<compile_context>
chip_gen: v5e
topology: v5e:2x2
jax: 0.10.0
libtpu: 0.0.40
codegen_flags: <defaults>
</compile_context>

<pallas_src>
import functools

import jax
import jax.numpy as jnp
from jax.experimental import pallas as pl
from jax.experimental.pallas import tpu as pltpu


D_OUT_PAD = 128  # lane-dense output width (real logits occupy the first 10)


def _silu(h):
    # SiLU with a single EUP push: sigmoid(h) = 0.5 * (tanh(0.5*h) + 1)
    return h * (0.5 * jnp.tanh(0.5 * h) + 0.5)


def mlp_kernel(x_ref, w1_ref, b1_ref, w2_ref, b2_ref, w3_ref, b3_ref, o_ref,
               *, fuse_softmax, valid_rows):
    # Layer 1: (tm, 2000) @ (2000, 1024) on the MXU, f32 accumulation.
    x = x_ref[...].astype(jnp.bfloat16)          # in-kernel cast (hidden under MXU)
    h = jnp.dot(x, w1_ref[...], preferred_element_type=jnp.float32)
    h = _silu(h + b1_ref[...])                   # (tm, 1024) + (1, 1024)
    # Layer 2: (tm, 1024) @ (1024, 1024), bf16 operands / f32 accumulate.
    h = jnp.dot(h.astype(jnp.bfloat16), w2_ref[...],
                preferred_element_type=jnp.float32)
    h = _silu(h + b2_ref[...])
    # Layer 3: (tm, 1024) @ (1024, 128)  (columns >= 10 are zero-padded).
    h = jnp.dot(h.astype(jnp.bfloat16), w3_ref[...],
                preferred_element_type=jnp.float32)
    h = _silu(h + b3_ref[...])                   # (tm, 128) f32 logits

    if fuse_softmax:
        # Softmax over dim 0 (batch), done in-kernel: whole batch is resident
        # in this single grid step.  Padded batch rows (if any) are masked out.
        if valid_rows < o_ref.shape[0]:
            rows = jax.lax.broadcasted_iota(jnp.int32, h.shape, 0)
            h = jnp.where(rows < valid_rows, h, -1e30)
        m = jnp.max(h, axis=0, keepdims=True)
        e = jnp.exp(h - m)
        h = e / jnp.sum(e, axis=0, keepdims=True)

    o_ref[...] = h


def softmax0_kernel(x_ref, o_ref):
    # Fallback (multi-tile batch) softmax over dim 0 on the sliced (B, 10)
    # logits.  TODO(synk): for very large B, tile this (two-pass max/sum) or
    # transpose to (10, B) so the reduction runs over the lane axis.
    x = x_ref[...]
    m = jnp.max(x, axis=0, keepdims=True)
    e = jnp.exp(x - m)
    o_ref[...] = e / jnp.sum(e, axis=0, keepdims=True)


def _round_up(n, m):
    return ((n + m - 1) // m) * m


def _pick_tiling(batch):
    """Return (tm, padded_batch). tm always a multiple of 8, never tiny."""
    b8 = _round_up(batch, 8)
    if b8 <= 256:
        # Small batch: one grid step; do NOT split across cores (splitting
        # duplicates ~6 MiB of resident weights per TC for zero benefit).
        return b8, b8
    # Large batch: keep the MXU M dimension >= 256 rows per step.
    tm = 512 if b8 >= 1024 else 256
    return tm, _round_up(b8, tm)


def model_forward(x, params):
    """x: (B, 2000) float32.  params = (w1, b1, w2, b2, w3, b3) with W: (in, out)."""
    w1, b1, w2, b2, w3, b3 = params
    B, d_in = x.shape
    d_hid = w1.shape[1]
    d_out = w3.shape[1]

    tm, bp = _pick_tiling(B)
    n_steps = bp // tm
    fuse_softmax = (n_steps == 1)

    if bp != B:
        x = jnp.pad(x, ((0, bp - B), (0, 0)))

    # bf16 matmul operands (accumulation stays f32); pad the output dim of the
    # third layer to 128 lanes so the final store is lane-dense.
    w1_bf = w1.astype(jnp.bfloat16)
    w2_bf = w2.astype(jnp.bfloat16)
    w3_bf = jnp.pad(w3, ((0, 0), (0, D_OUT_PAD - d_out))).astype(jnp.bfloat16)
    b1_f = b1.astype(jnp.float32)
    b2_f = b2.astype(jnp.float32)
    b3_f = jnp.pad(b3.astype(jnp.float32), ((0, 0), (0, D_OUT_PAD - d_out)))

    kernel = functools.partial(
        mlp_kernel,
        fuse_softmax=fuse_softmax,
        valid_rows=B if fuse_softmax else tm,
    )

    out = pl.pallas_call(
        kernel,
        out_shape=jax.ShapeDtypeStruct((bp, D_OUT_PAD), jnp.float32),
        grid_spec=pltpu.PrefetchScalarGridSpec(
            num_scalar_prefetch=0,
            grid=(n_steps,),
            in_specs=[
                pl.BlockSpec((tm, d_in), lambda i: (i, 0)),          # x (f32, cast in kernel)
                pl.BlockSpec((d_in, d_hid), lambda i: (0, 0)),        # W1 (resident)
                pl.BlockSpec((1, d_hid), lambda i: (0, 0)),           # b1
                pl.BlockSpec((d_hid, d_hid), lambda i: (0, 0)),       # W2 (resident)
                pl.BlockSpec((1, d_hid), lambda i: (0, 0)),           # b2
                pl.BlockSpec((d_hid, D_OUT_PAD), lambda i: (0, 0)),   # W3 (resident, padded)
                pl.BlockSpec((1, D_OUT_PAD), lambda i: (0, 0)),       # b3 (padded)
            ],
            out_specs=pl.BlockSpec((tm, D_OUT_PAD), lambda i: (i, 0)),
        ),
        compiler_params=pltpu.CompilerParams(
            dimension_semantics=("parallel",),
            vmem_limit_bytes=32 << 20,
        ),
    )(x, w1_bf, b1_f, w2_bf, b2_f, w3_bf, b3_f)

    result = out[:B, :d_out]
    if fuse_softmax:
        # TODO(synk): KAN([10, 2], grid=10) is a third-party (efficient-KAN)
        # module with no definition in the spec; it is skipped, so the dim-0
        # softmax is applied to the 10-dim MLP output instead.
        return result

    # Multi-tile batch: softmax over dim 0 needs all rows -> second (tiny) kernel.
    return pl.pallas_call(
        softmax0_kernel,
        out_shape=jax.ShapeDtypeStruct((B, d_out), jnp.float32),
    )(result)


# ----------------------------- references -----------------------------------

def _quant(a):
    # Mirror the kernel's bf16 operand quantization (products exact in f32).
    return a.astype(jnp.bfloat16).astype(jnp.float32)


def reference_forward_quantized(x, w1, b1, w2, b2, w3, b3):
    prec = jax.lax.Precision.HIGHEST
    h = jnp.dot(_quant(x), _quant(w1), precision=prec) + b1
    h = h * jax.nn.sigmoid(h)
    h = jnp.dot(_quant(h), _quant(w2), precision=prec) + b2
    h = h * jax.nn.sigmoid(h)
    h = jnp.dot(_quant(h), _quant(w3), precision=prec) + b3
    h = h * jax.nn.sigmoid(h)
    return jax.nn.softmax(h, axis=0)


def reference_forward_f32(x, w1, b1, w2, b2, w3, b3):
    prec = jax.lax.Precision.HIGHEST
    h = jnp.dot(x, w1, precision=prec) + b1
    h = h * jax.nn.sigmoid(h)
    h = jnp.dot(h, w2, precision=prec) + b2
    h = h * jax.nn.sigmoid(h)
    h = jnp.dot(h, w3, precision=prec) + b3
    h = h * jax.nn.sigmoid(h)
    return jax.nn.softmax(h, axis=0)


if __name__ == "__main__":
    key = jax.random.PRNGKey(0)
    k_x, k_w1, k_b1, k_w2, k_b2, k_w3, k_b3 = jax.random.split(key, 7)

    B, D_in, D_hid, D_out = 16, 2000, 1024, 10

    x = jax.random.normal(k_x, (B, D_in), dtype=jnp.float32)
    # Deterministic synthetic parameters (not a checkpoint load).
    w1 = jax.random.normal(k_w1, (D_in, D_hid), jnp.float32) * (1.0 / jnp.sqrt(D_in))
    b1 = jax.random.normal(k_b1, (1, D_hid), jnp.float32) * 0.01
    w2 = jax.random.normal(k_w2, (D_hid, D_hid), jnp.float32) * (1.0 / jnp.sqrt(D_hid))
    b2 = jax.random.normal(k_b2, (1, D_hid), jnp.float32) * 0.01
    w3 = jax.random.normal(k_w3, (D_hid, D_out), jnp.float32) * (1.0 / jnp.sqrt(D_hid))
    b3 = jax.random.normal(k_b3, (1, D_out), jnp.float32) * 0.01

    params = (w1, b1, w2, b2, w3, b3)

    out = model_forward(x, params)          # B=16 -> single grid step, fused softmax
    out = jax.block_until_ready(out)

    ref_q = reference_forward_quantized(x, *params)
    ref_f = reference_forward_f32(x, *params)

    assert out.shape == (B, D_out)
    assert jnp.allclose(out, ref_q, atol=2e-3, rtol=2e-3), "mismatch vs bf16-quantized reference"
    assert jnp.allclose(out, ref_f, atol=2e-2, rtol=2e-2), "mismatch vs f32 reference"

    print("KERNEL_OK")
</pallas_src>

<mosaic_0001>
module attributes {stable_mosaic.version = 11 : i64} {
  func.func @mlp_kernel(%arg0: i32, %arg1: memref<16x2000xf32, #tpu.memory_space<vmem>>, %arg2: memref<2000x1024xbf16, #tpu.memory_space<vmem>>, %arg3: memref<1x1024xf32, #tpu.memory_space<vmem>>, %arg4: memref<1024x1024xbf16, #tpu.memory_space<vmem>>, %arg5: memref<1x1024xf32, #tpu.memory_space<vmem>>, %arg6: memref<1024x128xbf16, #tpu.memory_space<vmem>>, %arg7: memref<1x128xf32, #tpu.memory_space<vmem>>, %arg8: memref<16x128xf32, #tpu.memory_space<vmem>>) attributes {dimension_semantics = [#tpu.dimension_semantics<parallel>], iteration_bounds = array<i64: 1>, scalar_prefetch = 0 : i64, scratch_operands = 0 : i64, tpu.core_type = #tpu.core_type<tc>, window_params = [{transform_indices = @transform_0, window_bounds = array<i64: 16, 2000>}, {pipeline_mode = #tpu.pipeline_mode<synchronous>, transform_indices = @transform_1, window_bounds = array<i64: 2000, 1024>}, {pipeline_mode = #tpu.pipeline_mode<synchronous>, transform_indices = @transform_2, window_bounds = array<i64: 1, 1024>}, {pipeline_mode = #tpu.pipeline_mode<synchronous>, transform_indices = @transform_3, window_bounds = array<i64: 1024, 1024>}, {pipeline_mode = #tpu.pipeline_mode<synchronous>, transform_indices = @transform_4, window_bounds = array<i64: 1, 1024>}, {pipeline_mode = #tpu.pipeline_mode<synchronous>, transform_indices = @transform_5, window_bounds = array<i64: 1024, 128>}, {pipeline_mode = #tpu.pipeline_mode<synchronous>, transform_indices = @transform_6, window_bounds = array<i64: 1, 128>}, {transform_indices = @transform_7, window_bounds = array<i64: 16, 128>}]} {
    %c0 = arith.constant 0 : index
    %c0_0 = arith.constant 0 : index
    %0 = vector.load %arg1[%c0, %c0_0] : memref<16x2000xf32, #tpu.memory_space<vmem>>, vector<16x2000xf32>
    %1 = arith.truncf %0 : vector<16x2000xf32> to vector<16x2000xbf16>
    %c0_1 = arith.constant 0 : index
    %c0_2 = arith.constant 0 : index
    %2 = vector.load %arg2[%c0_1, %c0_2] : memref<2000x1024xbf16, #tpu.memory_space<vmem>>, vector<2000x1024xbf16>
    %cst = arith.constant dense<0.000000e+00> : vector<16x1024xf32>
    %3 = tpu.matmul %1, %2, %cst {dimension_numbers = #tpu.dot_dimension_numbers<[1], [0], [0], [1], [0, 0, 1, 1], [], []>} : vector<16x2000xbf16>, vector<2000x1024xbf16>, vector<16x1024xf32> -> vector<16x1024xf32>
    %c0_3 = arith.constant 0 : index
    %c0_4 = arith.constant 0 : index
    %4 = vector.load %arg3[%c0_3, %c0_4] : memref<1x1024xf32, #tpu.memory_space<vmem>>, vector<1x1024xf32>
    %5 = vector.broadcast %4 : vector<1x1024xf32> to vector<16x1024xf32>
    %6 = arith.addf %3, %5 : vector<16x1024xf32>
    %cst_5 = arith.constant 5.000000e-01 : f32
    %7 = vector.broadcast %cst_5 : f32 to vector<16x1024xf32>
    %8 = arith.mulf %7, %6 : vector<16x1024xf32>
    %9 = math.tanh %8 : vector<16x1024xf32>
    %cst_6 = arith.constant 5.000000e-01 : f32
    %10 = vector.broadcast %cst_6 : f32 to vector<16x1024xf32>
    %11 = arith.mulf %10, %9 : vector<16x1024xf32>
    %cst_7 = arith.constant 5.000000e-01 : f32
    %12 = vector.broadcast %cst_7 : f32 to vector<16x1024xf32>
    %13 = arith.addf %11, %12 : vector<16x1024xf32>
    %14 = arith.mulf %6, %13 : vector<16x1024xf32>
    %15 = arith.truncf %14 : vector<16x1024xf32> to vector<16x1024xbf16>
    %c0_8 = arith.constant 0 : index
    %c0_9 = arith.constant 0 : index
    %16 = vector.load %arg4[%c0_8, %c0_9] : memref<1024x1024xbf16, #tpu.memory_space<vmem>>, vector<1024x1024xbf16>
    %cst_10 = arith.constant dense<0.000000e+00> : vector<16x1024xf32>
    %17 = tpu.matmul %15, %16, %cst_10 {dimension_numbers = #tpu.dot_dimension_numbers<[1], [0], [0], [1], [0, 0, 1, 1], [], []>} : vector<16x1024xbf16>, vector<1024x1024xbf16>, vector<16x1024xf32> -> vector<16x1024xf32>
    %c0_11 = arith.constant 0 : index
    %c0_12 = arith.constant 0 : index
    %18 = vector.load %arg5[%c0_11, %c0_12] : memref<1x1024xf32, #tpu.memory_space<vmem>>, vector<1x1024xf32>
    %19 = vector.broadcast %18 : vector<1x1024xf32> to vector<16x1024xf32>
    %20 = arith.addf %17, %19 : vector<16x1024xf32>
    %cst_13 = arith.constant 5.000000e-01 : f32
    %21 = vector.broadcast %cst_13 : f32 to vector<16x1024xf32>
    %22 = arith.mulf %21, %20 : vector<16x1024xf32>
    %23 = math.tanh %22 : vector<16x1024xf32>
    %cst_14 = arith.constant 5.000000e-01 : f32
    %24 = vector.broadcast %cst_14 : f32 to vector<16x1024xf32>
    %25 = arith.mulf %24, %23 : vector<16x1024xf32>
    %cst_15 = arith.constant 5.000000e-01 : f32
    %26 = vector.broadcast %cst_15 : f32 to vector<16x1024xf32>
    %27 = arith.addf %25, %26 : vector<16x1024xf32>
    %28 = arith.mulf %20, %27 : vector<16x1024xf32>
    %29 = arith.truncf %28 : vector<16x1024xf32> to vector<16x1024xbf16>
    %c0_16 = arith.constant 0 : index
    %c0_17 = arith.constant 0 : index
    %30 = vector.load %arg6[%c0_16, %c0_17] : memref<1024x128xbf16, #tpu.memory_space<vmem>>, vector<1024x128xbf16>
    %cst_18 = arith.constant dense<0.000000e+00> : vector<16x128xf32>
    %31 = tpu.matmul %29, %30, %cst_18 {dimension_numbers = #tpu.dot_dimension_numbers<[1], [0], [0], [1], [0, 0, 1, 1], [], []>} : vector<16x1024xbf16>, vector<1024x128xbf16>, vector<16x128xf32> -> vector<16x128xf32>
    %c0_19 = arith.constant 0 : index
    %c0_20 = arith.constant 0 : index
    %32 = vector.load %arg7[%c0_19, %c0_20] : memref<1x128xf32, #tpu.memory_space<vmem>>, vector<1x128xf32>
    %33 = vector.broadcast %32 : vector<1x128xf32> to vector<16x128xf32>
    %34 = arith.addf %31, %33 : vector<16x128xf32>
    %cst_21 = arith.constant 5.000000e-01 : f32
    %35 = vector.broadcast %cst_21 : f32 to vector<16x128xf32>
    %36 = arith.mulf %35, %34 : vector<16x128xf32>
    %37 = math.tanh %36 : vector<16x128xf32>
    %cst_22 = arith.constant 5.000000e-01 : f32
    %38 = vector.broadcast %cst_22 : f32 to vector<16x128xf32>
    %39 = arith.mulf %38, %37 : vector<16x128xf32>
    %cst_23 = arith.constant 5.000000e-01 : f32
    %40 = vector.broadcast %cst_23 : f32 to vector<16x128xf32>
    %41 = arith.addf %39, %40 : vector<16x128xf32>
    %42 = arith.mulf %34, %41 : vector<16x128xf32>
    %cst_24 = arith.constant dense<0xFF800000> : vector<128xf32>
    %43 = vector.multi_reduction <maximumf>, %42, %cst_24 [0] : vector<16x128xf32> to vector<128xf32>
    %44 = vector.shape_cast %43 : vector<128xf32> to vector<1x128xf32>
    %45 = vector.broadcast %44 : vector<1x128xf32> to vector<16x128xf32>
    %46 = arith.subf %42, %45 : vector<16x128xf32>
    %47 = math.exp %46 : vector<16x128xf32>
    %cst_25 = arith.constant dense<0.000000e+00> : vector<128xf32>
    %48 = vector.multi_reduction <add>, %47, %cst_25 [0] : vector<16x128xf32> to vector<128xf32>
    %49 = vector.shape_cast %48 : vector<128xf32> to vector<1x128xf32>
    %50 = vector.broadcast %49 : vector<1x128xf32> to vector<16x128xf32>
    %51 = arith.divf %47, %50 : vector<16x128xf32>
    %c0_26 = arith.constant 0 : index
    %c0_27 = arith.constant 0 : index
    %52 = vector.load %arg8[%c0_26, %c0_27] : memref<16x128xf32, #tpu.memory_space<vmem>>, vector<16x128xf32>
    tpu.vector_store %arg8[%c0_26, %c0_27], %51 {strides = array<i32>} : memref<16x128xf32, #tpu.memory_space<vmem>>, vector<16x128xf32>,
    return
  }
  func.func @transform_0(%arg0: i32) -> (i32, i32) {
    %c0_i32 = arith.constant 0 : i32
    %c0_i32_0 = arith.constant 0 : i32
    return %arg0, %c0_i32 : i32, i32
  }
  func.func @transform_1(%arg0: i32) -> (i32, i32) {
    %c0_i32 = arith.constant 0 : i32
    %c0_i32_0 = arith.constant 0 : i32
    %c0_i32_1 = arith.constant 0 : i32
    return %c0_i32, %c0_i32_0 : i32, i32
  }
  func.func @transform_2(%arg0: i32) -> (i32, i32) {
    %c0_i32 = arith.constant 0 : i32
    %c0_i32_0 = arith.constant 0 : i32
    %c0_i32_1 = arith.constant 0 : i32
    return %c0_i32, %c0_i32_0 : i32, i32
  }
  func.func @transform_3(%arg0: i32) -> (i32, i32) {
    %c0_i32 = arith.constant 0 : i32
    %c0_i32_0 = arith.constant 0 : i32
    %c0_i32_1 = arith.constant 0 : i32
    return %c0_i32, %c0_i32_0 : i32, i32
  }
  func.func @transform_4(%arg0: i32) -> (i32, i32) {
    %c0_i32 = arith.constant 0 : i32
    %c0_i32_0 = arith.constant 0 : i32
    %c0_i32_1 = arith.constant 0 : i32
    return %c0_i32, %c0_i32_0 : i32, i32
  }
  func.func @transform_5(%arg0: i32) -> (i32, i32) {
    %c0_i32 = arith.constant 0 : i32
    %c0_i32_0 = arith.constant 0 : i32
    %c0_i32_1 = arith.constant 0 : i32
    return %c0_i32, %c0_i32_0 : i32, i32
  }
  func.func @transform_6(%arg0: i32) -> (i32, i32) {
    %c0_i32 = arith.constant 0 : i32
    %c0_i32_0 = arith.constant 0 : i32
    %c0_i32_1 = arith.constant 0 : i32
    return %c0_i32, %c0_i32_0 : i32, i32
  }
  func.func @transform_7(%arg0: i32) -> (i32, i32) {
    %c0_i32 = arith.constant 0 : i32
    %c0_i32_0 = arith.constant 0 : i32
    return %arg0, %c0_i32 : i32, i32
  }
}

</mosaic_0001>

<llo_original>
// kernel: tpu_custom_call.1
$region0: #{tpu_custom_call.1}
  #allocation0 [shape = 'u32[]', space=smem, size = 0x4, offset = 0x4, fixed_abs, tag = 'smem constant byte address 0x4 - core index']
  #allocation1 [shape = 'u32[72,128]{1,0:T(1,128)}', space=vmem, size = 0x9000, scoped, tag = 'internal scratch']
  %s0 = inlined_call_operand.hbm [shape: f32[16,2000], index: 0, kind: input, shape index: {}]
  %s1 = inlined_call_operand.hbm [shape: bf16[2000,1024], index: 1, kind: input, shape index: {}]
  %s2 = inlined_call_operand.hbm [shape: f32[1,1024], index: 2, kind: input, shape index: {}]
  %s3 = inlined_call_operand.hbm [shape: bf16[1024,1024], index: 3, kind: input, shape index: {}]
  %s4 = inlined_call_operand.hbm [shape: f32[1,1024], index: 4, kind: input, shape index: {}]
  %s5 = inlined_call_operand.hbm [shape: bf16[1024,128], index: 5, kind: input, shape index: {}]
  %s6 = inlined_call_operand.hbm [shape: f32[1,128], index: 6, kind: input, shape index: {}]
  %s7 = inlined_call_operand.hbm [shape: f32[16,128], index: 7, kind: output, shape index: {}]
  %s8 = sld [smem:[#allocation0]]
  $region66: #{tpu_custom_call.1} parent=0
    _
  %s10 = ssub.s32 1, %s8
  %s11 = scalar_select 0, %s10, %s8
  $region1: #{tpu_custom_call.1} parent=0
    #allocation2 [shape = 'u8[131072]{0}', space=vmem, size = 0x20000, scoped, tag = 'input window, operand 0, single buffered']
    #allocation3 [shape = 's32[1]{0}', space=sflag, size = 0x4, scoped, tag = 'scoped memory for tpu_custom_call.1']
    #allocation4 [shape = 's32[1]{0}', space=sflag, size = 0x4, scoped, tag = 'scoped memory for tpu_custom_call.1']
    #allocation5 [shape = 'u8[4096000]{0}', space=vmem, size = 0x3e8000, scoped, tag = 'input window, operand 1, single buffered']
    #allocation6 [shape = 's32[1]{0}', space=sflag, size = 0x4, scoped, tag = 'scoped memory for tpu_custom_call.1']
    #allocation7 [shape = 'u8[4096]{0}', space=vmem, size = 0x1000, scoped, tag = 'input window, operand 2, single buffered']
    #allocation8 [shape = 'u8[2097152]{0}', space=vmem, size = 0x200000, scoped, tag = 'input window, operand 3, single buffered']
    #allocation9 [shape = 's32[1]{0}', space=sflag, size = 0x4, scoped, tag = 'scoped memory for tpu_custom_call.1']
    #allocation10 [shape = 'u8[4096]{0}', space=vmem, size = 0x1000, scoped, tag = 'input window, operand 4, single buffered']
    #allocation11 [shape = 'u8[262144]{0}', space=vmem, size = 0x40000, scoped, tag = 'input window, operand 5, single buffered']
    #allocation12 [shape = 's32[1]{0}', space=sflag, size = 0x4, scoped, tag = 'scoped memory for tpu_custom_call.1']
    #allocation13 [shape = 'u8[512]{0}', space=vmem, size = 0x400, scoped, tag = 'input window, operand 6, single buffered']
    #allocation14 [shape = 'u8[8192]{0}', space=vmem, size = 0x2000, scoped, tag = 'output window, operand 0, single buffered']
    %12 = vsyncpa [#allocation3], 0
    %13 = vsyncpa [#allocation6], 0
    %14 = vsyncpa [#allocation9], 0
    %15 = vsyncpa [#allocation12], 0
    %16 = vsyncpa [#allocation4], 0
    // Predicated region
    $region2: #{tpu_custom_call.1} parent=1 // pred_check
      _
    $region3: #{tpu_custom_call.1} parent=1 // pred_check_branch
      %18 = sbr.rel (0) target = $region5
    $region4: #{tpu_custom_call.1} parent=1 // pred_region
      %20 = vsyncadd [#allocation3], 0
      %s21 = sshll.u32 %s0, 4
      %s22 = int_to_ptr.hbm [resolvable:$true] %s21
      %s23 = sshll.u32 [#allocation2], 4
      %s24 = int_to_ptr.vmem [resolvable:$true] %s23
      %29 = dma.hbm_to_vmem [thread:$0]  %s22, 4096, %s24, [#allocation3], 2048, 2048, 128
    $region5: #{tpu_custom_call.1} parent=1 // pred_fallthru
      _
    // Predicated region
    $region6: #{tpu_custom_call.1} parent=1 // pred_check
      _
    $region7: #{tpu_custom_call.1} parent=1 // pred_check_branch
      %31 = sbr.rel (0) target = $region9
    $region8: #{tpu_custom_call.1} parent=1 // pred_region
      %33 = vsyncadd [#allocation6], 0
      %s34 = sshll.u32 %s1, 4
      %s35 = int_to_ptr.hbm [resolvable:$true] %s34
      %s36 = sshll.u32 [#allocation5], 4
      %s37 = int_to_ptr.vmem [resolvable:$true] %s36
      %42 = dma.hbm_to_vmem [thread:$0]  %s35, 128000, %s37, [#allocation6], 512, 512, 32
    $region9: #{tpu_custom_call.1} parent=1 // pred_fallthru
      _
    // Predicated region
    $region10: #{tpu_custom_call.1} parent=1 // pred_check
      _
    $region11: #{tpu_custom_call.1} parent=1 // pred_check_branch
      %44 = sbr.rel (0) target = $region13
    $region12: #{tpu_custom_call.1} parent=1 // pred_region
      %46 = vsyncadd [#allocation6], 0
      %s48 = sshll.u32 %s2, 4
      %s49 = int_to_ptr.hbm [resolvable:$true] %s48
      %s50 = sshll.u32 [#allocation7], 4
      %s51 = int_to_ptr.vmem [resolvable:$true] %s50
      %53 = dma.hbm_to_vmem [thread:$0]  %s49, 128, %s51, [#allocation6]
    $region13: #{tpu_custom_call.1} parent=1 // pred_fallthru
      _
    // Predicated region
    $region14: #{tpu_custom_call.1} parent=1 // pred_check
      _
    $region15: #{tpu_custom_call.1} parent=1 // pred_check_branch
      %55 = sbr.rel (0) target = $region17
    $region16: #{tpu_custom_call.1} parent=1 // pred_region
      %57 = vsyncadd [#allocation9], 0
      %s58 = sshll.u32 %s3, 4
      %s59 = int_to_ptr.hbm [resolvable:$true] %s58
      %s60 = sshll.u32 [#allocation8], 4
      %s61 = int_to_ptr.vmem [resolvable:$true] %s60
      %66 = dma.hbm_to_vmem [thread:$0]  %s59, 65536, %s61, [#allocation9], 512, 512, 32
    $region17: #{tpu_custom_call.1} parent=1 // pred_fallthru
      _
    // Predicated region
    $region18: #{tpu_custom_call.1} parent=1 // pred_check
      _
    $region19: #{tpu_custom_call.1} parent=1 // pred_check_branch
      %68 = sbr.rel (0) target = $region21
    $region20: #{tpu_custom_call.1} parent=1 // pred_region
      %70 = vsyncadd [#allocation9], 0
      %s72 = sshll.u32 %s4, 4
      %s73 = int_to_ptr.hbm [resolvable:$true] %s72
      %s74 = sshll.u32 [#allocation10], 4
      %s75 = int_to_ptr.vmem [resolvable:$true] %s74
      %77 = dma.hbm_to_vmem [thread:$0]  %s73, 128, %s75, [#allocation9]
    $region21: #{tpu_custom_call.1} parent=1 // pred_fallthru
      _
    // Predicated region
    $region22: #{tpu_custom_call.1} parent=1 // pred_check
      _
    $region23: #{tpu_custom_call.1} parent=1 // pred_check_branch
      %79 = sbr.rel (0) target = $region25
    $region24: #{tpu_custom_call.1} parent=1 // pred_region
      %81 = vsyncadd [#allocation12], 0
      %s82 = sshll.u32 %s5, 4
      %s83 = int_to_ptr.hbm [resolvable:$true] %s82
      %s84 = sshll.u32 [#allocation11], 4
      %s85 = int_to_ptr.vmem [resolvable:$true] %s84
      %90 = dma.hbm_to_vmem [thread:$0]  %s83, 8192, %s85, [#allocation12], 64, 64, 4
    $region25: #{tpu_custom_call.1} parent=1 // pred_fallthru
      _
    // Predicated region
    $region26: #{tpu_custom_call.1} parent=1 // pred_check
      _
    $region27: #{tpu_custom_call.1} parent=1 // pred_check_branch
      %92 = sbr.rel (0) target = $region29
    $region28: #{tpu_custom_call.1} parent=1 // pred_region
      %94 = vsyncadd [#allocation12], 0
      %s96 = sshll.u32 %s6, 4
      %s97 = int_to_ptr.hbm [resolvable:$true] %s96
      %s98 = sshll.u32 [#allocation13], 4
      %s99 = int_to_ptr.vmem [resolvable:$true] %s98
      %101 = dma.hbm_to_vmem [thread:$0]  %s97, 16, %s99, [#allocation12]
    $region29: #{tpu_custom_call.1} parent=1 // pred_fallthru
      _
    // Predicated region
    $region30: #{tpu_custom_call.1} parent=1 // pred_check
      _
    $region31: #{tpu_custom_call.1} parent=1 // pred_check_branch
      %103 = sbr.rel (0) target = $region33
    $region32: #{tpu_custom_call.1} parent=1 // pred_region
      %105 = dma.done [#allocation3], 4096
    $region33: #{tpu_custom_call.1} parent=1 // pred_fallthru
      _
    // Predicated region
    $region34: #{tpu_custom_call.1} parent=1 // pred_check
      _
    $region35: #{tpu_custom_call.1} parent=1 // pred_check_branch
      %107 = sbr.rel (0) target = $region37
    $region36: #{tpu_custom_call.1} parent=1 // pred_region
      %109 = dma.done [#allocation6], 128000
    $region37: #{tpu_custom_call.1} parent=1 // pred_fallthru
      _
    // Predicated region
    $region38: #{tpu_custom_call.1} parent=1 // pred_check
      _
    $region39: #{tpu_custom_call.1} parent=1 // pred_check_branch
      %111 = sbr.rel (0) target = $region41
    $region40: #{tpu_custom_call.1} parent=1 // pred_region
      %113 = dma.done [#allocation6], 128
    $region41: #{tpu_custom_call.1} parent=1 // pred_fallthru
      _
    // Predicated region
    $region42: #{tpu_custom_call.1} parent=1 // pred_check
      _
    $region43: #{tpu_custom_call.1} parent=1 // pred_check_branch
      %115 = sbr.rel (0) target = $region45
    $region44: #{tpu_custom_call.1} parent=1 // pred_region
      %117 = dma.done [#allocation9], 65536
    $region45: #{tpu_custom_call.1} parent=1 // pred_fallthru
      _
    // Predicated region
    $region46: #{tpu_custom_call.1} parent=1 // pred_check
      _
    $region47: #{tpu_custom_call.1} parent=1 // pred_check_branch
      %119 = sbr.rel (0) target = $region49
    $region48: #{tpu_custom_call.1} parent=1 // pred_region
      %121 = dma.done [#allocation9], 128
    $region49: #{tpu_custom_call.1} parent=1 // pred_fallthru
      _
    // Predicated region
    $region50: #{tpu_custom_call.1} parent=1 // pred_check
      _
    $region51: #{tpu_custom_call.1} parent=1 // pred_check_branch
      %123 = sbr.rel (0) target = $region53
    $region52: #{tpu_custom_call.1} parent=1 // pred_region
      %125 = dma.done [#allocation12], 8192
    $region53: #{tpu_custom_call.1} parent=1 // pred_fallthru
      _
    // Predicated region
    $region54: #{tpu_custom_call.1} parent=1 // pred_check
      _
    $region55: #{tpu_custom_call.1} parent=1 // pred_check_branch
      %127 = sbr.rel (0) target = $region57
    $region56: #{tpu_custom_call.1} parent=1 // pred_region
      %129 = dma.done [#allocation12], 16
    $region57: #{tpu_custom_call.1} parent=1 // pred_fallthru
      _
    %v131 = vld [vmem:[#allocation2] sm:$0xff]
    %v132 = vld [vmem:[#allocation2 + $0x8] sm:$0xff]
    %v133 = vld [vmem:[#allocation2 + $0x10] sm:$0xff]
    %v134 = vld [vmem:[#allocation2 + $0x18] sm:$0xff]
    %v135 = vld [vmem:[#allocation2 + $0x20] sm:$0xff]
    %v136 = vld [vmem:[#allocation2 + $0x28] sm:$0xff]
    %v137 = vld [vmem:[#allocation2 + $0x30] sm:$0xff]
    %v138 = vld [vmem:[#allocation2 + $0x38] sm:$0xff]
    %v139 = vld [vmem:[#allocation2 + $0x40] sm:$0xff]
    %v140 = vld [vmem:[#allocation2 + $0x48] sm:$0xff]
    %v141 = vld [vmem:[#allocation2 + $0x50] sm:$0xff]
    %v142 = vld [vmem:[#allocation2 + $0x58] sm:$0xff]
    %v143 = vld [vmem:[#allocation2 + $0x60] sm:$0xff]
    %v144 = vld [vmem:[#allocation2 + $0x68] sm:$0xff]
    %v145 = vld [vmem:[#allocation2 + $0x70] sm:$0xff]
    %v146 = vld [vmem:[#allocation2 + $0x78] sm:$0xff]
    %v147 = vld [vmem:[#allocation2 + $0x80] sm:$0xff]
    %v148 = vld [vmem:[#allocation2 + $0x88] sm:$0xff]
    %v149 = vld [vmem:[#allocation2 + $0x90] sm:$0xff]
    %v150 = vld [vmem:[#allocation2 + $0x98] sm:$0xff]
    %v151 = vld [vmem:[#allocation2 + $0xa0] sm:$0xff]
    %v152 = vld [vmem:[#allocation2 + $0xa8] sm:$0xff]
    %v153 = vld [vmem:[#allocation2 + $0xb0] sm:$0xff]
    %v154 = vld [vmem:[#allocation2 + $0xb8] sm:$0xff]
    %v155 = vld [vmem:[#allocation2 + $0xc0] sm:$0xff]
    %v156 = vld [vmem:[#allocation2 + $0xc8] sm:$0xff]
    %v157 = vld [vmem:[#allocation2 + $0xd0] sm:$0xff]
    %v158 = vld [vmem:[#allocation2 + $0xd8] sm:$0xff]
    %v159 = vld [vmem:[#allocation2 + $0xe0] sm:$0xff]
    %v160 = vld [vmem:[#allocation2 + $0xe8] sm:$0xff]
    %v161 = vld [vmem:[#allocation2 + $0xf0] sm:$0xff]
    %v162 = vld [vmem:[#allocation2 + $0xf8] sm:$0xff]
    %v163 = vpack.c.bf16 %v147, %v131
    %v164 = vpack.c.bf16 %v148, %v132
    %v165 = vpack.c.bf16 %v149, %v133
    %v166 = vpack.c.bf16 %v150, %v134
    %v167 = vpack.c.bf16 %v151, %v135
    %v168 = vpack.c.bf16 %v152, %v136
    %v169 = vpack.c.bf16 %v153, %v137
    %v170 = vpack.c.bf16 %v154, %v138
    %v171 = vpack.c.bf16 %v155, %v139
    %v172 = vpack.c.bf16 %v156, %v140
    %v173 = vpack.c.bf16 %v157, %v141
    %v174 = vpack.c.bf16 %v158, %v142
    %v175 = vpack.c.bf16 %v159, %v143
    %v176 = vpack.c.bf16 %v160, %v144
    %v177 = vpack.c.bf16 %v161, %v145
    %v178 = vpack.c.bf16 %v162, %v146
    %v179 = vld [vmem:[#allocation5] sm:$0xff]
    %v180 = vld [vmem:[#allocation5 + $0x8] sm:$0xff]
    %v181 = vld [vmem:[#allocation5 + $0x10] sm:$0xff]
    %v182 = vld [vmem:[#allocation5 + $0x18] sm:$0xff]
    %v183 = vld [vmem:[#allocation5 + $0x20] sm:$0xff]
    %v184 = vld [vmem:[#allocation5 + $0x28] sm:$0xff]
    %v185 = vld [vmem:[#allocation5 + $0x30] sm:$0xff]
    %v186 = vld [vmem:[#allocation5 + $0x38] sm:$0xff]
    %v187 = vld [vmem:[#allocation5 + $0x40] sm:$0xff]
    %v188 = vld [vmem:[#allocation5 + $0x48] sm:$0xff]
    %v189 = vld [vmem:[#allocation5 + $0x50] sm:$0xff]
    %v190 = vld [vmem:[#allocation5 + $0x58] sm:$0xff]
    %v191 = vld [vmem:[#allocation5 + $0x60] sm:$0xff]
    %v192 = vld [vmem:[#allocation5 + $0x68] sm:$0xff]
    %v193 = vld [vmem:[#allocation5 + $0x70] sm:$0xff]
    %v194 = vld [vmem:[#allocation5 + $0x78] sm:$0xff]
    %v195 = vld [vmem:[#allocation5 + $0x80] sm:$0xff]
    %v196 = vld [vmem:[#allocation5 + $0x88] sm:$0xff]
    %v197 = vld [vmem:[#allocation5 + $0x90] sm:$0xff]
    %v198 = vld [vmem:[#allocation5 + $0x98] sm:$0xff]
    %v199 = vld [vmem:[#allocation5 + $0xa0] sm:$0xff]
    %v200 = vld [vmem:[#allocation5 + $0xa8] sm:$0xff]
    %v201 = vld [vmem:[#allocation5 + $0xb0] sm:$0xff]
    %v202 = vld [vmem:[#allocation5 + $0xb8] sm:$0xff]
    %v203 = vld [vmem:[#allocation5 + $0xc0] sm:$0xff]
    %v204 = vld [vmem:[#allocation5 + $0xc8] sm:$0xff]
    %v205 = vld [vmem:[#allocation5 + $0xd0] sm:$0xff]
    %v206 = vld [vmem:[#allocation5 + $0xd8] sm:$0xff]
    %v207 = vld [vmem:[#allocation5 + $0xe0] sm:$0xff]
    %v208 = vld [vmem:[#allocation5 + $0xe8] sm:$0xff]
    %v209 = vld [vmem:[#allocation5 + $0xf0] sm:$0xff]
    %v210 = vld [vmem:[#allocation5 + $0xf8] sm:$0xff]
    %v211 = vld [vmem:[#allocation5 + $0x100] sm:$0xff]
    %v212 = vld [vmem:[#allocation5 + $0x108] sm:$0xff]
    %v213 = vld [vmem:[#allocation5 + $0x110] sm:$0xff]
    %v214 = vld [vmem:[#allocation5 + $0x118] sm:$0xff]
    %v215 = vld [vmem:[#allocation5 + $0x120] sm:$0xff]
    %v216 = vld [vmem:[#allocation5 + $0x128] sm:$0xff]
    %v217 = vld [vmem:[#allocation5 + $0x130] sm:$0xff]
    %v218 = vld [vmem:[#allocation5 + $0x138] sm:$0xff]
    %v219 = vld [vmem:[#allocation5 + $0x140] sm:$0xff]
    %v220 = vld [vmem:[#allocation5 + $0x148] sm:$0xff]
    %v221 = vld [vmem:[#allocation5 + $0x150] sm:$0xff]
    %v222 = vld [vmem:[#allocation5 + $0x158] sm:$0xff]
    %v223 = vld [vmem:[#allocation5 + $0x160] sm:$0xff]
    %v224 = vld [vmem:[#allocation5 + $0x168] sm:$0xff]
    %v225 = vld [vmem:[#allocation5 + $0x170] sm:$0xff]
    %v226 = vld [vmem:[#allocation5 + $0x178] sm:$0xff]
    %v227 = vld [vmem:[#allocation5 + $0x180] sm:$0xff]
    %v228 = vld [vmem:[#allocation5 + $0x188] sm:$0xff]
    %v229 = vld [vmem:[#allocation5 + $0x190] sm:$0xff]
    %v230 = vld [vmem:[#allocation5 + $0x198] sm:$0xff]
    %v231 = vld [vmem:[#allocation5 + $0x1a0] sm:$0xff]
    %v232 = vld [vmem:[#allocation5 + $0x1a8] sm:$0xff]
    %v233 = vld [vmem:[#allocation5 + $0x1b0] sm:$0xff]
    %v234 = vld [vmem:[#allocation5 + $0x1b8] sm:$0xff]
    %v235 = vld [vmem:[#allocation5 + $0x1c0] sm:$0xff]
    %v236 = vld [vmem:[#allocation5 + $0x1c8] sm:$0xff]
    %v237 = vld [vmem:[#allocation5 + $0x1d0] sm:$0xff]
    %v238 = vld [vmem:[#allocation5 + $0x1d8] sm:$0xff]
    %v239 = vld [vmem:[#allocation5 + $0x1e0] sm:$0xff]
    %v240 = vld [vmem:[#allocation5 + $0x1e8] sm:$0xff]
    %v241 = vld [vmem:[#allocation5 + $0x1f0] sm:$0xff]
    %v242 = vld [vmem:[#allocation5 + $0x1f8] sm:$0xff]
    %v243 = vld [vmem:[#allocation5 + $0x200] sm:$0xff]
    %v244 = vld [vmem:[#allocation5 + $0x208] sm:$0xff]
    %v245 = vld [vmem:[#allocation5 + $0x210] sm:$0xff]
    %v246 = vld [vmem:[#allocation5 + $0x218] sm:$0xff]
    %v247 = vld [vmem:[#allocation5 + $0x220] sm:$0xff]
    %v248 = vld [vmem:[#allocation5 + $0x228] sm:$0xff]
    %v249 = vld [vmem:[#allocation5 + $0x230] sm:$0xff]
    %v250 = vld [vmem:[#allocation5 + $0x238] sm:$0xff]
    %v251 = vld [vmem:[#allocation5 + $0x240] sm:$0xff]
    %v252 = vld [vmem:[#allocation5 + $0x248] sm:$0xff]
    %v253 = vld [vmem:[#allocation5 + $0x250] sm:$0xff]
    %v254 = vld [vmem:[#allocation5 + $0x258] sm:$0xff]
    %v255 = vld [vmem:[#allocation5 + $0x260] sm:$0xff]
    %v256 = vld [vmem:[#allocation5 + $0x268] sm:$0xff]
    %v257 = vld [vmem:[#allocation5 + $0x270] sm:$0xff]
    %v258 = vld [vmem:[#allocation5 + $0x278] sm:$0xff]
    %v259 = vld [vmem:[#allocation5 + $0x280] sm:$0xff]
    %v260 = vld [vmem:[#allocation5 + $0x288] sm:$0xff]
    %v261 = vld [vmem:[#allocation5 + $0x290] sm:$0xff]
    %v262 = vld [vmem:[#allocation5 + $0x298] sm:$0xff]
    %v263 = vld [vmem:[#allocation5 + $0x2a0] sm:$0xff]
    %v264 = vld [vmem:[#allocation5 + $0x2a8] sm:$0xff]
    %v265 = vld [vmem:[#allocation5 + $0x2b0] sm:$0xff]
    %v266 = vld [vmem:[#allocation5 + $0x2b8] sm:$0xff]
    %v267 = vld [vmem:[#allocation5 + $0x2c0] sm:$0xff]
    %v268 = vld [vmem:[#allocation5 + $0x2c8] sm:$0xff]
    %v269 = vld [vmem:[#allocation5 + $0x2d0] sm:$0xff]
    %v270 = vld [vmem:[#allocation5 + $0x2d8] sm:$0xff]
    %v271 = vld [vmem:[#allocation5 + $0x2e0] sm:$0xff]
    %v272 = vld [vmem:[#allocation5 + $0x2e8] sm:$0xff]
    %v273 = vld [vmem:[#allocation5 + $0x2f0] sm:$0xff]
    %v274 = vld [vmem:[#allocation5 + $0x2f8] sm:$0xff]
    %v275 = vld [vmem:[#allocation5 + $0x300] sm:$0xff]
    %v276 = vld [vmem:[#allocation5 + $0x308] sm:$0xff]
    %v277 = vld [vmem:[#allocation5 + $0x310] sm:$0xff]
    %v278 = vld [vmem:[#allocation5 + $0x318] sm:$0xff]
    %v279 = vld [vmem:[#allocation5 + $0x320] sm:$0xff]
    %v280 = vld [vmem:[#allocation5 + $0x328] sm:$0xff]
    %v281 = vld [vmem:[#allocation5 + $0x330] sm:$0xff]
    %v282 = vld [vmem:[#allocation5 + $0x338] sm:$0xff]
    %v283 = vld [vmem:[#allocation5 + $0x340] sm:$0xff]
    %v284 = vld [vmem:[#allocation5 + $0x348] sm:$0xff]
    %v285 = vld [vmem:[#allocation5 + $0x350] sm:$0xff]
    %v286 = vld [vmem:[#allocation5 + $0x358] sm:$0xff]
    %v287 = vld [vmem:[#allocation5 + $0x360] sm:$0xff]
    %v288 = vld [vmem:[#allocation5 + $0x368] sm:$0xff]
    %v289 = vld [vmem:[#allocation5 + $0x370] sm:$0xff]
    %v290 = vld [vmem:[#allocation5 + $0x378] sm:$0xff]
    %v291 = vld [vmem:[#allocation5 + $0x380] sm:$0xff]
    %v292 = vld [vmem:[#allocation5 + $0x388] sm:$0xff]
    %v293 = vld [vmem:[#allocation5 + $0x390] sm:$0xff]
    %v294 = vld [vmem:[#allocation5 + $0x398] sm:$0xff]
    %v295 = vld [vmem:[#allocation5 + $0x3a0] sm:$0xff]
    %v296 = vld [vmem:[#allocation5 + $0x3a8] sm:$0xff]
    %v297 = vld [vmem:[#allocation5 + $0x3b0] sm:$0xff]
    %v298 = vld [vmem:[#allocation5 + $0x3b8] sm:$0xff]
    %v299 = vld [vmem:[#allocation5 + $0x3c0] sm:$0xff]
    %v300 = vld [vmem:[#allocation5 + $0x3c8] sm:$0xff]
    %v301 = vld [vmem:[#allocation5 + $0x3d0] sm:$0xff]
    %v302 = vld [vmem:[#allocation5 + $0x3d8] sm:$0xff]
    %v303 = vld [vmem:[#allocation5 + $0x3e0] sm:$0xff]
    %v304 = vld [vmem:[#allocation5 + $0x3e8] sm:$0xff]
    %v305 = vld [vmem:[#allocation5 + $0x3f0] sm:$0xff]
    %v306 = vld [vmem:[#allocation5 + $0x3f8] sm:$0xff]
    %v307 = vld [vmem:[#allocation5 + $0x400] sm:$0xff]
    %v308 = vld [vmem:[#allocation5 + $0x408] sm:$0xff]
    %v309 = vld [vmem:[#allocation5 + $0x410] sm:$0xff]
    %v310 = vld [vmem:[#allocation5 + $0x418] sm:$0xff]
    %v311 = vld [vmem:[#allocation5 + $0x420] sm:$0xff]
    %v312 = vld [vmem:[#allocation5 + $0x428] sm:$0xff]
    %v313 = vld [vmem:[#allocation5 + $0x430] sm:$0xff]
    %v314 = vld [vmem:[#allocation5 + $0x438] sm:$0xff]
    %v315 = vld [vmem:[#allocation5 + $0x440] sm:$0xff]
    %v316 = vld [vmem:[#allocation5 + $0x448] sm:$0xff]
    %v317 = vld [vmem:[#allocation5 + $0x450] sm:$0xff]
    %v318 = vld [vmem:[#allocation5 + $0x458] sm:$0xff]
    %v319 = vld [vmem:[#allocation5 + $0x460] sm:$0xff]
    %v320 = vld [vmem:[#allocation5 + $0x468] sm:$0xff]
    %v321 = vld [vmem:[#allocation5 + $0x470] sm:$0xff]
    %v322 = vld [vmem:[#allocation5 + $0x478] sm:$0xff]
    %v323 = vld [vmem:[#allocation5 + $0x480] sm:$0xff]
    %v324 = vld [vmem:[#allocation5 + $0x488] sm:$0xff]
    %v325 = vld [vmem:[#allocation5 + $0x490] sm:$0xff]
    %v326 = vld [vmem:[#allocation5 + $0x498] sm:$0xff]
    %v327 = vld [vmem:[#allocation5 + $0x4a0] sm:$0xff]
    %v328 = vld [vmem:[#allocation5 + $0x4a8] sm:$0xff]
    %v329 = vld [vmem:[#allocation5 + $0x4b0] sm:$0xff]
    %v330 = vld [vmem:[#allocation5 + $0x4b8] sm:$0xff]
    %v331 = vld [vmem:[#allocation5 + $0x4c0] sm:$0xff]
    %v332 = vld [vmem:[#allocation5 + $0x4c8] sm:$0xff]
    %v333 = vld [vmem:[#allocation5 + $0x4d0] sm:$0xff]
    %v334 = vld [vmem:[#allocation5 + $0x4d8] sm:$0xff]
    %v335 = vld [vmem:[#allocation5 + $0x4e0] sm:$0xff]
    %v336 = vld [vmem:[#allocation5 + $0x4e8] sm:$0xff]
    %v337 = vld [vmem:[#allocation5 + $0x4f0] sm:$0xff]
    %v338 = vld [vmem:[#allocation5 + $0x4f8] sm:$0xff]
    %v339 = vld [vmem:[#allocation5 + $0x500] sm:$0xff]
    %v340 = vld [vmem:[#allocation5 + $0x508] sm:$0xff]
    %v341 = vld [vmem:[#allocation5 + $0x510] sm:$0xff]
    %v342 = vld [vmem:[#allocation5 + $0x518] sm:$0xff]
    %v343 = vld [vmem:[#allocation5 + $0x520] sm:$0xff]
    %v344 = vld [vmem:[#allocation5 + $0x528] sm:$0xff]
    %v345 = vld [vmem:[#allocation5 + $0x530] sm:$0xff]
    %v346 = vld [vmem:[#allocation5 + $0x538] sm:$0xff]
    %v347 = vld [vmem:[#allocation5 + $0x540] sm:$0xff]
    %v348 = vld [vmem:[#allocation5 + $0x548] sm:$0xff]
    %v349 = vld [vmem:[#allocation5 + $0x550] sm:$0xff]
    %v350 = vld [vmem:[#allocation5 + $0x558] sm:$0xff]
    %v351 = vld [vmem:[#allocation5 + $0x560] sm:$0xff]
    %v352 = vld [vmem:[#allocation5 + $0x568] sm:$0xff]
    %v353 = vld [vmem:[#allocation5 + $0x570] sm:$0xff]
    %v354 = vld [vmem:[#allocation5 + $0x578] sm:$0xff]
    %v355 = vld [vmem:[#allocation5 + $0x580] sm:$0xff]
    %v356 = vld [vmem:[#allocation5 + $0x588] sm:$0xff]
    %v357 = vld [vmem:[#allocation5 + $0x590] sm:$0xff]
    %v358 = vld [vmem:[#allocation5 + $0x598] sm:$0xff]
    %v359 = vld [vmem:[#allocation5 + $0x5a0] sm:$0xff]
    %v360 = vld [vmem:[#allocation5 + $0x5a8] sm:$0xff]
    %v361 = vld [vmem:[#allocation5 + $0x5b0] sm:$0xff]
    %v362 = vld [vmem:[#allocation5 + $0x5b8] sm:$0xff]
    %v363 = vld [vmem:[#allocation5 + $0x5c0] sm:$0xff]
    %v364 = vld [vmem:[#allocation5 + $0x5c8] sm:$0xff]
    %v365 = vld [vmem:[#allocation5 + $0x5d0] sm:$0xff]
    %v366 = vld [vmem:[#allocation5 + $0x5d8] sm:$0xff]
    %v367 = vld [vmem:[#allocation5 + $0x5e0] sm:$0xff]
    %v368 = vld [vmem:[#allocation5 + $0x5e8] sm:$0xff]
    %v369 = vld [vmem:[#allocation5 + $0x5f0] sm:$0xff]
    %v370 = vld [vmem:[#allocation5 + $0x5f8] sm:$0xff]
    %v371 = vld [vmem:[#allocation5 + $0x600] sm:$0xff]
    %v372 = vld [vmem:[#allocation5 + $0x608] sm:$0xff]
    %v373 = vld [vmem:[#allocation5 + $0x610] sm:$0xff]
    %v374 = vld [vmem:[#allocation5 + $0x618] sm:$0xff]
    %v375 = vld [vmem:[#allocation5 + $0x620] sm:$0xff]
    %v376 = vld [vmem:[#allocation5 + $0x628] sm:$0xff]
    %v377 = vld [vmem:[#allocation5 + $0x630] sm:$0xff]
    %v378 = vld [vmem:[#allocation5 + $0x638] sm:$0xff]
    %v379 = vld [vmem:[#allocation5 + $0x640] sm:$0xff]
    %v380 = vld [vmem:[#allocation5 + $0x648] sm:$0xff]
    %v381 = vld [vmem:[#allocation5 + $0x650] sm:$0xff]
    %v382 = vld [vmem:[#allocation5 + $0x658] sm:$0xff]
    %v383 = vld [vmem:[#allocation5 + $0x660] sm:$0xff]
    %v384 = vld [vmem:[#allocation5 + $0x668] sm:$0xff]
    %v385 = vld [vmem:[#allocation5 + $0x670] sm:$0xff]
    %v386 = vld [vmem:[#allocation5 + $0x678] sm:$0xff]
    %v387 = vld [vmem:[#allocation5 + $0x680] sm:$0xff]
    %v388 = vld [vmem:[#allocation5 + $0x688] sm:$0xff]
    %v389 = vld [vmem:[#allocation5 + $0x690] sm:$0xff]
    %v390 = vld [vmem:[#allocation5 + $0x698] sm:$0xff]
    %v391 = vld [vmem:[#allocation5 + $0x6a0] sm:$0xff]
    %v392 = vld [vmem:[#allocation5 + $0x6a8] sm:$0xff]
    %v393 = vld [vmem:[#allocation5 + $0x6b0] sm:$0xff]
    %v394 = vld [vmem:[#allocation5 + $0x6b8] sm:$0xff]
    %v395 = vld [vmem:[#allocation5 + $0x6c0] sm:$0xff]
    %v396 = vld [vmem:[#allocation5 + $0x6c8] sm:$0xff]
    %v397 = vld [vmem:[#allocation5 + $0x6d0] sm:$0xff]
    %v398 = vld [vmem:[#allocation5 + $0x6d8] sm:$0xff]
    %v399 = vld [vmem:[#allocation5 + $0x6e0] sm:$0xff]
    %v400 = vld [vmem:[#allocation5 + $0x6e8] sm:$0xff]
    %v401 = vld [vmem:[#allocation5 + $0x6f0] sm:$0xff]
    %v402 = vld [vmem:[#allocation5 + $0x6f8] sm:$0xff]
    %v403 = vld [vmem:[#allocation5 + $0x700] sm:$0xff]
    %v404 = vld [vmem:[#allocation5 + $0x708] sm:$0xff]
    %v405 = vld [vmem:[#allocation5 + $0x710] sm:$0xff]
    %v406 = vld [vmem:[#allocation5 + $0x718] sm:$0xff]
    %v407 = vld [vmem:[#allocation5 + $0x720] sm:$0xff]
    %v408 = vld [vmem:[#allocation5 + $0x728] sm:$0xff]
    %v409 = vld [vmem:[#allocation5 + $0x730] sm:$0xff]
    %v410 = vld [vmem:[#allocation5 + $0x738] sm:$0xff]
    %v411 = vld [vmem:[#allocation5 + $0x740] sm:$0xff]
    %v412 = vld [vmem:[#allocation5 + $0x748] sm:$0xff]
    %v413 = vld [vmem:[#allocation5 + $0x750] sm:$0xff]
    %v414 = vld [vmem:[#allocation5 + $0x758] sm:$0xff]
    %v415 = vld [vmem:[#allocation5 + $0x760] sm:$0xff]
    %v416 = vld [vmem:[#allocation5 + $0x768] sm:$0xff]
    %v417 = vld [vmem:[#allocation5 + $0x770] sm:$0xff]
    %v418 = vld [vmem:[#allocation5 + $0x778] sm:$0xff]
    %v419 = vld [vmem:[#allocation5 + $0x780] sm:$0xff]
    %v420 = vld [vmem:[#allocation5 + $0x788] sm:$0xff]
    %v421 = vld [vmem:[#allocation5 + $0x790] sm:$0xff]
    %v422 = vld [vmem:[#allocation5 + $0x798] sm:$0xff]
    %v423 = vld [vmem:[#allocation5 + $0x7a0] sm:$0xff]
    %v424 = vld [vmem:[#allocation5 + $0x7a8] sm:$0xff]
    %v425 = vld [vmem:[#allocation5 + $0x7b0] sm:$0xff]
    %v426 = vld [vmem:[#allocation5 + $0x7b8] sm:$0xff]
    %v427 = vld [vmem:[#allocation5 + $0x7c0] sm:$0xff]
    %v428 = vld [vmem:[#allocation5 + $0x7c8] sm:$0xff]
    %v429 = vld [vmem:[#allocation5 + $0x7d0] sm:$0xff]
    %v430 = vld [vmem:[#allocation5 + $0x7d8] sm:$0xff]
    %v431 = vld [vmem:[#allocation5 + $0x7e0] sm:$0xff]
    %v432 = vld [vmem:[#allocation5 + $0x7e8] sm:$0xff]
    %v433 = vld [vmem:[#allocation5 + $0x7f0] sm:$0xff]
    %v434 = vld [vmem:[#allocation5 + $0x7f8] sm:$0xff]
    %v435 = vld [vmem:[#allocation5 + $0x800] sm:$0xff]
    %v436 = vld [vmem:[#allocation5 + $0x808] sm:$0xff]
    %v437 = vld [vmem:[#allocation5 + $0x810] sm:$0xff]
    %v438 = vld [vmem:[#allocation5 + $0x818] sm:$0xff]
    %v439 = vld [vmem:[#allocation5 + $0x820] sm:$0xff]
    %v440 = vld [vmem:[#allocation5 + $0x828] sm:$0xff]
    %v441 = vld [vmem:[#allocation5 + $0x830] sm:$0xff]
    %v442 = vld [vmem:[#allocation5 + $0x838] sm:$0xff]
    %v443 = vld [vmem:[#allocation5 + $0x840] sm:$0xff]
    %v444 = vld [vmem:[#allocation5 + $0x848] sm:$0xff]
    %v445 = vld [vmem:[#allocation5 + $0x850] sm:$0xff]
    %v446 = vld [vmem:[#allocation5 + $0x858] sm:$0xff]
    %v447 = vld [vmem:[#allocation5 + $0x860] sm:$0xff]
    %v448 = vld [vmem:[#allocation5 + $0x868] sm:$0xff]
    %v449 = vld [vmem:[#allocation5 + $0x870] sm:$0xff]
    %v450 = vld [vmem:[#allocation5 + $0x878] sm:$0xff]
    %v451 = vld [vmem:[#allocation5 + $0x880] sm:$0xff]
    %v452 = vld [vmem:[#allocation5 + $0x888] sm:$0xff]
    %v453 = vld [vmem:[#allocation5 + $0x890] sm:$0xff]
    %v454 = vld [vmem:[#allocation5 + $0x898] sm:$0xff]
    %v455 = vld [vmem:[#allocation5 + $0x8a0] sm:$0xff]
    %v456 = vld [vmem:[#allocation5 + $0x8a8] sm:$0xff]
    %v457 = vld [vmem:[#allocation5 + $0x8b0] sm:$0xff]
    %v458 = vld [vmem:[#allocation5 + $0x8b8] sm:$0xff]
    %v459 = vld [vmem:[#allocation5 + $0x8c0] sm:$0xff]
    %v460 = vld [vmem:[#allocation5 + $0x8c8] sm:$0xff]
    %v461 = vld [vmem:[#allocation5 + $0x8d0] sm:$0xff]
    %v462 = vld [vmem:[#allocation5 + $0x8d8] sm:$0xff]
    %v463 = vld [vmem:[#allocation5 + $0x8e0] sm:$0xff]
    %v464 = vld [vmem:[#allocation5 + $0x8e8] sm:$0xff]
    %v465 = vld [vmem:[#allocation5 + $0x8f0] sm:$0xff]
    %v466 = vld [vmem:[#allocation5 + $0x8f8] sm:$0xff]
    %v467 = vld [vmem:[#allocation5 + $0x900] sm:$0xff]
    %v468 = vld [vmem:[#allocation5 + $0x908] sm:$0xff]
    %v469 = vld [vmem:[#allocation5 + $0x910] sm:$0xff]
    %v470 = vld [vmem:[#allocation5 + $0x918] sm:$0xff]
    %v471 = vld [vmem:[#allocation5 + $0x920] sm:$0xff]
    %v472 = vld [vmem:[#allocation5 + $0x928] sm:$0xff]
    %v473 = vld [vmem:[#allocation5 + $0x930] sm:$0xff]
    %v474 = vld [vmem:[#allocation5 + $0x938] sm:$0xff]
    %v475 = vld [vmem:[#allocation5 + $0x940] sm:$0xff]
    %v476 = vld [vmem:[#allocation5 + $0x948] sm:$0xff]
    %v477 = vld [vmem:[#allocation5 + $0x950] sm:$0xff]
    %v478 = vld [vmem:[#allocation5 + $0x958] sm:$0xff]
    %v479 = vld [vmem:[#allocation5 + $0x960] sm:$0xff]
    %v480 = vld [vmem:[#allocation5 + $0x968] sm:$0xff]
    %v481 = vld [vmem:[#allocation5 + $0x970] sm:$0xff]
    %v482 = vld [vmem:[#allocation5 + $0x978] sm:$0xff]
    %v483 = vld [vmem:[#allocation5 + $0x980] sm:$0xff]
    %v484 = vld [vmem:[#allocation5 + $0x988] sm:$0xff]
    %v485 = vld [vmem:[#allocation5 + $0x990] sm:$0xff]
    %v486 = vld [vmem:[#allocation5 + $0x998] sm:$0xff]
    %v487 = vld [vmem:[#allocation5 + $0x9a0] sm:$0xff]
    %v488 = vld [vmem:[#allocation5 + $0x9a8] sm:$0xff]
    %v489 = vld [vmem:[#allocation5 + $0x9b0] sm:$0xff]
    %v490 = vld [vmem:[#allocation5 + $0x9b8] sm:$0xff]
    %v491 = vld [vmem:[#allocation5 + $0x9c0] sm:$0xff]
    %v492 = vld [vmem:[#allocation5 + $0x9c8] sm:$0xff]
    %v493 = vld [vmem:[#allocation5 + $0x9d0] sm:$0xff]
    %v494 = vld [vmem:[#allocation5 + $0x9d8] sm:$0xff]
    %v495 = vld [vmem:[#allocation5 + $0x9e0] sm:$0xff]
    %v496 = vld [vmem:[#allocation5 + $0x9e8] sm:$0xff]
    %v497 = vld [vmem:[#allocation5 + $0x9f0] sm:$0xff]
    %v498 = vld [vmem:[#allocation5 + $0x9f8] sm:$0xff]
    %v499 = vld [vmem:[#allocation5 + $0xa00] sm:$0xff]
    %v500 = vld [vmem:[#allocation5 + $0xa08] sm:$0xff]
    %v501 = vld [vmem:[#allocation5 + $0xa10] sm:$0xff]
    %v502 = vld [vmem:[#allocation5 + $0xa18] sm:$0xff]
    %v503 = vld [vmem:[#allocation5 + $0xa20] sm:$0xff]
    %v504 = vld [vmem:[#allocation5 + $0xa28] sm:$0xff]
    %v505 = vld [vmem:[#allocation5 + $0xa30] sm:$0xff]
    %v506 = vld [vmem:[#allocation5 + $0xa38] sm:$0xff]
    %v507 = vld [vmem:[#allocation5 + $0xa40] sm:$0xff]
    %v508 = vld [vmem:[#allocation5 + $0xa48] sm:$0xff]
    %v509 = vld [vmem:[#allocation5 + $0xa50] sm:$0xff]
    %v510 = vld [vmem:[#allocation5 + $0xa58] sm:$0xff]
    %v511 = vld [vmem:[#allocation5 + $0xa60] sm:$0xff]
    %v512 = vld [vmem:[#allocation5 + $0xa68] sm:$0xff]
    %v513 = vld [vmem:[#allocation5 + $0xa70] sm:$0xff]
    %v514 = vld [vmem:[#allocation5 + $0xa78] sm:$0xff]
    %v515 = vld [vmem:[#allocation5 + $0xa80] sm:$0xff]
    %v516 = vld [vmem:[#allocation5 + $0xa88] sm:$0xff]
    %v517 = vld [vmem:[#allocation5 + $0xa90] sm:$0xff]
    %v518 = vld [vmem:[#allocation5 + $0xa98] sm:$0xff]
    %v519 = vld [vmem:[#allocation5 + $0xaa0] sm:$0xff]
    %v520 = vld [vmem:[#allocation5 + $0xaa8] sm:$0xff]
    %v521 = vld [vmem:[#allocation5 + $0xab0] sm:$0xff]
    %v522 = vld [vmem:[#allocation5 + $0xab8] sm:$0xff]
    %v523 = vld [vmem:[#allocation5 + $0xac0] sm:$0xff]
    %v524 = vld [vmem:[#allocation5 + $0xac8] sm:$0xff]
    %v525 = vld [vmem:[#allocation5 + $0xad0] sm:$0xff]
    %v526 = vld [vmem:[#allocation5 + $0xad8] sm:$0xff]
    %v527 = vld [vmem:[#allocation5 + $0xae0] sm:$0xff]
    %v528 = vld [vmem:[#allocation5 + $0xae8] sm:$0xff]
    %v529 = vld [vmem:[#allocation5 + $0xaf0] sm:$0xff]
    %v530 = vld [vmem:[#allocation5 + $0xaf8] sm:$0xff]
    %v531 = vld [vmem:[#allocation5 + $0xb00] sm:$0xff]
    %v532 = vld [vmem:[#allocation5 + $0xb08] sm:$0xff]
    %v533 = vld [vmem:[#allocation5 + $0xb10] sm:$0xff]
    %v534 = vld [vmem:[#allocation5 + $0xb18] sm:$0xff]
    %v535 = vld [vmem:[#allocation5 + $0xb20] sm:$0xff]
    %v536 = vld [vmem:[#allocation5 + $0xb28] sm:$0xff]
    %v537 = vld [vmem:[#allocation5 + $0xb30] sm:$0xff]
    %v538 = vld [vmem:[#allocation5 + $0xb38] sm:$0xff]
    %v539 = vld [vmem:[#allocation5 + $0xb40] sm:$0xff]
    %v540 = vld [vmem:[#allocation5 + $0xb48] sm:$0xff]
    %v541 = vld [vmem:[#allocation5 + $0xb50] sm:$0xff]
    %v542 = vld [vmem:[#allocation5 + $0xb58] sm:$0xff]
    %v543 = vld [vmem:[#allocation5 + $0xb60] sm:$0xff]
    %v544 = vld [vmem:[#allocation5 + $0xb68] sm:$0xff]
    %v545 = vld [vmem:[#allocation5 + $0xb70] sm:$0xff]
    %v546 = vld [vmem:[#allocation5 + $0xb78] sm:$0xff]
    %v547 = vld [vmem:[#allocation5 + $0xb80] sm:$0xff]
    %v548 = vld [vmem:[#allocation5 + $0xb88] sm:$0xff]
    %v549 = vld [vmem:[#allocation5 + $0xb90] sm:$0xff]
    %v550 = vld [vmem:[#allocation5 + $0xb98] sm:$0xff]
    %v551 = vld [vmem:[#allocation5 + $0xba0] sm:$0xff]
    %v552 = vld [vmem:[#allocation5 + $0xba8] sm:$0xff]
    %v553 = vld [vmem:[#allocation5 + $0xbb0] sm:$0xff]
    %v554 = vld [vmem:[#allocation5 + $0xbb8] sm:$0xff]
    %v555 = vld [vmem:[#allocation5 + $0xbc0] sm:$0xff]
    %v556 = vld [vmem:[#allocation5 + $0xbc8] sm:$0xff]
    %v557 = vld [vmem:[#allocation5 + $0xbd0] sm:$0xff]
    %v558 = vld [vmem:[#allocation5 + $0xbd8] sm:$0xff]
    %v559 = vld [vmem:[#allocation5 + $0xbe0] sm:$0xff]
    %v560 = vld [vmem:[#allocation5 + $0xbe8] sm:$0xff]
    %v561 = vld [vmem:[#allocation5 + $0xbf0] sm:$0xff]
    %v562 = vld [vmem:[#allocation5 + $0xbf8] sm:$0xff]
    %v563 = vld [vmem:[#allocation5 + $0xc00] sm:$0xff]
    %v564 = vld [vmem:[#allocation5 + $0xc08] sm:$0xff]
    %v565 = vld [vmem:[#allocation5 + $0xc10] sm:$0xff]
    %v566 = vld [vmem:[#allocation5 + $0xc18] sm:$0xff]
    %v567 = vld [vmem:[#allocation5 + $0xc20] sm:$0xff]
    %v568 = vld [vmem:[#allocation5 + $0xc28] sm:$0xff]
    %v569 = vld [vmem:[#allocation5 + $0xc30] sm:$0xff]
    %v570 = vld [vmem:[#allocation5 + $0xc38] sm:$0xff]
    %v571 = vld [vmem:[#allocation5 + $0xc40] sm:$0xff]
    %v572 = vld [vmem:[#allocation5 + $0xc48] sm:$0xff]
    %v573 = vld [vmem:[#allocation5 + $0xc50] sm:$0xff]
    %v574 = vld [vmem:[#allocation5 + $0xc58] sm:$0xff]
    %v575 = vld [vmem:[#allocation5 + $0xc60] sm:$0xff]
    %v576 = vld [vmem:[#allocation5 + $0xc68] sm:$0xff]
    %v577 = vld [vmem:[#allocation5 + $0xc70] sm:$0xff]
    %v578 = vld [vmem:[#allocation5 + $0xc78] sm:$0xff]
    %v579 = vld [vmem:[#allocation5 + $0xc80] sm:$0xff]
    %v580 = vld [vmem:[#allocation5 + $0xc88] sm:$0xff]
    %v581 = vld [vmem:[#allocation5 + $0xc90] sm:$0xff]
    %v582 = vld [vmem:[#allocation5 + $0xc98] sm:$0xff]
    %v583 = vld [vmem:[#allocation5 + $0xca0] sm:$0xff]
    %v584 = vld [vmem:[#allocation5 + $0xca8] sm:$0xff]
    %v585 = vld [vmem:[#allocation5 + $0xcb0] sm:$0xff]
    %v586 = vld [vmem:[#allocation5 + $0xcb8] sm:$0xff]
    %v587 = vld [vmem:[#allocation5 + $0xcc0] sm:$0xff]
    %v588 = vld [vmem:[#allocation5 + $0xcc8] sm:$0xff]
    %v589 = vld [vmem:[#allocation5 + $0xcd0] sm:$0xff]
    %v590 = vld [vmem:[#allocation5 + $0xcd8] sm:$0xff]
    %v591 = vld [vmem:[#allocation5 + $0xce0] sm:$0xff]
    %v592 = vld [vmem:[#allocation5 + $0xce8] sm:$0xff]
    %v593 = vld [vmem:[#allocation5 + $0xcf0] sm:$0xff]
    %v594 = vld [vmem:[#allocation5 + $0xcf8] sm:$0xff]
    %v595 = vld [vmem:[#allocation5 + $0xd00] sm:$0xff]
    %v596 = vld [vmem:[#allocation5 + $0xd08] sm:$0xff]
    %v597 = vld [vmem:[#allocation5 + $0xd10] sm:$0xff]
    %v598 = vld [vmem:[#allocation5 + $0xd18] sm:$0xff]
    %v599 = vld [vmem:[#allocation5 + $0xd20] sm:$0xff]
    %v600 = vld [vmem:[#allocation5 + $0xd28] sm:$0xff]
    %v601 = vld [vmem:[#allocation5 + $0xd30] sm:$0xff]
    %v602 = vld [vmem:[#allocation5 + $0xd38] sm:$0xff]
    %v603 = vld [vmem:[#allocation5 + $0xd40] sm:$0xff]
    %v604 = vld [vmem:[#allocation5 + $0xd48] sm:$0xff]
    %v605 = vld [vmem:[#allocation5 + $0xd50] sm:$0xff]
    %v606 = vld [vmem:[#allocation5 + $0xd58] sm:$0xff]
    %v607 = vld [vmem:[#allocation5 + $0xd60] sm:$0xff]
    %v608 = vld [vmem:[#allocation5 + $0xd68] sm:$0xff]
    %v609 = vld [vmem:[#allocation5 + $0xd70] sm:$0xff]
    %v610 = vld [vmem:[#allocation5 + $0xd78] sm:$0xff]
    %v611 = vld [vmem:[#allocation5 + $0xd80] sm:$0xff]
    %v612 = vld [vmem:[#allocation5 + $0xd88] sm:$0xff]
    %v613 = vld [vmem:[#allocation5 + $0xd90] sm:$0xff]
    %v614 = vld [vmem:[#allocation5 + $0xd98] sm:$0xff]
    %v615 = vld [vmem:[#allocation5 + $0xda0] sm:$0xff]
    %v616 = vld [vmem:[#allocation5 + $0xda8] sm:$0xff]
    %v617 = vld [vmem:[#allocation5 + $0xdb0] sm:$0xff]
    %v618 = vld [vmem:[#allocation5 + $0xdb8] sm:$0xff]
    %v619 = vld [vmem:[#allocation5 + $0xdc0] sm:$0xff]
    %v620 = vld [vmem:[#allocation5 + $0xdc8] sm:$0xff]
    %v621 = vld [vmem:[#allocation5 + $0xdd0] sm:$0xff]
    %v622 = vld [vmem:[#allocation5 + $0xdd8] sm:$0xff]
    %v623 = vld [vmem:[#allocation5 + $0xde0] sm:$0xff]
    %v624 = vld [vmem:[#allocation5 + $0xde8] sm:$0xff]
    %v625 = vld [vmem:[#allocation5 + $0xdf0] sm:$0xff]
    %v626 = vld [vmem:[#allocation5 + $0xdf8] sm:$0xff]
    %v627 = vld [vmem:[#allocation5 + $0xe00] sm:$0xff]
    %v628 = vld [vmem:[#allocation5 + $0xe08] sm:$0xff]
    %v629 = vld [vmem:[#allocation5 + $0xe10] sm:$0xff]
    %v630 = vld [vmem:[#allocation5 + $0xe18] sm:$0xff]
    %v631 = vld [vmem:[#allocation5 + $0xe20] sm:$0xff]
    %v632 = vld [vmem:[#allocation5 + $0xe28] sm:$0xff]
    %v633 = vld [vmem:[#allocation5 + $0xe30] sm:$0xff]
    %v634 = vld [vmem:[#allocation5 + $0xe38] sm:$0xff]
    %v635 = vld [vmem:[#allocation5 + $0xe40] sm:$0xff]
    %v636 = vld [vmem:[#allocation5 + $0xe48] sm:$0xff]
    %v637 = vld [vmem:[#allocation5 + $0xe50] sm:$0xff]
    %v638 = vld [vmem:[#allocation5 + $0xe58] sm:$0xff]
    %v639 = vld [vmem:[#allocation5 + $0xe60] sm:$0xff]
    %v640 = vld [vmem:[#allocation5 + $0xe68] sm:$0xff]
    %v641 = vld [vmem:[#allocation5 + $0xe70] sm:$0xff]
    %v642 = vld [vmem:[#allocation5 + $0xe78] sm:$0xff]
    %v643 = vld [vmem:[#allocation5 + $0xe80] sm:$0xff]
    %v644 = vld [vmem:[#allocation5 + $0xe88] sm:$0xff]
    %v645 = vld [vmem:[#allocation5 + $0xe90] sm:$0xff]
    %v646 = vld [vmem:[#allocation5 + $0xe98] sm:$0xff]
    %v647 = vld [vmem:[#allocation5 + $0xea0] sm:$0xff]
    %v648 = vld [vmem:[#allocation5 + $0xea8] sm:$0xff]
    %v649 = vld [vmem:[#allocation5 + $0xeb0] sm:$0xff]
    %v650 = vld [vmem:[#allocation5 + $0xeb8] sm:$0xff]
    %v651 = vld [vmem:[#allocation5 + $0xec0] sm:$0xff]
    %v652 = vld [vmem:[#allocation5 + $0xec8] sm:$0xff]
    %v653 = vld [vmem:[#allocation5 + $0xed0] sm:$0xff]
    %v654 = vld [vmem:[#allocation5 + $0xed8] sm:$0xff]
    %v655 = vld [vmem:[#allocation5 + $0xee0] sm:$0xff]
    %v656 = vld [vmem:[#allocation5 + $0xee8] sm:$0xff]
    %v657 = vld [vmem:[#allocation5 + $0xef0] sm:$0xff]
    %v658 = vld [vmem:[#allocation5 + $0xef8] sm:$0xff]
    %v659 = vld [vmem:[#allocation5 + $0xf00] sm:$0xff]
    %v660 = vld [vmem:[#allocation5 + $0xf08] sm:$0xff]
    %v661 = vld [vmem:[#allocation5 + $0xf10] sm:$0xff]
    %v662 = vld [vmem:[#allocation5 + $0xf18] sm:$0xff]
    %v663 = vld [vmem:[#allocation5 + $0xf20] sm:$0xff]
    %v664 = vld [vmem:[#allocation5 + $0xf28] sm:$0xff]
    %v665 = vld [vmem:[#allocation5 + $0xf30] sm:$0xff]
    %v666 = vld [vmem:[#allocation5 + $0xf38] sm:$0xff]
    %v667 = vld [vmem:[#allocation5 + $0xf40] sm:$0xff]
    %v668 = vld [vmem:[#allocation5 + $0xf48] sm:$0xff]
    %v669 = vld [vmem:[#allocation5 + $0xf50] sm:$0xff]
    %v670 = vld [vmem:[#allocation5 + $0xf58] sm:$0xff]
    %v671 = vld [vmem:[#allocation5 + $0xf60] sm:$0xff]
    %v672 = vld [vmem:[#allocation5 + $0xf68] sm:$0xff]
    %v673 = vld [vmem:[#allocation5 + $0xf70] sm:$0xff]
    %v674 = vld [vmem:[#allocation5 + $0xf78] sm:$0xff]
    %v675 = vld [vmem:[#allocation5 + $0xf80] sm:$0xff]
    %v676 = vld [vmem:[#allocation5 + $0xf88] sm:$0xff]
    %v677 = vld [vmem:[#allocation5 + $0xf90] sm:$0xff]
    %v678 = vld [vmem:[#allocation5 + $0xf98] sm:$0xff]
    %v679 = vld [vmem:[#allocation5 + $0xfa0] sm:$0xff]
    %v680 = vld [vmem:[#allocation5 + $0xfa8] sm:$0xff]
    %v681 = vld [vmem:[#allocation5 + $0xfb0] sm:$0xff]
    %v682 = vld [vmem:[#allocation5 + $0xfb8] sm:$0xff]
    %v683 = vld [vmem:[#allocation5 + $0xfc0] sm:$0xff]
    %v684 = vld [vmem:[#allocation5 + $0xfc8] sm:$0xff]
    %v685 = vld [vmem:[#allocation5 + $0xfd0] sm:$0xff]
    %v686 = vld [vmem:[#allocation5 + $0xfd8] sm:$0xff]
    %v687 = vld [vmem:[#allocation5 + $0xfe0] sm:$0xff]
    %v688 = vld [vmem:[#allocation5 + $0xfe8] sm:$0xff]
    %v689 = vld [vmem:[#allocation5 + $0xff0] sm:$0xff]
    %v690 = vld [vmem:[#allocation5 + $0xff8] sm:$0xff]
    %v691 = vld [vmem:[#allocation5 + $0x1000] sm:$0xff]
    %v692 = vld [vmem:[#allocation5 + $0x1008] sm:$0xff]
    %v693 = vld [vmem:[#allocation5 + $0x1010] sm:$0xff]
    %v694 = vld [vmem:[#allocation5 + $0x1018] sm:$0xff]
    %v695 = vld [vmem:[#allocation5 + $0x1020] sm:$0xff]
    %v696 = vld [vmem:[#allocation5 + $0x1028] sm:$0xff]
    %v697 = vld [vmem:[#allocation5 + $0x1030] sm:$0xff]
    %v698 = vld [vmem:[#allocation5 + $0x1038] sm:$0xff]
    %v699 = vld [vmem:[#allocation5 + $0x1040] sm:$0xff]
    %v700 = vld [vmem:[#allocation5 + $0x1048] sm:$0xff]
    %v701 = vld [vmem:[#allocation5 + $0x1050] sm:$0xff]
    %v702 = vld [vmem:[#allocation5 + $0x1058] sm:$0xff]
    %v703 = vld [vmem:[#allocation5 + $0x1060] sm:$0xff]
    %v704 = vld [vmem:[#allocation5 + $0x1068] sm:$0xff]
    %v705 = vld [vmem:[#allocation5 + $0x1070] sm:$0xff]
    %v706 = vld [vmem:[#allocation5 + $0x1078] sm:$0xff]
    %v707 = vld [vmem:[#allocation5 + $0x1080] sm:$0xff]
    %v708 = vld [vmem:[#allocation5 + $0x1088] sm:$0xff]
    %v709 = vld [vmem:[#allocation5 + $0x1090] sm:$0xff]
    %v710 = vld [vmem:[#allocation5 + $0x1098] sm:$0xff]
    %v711 = vld [vmem:[#allocation5 + $0x10a0] sm:$0xff]
    %v712 = vld [vmem:[#allocation5 + $0x10a8] sm:$0xff]
    %v713 = vld [vmem:[#allocation5 + $0x10b0] sm:$0xff]
    %v714 = vld [vmem:[#allocation5 + $0x10b8] sm:$0xff]
    %v715 = vld [vmem:[#allocation5 + $0x10c0] sm:$0xff]
    %v716 = vld [vmem:[#allocation5 + $0x10c8] sm:$0xff]
    %v717 = vld [vmem:[#allocation5 + $0x10d0] sm:$0xff]
    %v718 = vld [vmem:[#allocation5 + $0x10d8] sm:$0xff]
    %v719 = vld [vmem:[#allocation5 + $0x10e0] sm:$0xff]
    %v720 = vld [vmem:[#allocation5 + $0x10e8] sm:$0xff]
    %v721 = vld [vmem:[#allocation5 + $0x10f0] sm:$0xff]
    %v722 = vld [vmem:[#allocation5 + $0x10f8] sm:$0xff]
    %v723 = vld [vmem:[#allocation5 + $0x1100] sm:$0xff]
    %v724 = vld [vmem:[#allocation5 + $0x1108] sm:$0xff]
    %v725 = vld [vmem:[#allocation5 + $0x1110] sm:$0xff]
    %v726 = vld [vmem:[#allocation5 + $0x1118] sm:$0xff]
    %v727 = vld [vmem:[#allocation5 + $0x1120] sm:$0xff]
    %v728 = vld [vmem:[#allocation5 + $0x1128] sm:$0xff]
    %v729 = vld [vmem:[#allocation5 + $0x1130] sm:$0xff]
    %v730 = vld [vmem:[#allocation5 + $0x1138] sm:$0xff]
    %v731 = vld [vmem:[#allocation5 + $0x1140] sm:$0xff]
    %v732 = vld [vmem:[#allocation5 + $0x1148] sm:$0xff]
    %v733 = vld [vmem:[#allocation5 + $0x1150] sm:$0xff]
    %v734 = vld [vmem:[#allocation5 + $0x1158] sm:$0xff]
    %v735 = vld [vmem:[#allocation5 + $0x1160] sm:$0xff]
    %v736 = vld [vmem:[#allocation5 + $0x1168] sm:$0xff]
    %v737 = vld [vmem:[#allocation5 + $0x1170] sm:$0xff]
    %v738 = vld [vmem:[#allocation5 + $0x1178] sm:$0xff]
    %v739 = vld [vmem:[#allocation5 + $0x1180] sm:$0xff]
    %v740 = vld [vmem:[#allocation5 + $0x1188] sm:$0xff]
    %v741 = vld [vmem:[#allocation5 + $0x1190] sm:$0xff]
    %v742 = vld [vmem:[#allocation5 + $0x1198] sm:$0xff]
    %v743 = vld [vmem:[#allocation5 + $0x11a0] sm:$0xff]
    %v744 = vld [vmem:[#allocation5 + $0x11a8] sm:$0xff]
    %v745 = vld [vmem:[#allocation5 + $0x11b0] sm:$0xff]
    %v746 = vld [vmem:[#allocation5 + $0x11b8] sm:$0xff]
    %v747 = vld [vmem:[#allocation5 + $0x11c0] sm:$0xff]
    %v748 = vld [vmem:[#allocation5 + $0x11c8] sm:$0xff]
    %v749 = vld [vmem:[#allocation5 + $0x11d0] sm:$0xff]
    %v750 = vld [vmem:[#allocation5 + $0x11d8] sm:$0xff]
    %v751 = vld [vmem:[#allocation5 + $0x11e0] sm:$0xff]
    %v752 = vld [vmem:[#allocation5 + $0x11e8] sm:$0xff]
    %v753 = vld [vmem:[#allocation5 + $0x11f0] sm:$0xff]
    %v754 = vld [vmem:[#allocation5 + $0x11f8] sm:$0xff]
    %v755 = vld [vmem:[#allocation5 + $0x1200] sm:$0xff]
    %v756 = vld [vmem:[#allocation5 + $0x1208] sm:$0xff]
    %v757 = vld [vmem:[#allocation5 + $0x1210] sm:$0xff]
    %v758 = vld [vmem:[#allocation5 + $0x1218] sm:$0xff]
    %v759 = vld [vmem:[#allocation5 + $0x1220] sm:$0xff]
    %v760 = vld [vmem:[#allocation5 + $0x1228] sm:$0xff]
    %v761 = vld [vmem:[#allocation5 + $0x1230] sm:$0xff]
    %v762 = vld [vmem:[#allocation5 + $0x1238] sm:$0xff]
    %v763 = vld [vmem:[#allocation5 + $0x1240] sm:$0xff]
    %v764 = vld [vmem:[#allocation5 + $0x1248] sm:$0xff]
    %v765 = vld [vmem:[#allocation5 + $0x1250] sm:$0xff]
    %v766 = vld [vmem:[#allocation5 + $0x1258] sm:$0xff]
    %v767 = vld [vmem:[#allocation5 + $0x1260] sm:$0xff]
    %v768 = vld [vmem:[#allocation5 + $0x1268] sm:$0xff]
    %v769 = vld [vmem:[#allocation5 + $0x1270] sm:$0xff]
    %v770 = vld [vmem:[#allocation5 + $0x1278] sm:$0xff]
    %v771 = vld [vmem:[#allocation5 + $0x1280] sm:$0xff]
    %v772 = vld [vmem:[#allocation5 + $0x1288] sm:$0xff]
    %v773 = vld [vmem:[#allocation5 + $0x1290] sm:$0xff]
    %v774 = vld [vmem:[#allocation5 + $0x1298] sm:$0xff]
    %v775 = vld [vmem:[#allocation5 + $0x12a0] sm:$0xff]
    %v776 = vld [vmem:[#allocation5 + $0x12a8] sm:$0xff]
    %v777 = vld [vmem:[#allocation5 + $0x12b0] sm:$0xff]
    %v778 = vld [vmem:[#allocation5 + $0x12b8] sm:$0xff]
    %v779 = vld [vmem:[#allocation5 + $0x12c0] sm:$0xff]
    %v780 = vld [vmem:[#allocation5 + $0x12c8] sm:$0xff]
    %v781 = vld [vmem:[#allocation5 + $0x12d0] sm:$0xff]
    %v782 = vld [vmem:[#allocation5 + $0x12d8] sm:$0xff]
    %v783 = vld [vmem:[#allocation5 + $0x12e0] sm:$0xff]
    %v784 = vld [vmem:[#allocation5 + $0x12e8] sm:$0xff]
    %v785 = vld [vmem:[#allocation5 + $0x12f0] sm:$0xff]
    %v786 = vld [vmem:[#allocation5 + $0x12f8] sm:$0xff]
    %v787 = vld [vmem:[#allocation5 + $0x1300] sm:$0xff]
    %v788 = vld [vmem:[#allocation5 + $0x1308] sm:$0xff]
    %v789 = vld [vmem:[#allocation5 + $0x1310] sm:$0xff]
    %v790 = vld [vmem:[#allocation5 + $0x1318] sm:$0xff]
    %v791 = vld [vmem:[#allocation5 + $0x1320] sm:$0xff]
    %v792 = vld [vmem:[#allocation5 + $0x1328] sm:$0xff]
    %v793 = vld [vmem:[#allocation5 + $0x1330] sm:$0xff]
    %v794 = vld [vmem:[#allocation5 + $0x1338] sm:$0xff]
    %v795 = vld [vmem:[#allocation5 + $0x1340] sm:$0xff]
    %v796 = vld [vmem:[#allocation5 + $0x1348] sm:$0xff]
    %v797 = vld [vmem:[#allocation5 + $0x1350] sm:$0xff]
    %v798 = vld [vmem:[#allocation5 + $0x1358] sm:$0xff]
    %v799 = vld [vmem:[#allocation5 + $0x1360] sm:$0xff]
    %v800 = vld [vmem:[#allocation5 + $0x1368] sm:$0xff]
    %v801 = vld [vmem:[#allocation5 + $0x1370] sm:$0xff]
    %v802 = vld [vmem:[#allocation5 + $0x1378] sm:$0xff]
    %v803 = vld [vmem:[#allocation5 + $0x1380] sm:$0xff]
    %v804 = vld [vmem:[#allocation5 + $0x1388] sm:$0xff]
    %v805 = vld [vmem:[#allocation5 + $0x1390] sm:$0xff]
    %v806 = vld [vmem:[#allocation5 + $0x1398] sm:$0xff]
    %v807 = vld [vmem:[#allocation5 + $0x13a0] sm:$0xff]
    %v808 = vld [vmem:[#allocation5 + $0x13a8] sm:$0xff]
    %v809 = vld [vmem:[#allocation5 + $0x13b0] sm:$0xff]
    %v810 = vld [vmem:[#allocation5 + $0x13b8] sm:$0xff]
    %v811 = vld [vmem:[#allocation5 + $0x13c0] sm:$0xff]
    %v812 = vld [vmem:[#allocation5 + $0x13c8] sm:$0xff]
    %v813 = vld [vmem:[#allocation5 + $0x13d0] sm:$0xff]
    %v814 = vld [vmem:[#allocation5 + $0x13d8] sm:$0xff]
    %v815 = vld [vmem:[#allocation5 + $0x13e0] sm:$0xff]
    %v816 = vld [vmem:[#allocation5 + $0x13e8] sm:$0xff]
    %v817 = vld [vmem:[#allocation5 + $0x13f0] sm:$0xff]
    %v818 = vld [vmem:[#allocation5 + $0x13f8] sm:$0xff]
    %v819 = vld [vmem:[#allocation5 + $0x1400] sm:$0xff]
    %v820 = vld [vmem:[#allocation5 + $0x1408] sm:$0xff]
    %v821 = vld [vmem:[#allocation5 + $0x1410] sm:$0xff]
    %v822 = vld [vmem:[#allocation5 + $0x1418] sm:$0xff]
    %v823 = vld [vmem:[#allocation5 + $0x1420] sm:$0xff]
    %v824 = vld [vmem:[#allocation5 + $0x1428] sm:$0xff]
    %v825 = vld [vmem:[#allocation5 + $0x1430] sm:$0xff]
    %v826 = vld [vmem:[#allocation5 + $0x1438] sm:$0xff]
    %v827 = vld [vmem:[#allocation5 + $0x1440] sm:$0xff]
    %v828 = vld [vmem:[#allocation5 + $0x1448] sm:$0xff]
    %v829 = vld [vmem:[#allocation5 + $0x1450] sm:$0xff]
    %v830 = vld [vmem:[#allocation5 + $0x1458] sm:$0xff]
    %v831 = vld [vmem:[#allocation5 + $0x1460] sm:$0xff]
    %v832 = vld [vmem:[#allocation5 + $0x1468] sm:$0xff]
    %v833 = vld [vmem:[#allocation5 + $0x1470] sm:$0xff]
    %v834 = vld [vmem:[#allocation5 + $0x1478] sm:$0xff]
    %v835 = vld [vmem:[#allocation5 + $0x1480] sm:$0xff]
    %v836 = vld [vmem:[#allocation5 + $0x1488] sm:$0xff]
    %v837 = vld [vmem:[#allocation5 + $0x1490] sm:$0xff]
    %v838 = vld [vmem:[#allocation5 + $0x1498] sm:$0xff]
    %v839 = vld [vmem:[#allocation5 + $0x14a0] sm:$0xff]
    %v840 = vld [vmem:[#allocation5 + $0x14a8] sm:$0xff]
    %v841 = vld [vmem:[#allocation5 + $0x14b0] sm:$0xff]
    %v842 = vld [vmem:[#allocation5 + $0x14b8] sm:$0xff]
    %v843 = vld [vmem:[#allocation5 + $0x14c0] sm:$0xff]
    %v844 = vld [vmem:[#allocation5 + $0x14c8] sm:$0xff]
    %v845 = vld [vmem:[#allocation5 + $0x14d0] sm:$0xff]
    %v846 = vld [vmem:[#allocation5 + $0x14d8] sm:$0xff]
    %v847 = vld [vmem:[#allocation5 + $0x14e0] sm:$0xff]
    %v848 = vld [vmem:[#allocation5 + $0x14e8] sm:$0xff]
    %v849 = vld [vmem:[#allocation5 + $0x14f0] sm:$0xff]
    %v850 = vld [vmem:[#allocation5 + $0x14f8] sm:$0xff]
    %v851 = vld [vmem:[#allocation5 + $0x1500] sm:$0xff]
    %v852 = vld [vmem:[#allocation5 + $0x1508] sm:$0xff]
    %v853 = vld [vmem:[#allocation5 + $0x1510] sm:$0xff]
    %v854 = vld [vmem:[#allocation5 + $0x1518] sm:$0xff]
    %v855 = vld [vmem:[#allocation5 + $0x1520] sm:$0xff]
    %v856 = vld [vmem:[#allocation5 + $0x1528] sm:$0xff]
    %v857 = vld [vmem:[#allocation5 + $0x1530] sm:$0xff]
    %v858 = vld [vmem:[#allocation5 + $0x1538] sm:$0xff]
    %v859 = vld [vmem:[#allocation5 + $0x1540] sm:$0xff]
    %v860 = vld [vmem:[#allocation5 + $0x1548] sm:$0xff]
    %v861 = vld [vmem:[#allocation5 + $0x1550] sm:$0xff]
    %v862 = vld [vmem:[#allocation5 + $0x1558] sm:$0xff]
    %v863 = vld [vmem:[#allocation5 + $0x1560] sm:$0xff]
    %v864 = vld [vmem:[#allocation5 + $0x1568] sm:$0xff]
    %v865 = vld [vmem:[#allocation5 + $0x1570] sm:$0xff]
    %v866 = vld [vmem:[#allocation5 + $0x1578] sm:$0xff]
    %v867 = vld [vmem:[#allocation5 + $0x1580] sm:$0xff]
    %v868 = vld [vmem:[#allocation5 + $0x1588] sm:$0xff]
    %v869 = vld [vmem:[#allocation5 + $0x1590] sm:$0xff]
    %v870 = vld [vmem:[#allocation5 + $0x1598] sm:$0xff]
    %v871 = vld [vmem:[#allocation5 + $0x15a0] sm:$0xff]
    %v872 = vld [vmem:[#allocation5 + $0x15a8] sm:$0xff]
    %v873 = vld [vmem:[#allocation5 + $0x15b0] sm:$0xff]
    %v874 = vld [vmem:[#allocation5 + $0x15b8] sm:$0xff]
    %v875 = vld [vmem:[#allocation5 + $0x15c0] sm:$0xff]
    %v876 = vld [vmem:[#allocation5 + $0x15c8] sm:$0xff]
    %v877 = vld [vmem:[#allocation5 + $0x15d0] sm:$0xff]
    %v878 = vld [vmem:[#allocation5 + $0x15d8] sm:$0xff]
    %v879 = vld [vmem:[#allocation5 + $0x15e0] sm:$0xff]
    %v880 = vld [vmem:[#allocation5 + $0x15e8] sm:$0xff]
    %v881 = vld [vmem:[#allocation5 + $0x15f0] sm:$0xff]
    %v882 = vld [vmem:[#allocation5 + $0x15f8] sm:$0xff]
    %v883 = vld [vmem:[#allocation5 + $0x1600] sm:$0xff]
    %v884 = vld [vmem:[#allocation5 + $0x1608] sm:$0xff]
    %v885 = vld [vmem:[#allocation5 + $0x1610] sm:$0xff]
    %v886 = vld [vmem:[#allocation5 + $0x1618] sm:$0xff]
    %v887 = vld [vmem:[#allocation5 + $0x1620] sm:$0xff]
    %v888 = vld [vmem:[#allocation5 + $0x1628] sm:$0xff]
    %v889 = vld [vmem:[#allocation5 + $0x1630] sm:$0xff]
    %v890 = vld [vmem:[#allocation5 + $0x1638] sm:$0xff]
    %v891 = vld [vmem:[#allocation5 + $0x1640] sm:$0xff]
    %v892 = vld [vmem:[#allocation5 + $0x1648] sm:$0xff]
    %v893 = vld [vmem:[#allocation5 + $0x1650] sm:$0xff]
    %v894 = vld [vmem:[#allocation5 + $0x1658] sm:$0xff]
    %v895 = vld [vmem:[#allocation5 + $0x1660] sm:$0xff]
    %v896 = vld [vmem:[#allocation5 + $0x1668] sm:$0xff]
    %v897 = vld [vmem:[#allocation5 + $0x1670] sm:$0xff]
    %v898 = vld [vmem:[#allocation5 + $0x1678] sm:$0xff]
    %v899 = vld [vmem:[#allocation5 + $0x1680] sm:$0xff]
    %v900 = vld [vmem:[#allocation5 + $0x1688] sm:$0xff]
    %v901 = vld [vmem:[#allocation5 + $0x1690] sm:$0xff]
    %v902 = vld [vmem:[#allocation5 + $0x1698] sm:$0xff]
    %v903 = vld [vmem:[#allocation5 + $0x16a0] sm:$0xff]
    %v904 = vld [vmem:[#allocation5 + $0x16a8] sm:$0xff]
    %v905 = vld [vmem:[#allocation5 + $0x16b0] sm:$0xff]
    %v906 = vld [vmem:[#allocation5 + $0x16b8] sm:$0xff]
    %v907 = vld [vmem:[#allocation5 + $0x16c0] sm:$0xff]
    %v908 = vld [vmem:[#allocation5 + $0x16c8] sm:$0xff]
    %v909 = vld [vmem:[#allocation5 + $0x16d0] sm:$0xff]
    %v910 = vld [vmem:[#allocation5 + $0x16d8] sm:$0xff]
    %v911 = vld [vmem:[#allocation5 + $0x16e0] sm:$0xff]
    %v912 = vld [vmem:[#allocation5 + $0x16e8] sm:$0xff]
    %v913 = vld [vmem:[#allocation5 + $0x16f0] sm:$0xff]
    %v914 = vld [vmem:[#allocation5 + $0x16f8] sm:$0xff]
    %v915 = vld [vmem:[#allocation5 + $0x1700] sm:$0xff]
    %v916 = vld [vmem:[#allocation5 + $0x1708] sm:$0xff]
    %v917 = vld [vmem:[#allocation5 + $0x1710] sm:$0xff]
    %v918 = vld [vmem:[#allocation5 + $0x1718] sm:$0xff]
    %v919 = vld [vmem:[#allocation5 + $0x1720] sm:$0xff]
    %v920 = vld [vmem:[#allocation5 + $0x1728] sm:$0xff]
    %v921 = vld [vmem:[#allocation5 + $0x1730] sm:$0xff]
    %v922 = vld [vmem:[#allocation5 + $0x1738] sm:$0xff]
    %v923 = vld [vmem:[#allocation5 + $0x1740] sm:$0xff]
    %v924 = vld [vmem:[#allocation5 + $0x1748] sm:$0xff]
    %v925 = vld [vmem:[#allocation5 + $0x1750] sm:$0xff]
    %v926 = vld [vmem:[#allocation5 + $0x1758] sm:$0xff]
    %v927 = vld [vmem:[#allocation5 + $0x1760] sm:$0xff]
    %v928 = vld [vmem:[#allocation5 + $0x1768] sm:$0xff]
    %v929 = vld [vmem:[#allocation5 + $0x1770] sm:$0xff]
    %v930 = vld [vmem:[#allocation5 + $0x1778] sm:$0xff]
    %v931 = vld [vmem:[#allocation5 + $0x1780] sm:$0xff]
    %v932 = vld [vmem:[#allocation5 + $0x1788] sm:$0xff]
    %v933 = vld [vmem:[#allocation5 + $0x1790] sm:$0xff]
    %v934 = vld [vmem:[#allocation5 + $0x1798] sm:$0xff]
    %v935 = vld [vmem:[#allocation5 + $0x17a0] sm:$0xff]
    %v936 = vld [vmem:[#allocation5 + $0x17a8] sm:$0xff]
    %v937 = vld [vmem:[#allocation5 + $0x17b0] sm:$0xff]
    %v938 = vld [vmem:[#allocation5 + $0x17b8] sm:$0xff]
    %v939 = vld [vmem:[#allocation5 + $0x17c0] sm:$0xff]
    %v940 = vld [vmem:[#allocation5 + $0x17c8] sm:$0xff]
    %v941 = vld [vmem:[#allocation5 + $0x17d0] sm:$0xff]
    %v942 = vld [vmem:[#allocation5 + $0x17d8] sm:$0xff]
    %v943 = vld [vmem:[#allocation5 + $0x17e0] sm:$0xff]
    %v944 = vld [vmem:[#allocation5 + $0x17e8] sm:$0xff]
    %v945 = vld [vmem:[#allocation5 + $0x17f0] sm:$0xff]
    %v946 = vld [vmem:[#allocation5 + $0x17f8] sm:$0xff]
    %v947 = vld [vmem:[#allocation5 + $0x1800] sm:$0xff]
    %v948 = vld [vmem:[#allocation5 + $0x1808] sm:$0xff]
    %v949 = vld [vmem:[#allocation5 + $0x1810] sm:$0xff]
    %v950 = vld [vmem:[#allocation5 + $0x1818] sm:$0xff]
    %v951 = vld [vmem:[#allocation5 + $0x1820] sm:$0xff]
    %v952 = vld [vmem:[#allocation5 + $0x1828] sm:$0xff]
    %v953 = vld [vmem:[#allocation5 + $0x1830] sm:$0xff]
    %v954 = vld [vmem:[#allocation5 + $0x1838] sm:$0xff]
    %v955 = vld [vmem:[#allocation5 + $0x1840] sm:$0xff]
    %v956 = vld [vmem:[#allocation5 + $0x1848] sm:$0xff]
    %v957 = vld [vmem:[#allocation5 + $0x1850] sm:$0xff]
    %v958 = vld [vmem:[#allocation5 + $0x1858] sm:$0xff]
    %v959 = vld [vmem:[#allocation5 + $0x1860] sm:$0xff]
    %v960 = vld [vmem:[#allocation5 + $0x1868] sm:$0xff]
    %v961 = vld [vmem:[#allocation5 + $0x1870] sm:$0xff]
    %v962 = vld [vmem:[#allocation5 + $0x1878] sm:$0xff]
    %v963 = vld [vmem:[#allocation5 + $0x1880] sm:$0xff]
    %v964 = vld [vmem:[#allocation5 + $0x1888] sm:$0xff]
    %v965 = vld [vmem:[#allocation5 + $0x1890] sm:$0xff]
    %v966 = vld [vmem:[#allocation5 + $0x1898] sm:$0xff]
    %v967 = vld [vmem:[#allocation5 + $0x18a0] sm:$0xff]
    %v968 = vld [vmem:[#allocation5 + $0x18a8] sm:$0xff]
    %v969 = vld [vmem:[#allocation5 + $0x18b0] sm:$0xff]
    %v970 = vld [vmem:[#allocation5 + $0x18b8] sm:$0xff]
    %v971 = vld [vmem:[#allocation5 + $0x18c0] sm:$0xff]
    %v972 = vld [vmem:[#allocation5 + $0x18c8] sm:$0xff]
    %v973 = vld [vmem:[#allocation5 + $0x18d0] sm:$0xff]
    %v974 = vld [vmem:[#allocation5 + $0x18d8] sm:$0xff]
    %v975 = vld [vmem:[#allocation5 + $0x18e0] sm:$0xff]
    %v976 = vld [vmem:[#allocation5 + $0x18e8] sm:$0xff]
    %v977 = vld [vmem:[#allocation5 + $0x18f0] sm:$0xff]
    %v978 = vld [vmem:[#allocation5 + $0x18f8] sm:$0xff]
    %v979 = vld [vmem:[#allocation5 + $0x1900] sm:$0xff]
    %v980 = vld [vmem:[#allocation5 + $0x1908] sm:$0xff]
    %v981 = vld [vmem:[#allocation5 + $0x1910] sm:$0xff]
    %v982 = vld [vmem:[#allocation5 + $0x1918] sm:$0xff]
    %v983 = vld [vmem:[#allocation5 + $0x1920] sm:$0xff]
    %v984 = vld [vmem:[#allocation5 + $0x1928] sm:$0xff]
    %v985 = vld [vmem:[#allocation5 + $0x1930] sm:$0xff]
    %v986 = vld [vmem:[#allocation5 + $0x1938] sm:$0xff]
    %v987 = vld [vmem:[#allocation5 + $0x1940] sm:$0xff]
    %v988 = vld [vmem:[#allocation5 + $0x1948] sm:$0xff]
    %v989 = vld [vmem:[#allocation5 + $0x1950] sm:$0xff]
    %v990 = vld [vmem:[#allocation5 + $0x1958] sm:$0xff]
    %v991 = vld [vmem:[#allocation5 + $0x1960] sm:$0xff]
    %v992 = vld [vmem:[#allocation5 + $0x1968] sm:$0xff]
    %v993 = vld [vmem:[#allocation5 + $0x1970] sm:$0xff]
    %v994 = vld [vmem:[#allocation5 + $0x1978] sm:$0xff]
    %v995 = vld [vmem:[#allocation5 + $0x1980] sm:$0xff]
    %v996 = vld [vmem:[#allocation5 + $0x1988] sm:$0xff]
    %v997 = vld [vmem:[#allocation5 + $0x1990] sm:$0xff]
    %v998 = vld [vmem:[#allocation5 + $0x1998] sm:$0xff]
    %v999 = vld [vmem:[#allocation5 + $0x19a0] sm:$0xff]
    %v1000 = vld [vmem:[#allocation5 + $0x19a8] sm:$0xff]
    %v1001 = vld [vmem:[#allocation5 + $0x19b0] sm:$0xff]
    %v1002 = vld [vmem:[#allocation5 + $0x19b8] sm:$0xff]
    %v1003 = vld [vmem:[#allocation5 + $0x19c0] sm:$0xff]
    %v1004 = vld [vmem:[#allocation5 + $0x19c8] sm:$0xff]
    %v1005 = vld [vmem:[#allocation5 + $0x19d0] sm:$0xff]
    %v1006 = vld [vmem:[#allocation5 + $0x19d8] sm:$0xff]
    %v1007 = vld [vmem:[#allocation5 + $0x19e0] sm:$0xff]
    %v1008 = vld [vmem:[#allocation5 + $0x19e8] sm:$0xff]
    %v1009 = vld [vmem:[#allocation5 + $0x19f0] sm:$0xff]
    %v1010 = vld [vmem:[#allocation5 + $0x19f8] sm:$0xff]
    %v1011 = vld [vmem:[#allocation5 + $0x1a00] sm:$0xff]
    %v1012 = vld [vmem:[#allocation5 + $0x1a08] sm:$0xff]
    %v1013 = vld [vmem:[#allocation5 + $0x1a10] sm:$0xff]
    %v1014 = vld [vmem:[#allocation5 + $0x1a18] sm:$0xff]
    %v1015 = vld [vmem:[#allocation5 + $0x1a20] sm:$0xff]
    %v1016 = vld [vmem:[#allocation5 + $0x1a28] sm:$0xff]
    %v1017 = vld [vmem:[#allocation5 + $0x1a30] sm:$0xff]
    %v1018 = vld [vmem:[#allocation5 + $0x1a38] sm:$0xff]
    %v1019 = vld [vmem:[#allocation5 + $0x1a40] sm:$0xff]
    %v1020 = vld [vmem:[#allocation5 + $0x1a48] sm:$0xff]
    %v1021 = vld [vmem:[#allocation5 + $0x1a50] sm:$0xff]
    %v1022 = vld [vmem:[#allocation5 + $0x1a58] sm:$0xff]
    %v1023 = vld [vmem:[#allocation5 + $0x1a60] sm:$0xff]
    %v1024 = vld [vmem:[#allocation5 + $0x1a68] sm:$0xff]
    %v1025 = vld [vmem:[#allocation5 + $0x1a70] sm:$0xff]
    %v1026 = vld [vmem:[#allocation5 + $0x1a78] sm:$0xff]
    %v1027 = vld [vmem:[#allocation5 + $0x1a80] sm:$0xff]
    %v1028 = vld [vmem:[#allocation5 + $0x1a88] sm:$0xff]
    %v1029 = vld [vmem:[#allocation5 + $0x1a90] sm:$0xff]
    %v1030 = vld [vmem:[#allocation5 + $0x1a98] sm:$0xff]
    %v1031 = vld [vmem:[#allocation5 + $0x1aa0] sm:$0xff]
    %v1032 = vld [vmem:[#allocation5 + $0x1aa8] sm:$0xff]
    %v1033 = vld [vmem:[#allocation5 + $0x1ab0] sm:$0xff]
    %v1034 = vld [vmem:[#allocation5 + $0x1ab8] sm:$0xff]
    %v1035 = vld [vmem:[#allocation5 + $0x1ac0] sm:$0xff]
    %v1036 = vld [vmem:[#allocation5 + $0x1ac8] sm:$0xff]
    %v1037 = vld [vmem:[#allocation5 + $0x1ad0] sm:$0xff]
    %v1038 = vld [vmem:[#allocation5 + $0x1ad8] sm:$0xff]
    %v1039 = vld [vmem:[#allocation5 + $0x1ae0] sm:$0xff]
    %v1040 = vld [vmem:[#allocation5 + $0x1ae8] sm:$0xff]
    %v1041 = vld [vmem:[#allocation5 + $0x1af0] sm:$0xff]
    %v1042 = vld [vmem:[#allocation5 + $0x1af8] sm:$0xff]
    %v1043 = vld [vmem:[#allocation5 + $0x1b00] sm:$0xff]
    %v1044 = vld [vmem:[#allocation5 + $0x1b08] sm:$0xff]
    %v1045 = vld [vmem:[#allocation5 + $0x1b10] sm:$0xff]
    %v1046 = vld [vmem:[#allocation5 + $0x1b18] sm:$0xff]
    %v1047 = vld [vmem:[#allocation5 + $0x1b20] sm:$0xff]
    %v1048 = vld [vmem:[#allocation5 + $0x1b28] sm:$0xff]
    %v1049 = vld [vmem:[#allocation5 + $0x1b30] sm:$0xff]
    %v1050 = vld [vmem:[#allocation5 + $0x1b38] sm:$0xff]
    %v1051 = vld [vmem:[#allocation5 + $0x1b40] sm:$0xff]
    %v1052 = vld [vmem:[#allocation5 + $0x1b48] sm:$0xff]
    %v1053 = vld [vmem:[#allocation5 + $0x1b50] sm:$0xff]
    %v1054 = vld [vmem:[#allocation5 + $0x1b58] sm:$0xff]
    %v1055 = vld [vmem:[#allocation5 + $0x1b60] sm:$0xff]
    %v1056 = vld [vmem:[#allocation5 + $0x1b68] sm:$0xff]
    %v1057 = vld [vmem:[#allocation5 + $0x1b70] sm:$0xff]
    %v1058 = vld [vmem:[#allocation5 + $0x1b78] sm:$0xff]
    %v1059 = vld [vmem:[#allocation5 + $0x1b80] sm:$0xff]
    %v1060 = vld [vmem:[#allocation5 + $0x1b88] sm:$0xff]
    %v1061 = vld [vmem:[#allocation5 + $0x1b90] sm:$0xff]
    %v1062 = vld [vmem:[#allocation5 + $0x1b98] sm:$0xff]
    %v1063 = vld [vmem:[#allocation5 + $0x1ba0] sm:$0xff]
    %v1064 = vld [vmem:[#allocation5 + $0x1ba8] sm:$0xff]
    %v1065 = vld [vmem:[#allocation5 + $0x1bb0] sm:$0xff]
    %v1066 = vld [vmem:[#allocation5 + $0x1bb8] sm:$0xff]
    %v1067 = vld [vmem:[#allocation5 + $0x1bc0] sm:$0xff]
    %v1068 = vld [vmem:[#allocation5 + $0x1bc8] sm:$0xff]
    %v1069 = vld [vmem:[#allocation5 + $0x1bd0] sm:$0xff]
    %v1070 = vld [vmem:[#allocation5 + $0x1bd8] sm:$0xff]
    %v1071 = vld [vmem:[#allocation5 + $0x1be0] sm:$0xff]
    %v1072 = vld [vmem:[#allocation5 + $0x1be8] sm:$0xff]
    %v1073 = vld [vmem:[#allocation5 + $0x1bf0] sm:$0xff]
    %v1074 = vld [vmem:[#allocation5 + $0x1bf8] sm:$0xff]
    %v1075 = vld [vmem:[#allocation5 + $0x1c00] sm:$0xff]
    %v1076 = vld [vmem:[#allocation5 + $0x1c08] sm:$0xff]
    %v1077 = vld [vmem:[#allocation5 + $0x1c10] sm:$0xff]
    %v1078 = vld [vmem:[#allocation5 + $0x1c18] sm:$0xff]
    %v1079 = vld [vmem:[#allocation5 + $0x1c20] sm:$0xff]
    %v1080 = vld [vmem:[#allocation5 + $0x1c28] sm:$0xff]
    %v1081 = vld [vmem:[#allocation5 + $0x1c30] sm:$0xff]
    %v1082 = vld [vmem:[#allocation5 + $0x1c38] sm:$0xff]
    %v1083 = vld [vmem:[#allocation5 + $0x1c40] sm:$0xff]
    %v1084 = vld [vmem:[#allocation5 + $0x1c48] sm:$0xff]
    %v1085 = vld [vmem:[#allocation5 + $0x1c50] sm:$0xff]
    %v1086 = vld [vmem:[#allocation5 + $0x1c58] sm:$0xff]
    %v1087 = vld [vmem:[#allocation5 + $0x1c60] sm:$0xff]
    %v1088 = vld [vmem:[#allocation5 + $0x1c68] sm:$0xff]
    %v1089 = vld [vmem:[#allocation5 + $0x1c70] sm:$0xff]
    %v1090 = vld [vmem:[#allocation5 + $0x1c78] sm:$0xff]
    %v1091 = vld [vmem:[#allocation5 + $0x1c80] sm:$0xff]
    %v1092 = vld [vmem:[#allocation5 + $0x1c88] sm:$0xff]
    %v1093 = vld [vmem:[#allocation5 + $0x1c90] sm:$0xff]
    %v1094 = vld [vmem:[#allocation5 + $0x1c98] sm:$0xff]
    %v1095 = vld [vmem:[#allocation5 + $0x1ca0] sm:$0xff]
    %v1096 = vld [vmem:[#allocation5 + $0x1ca8] sm:$0xff]
    %v1097 = vld [vmem:[#allocation5 + $0x1cb0] sm:$0xff]
    %v1098 = vld [vmem:[#allocation5 + $0x1cb8] sm:$0xff]
    %v1099 = vld [vmem:[#allocation5 + $0x1cc0] sm:$0xff]
    %v1100 = vld [vmem:[#allocation5 + $0x1cc8] sm:$0xff]
    %v1101 = vld [vmem:[#allocation5 + $0x1cd0] sm:$0xff]
    %v1102 = vld [vmem:[#allocation5 + $0x1cd8] sm:$0xff]
    %v1103 = vld [vmem:[#allocation5 + $0x1ce0] sm:$0xff]
    %v1104 = vld [vmem:[#allocation5 + $0x1ce8] sm:$0xff]
    %v1105 = vld [vmem:[#allocation5 + $0x1cf0] sm:$0xff]
    %v1106 = vld [vmem:[#allocation5 + $0x1cf8] sm:$0xff]
    %v1107 = vld [vmem:[#allocation5 + $0x1d00] sm:$0xff]
    %v1108 = vld [vmem:[#allocation5 + $0x1d08] sm:$0xff]
    %v1109 = vld [vmem:[#allocation5 + $0x1d10] sm:$0xff]
    %v1110 = vld [vmem:[#allocation5 + $0x1d18] sm:$0xff]
    %v1111 = vld [vmem:[#allocation5 + $0x1d20] sm:$0xff]
    %v1112 = vld [vmem:[#allocation5 + $0x1d28] sm:$0xff]
    %v1113 = vld [vmem:[#allocation5 + $0x1d30] sm:$0xff]
    %v1114 = vld [vmem:[#allocation5 + $0x1d38] sm:$0xff]
    %v1115 = vld [vmem:[#allocation5 + $0x1d40] sm:$0xff]
    %v1116 = vld [vmem:[#allocation5 + $0x1d48] sm:$0xff]
    %v1117 = vld [vmem:[#allocation5 + $0x1d50] sm:$0xff]
    %v1118 = vld [vmem:[#allocation5 + $0x1d58] sm:$0xff]
    %v1119 = vld [vmem:[#allocation5 + $0x1d60] sm:$0xff]
    %v1120 = vld [vmem:[#allocation5 + $0x1d68] sm:$0xff]
    %v1121 = vld [vmem:[#allocation5 + $0x1d70] sm:$0xff]
    %v1122 = vld [vmem:[#allocation5 + $0x1d78] sm:$0xff]
    %v1123 = vld [vmem:[#allocation5 + $0x1d80] sm:$0xff]
    %v1124 = vld [vmem:[#allocation5 + $0x1d88] sm:$0xff]
    %v1125 = vld [vmem:[#allocation5 + $0x1d90] sm:$0xff]
    %v1126 = vld [vmem:[#allocation5 + $0x1d98] sm:$0xff]
    %v1127 = vld [vmem:[#allocation5 + $0x1da0] sm:$0xff]
    %v1128 = vld [vmem:[#allocation5 + $0x1da8] sm:$0xff]
    %v1129 = vld [vmem:[#allocation5 + $0x1db0] sm:$0xff]
    %v1130 = vld [vmem:[#allocation5 + $0x1db8] sm:$0xff]
    %v1131 = vld [vmem:[#allocation5 + $0x1dc0] sm:$0xff]
    %v1132 = vld [vmem:[#allocation5 + $0x1dc8] sm:$0xff]
    %v1133 = vld [vmem:[#allocation5 + $0x1dd0] sm:$0xff]
    %v1134 = vld [vmem:[#allocation5 + $0x1dd8] sm:$0xff]
    %v1135 = vld [vmem:[#allocation5 + $0x1de0] sm:$0xff]
    %v1136 = vld [vmem:[#allocation5 + $0x1de8] sm:$0xff]
    %v1137 = vld [vmem:[#allocation5 + $0x1df0] sm:$0xff]
    %v1138 = vld [vmem:[#allocation5 + $0x1df8] sm:$0xff]
    %v1139 = vld [vmem:[#allocation5 + $0x1e00] sm:$0xff]
    %v1140 = vld [vmem:[#allocation5 + $0x1e08] sm:$0xff]
    %v1141 = vld [vmem:[#allocation5 + $0x1e10] sm:$0xff]
    %v1142 = vld [vmem:[#allocation5 + $0x1e18] sm:$0xff]
    %v1143 = vld [vmem:[#allocation5 + $0x1e20] sm:$0xff]
    %v1144 = vld [vmem:[#allocation5 + $0x1e28] sm:$0xff]
    %v1145 = vld [vmem:[#allocation5 + $0x1e30] sm:$0xff]
    %v1146 = vld [vmem:[#allocation5 + $0x1e38] sm:$0xff]
    %v1147 = vld [vmem:[#allocation5 + $0x1e40] sm:$0xff]
    %v1148 = vld [vmem:[#allocation5 + $0x1e48] sm:$0xff]
    %v1149 = vld [vmem:[#allocation5 + $0x1e50] sm:$0xff]
    %v1150 = vld [vmem:[#allocation5 + $0x1e58] sm:$0xff]
    %v1151 = vld [vmem:[#allocation5 + $0x1e60] sm:$0xff]
    %v1152 = vld [vmem:[#allocation5 + $0x1e68] sm:$0xff]
    %v1153 = vld [vmem:[#allocation5 + $0x1e70] sm:$0xff]
    %v1154 = vld [vmem:[#allocation5 + $0x1e78] sm:$0xff]
    %v1155 = vld [vmem:[#allocation5 + $0x1e80] sm:$0xff]
    %v1156 = vld [vmem:[#allocation5 + $0x1e88] sm:$0xff]
    %v1157 = vld [vmem:[#allocation5 + $0x1e90] sm:$0xff]
    %v1158 = vld [vmem:[#allocation5 + $0x1e98] sm:$0xff]
    %v1159 = vld [vmem:[#allocation5 + $0x1ea0] sm:$0xff]
    %v1160 = vld [vmem:[#allocation5 + $0x1ea8] sm:$0xff]
    %v1161 = vld [vmem:[#allocation5 + $0x1eb0] sm:$0xff]
    %v1162 = vld [vmem:[#allocation5 + $0x1eb8] sm:$0xff]
    %v1163 = vld [vmem:[#allocation5 + $0x1ec0] sm:$0xff]
    %v1164 = vld [vmem:[#allocation5 + $0x1ec8] sm:$0xff]
    %v1165 = vld [vmem:[#allocation5 + $0x1ed0] sm:$0xff]
    %v1166 = vld [vmem:[#allocation5 + $0x1ed8] sm:$0xff]
    %v1167 = vld [vmem:[#allocation5 + $0x1ee0] sm:$0xff]
    %v1168 = vld [vmem:[#allocation5 + $0x1ee8] sm:$0xff]
    %v1169 = vld [vmem:[#allocation5 + $0x1ef0] sm:$0xff]
    %v1170 = vld [vmem:[#allocation5 + $0x1ef8] sm:$0xff]
    %v1171 = vld [vmem:[#allocation5 + $0x1f00] sm:$0xff]
    %v1172 = vld [vmem:[#allocation5 + $0x1f08] sm:$0xff]
    %v1173 = vld [vmem:[#allocation5 + $0x1f10] sm:$0xff]
    %v1174 = vld [vmem:[#allocation5 + $0x1f18] sm:$0xff]
    %v1175 = vld [vmem:[#allocation5 + $0x1f20] sm:$0xff]
    %v1176 = vld [vmem:[#allocation5 + $0x1f28] sm:$0xff]
    %v1177 = vld [vmem:[#allocation5 + $0x1f30] sm:$0xff]
    %v1178 = vld [vmem:[#allocation5 + $0x1f38] sm:$0xff]
    %v1179 = vld [vmem:[#allocation7] sm:$0xff]
    %v1181 = vperm.slane %v1179, 0
    %v1182 = vperm.slane %v1179, 1
    %v1183 = vperm.slane %v1179, 2
    %v1184 = vperm.slane %v1179, 3
    %v1185 = vperm.slane %v1179, 4
    %v1186 = vperm.slane %v1179, 5
    %v1187 = vperm.slane %v1179, 6
    %v1188 = vperm.slane %v1179, 7
    %v2197 = vunpack.c.l.b16 %v179
    %v2198 = vunpack.c.h.b16 %v179
    %v2199 = vunpack.c.l.b16 %v180
    %v2200 = vunpack.c.h.b16 %v180
    %v2201 = vunpack.c.l.b16 %v181
    %v2202 = vunpack.c.h.b16 %v181
    %v2203 = vunpack.c.l.b16 %v182
    %v2204 = vunpack.c.h.b16 %v182
    %v2205 = vunpack.c.l.b16 %v183
    %v2206 = vunpack.c.h.b16 %v183
    %v2207 = vunpack.c.l.b16 %v184
    %v2208 = vunpack.c.h.b16 %v184
    %v2209 = vunpack.c.l.b16 %v185
    %v2210 = vunpack.c.h.b16 %v185
    %v2211 = vunpack.c.l.b16 %v186
    %v2212 = vunpack.c.h.b16 %v186
    %v2213 = vunpack.c.l.b16 %v187
    %v2214 = vunpack.c.h.b16 %v187
    %v2215 = vunpack.c.l.b16 %v188
    %v2216 = vunpack.c.h.b16 %v188
    %v2217 = vunpack.c.l.b16 %v189
    %v2218 = vunpack.c.h.b16 %v189
    %v2219 = vunpack.c.l.b16 %v190
    %v2220 = vunpack.c.h.b16 %v190
    %v2221 = vunpack.c.l.b16 %v191
    %v2222 = vunpack.c.h.b16 %v191
    %v2223 = vunpack.c.l.b16 %v192
    %v2224 = vunpack.c.h.b16 %v192
    %v2225 = vunpack.c.l.b16 %v193
    %v2226 = vunpack.c.h.b16 %v193
    %v2227 = vunpack.c.l.b16 %v194
    %v2228 = vunpack.c.h.b16 %v194
    %v2229 = vunpack.c.l.b16 %v195
    %v2230 = vunpack.c.h.b16 %v195
    %v2231 = vunpack.c.l.b16 %v196
    %v2232 = vunpack.c.h.b16 %v196
    %v2233 = vunpack.c.l.b16 %v197
    %v2234 = vunpack.c.h.b16 %v197
    %v2235 = vunpack.c.l.b16 %v198
    %v2236 = vunpack.c.h.b16 %v198
    %v2237 = vunpack.c.l.b16 %v199
    %v2238 = vunpack.c.h.b16 %v199
    %v2239 = vunpack.c.l.b16 %v200
    %v2240 = vunpack.c.h.b16 %v200
    %v2241 = vunpack.c.l.b16 %v201
    %v2242 = vunpack.c.h.b16 %v201
    %v2243 = vunpack.c.l.b16 %v202
    %v2244 = vunpack.c.h.b16 %v202
    %v2245 = vunpack.c.l.b16 %v203
    %v2246 = vunpack.c.h.b16 %v203
    %v2247 = vunpack.c.l.b16 %v204
    %v2248 = vunpack.c.h.b16 %v204
    %v2249 = vunpack.c.l.b16 %v205
    %v2250 = vunpack.c.h.b16 %v205
    %v2251 = vunpack.c.l.b16 %v206
    %v2252 = vunpack.c.h.b16 %v206
    %v2253 = vunpack.c.l.b16 %v207
    %v2254 = vunpack.c.h.b16 %v207
    %v2255 = vunpack.c.l.b16 %v208
    %v2256 = vunpack.c.h.b16 %v208
    %v2257 = vunpack.c.l.b16 %v209
    %v2258 = vunpack.c.h.b16 %v209
    %v2259 = vunpack.c.l.b16 %v210
    %v2260 = vunpack.c.h.b16 %v210
    %v2261 = vunpack.c.l.b16 %v211
    %v2262 = vunpack.c.h.b16 %v211
    %v2263 = vunpack.c.l.b16 %v212
    %v2264 = vunpack.c.h.b16 %v212
    %v2265 = vunpack.c.l.b16 %v213
    %v2266 = vunpack.c.h.b16 %v213
    %v2267 = vunpack.c.l.b16 %v214
    %v2268 = vunpack.c.h.b16 %v214
    %v2269 = vunpack.c.l.b16 %v215
    %v2270 = vunpack.c.h.b16 %v215
    %v2271 = vunpack.c.l.b16 %v216
    %v2272 = vunpack.c.h.b16 %v216
    %v2273 = vunpack.c.l.b16 %v217
    %v2274 = vunpack.c.h.b16 %v217
    %v2275 = vunpack.c.l.b16 %v218
    %v2276 = vunpack.c.h.b16 %v218
    %v2277 = vunpack.c.l.b16 %v219
    %v2278 = vunpack.c.h.b16 %v219
    %v2279 = vunpack.c.l.b16 %v220
    %v2280 = vunpack.c.h.b16 %v220
    %v2281 = vunpack.c.l.b16 %v221
    %v2282 = vunpack.c.h.b16 %v221
    %v2283 = vunpack.c.l.b16 %v222
    %v2284 = vunpack.c.h.b16 %v222
    %v2285 = vunpack.c.l.b16 %v223
    %v2286 = vunpack.c.h.b16 %v223
    %v2287 = vunpack.c.l.b16 %v224
    %v2288 = vunpack.c.h.b16 %v224
    %v2289 = vunpack.c.l.b16 %v225
    %v2290 = vunpack.c.h.b16 %v225
    %v2291 = vunpack.c.l.b16 %v226
    %v2292 = vunpack.c.h.b16 %v226
    %v2293 = vunpack.c.l.b16 %v227
    %v2294 = vunpack.c.h.b16 %v227
    %v2295 = vunpack.c.l.b16 %v228
    %v2296 = vunpack.c.h.b16 %v228
    %v2297 = vunpack.c.l.b16 %v229
    %v2298 = vunpack.c.h.b16 %v229
    %v2299 = vunpack.c.l.b16 %v230
    %v2300 = vunpack.c.h.b16 %v230
    %v2301 = vunpack.c.l.b16 %v231
    %v2302 = vunpack.c.h.b16 %v231
    %v2303 = vunpack.c.l.b16 %v232
    %v2304 = vunpack.c.h.b16 %v232
    %v2305 = vunpack.c.l.b16 %v233
    %v2306 = vunpack.c.h.b16 %v233
    %v2307 = vunpack.c.l.b16 %v234
    %v2308 = vunpack.c.h.b16 %v234
    %v2309 = vunpack.c.l.b16 %v235
    %v2310 = vunpack.c.h.b16 %v235
    %v2311 = vunpack.c.l.b16 %v236
    %v2312 = vunpack.c.h.b16 %v236
    %v2313 = vunpack.c.l.b16 %v237
    %v2314 = vunpack.c.h.b16 %v237
    %v2315 = vunpack.c.l.b16 %v238
    %v2316 = vunpack.c.h.b16 %v238
    %v2317 = vunpack.c.l.b16 %v239
    %v2318 = vunpack.c.h.b16 %v239
    %v2319 = vunpack.c.l.b16 %v240
    %v2320 = vunpack.c.h.b16 %v240
    %v2321 = vunpack.c.l.b16 %v241
    %v2322 = vunpack.c.h.b16 %v241
    %v2323 = vunpack.c.l.b16 %v242
    %v2324 = vunpack.c.h.b16 %v242
    %v2325 = vunpack.c.l.b16 %v243
    %v2326 = vunpack.c.h.b16 %v243
    %v2327 = vunpack.c.l.b16 %v244
    %v2328 = vunpack.c.h.b16 %v244
    %v2329 = vunpack.c.l.b16 %v245
    %v2330 = vunpack.c.h.b16 %v245
    %v2331 = vunpack.c.l.b16 %v246
    %v2332 = vunpack.c.h.b16 %v246
    %v2333 = vunpack.c.l.b16 %v247
    %v2334 = vunpack.c.h.b16 %v247
    %v2335 = vunpack.c.l.b16 %v248
    %v2336 = vunpack.c.h.b16 %v248
    %v2337 = vunpack.c.l.b16 %v249
    %v2338 = vunpack.c.h.b16 %v249
    %v2339 = vunpack.c.l.b16 %v250
    %v2340 = vunpack.c.h.b16 %v250
    %v2341 = vunpack.c.l.b16 %v251
    %v2342 = vunpack.c.h.b16 %v251
    %v2343 = vunpack.c.l.b16 %v252
    %v2344 = vunpack.c.h.b16 %v252
    %v2345 = vunpack.c.l.b16 %v253
    %v2346 = vunpack.c.h.b16 %v253
    %v2347 = vunpack.c.l.b16 %v254
    %v2348 = vunpack.c.h.b16 %v254
    %v2349 = vunpack.c.l.b16 %v255
    %v2350 = vunpack.c.h.b16 %v255
    %v2351 = vunpack.c.l.b16 %v256
    %v2352 = vunpack.c.h.b16 %v256
    %v2353 = vunpack.c.l.b16 %v257
    %v2354 = vunpack.c.h.b16 %v257
    %v2355 = vunpack.c.l.b16 %v258
    %v2356 = vunpack.c.h.b16 %v258
    %v2357 = vunpack.c.l.b16 %v259
    %v2358 = vunpack.c.h.b16 %v259
    %v2359 = vunpack.c.l.b16 %v260
    %v2360 = vunpack.c.h.b16 %v260
    %v2361 = vunpack.c.l.b16 %v261
    %v2362 = vunpack.c.h.b16 %v261
    %v2363 = vunpack.c.l.b16 %v262
    %v2364 = vunpack.c.h.b16 %v262
    %v2365 = vunpack.c.l.b16 %v263
    %v2366 = vunpack.c.h.b16 %v263
    %v2367 = vunpack.c.l.b16 %v264
    %v2368 = vunpack.c.h.b16 %v264
    %v2369 = vunpack.c.l.b16 %v265
    %v2370 = vunpack.c.h.b16 %v265
    %v2371 = vunpack.c.l.b16 %v266
    %v2372 = vunpack.c.h.b16 %v266
    %v2373 = vunpack.c.l.b16 %v267
    %v2374 = vunpack.c.h.b16 %v267
    %v2375 = vunpack.c.l.b16 %v268
    %v2376 = vunpack.c.h.b16 %v268
    %v2377 = vunpack.c.l.b16 %v269
    %v2378 = vunpack.c.h.b16 %v269
    %v2379 = vunpack.c.l.b16 %v270
    %v2380 = vunpack.c.h.b16 %v270
    %v2381 = vunpack.c.l.b16 %v271
    %v2382 = vunpack.c.h.b16 %v271
    %v2383 = vunpack.c.l.b16 %v272
    %v2384 = vunpack.c.h.b16 %v272
    %v2385 = vunpack.c.l.b16 %v273
    %v2386 = vunpack.c.h.b16 %v273
    %v2387 = vunpack.c.l.b16 %v274
    %v2388 = vunpack.c.h.b16 %v274
    %v2389 = vunpack.c.l.b16 %v275
    %v2390 = vunpack.c.h.b16 %v275
    %v2391 = vunpack.c.l.b16 %v276
    %v2392 = vunpack.c.h.b16 %v276
    %v2393 = vunpack.c.l.b16 %v277
    %v2394 = vunpack.c.h.b16 %v277
    %v2395 = vunpack.c.l.b16 %v278
    %v2396 = vunpack.c.h.b16 %v278
    %v2397 = vunpack.c.l.b16 %v279
    %v2398 = vunpack.c.h.b16 %v279
    %v2399 = vunpack.c.l.b16 %v280
    %v2400 = vunpack.c.h.b16 %v280
    %v2401 = vunpack.c.l.b16 %v281
    %v2402 = vunpack.c.h.b16 %v281
    %v2403 = vunpack.c.l.b16 %v282
    %v2404 = vunpack.c.h.b16 %v282
    %v2405 = vunpack.c.l.b16 %v283
    %v2406 = vunpack.c.h.b16 %v283
    %v2407 = vunpack.c.l.b16 %v284
    %v2408 = vunpack.c.h.b16 %v284
    %v2409 = vunpack.c.l.b16 %v285
    %v2410 = vunpack.c.h.b16 %v285
    %v2411 = vunpack.c.l.b16 %v286
    %v2412 = vunpack.c.h.b16 %v286
    %v2413 = vunpack.c.l.b16 %v287
    %v2414 = vunpack.c.h.b16 %v287
    %v2415 = vunpack.c.l.b16 %v288
    %v2416 = vunpack.c.h.b16 %v288
    %v2417 = vunpack.c.l.b16 %v289
    %v2418 = vunpack.c.h.b16 %v289
    %v2419 = vunpack.c.l.b16 %v290
    %v2420 = vunpack.c.h.b16 %v290
    %v2421 = vunpack.c.l.b16 %v291
    %v2422 = vunpack.c.h.b16 %v291
    %v2423 = vunpack.c.l.b16 %v292
    %v2424 = vunpack.c.h.b16 %v292
    %v2425 = vunpack.c.l.b16 %v293
    %v2426 = vunpack.c.h.b16 %v293
    %v2427 = vunpack.c.l.b16 %v294
    %v2428 = vunpack.c.h.b16 %v294
    %v2429 = vunpack.c.l.b16 %v295
    %v2430 = vunpack.c.h.b16 %v295
    %v2431 = vunpack.c.l.b16 %v296
    %v2432 = vunpack.c.h.b16 %v296
    %v2433 = vunpack.c.l.b16 %v297
    %v2434 = vunpack.c.h.b16 %v297
    %v2435 = vunpack.c.l.b16 %v298
    %v2436 = vunpack.c.h.b16 %v298
    %v2437 = vunpack.c.l.b16 %v299
    %v2438 = vunpack.c.h.b16 %v299
    %v2439 = vunpack.c.l.b16 %v300
    %v2440 = vunpack.c.h.b16 %v300
    %v2441 = vunpack.c.l.b16 %v301
    %v2442 = vunpack.c.h.b16 %v301
    %v2443 = vunpack.c.l.b16 %v302
    %v2444 = vunpack.c.h.b16 %v302
    %v2445 = vunpack.c.l.b16 %v303
    %v2446 = vunpack.c.h.b16 %v303
    %v2447 = vunpack.c.l.b16 %v304
    %v2448 = vunpack.c.h.b16 %v304
    %v2449 = vunpack.c.l.b16 %v305
    %v2450 = vunpack.c.h.b16 %v305
    %v2451 = vunpack.c.l.b16 %v306
    %v2452 = vunpack.c.h.b16 %v306
    %v2453 = vunpack.c.l.b16 %v307
    %v2454 = vunpack.c.h.b16 %v307
    %v2455 = vunpack.c.l.b16 %v308
    %v2456 = vunpack.c.h.b16 %v308
    %v2457 = vunpack.c.l.b16 %v309
    %v2458 = vunpack.c.h.b16 %v309
    %v2459 = vunpack.c.l.b16 %v310
    %v2460 = vunpack.c.h.b16 %v310
    %v2461 = vunpack.c.l.b16 %v311
    %v2462 = vunpack.c.h.b16 %v311
    %v2463 = vunpack.c.l.b16 %v312
    %v2464 = vunpack.c.h.b16 %v312
    %v2465 = vunpack.c.l.b16 %v313
    %v2466 = vunpack.c.h.b16 %v313
    %v2467 = vunpack.c.l.b16 %v314
    %v2468 = vunpack.c.h.b16 %v314
    %v2469 = vunpack.c.l.b16 %v315
    %v2470 = vunpack.c.h.b16 %v315
    %v2471 = vunpack.c.l.b16 %v316
    %v2472 = vunpack.c.h.b16 %v316
    %v2473 = vunpack.c.l.b16 %v317
    %v2474 = vunpack.c.h.b16 %v317
    %v2475 = vunpack.c.l.b16 %v318
    %v2476 = vunpack.c.h.b16 %v318
    %v2477 = vunpack.c.l.b16 %v319
    %v2478 = vunpack.c.h.b16 %v319
    %v2479 = vunpack.c.l.b16 %v320
    %v2480 = vunpack.c.h.b16 %v320
    %v2481 = vunpack.c.l.b16 %v321
    %v2482 = vunpack.c.h.b16 %v321
    %v2483 = vunpack.c.l.b16 %v322
    %v2484 = vunpack.c.h.b16 %v322
    %v2485 = vunpack.c.l.b16 %v323
    %v2486 = vunpack.c.h.b16 %v323
    %v2487 = vunpack.c.l.b16 %v324
    %v2488 = vunpack.c.h.b16 %v324
    %v2489 = vunpack.c.l.b16 %v325
    %v2490 = vunpack.c.h.b16 %v325
    %v2491 = vunpack.c.l.b16 %v326
    %v2492 = vunpack.c.h.b16 %v326
    %v2493 = vunpack.c.l.b16 %v327
    %v2494 = vunpack.c.h.b16 %v327
    %v2495 = vunpack.c.l.b16 %v328
    %v2496 = vunpack.c.h.b16 %v328
    %v2497 = vunpack.c.l.b16 %v329
    %v2498 = vunpack.c.h.b16 %v329
    %v2499 = vunpack.c.l.b16 %v330
    %v2500 = vunpack.c.h.b16 %v330
    %v2501 = vunpack.c.l.b16 %v331
    %v2502 = vunpack.c.h.b16 %v331
    %v2503 = vunpack.c.l.b16 %v332
    %v2504 = vunpack.c.h.b16 %v332
    %v2505 = vunpack.c.l.b16 %v333
    %v2506 = vunpack.c.h.b16 %v333
    %v2507 = vunpack.c.l.b16 %v334
    %v2508 = vunpack.c.h.b16 %v334
    %v2509 = vunpack.c.l.b16 %v335
    %v2510 = vunpack.c.h.b16 %v335
    %v2511 = vunpack.c.l.b16 %v336
    %v2512 = vunpack.c.h.b16 %v336
    %v2513 = vunpack.c.l.b16 %v337
    %v2514 = vunpack.c.h.b16 %v337
    %v2515 = vunpack.c.l.b16 %v338
    %v2516 = vunpack.c.h.b16 %v338
    %v2517 = vunpack.c.l.b16 %v339
    %v2518 = vunpack.c.h.b16 %v339
    %v2519 = vunpack.c.l.b16 %v340
    %v2520 = vunpack.c.h.b16 %v340
    %v2521 = vunpack.c.l.b16 %v341
    %v2522 = vunpack.c.h.b16 %v341
    %v2523 = vunpack.c.l.b16 %v342
    %v2524 = vunpack.c.h.b16 %v342
    %v2525 = vunpack.c.l.b16 %v343
    %v2526 = vunpack.c.h.b16 %v343
    %v2527 = vunpack.c.l.b16 %v344
    %v2528 = vunpack.c.h.b16 %v344
    %v2529 = vunpack.c.l.b16 %v345
    %v2530 = vunpack.c.h.b16 %v345
    %v2531 = vunpack.c.l.b16 %v346
    %v2532 = vunpack.c.h.b16 %v346
    %v2533 = vunpack.c.l.b16 %v347
    %v2534 = vunpack.c.h.b16 %v347
    %v2535 = vunpack.c.l.b16 %v348
    %v2536 = vunpack.c.h.b16 %v348
    %v2537 = vunpack.c.l.b16 %v349
    %v2538 = vunpack.c.h.b16 %v349
    %v2539 = vunpack.c.l.b16 %v350
    %v2540 = vunpack.c.h.b16 %v350
    %v2541 = vunpack.c.l.b16 %v351
    %v2542 = vunpack.c.h.b16 %v351
    %v2543 = vunpack.c.l.b16 %v352
    %v2544 = vunpack.c.h.b16 %v352
    %v2545 = vunpack.c.l.b16 %v353
    %v2546 = vunpack.c.h.b16 %v353
    %v2547 = vunpack.c.l.b16 %v354
    %v2548 = vunpack.c.h.b16 %v354
    %v2549 = vunpack.c.l.b16 %v355
    %v2550 = vunpack.c.h.b16 %v355
    %v2551 = vunpack.c.l.b16 %v356
    %v2552 = vunpack.c.h.b16 %v356
    %v2553 = vunpack.c.l.b16 %v357
    %v2554 = vunpack.c.h.b16 %v357
    %v2555 = vunpack.c.l.b16 %v358
    %v2556 = vunpack.c.h.b16 %v358
    %v2557 = vunpack.c.l.b16 %v359
    %v2558 = vunpack.c.h.b16 %v359
    %v2559 = vunpack.c.l.b16 %v360
    %v2560 = vunpack.c.h.b16 %v360
    %v2561 = vunpack.c.l.b16 %v361
    %v2562 = vunpack.c.h.b16 %v361
    %v2563 = vunpack.c.l.b16 %v362
    %v2564 = vunpack.c.h.b16 %v362
    %v2565 = vunpack.c.l.b16 %v363
    %v2566 = vunpack.c.h.b16 %v363
    %v2567 = vunpack.c.l.b16 %v364
    %v2568 = vunpack.c.h.b16 %v364
    %v2569 = vunpack.c.l.b16 %v365
    %v2570 = vunpack.c.h.b16 %v365
    %v2571 = vunpack.c.l.b16 %v366
    %v2572 = vunpack.c.h.b16 %v366
    %v2573 = vunpack.c.l.b16 %v367
    %v2574 = vunpack.c.h.b16 %v367
    %v2575 = vunpack.c.l.b16 %v368
    %v2576 = vunpack.c.h.b16 %v368
    %v2577 = vunpack.c.l.b16 %v369
    %v2578 = vunpack.c.h.b16 %v369
    %v2579 = vunpack.c.l.b16 %v370
    %v2580 = vunpack.c.h.b16 %v370
    %v2581 = vunpack.c.l.b16 %v371
    %v2582 = vunpack.c.h.b16 %v371
    %v2583 = vunpack.c.l.b16 %v372
    %v2584 = vunpack.c.h.b16 %v372
    %v2585 = vunpack.c.l.b16 %v373
    %v2586 = vunpack.c.h.b16 %v373
    %v2587 = vunpack.c.l.b16 %v374
    %v2588 = vunpack.c.h.b16 %v374
    %v2589 = vunpack.c.l.b16 %v375
    %v2590 = vunpack.c.h.b16 %v375
    %v2591 = vunpack.c.l.b16 %v376
    %v2592 = vunpack.c.h.b16 %v376
    %v2593 = vunpack.c.l.b16 %v377
    %v2594 = vunpack.c.h.b16 %v377
    %v2595 = vunpack.c.l.b16 %v378
    %v2596 = vunpack.c.h.b16 %v378
    %v2597 = vunpack.c.l.b16 %v379
    %v2598 = vunpack.c.h.b16 %v379
    %v2599 = vunpack.c.l.b16 %v380
    %v2600 = vunpack.c.h.b16 %v380
    %v2601 = vunpack.c.l.b16 %v381
    %v2602 = vunpack.c.h.b16 %v381
    %v2603 = vunpack.c.l.b16 %v382
    %v2604 = vunpack.c.h.b16 %v382
    %v2605 = vunpack.c.l.b16 %v383
    %v2606 = vunpack.c.h.b16 %v383
    %v2607 = vunpack.c.l.b16 %v384
    %v2608 = vunpack.c.h.b16 %v384
    %v2609 = vunpack.c.l.b16 %v385
    %v2610 = vunpack.c.h.b16 %v385
    %v2611 = vunpack.c.l.b16 %v386
    %v2612 = vunpack.c.h.b16 %v386
    %v2613 = vunpack.c.l.b16 %v387
    %v2614 = vunpack.c.h.b16 %v387
    %v2615 = vunpack.c.l.b16 %v388
    %v2616 = vunpack.c.h.b16 %v388
    %v2617 = vunpack.c.l.b16 %v389
    %v2618 = vunpack.c.h.b16 %v389
    %v2619 = vunpack.c.l.b16 %v390
    %v2620 = vunpack.c.h.b16 %v390
    %v2621 = vunpack.c.l.b16 %v391
    %v2622 = vunpack.c.h.b16 %v391
    %v2623 = vunpack.c.l.b16 %v392
    %v2624 = vunpack.c.h.b16 %v392
    %v2625 = vunpack.c.l.b16 %v393
    %v2626 = vunpack.c.h.b16 %v393
    %v2627 = vunpack.c.l.b16 %v394
    %v2628 = vunpack.c.h.b16 %v394
    %v2629 = vunpack.c.l.b16 %v395
    %v2630 = vunpack.c.h.b16 %v395
    %v2631 = vunpack.c.l.b16 %v396
    %v2632 = vunpack.c.h.b16 %v396
    %v2633 = vunpack.c.l.b16 %v397
    %v2634 = vunpack.c.h.b16 %v397
    %v2635 = vunpack.c.l.b16 %v398
    %v2636 = vunpack.c.h.b16 %v398
    %v2637 = vunpack.c.l.b16 %v399
    %v2638 = vunpack.c.h.b16 %v399
    %v2639 = vunpack.c.l.b16 %v400
    %v2640 = vunpack.c.h.b16 %v400
    %v2641 = vunpack.c.l.b16 %v401
    %v2642 = vunpack.c.h.b16 %v401
    %v2643 = vunpack.c.l.b16 %v402
    %v2644 = vunpack.c.h.b16 %v402
    %v2645 = vunpack.c.l.b16 %v403
    %v2646 = vunpack.c.h.b16 %v403
    %v2647 = vunpack.c.l.b16 %v404
    %v2648 = vunpack.c.h.b16 %v404
    %v2649 = vunpack.c.l.b16 %v405
    %v2650 = vunpack.c.h.b16 %v405
    %v2651 = vunpack.c.l.b16 %v406
    %v2652 = vunpack.c.h.b16 %v406
    %v2653 = vunpack.c.l.b16 %v407
    %v2654 = vunpack.c.h.b16 %v407
    %v2655 = vunpack.c.l.b16 %v408
    %v2656 = vunpack.c.h.b16 %v408
    %v2657 = vunpack.c.l.b16 %v409
    %v2658 = vunpack.c.h.b16 %v409
    %v2659 = vunpack.c.l.b16 %v410
    %v2660 = vunpack.c.h.b16 %v410
    %v2661 = vunpack.c.l.b16 %v411
    %v2662 = vunpack.c.h.b16 %v411
    %v2663 = vunpack.c.l.b16 %v412
    %v2664 = vunpack.c.h.b16 %v412
    %v2665 = vunpack.c.l.b16 %v413
    %v2666 = vunpack.c.h.b16 %v413
    %v2667 = vunpack.c.l.b16 %v414
    %v2668 = vunpack.c.h.b16 %v414
    %v2669 = vunpack.c.l.b16 %v415
    %v2670 = vunpack.c.h.b16 %v415
    %v2671 = vunpack.c.l.b16 %v416
    %v2672 = vunpack.c.h.b16 %v416
    %v2673 = vunpack.c.l.b16 %v417
    %v2674 = vunpack.c.h.b16 %v417
    %v2675 = vunpack.c.l.b16 %v418
    %v2676 = vunpack.c.h.b16 %v418
    %v2677 = vunpack.c.l.b16 %v419
    %v2678 = vunpack.c.h.b16 %v419
    %v2679 = vunpack.c.l.b16 %v420
    %v2680 = vunpack.c.h.b16 %v420
    %v2681 = vunpack.c.l.b16 %v421
    %v2682 = vunpack.c.h.b16 %v421
    %v2683 = vunpack.c.l.b16 %v422
    %v2684 = vunpack.c.h.b16 %v422
    %v2685 = vunpack.c.l.b16 %v423
    %v2686 = vunpack.c.h.b16 %v423
    %v2687 = vunpack.c.l.b16 %v424
    %v2688 = vunpack.c.h.b16 %v424
    %v2689 = vunpack.c.l.b16 %v425
    %v2690 = vunpack.c.h.b16 %v425
    %v2691 = vunpack.c.l.b16 %v426
    %v2692 = vunpack.c.h.b16 %v426
    %v2693 = vunpack.c.l.b16 %v427
    %v2694 = vunpack.c.h.b16 %v427
    %v2695 = vunpack.c.l.b16 %v428
    %v2696 = vunpack.c.h.b16 %v428
    %v2697 = vunpack.c.l.b16 %v429
    %v2698 = vunpack.c.h.b16 %v429
    %v2699 = vunpack.c.l.b16 %v430
    %v2700 = vunpack.c.h.b16 %v430
    %v2701 = vunpack.c.l.b16 %v431
    %v2702 = vunpack.c.h.b16 %v431
    %v2703 = vunpack.c.l.b16 %v432
    %v2704 = vunpack.c.h.b16 %v432
    %v2705 = vunpack.c.l.b16 %v433
    %v2706 = vunpack.c.h.b16 %v433
    %v2707 = vunpack.c.l.b16 %v434
    %v2708 = vunpack.c.h.b16 %v434
    %v2709 = vunpack.c.l.b16 %v435
    %v2710 = vunpack.c.h.b16 %v435
    %v2711 = vunpack.c.l.b16 %v436
    %v2712 = vunpack.c.h.b16 %v436
    %v2713 = vunpack.c.l.b16 %v437
    %v2714 = vunpack.c.h.b16 %v437
    %v2715 = vunpack.c.l.b16 %v438
    %v2716 = vunpack.c.h.b16 %v438
    %v2717 = vunpack.c.l.b16 %v439
    %v2718 = vunpack.c.h.b16 %v439
    %v2719 = vunpack.c.l.b16 %v440
    %v2720 = vunpack.c.h.b16 %v440
    %v2721 = vunpack.c.l.b16 %v441
    %v2722 = vunpack.c.h.b16 %v441
    %v2723 = vunpack.c.l.b16 %v442
    %v2724 = vunpack.c.h.b16 %v442
    %v2725 = vunpack.c.l.b16 %v443
    %v2726 = vunpack.c.h.b16 %v443
    %v2727 = vunpack.c.l.b16 %v444
    %v2728 = vunpack.c.h.b16 %v444
    %v2729 = vunpack.c.l.b16 %v445
    %v2730 = vunpack.c.h.b16 %v445
    %v2731 = vunpack.c.l.b16 %v446
    %v2732 = vunpack.c.h.b16 %v446
    %v2733 = vunpack.c.l.b16 %v447
    %v2734 = vunpack.c.h.b16 %v447
    %v2735 = vunpack.c.l.b16 %v448
    %v2736 = vunpack.c.h.b16 %v448
    %v2737 = vunpack.c.l.b16 %v449
    %v2738 = vunpack.c.h.b16 %v449
    %v2739 = vunpack.c.l.b16 %v450
    %v2740 = vunpack.c.h.b16 %v450
    %v2741 = vunpack.c.l.b16 %v451
    %v2742 = vunpack.c.h.b16 %v451
    %v2743 = vunpack.c.l.b16 %v452
    %v2744 = vunpack.c.h.b16 %v452
    %v2745 = vunpack.c.l.b16 %v453
    %v2746 = vunpack.c.h.b16 %v453
    %v2747 = vunpack.c.l.b16 %v454
    %v2748 = vunpack.c.h.b16 %v454
    %v2749 = vunpack.c.l.b16 %v455
    %v2750 = vunpack.c.h.b16 %v455
    %v2751 = vunpack.c.l.b16 %v456
    %v2752 = vunpack.c.h.b16 %v456
    %v2753 = vunpack.c.l.b16 %v457
    %v2754 = vunpack.c.h.b16 %v457
    %v2755 = vunpack.c.l.b16 %v458
    %v2756 = vunpack.c.h.b16 %v458
    %v2757 = vunpack.c.l.b16 %v459
    %v2758 = vunpack.c.h.b16 %v459
    %v2759 = vunpack.c.l.b16 %v460
    %v2760 = vunpack.c.h.b16 %v460
    %v2761 = vunpack.c.l.b16 %v461
    %v2762 = vunpack.c.h.b16 %v461
    %v2763 = vunpack.c.l.b16 %v462
    %v2764 = vunpack.c.h.b16 %v462
    %v2765 = vunpack.c.l.b16 %v463
    %v2766 = vunpack.c.h.b16 %v463
    %v2767 = vunpack.c.l.b16 %v464
    %v2768 = vunpack.c.h.b16 %v464
    %v2769 = vunpack.c.l.b16 %v465
    %v2770 = vunpack.c.h.b16 %v465
    %v2771 = vunpack.c.l.b16 %v466
    %v2772 = vunpack.c.h.b16 %v466
    %v2773 = vunpack.c.l.b16 %v467
    %v2774 = vunpack.c.h.b16 %v467
    %v2775 = vunpack.c.l.b16 %v468
    %v2776 = vunpack.c.h.b16 %v468
    %v2777 = vunpack.c.l.b16 %v469
    %v2778 = vunpack.c.h.b16 %v469
    %v2779 = vunpack.c.l.b16 %v470
    %v2780 = vunpack.c.h.b16 %v470
    %v2781 = vunpack.c.l.b16 %v471
    %v2782 = vunpack.c.h.b16 %v471
    %v2783 = vunpack.c.l.b16 %v472
    %v2784 = vunpack.c.h.b16 %v472
    %v2785 = vunpack.c.l.b16 %v473
    %v2786 = vunpack.c.h.b16 %v473
    %v2787 = vunpack.c.l.b16 %v474
    %v2788 = vunpack.c.h.b16 %v474
    %v2789 = vunpack.c.l.b16 %v475
    %v2790 = vunpack.c.h.b16 %v475
    %v2791 = vunpack.c.l.b16 %v476
    %v2792 = vunpack.c.h.b16 %v476
    %v2793 = vunpack.c.l.b16 %v477
    %v2794 = vunpack.c.h.b16 %v477
    %v2795 = vunpack.c.l.b16 %v478
    %v2796 = vunpack.c.h.b16 %v478
    %v2797 = vunpack.c.l.b16 %v479
    %v2798 = vunpack.c.h.b16 %v479
    %v2799 = vunpack.c.l.b16 %v480
    %v2800 = vunpack.c.h.b16 %v480
    %v2801 = vunpack.c.l.b16 %v481
    %v2802 = vunpack.c.h.b16 %v481
    %v2803 = vunpack.c.l.b16 %v482
    %v2804 = vunpack.c.h.b16 %v482
    %v2805 = vunpack.c.l.b16 %v483
    %v2806 = vunpack.c.h.b16 %v483
    %v2807 = vunpack.c.l.b16 %v484
    %v2808 = vunpack.c.h.b16 %v484
    %v2809 = vunpack.c.l.b16 %v485
    %v2810 = vunpack.c.h.b16 %v485
    %v2811 = vunpack.c.l.b16 %v486
    %v2812 = vunpack.c.h.b16 %v486
    %v2813 = vunpack.c.l.b16 %v487
    %v2814 = vunpack.c.h.b16 %v487
    %v2815 = vunpack.c.l.b16 %v488
    %v2816 = vunpack.c.h.b16 %v488
    %v2817 = vunpack.c.l.b16 %v489
    %v2818 = vunpack.c.h.b16 %v489
    %v2819 = vunpack.c.l.b16 %v490
    %v2820 = vunpack.c.h.b16 %v490
    %v2821 = vunpack.c.l.b16 %v491
    %v2822 = vunpack.c.h.b16 %v491
    %v2823 = vunpack.c.l.b16 %v492
    %v2824 = vunpack.c.h.b16 %v492
    %v2825 = vunpack.c.l.b16 %v493
    %v2826 = vunpack.c.h.b16 %v493
    %v2827 = vunpack.c.l.b16 %v494
    %v2828 = vunpack.c.h.b16 %v494
    %v2829 = vunpack.c.l.b16 %v495
    %v2830 = vunpack.c.h.b16 %v495
    %v2831 = vunpack.c.l.b16 %v496
    %v2832 = vunpack.c.h.b16 %v496
    %v2833 = vunpack.c.l.b16 %v497
    %v2834 = vunpack.c.h.b16 %v497
    %v2835 = vunpack.c.l.b16 %v498
    %v2836 = vunpack.c.h.b16 %v498
    %v2837 = vunpack.c.l.b16 %v499
    %v2838 = vunpack.c.h.b16 %v499
    %v2839 = vunpack.c.l.b16 %v500
    %v2840 = vunpack.c.h.b16 %v500
    %v2841 = vunpack.c.l.b16 %v501
    %v2842 = vunpack.c.h.b16 %v501
    %v2843 = vunpack.c.l.b16 %v502
    %v2844 = vunpack.c.h.b16 %v502
    %v2845 = vunpack.c.l.b16 %v503
    %v2846 = vunpack.c.h.b16 %v503
    %v2847 = vunpack.c.l.b16 %v504
    %v2848 = vunpack.c.h.b16 %v504
    %v2849 = vunpack.c.l.b16 %v505
    %v2850 = vunpack.c.h.b16 %v505
    %v2851 = vunpack.c.l.b16 %v506
    %v2852 = vunpack.c.h.b16 %v506
    %v2853 = vunpack.c.l.b16 %v507
    %v2854 = vunpack.c.h.b16 %v507
    %v2855 = vunpack.c.l.b16 %v508
    %v2856 = vunpack.c.h.b16 %v508
    %v2857 = vunpack.c.l.b16 %v509
    %v2858 = vunpack.c.h.b16 %v509
    %v2859 = vunpack.c.l.b16 %v510
    %v2860 = vunpack.c.h.b16 %v510
    %v2861 = vunpack.c.l.b16 %v511
    %v2862 = vunpack.c.h.b16 %v511
    %v2863 = vunpack.c.l.b16 %v512
    %v2864 = vunpack.c.h.b16 %v512
    %v2865 = vunpack.c.l.b16 %v513
    %v2866 = vunpack.c.h.b16 %v513
    %v2867 = vunpack.c.l.b16 %v514
    %v2868 = vunpack.c.h.b16 %v514
    %v2869 = vunpack.c.l.b16 %v515
    %v2870 = vunpack.c.h.b16 %v515
    %v2871 = vunpack.c.l.b16 %v516
    %v2872 = vunpack.c.h.b16 %v516
    %v2873 = vunpack.c.l.b16 %v517
    %v2874 = vunpack.c.h.b16 %v517
    %v2875 = vunpack.c.l.b16 %v518
    %v2876 = vunpack.c.h.b16 %v518
    %v2877 = vunpack.c.l.b16 %v519
    %v2878 = vunpack.c.h.b16 %v519
    %v2879 = vunpack.c.l.b16 %v520
    %v2880 = vunpack.c.h.b16 %v520
    %v2881 = vunpack.c.l.b16 %v521
    %v2882 = vunpack.c.h.b16 %v521
    %v2883 = vunpack.c.l.b16 %v522
    %v2884 = vunpack.c.h.b16 %v522
    %v2885 = vunpack.c.l.b16 %v523
    %v2886 = vunpack.c.h.b16 %v523
    %v2887 = vunpack.c.l.b16 %v524
    %v2888 = vunpack.c.h.b16 %v524
    %v2889 = vunpack.c.l.b16 %v525
    %v2890 = vunpack.c.h.b16 %v525
    %v2891 = vunpack.c.l.b16 %v526
    %v2892 = vunpack.c.h.b16 %v526
    %v2893 = vunpack.c.l.b16 %v527
    %v2894 = vunpack.c.h.b16 %v527
    %v2895 = vunpack.c.l.b16 %v528
    %v2896 = vunpack.c.h.b16 %v528
    %v2897 = vunpack.c.l.b16 %v529
    %v2898 = vunpack.c.h.b16 %v529
    %v2899 = vunpack.c.l.b16 %v530
    %v2900 = vunpack.c.h.b16 %v530
    %v2901 = vunpack.c.l.b16 %v531
    %v2902 = vunpack.c.h.b16 %v531
    %v2903 = vunpack.c.l.b16 %v532
    %v2904 = vunpack.c.h.b16 %v532
    %v2905 = vunpack.c.l.b16 %v533
    %v2906 = vunpack.c.h.b16 %v533
    %v2907 = vunpack.c.l.b16 %v534
    %v2908 = vunpack.c.h.b16 %v534
    %v2909 = vunpack.c.l.b16 %v535
    %v2910 = vunpack.c.h.b16 %v535
    %v2911 = vunpack.c.l.b16 %v536
    %v2912 = vunpack.c.h.b16 %v536
    %v2913 = vunpack.c.l.b16 %v537
    %v2914 = vunpack.c.h.b16 %v537
    %v2915 = vunpack.c.l.b16 %v538
    %v2916 = vunpack.c.h.b16 %v538
    %v2917 = vunpack.c.l.b16 %v539
    %v2918 = vunpack.c.h.b16 %v539
    %v2919 = vunpack.c.l.b16 %v540
    %v2920 = vunpack.c.h.b16 %v540
    %v2921 = vunpack.c.l.b16 %v541
    %v2922 = vunpack.c.h.b16 %v541
    %v2923 = vunpack.c.l.b16 %v542
    %v2924 = vunpack.c.h.b16 %v542
    %v2925 = vunpack.c.l.b16 %v543
    %v2926 = vunpack.c.h.b16 %v543
    %v2927 = vunpack.c.l.b16 %v544
    %v2928 = vunpack.c.h.b16 %v544
    %v2929 = vunpack.c.l.b16 %v545
    %v2930 = vunpack.c.h.b16 %v545
    %v2931 = vunpack.c.l.b16 %v546
    %v2932 = vunpack.c.h.b16 %v546
    %v2933 = vunpack.c.l.b16 %v547
    %v2934 = vunpack.c.h.b16 %v547
    %v2935 = vunpack.c.l.b16 %v548
    %v2936 = vunpack.c.h.b16 %v548
    %v2937 = vunpack.c.l.b16 %v549
    %v2938 = vunpack.c.h.b16 %v549
    %v2939 = vunpack.c.l.b16 %v550
    %v2940 = vunpack.c.h.b16 %v550
    %v2941 = vunpack.c.l.b16 %v551
    %v2942 = vunpack.c.h.b16 %v551
    %v2943 = vunpack.c.l.b16 %v552
    %v2944 = vunpack.c.h.b16 %v552
    %v2945 = vunpack.c.l.b16 %v553
    %v2946 = vunpack.c.h.b16 %v553
    %v2947 = vunpack.c.l.b16 %v554
    %v2948 = vunpack.c.h.b16 %v554
    %v2949 = vunpack.c.l.b16 %v555
    %v2950 = vunpack.c.h.b16 %v555
    %v2951 = vunpack.c.l.b16 %v556
    %v2952 = vunpack.c.h.b16 %v556
    %v2953 = vunpack.c.l.b16 %v557
    %v2954 = vunpack.c.h.b16 %v557
    %v2955 = vunpack.c.l.b16 %v558
    %v2956 = vunpack.c.h.b16 %v558
    %v2957 = vunpack.c.l.b16 %v559
    %v2958 = vunpack.c.h.b16 %v559
    %v2959 = vunpack.c.l.b16 %v560
    %v2960 = vunpack.c.h.b16 %v560
    %v2961 = vunpack.c.l.b16 %v561
    %v2962 = vunpack.c.h.b16 %v561
    %v2963 = vunpack.c.l.b16 %v562
    %v2964 = vunpack.c.h.b16 %v562
    %v2965 = vunpack.c.l.b16 %v563
    %v2966 = vunpack.c.h.b16 %v563
    %v2967 = vunpack.c.l.b16 %v564
    %v2968 = vunpack.c.h.b16 %v564
    %v2969 = vunpack.c.l.b16 %v565
    %v2970 = vunpack.c.h.b16 %v565
    %v2971 = vunpack.c.l.b16 %v566
    %v2972 = vunpack.c.h.b16 %v566
    %v2973 = vunpack.c.l.b16 %v567
    %v2974 = vunpack.c.h.b16 %v567
    %v2975 = vunpack.c.l.b16 %v568
    %v2976 = vunpack.c.h.b16 %v568
    %v2977 = vunpack.c.l.b16 %v569
    %v2978 = vunpack.c.h.b16 %v569
    %v2979 = vunpack.c.l.b16 %v570
    %v2980 = vunpack.c.h.b16 %v570
    %v2981 = vunpack.c.l.b16 %v571
    %v2982 = vunpack.c.h.b16 %v571
    %v2983 = vunpack.c.l.b16 %v572
    %v2984 = vunpack.c.h.b16 %v572
    %v2985 = vunpack.c.l.b16 %v573
    %v2986 = vunpack.c.h.b16 %v573
    %v2987 = vunpack.c.l.b16 %v574
    %v2988 = vunpack.c.h.b16 %v574
    %v2989 = vunpack.c.l.b16 %v575
    %v2990 = vunpack.c.h.b16 %v575
    %v2991 = vunpack.c.l.b16 %v576
    %v2992 = vunpack.c.h.b16 %v576
    %v2993 = vunpack.c.l.b16 %v577
    %v2994 = vunpack.c.h.b16 %v577
    %v2995 = vunpack.c.l.b16 %v578
    %v2996 = vunpack.c.h.b16 %v578
    %v2997 = vunpack.c.l.b16 %v579
    %v2998 = vunpack.c.h.b16 %v579
    %v2999 = vunpack.c.l.b16 %v580
    %v3000 = vunpack.c.h.b16 %v580
    %v3001 = vunpack.c.l.b16 %v581
    %v3002 = vunpack.c.h.b16 %v581
    %v3003 = vunpack.c.l.b16 %v582
    %v3004 = vunpack.c.h.b16 %v582
    %v3005 = vunpack.c.l.b16 %v583
    %v3006 = vunpack.c.h.b16 %v583
    %v3007 = vunpack.c.l.b16 %v584
    %v3008 = vunpack.c.h.b16 %v584
    %v3009 = vunpack.c.l.b16 %v585
    %v3010 = vunpack.c.h.b16 %v585
    %v3011 = vunpack.c.l.b16 %v586
    %v3012 = vunpack.c.h.b16 %v586
    %v3013 = vunpack.c.l.b16 %v587
    %v3014 = vunpack.c.h.b16 %v587
    %v3015 = vunpack.c.l.b16 %v588
    %v3016 = vunpack.c.h.b16 %v588
    %v3017 = vunpack.c.l.b16 %v589
    %v3018 = vunpack.c.h.b16 %v589
    %v3019 = vunpack.c.l.b16 %v590
    %v3020 = vunpack.c.h.b16 %v590
    %v3021 = vunpack.c.l.b16 %v591
    %v3022 = vunpack.c.h.b16 %v591
    %v3023 = vunpack.c.l.b16 %v592
    %v3024 = vunpack.c.h.b16 %v592
    %v3025 = vunpack.c.l.b16 %v593
    %v3026 = vunpack.c.h.b16 %v593
    %v3027 = vunpack.c.l.b16 %v594
    %v3028 = vunpack.c.h.b16 %v594
    %v3029 = vunpack.c.l.b16 %v595
    %v3030 = vunpack.c.h.b16 %v595
    %v3031 = vunpack.c.l.b16 %v596
    %v3032 = vunpack.c.h.b16 %v596
    %v3033 = vunpack.c.l.b16 %v597
    %v3034 = vunpack.c.h.b16 %v597
    %v3035 = vunpack.c.l.b16 %v598
    %v3036 = vunpack.c.h.b16 %v598
    %v3037 = vunpack.c.l.b16 %v599
    %v3038 = vunpack.c.h.b16 %v599
    %v3039 = vunpack.c.l.b16 %v600
    %v3040 = vunpack.c.h.b16 %v600
    %v3041 = vunpack.c.l.b16 %v601
    %v3042 = vunpack.c.h.b16 %v601
    %v3043 = vunpack.c.l.b16 %v602
    %v3044 = vunpack.c.h.b16 %v602
    %v3045 = vunpack.c.l.b16 %v603
    %v3046 = vunpack.c.h.b16 %v603
    %v3047 = vunpack.c.l.b16 %v604
    %v3048 = vunpack.c.h.b16 %v604
    %v3049 = vunpack.c.l.b16 %v605
    %v3050 = vunpack.c.h.b16 %v605
    %v3051 = vunpack.c.l.b16 %v606
    %v3052 = vunpack.c.h.b16 %v606
    %v3053 = vunpack.c.l.b16 %v607
    %v3054 = vunpack.c.h.b16 %v607
    %v3055 = vunpack.c.l.b16 %v608
    %v3056 = vunpack.c.h.b16 %v608
    %v3057 = vunpack.c.l.b16 %v609
    %v3058 = vunpack.c.h.b16 %v609
    %v3059 = vunpack.c.l.b16 %v610
    %v3060 = vunpack.c.h.b16 %v610
    %v3061 = vunpack.c.l.b16 %v611
    %v3062 = vunpack.c.h.b16 %v611
    %v3063 = vunpack.c.l.b16 %v612
    %v3064 = vunpack.c.h.b16 %v612
    %v3065 = vunpack.c.l.b16 %v613
    %v3066 = vunpack.c.h.b16 %v613
    %v3067 = vunpack.c.l.b16 %v614
    %v3068 = vunpack.c.h.b16 %v614
    %v3069 = vunpack.c.l.b16 %v615
    %v3070 = vunpack.c.h.b16 %v615
    %v3071 = vunpack.c.l.b16 %v616
    %v3072 = vunpack.c.h.b16 %v616
    %v3073 = vunpack.c.l.b16 %v617
    %v3074 = vunpack.c.h.b16 %v617
    %v3075 = vunpack.c.l.b16 %v618
    %v3076 = vunpack.c.h.b16 %v618
    %v3077 = vunpack.c.l.b16 %v619
    %v3078 = vunpack.c.h.b16 %v619
    %v3079 = vunpack.c.l.b16 %v620
    %v3080 = vunpack.c.h.b16 %v620
    %v3081 = vunpack.c.l.b16 %v621
    %v3082 = vunpack.c.h.b16 %v621
    %v3083 = vunpack.c.l.b16 %v622
    %v3084 = vunpack.c.h.b16 %v622
    %v3085 = vunpack.c.l.b16 %v623
    %v3086 = vunpack.c.h.b16 %v623
    %v3087 = vunpack.c.l.b16 %v624
    %v3088 = vunpack.c.h.b16 %v624
    %v3089 = vunpack.c.l.b16 %v625
    %v3090 = vunpack.c.h.b16 %v625
    %v3091 = vunpack.c.l.b16 %v626
    %v3092 = vunpack.c.h.b16 %v626
    %v3093 = vunpack.c.l.b16 %v627
    %v3094 = vunpack.c.h.b16 %v627
    %v3095 = vunpack.c.l.b16 %v628
    %v3096 = vunpack.c.h.b16 %v628
    %v3097 = vunpack.c.l.b16 %v629
    %v3098 = vunpack.c.h.b16 %v629
    %v3099 = vunpack.c.l.b16 %v630
    %v3100 = vunpack.c.h.b16 %v630
    %v3101 = vunpack.c.l.b16 %v631
    %v3102 = vunpack.c.h.b16 %v631
    %v3103 = vunpack.c.l.b16 %v632
    %v3104 = vunpack.c.h.b16 %v632
    %v3105 = vunpack.c.l.b16 %v633
    %v3106 = vunpack.c.h.b16 %v633
    %v3107 = vunpack.c.l.b16 %v634
    %v3108 = vunpack.c.h.b16 %v634
    %v3109 = vunpack.c.l.b16 %v635
    %v3110 = vunpack.c.h.b16 %v635
    %v3111 = vunpack.c.l.b16 %v636
    %v3112 = vunpack.c.h.b16 %v636
    %v3113 = vunpack.c.l.b16 %v637
    %v3114 = vunpack.c.h.b16 %v637
    %v3115 = vunpack.c.l.b16 %v638
    %v3116 = vunpack.c.h.b16 %v638
    %v3117 = vunpack.c.l.b16 %v639
    %v3118 = vunpack.c.h.b16 %v639
    %v3119 = vunpack.c.l.b16 %v640
    %v3120 = vunpack.c.h.b16 %v640
    %v3121 = vunpack.c.l.b16 %v641
    %v3122 = vunpack.c.h.b16 %v641
    %v3123 = vunpack.c.l.b16 %v642
    %v3124 = vunpack.c.h.b16 %v642
    %v3125 = vunpack.c.l.b16 %v643
    %v3126 = vunpack.c.h.b16 %v643
    %v3127 = vunpack.c.l.b16 %v644
    %v3128 = vunpack.c.h.b16 %v644
    %v3129 = vunpack.c.l.b16 %v645
    %v3130 = vunpack.c.h.b16 %v645
    %v3131 = vunpack.c.l.b16 %v646
    %v3132 = vunpack.c.h.b16 %v646
    %v3133 = vunpack.c.l.b16 %v647
    %v3134 = vunpack.c.h.b16 %v647
    %v3135 = vunpack.c.l.b16 %v648
    %v3136 = vunpack.c.h.b16 %v648
    %v3137 = vunpack.c.l.b16 %v649
    %v3138 = vunpack.c.h.b16 %v649
    %v3139 = vunpack.c.l.b16 %v650
    %v3140 = vunpack.c.h.b16 %v650
    %v3141 = vunpack.c.l.b16 %v651
    %v3142 = vunpack.c.h.b16 %v651
    %v3143 = vunpack.c.l.b16 %v652
    %v3144 = vunpack.c.h.b16 %v652
    %v3145 = vunpack.c.l.b16 %v653
    %v3146 = vunpack.c.h.b16 %v653
    %v3147 = vunpack.c.l.b16 %v654
    %v3148 = vunpack.c.h.b16 %v654
    %v3149 = vunpack.c.l.b16 %v655
    %v3150 = vunpack.c.h.b16 %v655
    %v3151 = vunpack.c.l.b16 %v656
    %v3152 = vunpack.c.h.b16 %v656
    %v3153 = vunpack.c.l.b16 %v657
    %v3154 = vunpack.c.h.b16 %v657
    %v3155 = vunpack.c.l.b16 %v658
    %v3156 = vunpack.c.h.b16 %v658
    %v3157 = vunpack.c.l.b16 %v659
    %v3158 = vunpack.c.h.b16 %v659
    %v3159 = vunpack.c.l.b16 %v660
    %v3160 = vunpack.c.h.b16 %v660
    %v3161 = vunpack.c.l.b16 %v661
    %v3162 = vunpack.c.h.b16 %v661
    %v3163 = vunpack.c.l.b16 %v662
    %v3164 = vunpack.c.h.b16 %v662
    %v3165 = vunpack.c.l.b16 %v663
    %v3166 = vunpack.c.h.b16 %v663
    %v3167 = vunpack.c.l.b16 %v664
    %v3168 = vunpack.c.h.b16 %v664
    %v3169 = vunpack.c.l.b16 %v665
    %v3170 = vunpack.c.h.b16 %v665
    %v3171 = vunpack.c.l.b16 %v666
    %v3172 = vunpack.c.h.b16 %v666
    %v3173 = vunpack.c.l.b16 %v667
    %v3174 = vunpack.c.h.b16 %v667
    %v3175 = vunpack.c.l.b16 %v668
    %v3176 = vunpack.c.h.b16 %v668
    %v3177 = vunpack.c.l.b16 %v669
    %v3178 = vunpack.c.h.b16 %v669
    %v3179 = vunpack.c.l.b16 %v670
    %v3180 = vunpack.c.h.b16 %v670
    %v3181 = vunpack.c.l.b16 %v671
    %v3182 = vunpack.c.h.b16 %v671
    %v3183 = vunpack.c.l.b16 %v672
    %v3184 = vunpack.c.h.b16 %v672
    %v3185 = vunpack.c.l.b16 %v673
    %v3186 = vunpack.c.h.b16 %v673
    %v3187 = vunpack.c.l.b16 %v674
    %v3188 = vunpack.c.h.b16 %v674
    %v3189 = vunpack.c.l.b16 %v675
    %v3190 = vunpack.c.h.b16 %v675
    %v3191 = vunpack.c.l.b16 %v676
    %v3192 = vunpack.c.h.b16 %v676
    %v3193 = vunpack.c.l.b16 %v677
    %v3194 = vunpack.c.h.b16 %v677
    %v3195 = vunpack.c.l.b16 %v678
    %v3196 = vunpack.c.h.b16 %v678
    %v3197 = vunpack.c.l.b16 %v679
    %v3198 = vunpack.c.h.b16 %v679
    %v3199 = vunpack.c.l.b16 %v680
    %v3200 = vunpack.c.h.b16 %v680
    %v3201 = vunpack.c.l.b16 %v681
    %v3202 = vunpack.c.h.b16 %v681
    %v3203 = vunpack.c.l.b16 %v682
    %v3204 = vunpack.c.h.b16 %v682
    %v3205 = vunpack.c.l.b16 %v683
    %v3206 = vunpack.c.h.b16 %v683
    %v3207 = vunpack.c.l.b16 %v684
    %v3208 = vunpack.c.h.b16 %v684
    %v3209 = vunpack.c.l.b16 %v685
    %v3210 = vunpack.c.h.b16 %v685
    %v3211 = vunpack.c.l.b16 %v686
    %v3212 = vunpack.c.h.b16 %v686
    %v3213 = vunpack.c.l.b16 %v687
    %v3214 = vunpack.c.h.b16 %v687
    %v3215 = vunpack.c.l.b16 %v688
    %v3216 = vunpack.c.h.b16 %v688
    %v3217 = vunpack.c.l.b16 %v689
    %v3218 = vunpack.c.h.b16 %v689
    %v3219 = vunpack.c.l.b16 %v690
    %v3220 = vunpack.c.h.b16 %v690
    %v3221 = vunpack.c.l.b16 %v691
    %v3222 = vunpack.c.h.b16 %v691
    %v3223 = vunpack.c.l.b16 %v692
    %v3224 = vunpack.c.h.b16 %v692
    %v3225 = vunpack.c.l.b16 %v693
    %v3226 = vunpack.c.h.b16 %v693
    %v3227 = vunpack.c.l.b16 %v694
    %v3228 = vunpack.c.h.b16 %v694
    %v3229 = vunpack.c.l.b16 %v695
    %v3230 = vunpack.c.h.b16 %v695
    %v3231 = vunpack.c.l.b16 %v696
    %v3232 = vunpack.c.h.b16 %v696
    %v3233 = vunpack.c.l.b16 %v697
    %v3234 = vunpack.c.h.b16 %v697
    %v3235 = vunpack.c.l.b16 %v698
    %v3236 = vunpack.c.h.b16 %v698
    %v3237 = vunpack.c.l.b16 %v699
    %v3238 = vunpack.c.h.b16 %v699
    %v3239 = vunpack.c.l.b16 %v700
    %v3240 = vunpack.c.h.b16 %v700
    %v3241 = vunpack.c.l.b16 %v701
    %v3242 = vunpack.c.h.b16 %v701
    %v3243 = vunpack.c.l.b16 %v702
    %v3244 = vunpack.c.h.b16 %v702
    %v3245 = vunpack.c.l.b16 %v703
    %v3246 = vunpack.c.h.b16 %v703
    %v3247 = vunpack.c.l.b16 %v704
    %v3248 = vunpack.c.h.b16 %v704
    %v3249 = vunpack.c.l.b16 %v705
    %v3250 = vunpack.c.h.b16 %v705
    %v3251 = vunpack.c.l.b16 %v706
    %v3252 = vunpack.c.h.b16 %v706
    %v3253 = vunpack.c.l.b16 %v707
    %v3254 = vunpack.c.h.b16 %v707
    %v3255 = vunpack.c.l.b16 %v708
    %v3256 = vunpack.c.h.b16 %v708
    %v3257 = vunpack.c.l.b16 %v709
    %v3258 = vunpack.c.h.b16 %v709
    %v3259 = vunpack.c.l.b16 %v710
    %v3260 = vunpack.c.h.b16 %v710
    %v3261 = vunpack.c.l.b16 %v711
    %v3262 = vunpack.c.h.b16 %v711
    %v3263 = vunpack.c.l.b16 %v712
    %v3264 = vunpack.c.h.b16 %v712
    %v3265 = vunpack.c.l.b16 %v713
    %v3266 = vunpack.c.h.b16 %v713
    %v3267 = vunpack.c.l.b16 %v714
    %v3268 = vunpack.c.h.b16 %v714
    %v3269 = vunpack.c.l.b16 %v715
    %v3270 = vunpack.c.h.b16 %v715
    %v3271 = vunpack.c.l.b16 %v716
    %v3272 = vunpack.c.h.b16 %v716
    %v3273 = vunpack.c.l.b16 %v717
    %v3274 = vunpack.c.h.b16 %v717
    %v3275 = vunpack.c.l.b16 %v718
    %v3276 = vunpack.c.h.b16 %v718
    %v3277 = vunpack.c.l.b16 %v719
    %v3278 = vunpack.c.h.b16 %v719
    %v3279 = vunpack.c.l.b16 %v720
    %v3280 = vunpack.c.h.b16 %v720
    %v3281 = vunpack.c.l.b16 %v721
    %v3282 = vunpack.c.h.b16 %v721
    %v3283 = vunpack.c.l.b16 %v722
    %v3284 = vunpack.c.h.b16 %v722
    %v3285 = vunpack.c.l.b16 %v723
    %v3286 = vunpack.c.h.b16 %v723
    %v3287 = vunpack.c.l.b16 %v724
    %v3288 = vunpack.c.h.b16 %v724
    %v3289 = vunpack.c.l.b16 %v725
    %v3290 = vunpack.c.h.b16 %v725
    %v3291 = vunpack.c.l.b16 %v726
    %v3292 = vunpack.c.h.b16 %v726
    %v3293 = vunpack.c.l.b16 %v727
    %v3294 = vunpack.c.h.b16 %v727
    %v3295 = vunpack.c.l.b16 %v728
    %v3296 = vunpack.c.h.b16 %v728
    %v3297 = vunpack.c.l.b16 %v729
    %v3298 = vunpack.c.h.b16 %v729
    %v3299 = vunpack.c.l.b16 %v730
    %v3300 = vunpack.c.h.b16 %v730
    %v3301 = vunpack.c.l.b16 %v731
    %v3302 = vunpack.c.h.b16 %v731
    %v3303 = vunpack.c.l.b16 %v732
    %v3304 = vunpack.c.h.b16 %v732
    %v3305 = vunpack.c.l.b16 %v733
    %v3306 = vunpack.c.h.b16 %v733
    %v3307 = vunpack.c.l.b16 %v734
    %v3308 = vunpack.c.h.b16 %v734
    %v3309 = vunpack.c.l.b16 %v735
    %v3310 = vunpack.c.h.b16 %v735
    %v3311 = vunpack.c.l.b16 %v736
    %v3312 = vunpack.c.h.b16 %v736
    %v3313 = vunpack.c.l.b16 %v737
    %v3314 = vunpack.c.h.b16 %v737
    %v3315 = vunpack.c.l.b16 %v738
    %v3316 = vunpack.c.h.b16 %v738
    %v3317 = vunpack.c.l.b16 %v739
    %v3318 = vunpack.c.h.b16 %v739
    %v3319 = vunpack.c.l.b16 %v740
    %v3320 = vunpack.c.h.b16 %v740
    %v3321 = vunpack.c.l.b16 %v741
    %v3322 = vunpack.c.h.b16 %v741
    %v3323 = vunpack.c.l.b16 %v742
    %v3324 = vunpack.c.h.b16 %v742
    %v3325 = vunpack.c.l.b16 %v743
    %v3326 = vunpack.c.h.b16 %v743
    %v3327 = vunpack.c.l.b16 %v744
    %v3328 = vunpack.c.h.b16 %v744
    %v3329 = vunpack.c.l.b16 %v745
    %v3330 = vunpack.c.h.b16 %v745
    %v3331 = vunpack.c.l.b16 %v746
    %v3332 = vunpack.c.h.b16 %v746
    %v3333 = vunpack.c.l.b16 %v747
    %v3334 = vunpack.c.h.b16 %v747
    %v3335 = vunpack.c.l.b16 %v748
    %v3336 = vunpack.c.h.b16 %v748
    %v3337 = vunpack.c.l.b16 %v749
    %v3338 = vunpack.c.h.b16 %v749
    %v3339 = vunpack.c.l.b16 %v750
    %v3340 = vunpack.c.h.b16 %v750
    %v3341 = vunpack.c.l.b16 %v751
    %v3342 = vunpack.c.h.b16 %v751
    %v3343 = vunpack.c.l.b16 %v752
    %v3344 = vunpack.c.h.b16 %v752
    %v3345 = vunpack.c.l.b16 %v753
    %v3346 = vunpack.c.h.b16 %v753
    %v3347 = vunpack.c.l.b16 %v754
    %v3348 = vunpack.c.h.b16 %v754
    %v3349 = vunpack.c.l.b16 %v755
    %v3350 = vunpack.c.h.b16 %v755
    %v3351 = vunpack.c.l.b16 %v756
    %v3352 = vunpack.c.h.b16 %v756
    %v3353 = vunpack.c.l.b16 %v757
    %v3354 = vunpack.c.h.b16 %v757
    %v3355 = vunpack.c.l.b16 %v758
    %v3356 = vunpack.c.h.b16 %v758
    %v3357 = vunpack.c.l.b16 %v759
    %v3358 = vunpack.c.h.b16 %v759
    %v3359 = vunpack.c.l.b16 %v760
    %v3360 = vunpack.c.h.b16 %v760
    %v3361 = vunpack.c.l.b16 %v761
    %v3362 = vunpack.c.h.b16 %v761
    %v3363 = vunpack.c.l.b16 %v762
    %v3364 = vunpack.c.h.b16 %v762
    %v3365 = vunpack.c.l.b16 %v763
    %v3366 = vunpack.c.h.b16 %v763
    %v3367 = vunpack.c.l.b16 %v764
    %v3368 = vunpack.c.h.b16 %v764
    %v3369 = vunpack.c.l.b16 %v765
    %v3370 = vunpack.c.h.b16 %v765
    %v3371 = vunpack.c.l.b16 %v766
    %v3372 = vunpack.c.h.b16 %v766
    %v3373 = vunpack.c.l.b16 %v767
    %v3374 = vunpack.c.h.b16 %v767
    %v3375 = vunpack.c.l.b16 %v768
    %v3376 = vunpack.c.h.b16 %v768
    %v3377 = vunpack.c.l.b16 %v769
    %v3378 = vunpack.c.h.b16 %v769
    %v3379 = vunpack.c.l.b16 %v770
    %v3380 = vunpack.c.h.b16 %v770
    %v3381 = vunpack.c.l.b16 %v771
    %v3382 = vunpack.c.h.b16 %v771
    %v3383 = vunpack.c.l.b16 %v772
    %v3384 = vunpack.c.h.b16 %v772
    %v3385 = vunpack.c.l.b16 %v773
    %v3386 = vunpack.c.h.b16 %v773
    %v3387 = vunpack.c.l.b16 %v774
    %v3388 = vunpack.c.h.b16 %v774
    %v3389 = vunpack.c.l.b16 %v775
    %v3390 = vunpack.c.h.b16 %v775
    %v3391 = vunpack.c.l.b16 %v776
    %v3392 = vunpack.c.h.b16 %v776
    %v3393 = vunpack.c.l.b16 %v777
    %v3394 = vunpack.c.h.b16 %v777
    %v3395 = vunpack.c.l.b16 %v778
    %v3396 = vunpack.c.h.b16 %v778
    %v3397 = vunpack.c.l.b16 %v779
    %v3398 = vunpack.c.h.b16 %v779
    %v3399 = vunpack.c.l.b16 %v780
    %v3400 = vunpack.c.h.b16 %v780
    %v3401 = vunpack.c.l.b16 %v781
    %v3402 = vunpack.c.h.b16 %v781
    %v3403 = vunpack.c.l.b16 %v782
    %v3404 = vunpack.c.h.b16 %v782
    %v3405 = vunpack.c.l.b16 %v783
    %v3406 = vunpack.c.h.b16 %v783
    %v3407 = vunpack.c.l.b16 %v784
    %v3408 = vunpack.c.h.b16 %v784
    %v3409 = vunpack.c.l.b16 %v785
    %v3410 = vunpack.c.h.b16 %v785
    %v3411 = vunpack.c.l.b16 %v786
    %v3412 = vunpack.c.h.b16 %v786
    %v3413 = vunpack.c.l.b16 %v787
    %v3414 = vunpack.c.h.b16 %v787
    %v3415 = vunpack.c.l.b16 %v788
    %v3416 = vunpack.c.h.b16 %v788
    %v3417 = vunpack.c.l.b16 %v789
    %v3418 = vunpack.c.h.b16 %v789
    %v3419 = vunpack.c.l.b16 %v790
    %v3420 = vunpack.c.h.b16 %v790
    %v3421 = vunpack.c.l.b16 %v791
    %v3422 = vunpack.c.h.b16 %v791
    %v3423 = vunpack.c.l.b16 %v792
    %v3424 = vunpack.c.h.b16 %v792
    %v3425 = vunpack.c.l.b16 %v793
    %v3426 = vunpack.c.h.b16 %v793
    %v3427 = vunpack.c.l.b16 %v794
    %v3428 = vunpack.c.h.b16 %v794
    %v3429 = vunpack.c.l.b16 %v795
    %v3430 = vunpack.c.h.b16 %v795
    %v3431 = vunpack.c.l.b16 %v796
    %v3432 = vunpack.c.h.b16 %v796
    %v3433 = vunpack.c.l.b16 %v797
    %v3434 = vunpack.c.h.b16 %v797
    %v3435 = vunpack.c.l.b16 %v798
    %v3436 = vunpack.c.h.b16 %v798
    %v3437 = vunpack.c.l.b16 %v799
    %v3438 = vunpack.c.h.b16 %v799
    %v3439 = vunpack.c.l.b16 %v800
    %v3440 = vunpack.c.h.b16 %v800
    %v3441 = vunpack.c.l.b16 %v801
    %v3442 = vunpack.c.h.b16 %v801
    %v3443 = vunpack.c.l.b16 %v802
    %v3444 = vunpack.c.h.b16 %v802
    %v3445 = vunpack.c.l.b16 %v803
    %v3446 = vunpack.c.h.b16 %v803
    %v3447 = vunpack.c.l.b16 %v804
    %v3448 = vunpack.c.h.b16 %v804
    %v3449 = vunpack.c.l.b16 %v805
    %v3450 = vunpack.c.h.b16 %v805
    %v3451 = vunpack.c.l.b16 %v806
    %v3452 = vunpack.c.h.b16 %v806
    %v3453 = vunpack.c.l.b16 %v807
    %v3454 = vunpack.c.h.b16 %v807
    %v3455 = vunpack.c.l.b16 %v808
    %v3456 = vunpack.c.h.b16 %v808
    %v3457 = vunpack.c.l.b16 %v809
    %v3458 = vunpack.c.h.b16 %v809
    %v3459 = vunpack.c.l.b16 %v810
    %v3460 = vunpack.c.h.b16 %v810
    %v3461 = vunpack.c.l.b16 %v811
    %v3462 = vunpack.c.h.b16 %v811
    %v3463 = vunpack.c.l.b16 %v812
    %v3464 = vunpack.c.h.b16 %v812
    %v3465 = vunpack.c.l.b16 %v813
    %v3466 = vunpack.c.h.b16 %v813
    %v3467 = vunpack.c.l.b16 %v814
    %v3468 = vunpack.c.h.b16 %v814
    %v3469 = vunpack.c.l.b16 %v815
    %v3470 = vunpack.c.h.b16 %v815
    %v3471 = vunpack.c.l.b16 %v816
    %v3472 = vunpack.c.h.b16 %v816
    %v3473 = vunpack.c.l.b16 %v817
    %v3474 = vunpack.c.h.b16 %v817
    %v3475 = vunpack.c.l.b16 %v818
    %v3476 = vunpack.c.h.b16 %v818
    %v3477 = vunpack.c.l.b16 %v819
    %v3478 = vunpack.c.h.b16 %v819
    %v3479 = vunpack.c.l.b16 %v820
    %v3480 = vunpack.c.h.b16 %v820
    %v3481 = vunpack.c.l.b16 %v821
    %v3482 = vunpack.c.h.b16 %v821
    %v3483 = vunpack.c.l.b16 %v822
    %v3484 = vunpack.c.h.b16 %v822
    %v3485 = vunpack.c.l.b16 %v823
    %v3486 = vunpack.c.h.b16 %v823
    %v3487 = vunpack.c.l.b16 %v824
    %v3488 = vunpack.c.h.b16 %v824
    %v3489 = vunpack.c.l.b16 %v825
    %v3490 = vunpack.c.h.b16 %v825
    %v3491 = vunpack.c.l.b16 %v826
    %v3492 = vunpack.c.h.b16 %v826
    %v3493 = vunpack.c.l.b16 %v827
    %v3494 = vunpack.c.h.b16 %v827
    %v3495 = vunpack.c.l.b16 %v828
    %v3496 = vunpack.c.h.b16 %v828
    %v3497 = vunpack.c.l.b16 %v829
    %v3498 = vunpack.c.h.b16 %v829
    %v3499 = vunpack.c.l.b16 %v830
    %v3500 = vunpack.c.h.b16 %v830
    %v3501 = vunpack.c.l.b16 %v831
    %v3502 = vunpack.c.h.b16 %v831
    %v3503 = vunpack.c.l.b16 %v832
    %v3504 = vunpack.c.h.b16 %v832
    %v3505 = vunpack.c.l.b16 %v833
    %v3506 = vunpack.c.h.b16 %v833
    %v3507 = vunpack.c.l.b16 %v834
    %v3508 = vunpack.c.h.b16 %v834
    %v3509 = vunpack.c.l.b16 %v835
    %v3510 = vunpack.c.h.b16 %v835
    %v3511 = vunpack.c.l.b16 %v836
    %v3512 = vunpack.c.h.b16 %v836
    %v3513 = vunpack.c.l.b16 %v837
    %v3514 = vunpack.c.h.b16 %v837
    %v3515 = vunpack.c.l.b16 %v838
    %v3516 = vunpack.c.h.b16 %v838
    %v3517 = vunpack.c.l.b16 %v839
    %v3518 = vunpack.c.h.b16 %v839
    %v3519 = vunpack.c.l.b16 %v840
    %v3520 = vunpack.c.h.b16 %v840
    %v3521 = vunpack.c.l.b16 %v841
    %v3522 = vunpack.c.h.b16 %v841
    %v3523 = vunpack.c.l.b16 %v842
    %v3524 = vunpack.c.h.b16 %v842
    %v3525 = vunpack.c.l.b16 %v843
    %v3526 = vunpack.c.h.b16 %v843
    %v3527 = vunpack.c.l.b16 %v844
    %v3528 = vunpack.c.h.b16 %v844
    %v3529 = vunpack.c.l.b16 %v845
    %v3530 = vunpack.c.h.b16 %v845
    %v3531 = vunpack.c.l.b16 %v846
    %v3532 = vunpack.c.h.b16 %v846
    %v3533 = vunpack.c.l.b16 %v847
    %v3534 = vunpack.c.h.b16 %v847
    %v3535 = vunpack.c.l.b16 %v848
    %v3536 = vunpack.c.h.b16 %v848
    %v3537 = vunpack.c.l.b16 %v849
    %v3538 = vunpack.c.h.b16 %v849
    %v3539 = vunpack.c.l.b16 %v850
    %v3540 = vunpack.c.h.b16 %v850
    %v3541 = vunpack.c.l.b16 %v851
    %v3542 = vunpack.c.h.b16 %v851
    %v3543 = vunpack.c.l.b16 %v852
    %v3544 = vunpack.c.h.b16 %v852
    %v3545 = vunpack.c.l.b16 %v853
    %v3546 = vunpack.c.h.b16 %v853
    %v3547 = vunpack.c.l.b16 %v854
    %v3548 = vunpack.c.h.b16 %v854
    %v3549 = vunpack.c.l.b16 %v855
    %v3550 = vunpack.c.h.b16 %v855
    %v3551 = vunpack.c.l.b16 %v856
    %v3552 = vunpack.c.h.b16 %v856
    %v3553 = vunpack.c.l.b16 %v857
    %v3554 = vunpack.c.h.b16 %v857
    %v3555 = vunpack.c.l.b16 %v858
    %v3556 = vunpack.c.h.b16 %v858
    %v3557 = vunpack.c.l.b16 %v859
    %v3558 = vunpack.c.h.b16 %v859
    %v3559 = vunpack.c.l.b16 %v860
    %v3560 = vunpack.c.h.b16 %v860
    %v3561 = vunpack.c.l.b16 %v861
    %v3562 = vunpack.c.h.b16 %v861
    %v3563 = vunpack.c.l.b16 %v862
    %v3564 = vunpack.c.h.b16 %v862
    %v3565 = vunpack.c.l.b16 %v863
    %v3566 = vunpack.c.h.b16 %v863
    %v3567 = vunpack.c.l.b16 %v864
    %v3568 = vunpack.c.h.b16 %v864
    %v3569 = vunpack.c.l.b16 %v865
    %v3570 = vunpack.c.h.b16 %v865
    %v3571 = vunpack.c.l.b16 %v866
    %v3572 = vunpack.c.h.b16 %v866
    %v3573 = vunpack.c.l.b16 %v867
    %v3574 = vunpack.c.h.b16 %v867
    %v3575 = vunpack.c.l.b16 %v868
    %v3576 = vunpack.c.h.b16 %v868
    %v3577 = vunpack.c.l.b16 %v869
    %v3578 = vunpack.c.h.b16 %v869
    %v3579 = vunpack.c.l.b16 %v870
    %v3580 = vunpack.c.h.b16 %v870
    %v3581 = vunpack.c.l.b16 %v871
    %v3582 = vunpack.c.h.b16 %v871
    %v3583 = vunpack.c.l.b16 %v872
    %v3584 = vunpack.c.h.b16 %v872
    %v3585 = vunpack.c.l.b16 %v873
    %v3586 = vunpack.c.h.b16 %v873
    %v3587 = vunpack.c.l.b16 %v874
    %v3588 = vunpack.c.h.b16 %v874
    %v3589 = vunpack.c.l.b16 %v875
    %v3590 = vunpack.c.h.b16 %v875
    %v3591 = vunpack.c.l.b16 %v876
    %v3592 = vunpack.c.h.b16 %v876
    %v3593 = vunpack.c.l.b16 %v877
    %v3594 = vunpack.c.h.b16 %v877
    %v3595 = vunpack.c.l.b16 %v878
    %v3596 = vunpack.c.h.b16 %v878
    %v3597 = vunpack.c.l.b16 %v879
    %v3598 = vunpack.c.h.b16 %v879
    %v3599 = vunpack.c.l.b16 %v880
    %v3600 = vunpack.c.h.b16 %v880
    %v3601 = vunpack.c.l.b16 %v881
    %v3602 = vunpack.c.h.b16 %v881
    %v3603 = vunpack.c.l.b16 %v882
    %v3604 = vunpack.c.h.b16 %v882
    %v3605 = vunpack.c.l.b16 %v883
    %v3606 = vunpack.c.h.b16 %v883
    %v3607 = vunpack.c.l.b16 %v884
    %v3608 = vunpack.c.h.b16 %v884
    %v3609 = vunpack.c.l.b16 %v885
    %v3610 = vunpack.c.h.b16 %v885
    %v3611 = vunpack.c.l.b16 %v886
    %v3612 = vunpack.c.h.b16 %v886
    %v3613 = vunpack.c.l.b16 %v887
    %v3614 = vunpack.c.h.b16 %v887
    %v3615 = vunpack.c.l.b16 %v888
    %v3616 = vunpack.c.h.b16 %v888
    %v3617 = vunpack.c.l.b16 %v889
    %v3618 = vunpack.c.h.b16 %v889
    %v3619 = vunpack.c.l.b16 %v890
    %v3620 = vunpack.c.h.b16 %v890
    %v3621 = vunpack.c.l.b16 %v891
    %v3622 = vunpack.c.h.b16 %v891
    %v3623 = vunpack.c.l.b16 %v892
    %v3624 = vunpack.c.h.b16 %v892
    %v3625 = vunpack.c.l.b16 %v893
    %v3626 = vunpack.c.h.b16 %v893
    %v3627 = vunpack.c.l.b16 %v894
    %v3628 = vunpack.c.h.b16 %v894
    %v3629 = vunpack.c.l.b16 %v895
    %v3630 = vunpack.c.h.b16 %v895
    %v3631 = vunpack.c.l.b16 %v896
    %v3632 = vunpack.c.h.b16 %v896
    %v3633 = vunpack.c.l.b16 %v897
    %v3634 = vunpack.c.h.b16 %v897
    %v3635 = vunpack.c.l.b16 %v898
    %v3636 = vunpack.c.h.b16 %v898
    %v3637 = vunpack.c.l.b16 %v899
    %v3638 = vunpack.c.h.b16 %v899
    %v3639 = vunpack.c.l.b16 %v900
    %v3640 = vunpack.c.h.b16 %v900
    %v3641 = vunpack.c.l.b16 %v901
    %v3642 = vunpack.c.h.b16 %v901
    %v3643 = vunpack.c.l.b16 %v902
    %v3644 = vunpack.c.h.b16 %v902
    %v3645 = vunpack.c.l.b16 %v903
    %v3646 = vunpack.c.h.b16 %v903
    %v3647 = vunpack.c.l.b16 %v904
    %v3648 = vunpack.c.h.b16 %v904
    %v3649 = vunpack.c.l.b16 %v905
    %v3650 = vunpack.c.h.b16 %v905
    %v3651 = vunpack.c.l.b16 %v906
    %v3652 = vunpack.c.h.b16 %v906
    %v3653 = vunpack.c.l.b16 %v907
    %v3654 = vunpack.c.h.b16 %v907
    %v3655 = vunpack.c.l.b16 %v908
    %v3656 = vunpack.c.h.b16 %v908
    %v3657 = vunpack.c.l.b16 %v909
    %v3658 = vunpack.c.h.b16 %v909
    %v3659 = vunpack.c.l.b16 %v910
    %v3660 = vunpack.c.h.b16 %v910
    %v3661 = vunpack.c.l.b16 %v911
    %v3662 = vunpack.c.h.b16 %v911
    %v3663 = vunpack.c.l.b16 %v912
    %v3664 = vunpack.c.h.b16 %v912
    %v3665 = vunpack.c.l.b16 %v913
    %v3666 = vunpack.c.h.b16 %v913
    %v3667 = vunpack.c.l.b16 %v914
    %v3668 = vunpack.c.h.b16 %v914
    %v3669 = vunpack.c.l.b16 %v915
    %v3670 = vunpack.c.h.b16 %v915
    %v3671 = vunpack.c.l.b16 %v916
    %v3672 = vunpack.c.h.b16 %v916
    %v3673 = vunpack.c.l.b16 %v917
    %v3674 = vunpack.c.h.b16 %v917
    %v3675 = vunpack.c.l.b16 %v918
    %v3676 = vunpack.c.h.b16 %v918
    %v3677 = vunpack.c.l.b16 %v919
    %v3678 = vunpack.c.h.b16 %v919
    %v3679 = vunpack.c.l.b16 %v920
    %v3680 = vunpack.c.h.b16 %v920
    %v3681 = vunpack.c.l.b16 %v921
    %v3682 = vunpack.c.h.b16 %v921
    %v3683 = vunpack.c.l.b16 %v922
    %v3684 = vunpack.c.h.b16 %v922
    %v3685 = vunpack.c.l.b16 %v923
    %v3686 = vunpack.c.h.b16 %v923
    %v3687 = vunpack.c.l.b16 %v924
    %v3688 = vunpack.c.h.b16 %v924
    %v3689 = vunpack.c.l.b16 %v925
    %v3690 = vunpack.c.h.b16 %v925
    %v3691 = vunpack.c.l.b16 %v926
    %v3692 = vunpack.c.h.b16 %v926
    %v3693 = vunpack.c.l.b16 %v927
    %v3694 = vunpack.c.h.b16 %v927
    %v3695 = vunpack.c.l.b16 %v928
    %v3696 = vunpack.c.h.b16 %v928
    %v3697 = vunpack.c.l.b16 %v929
    %v3698 = vunpack.c.h.b16 %v929
    %v3699 = vunpack.c.l.b16 %v930
    %v3700 = vunpack.c.h.b16 %v930
    %v3701 = vunpack.c.l.b16 %v931
    %v3702 = vunpack.c.h.b16 %v931
    %v3703 = vunpack.c.l.b16 %v932
    %v3704 = vunpack.c.h.b16 %v932
    %v3705 = vunpack.c.l.b16 %v933
    %v3706 = vunpack.c.h.b16 %v933
    %v3707 = vunpack.c.l.b16 %v934
    %v3708 = vunpack.c.h.b16 %v934
    %v3709 = vunpack.c.l.b16 %v935
    %v3710 = vunpack.c.h.b16 %v935
    %v3711 = vunpack.c.l.b16 %v936
    %v3712 = vunpack.c.h.b16 %v936
    %v3713 = vunpack.c.l.b16 %v937
    %v3714 = vunpack.c.h.b16 %v937
    %v3715 = vunpack.c.l.b16 %v938
    %v3716 = vunpack.c.h.b16 %v938
    %v3717 = vunpack.c.l.b16 %v939
    %v3718 = vunpack.c.h.b16 %v939
    %v3719 = vunpack.c.l.b16 %v940
    %v3720 = vunpack.c.h.b16 %v940
    %v3721 = vunpack.c.l.b16 %v941
    %v3722 = vunpack.c.h.b16 %v941
    %v3723 = vunpack.c.l.b16 %v942
    %v3724 = vunpack.c.h.b16 %v942
    %v3725 = vunpack.c.l.b16 %v943
    %v3726 = vunpack.c.h.b16 %v943
    %v3727 = vunpack.c.l.b16 %v944
    %v3728 = vunpack.c.h.b16 %v944
    %v3729 = vunpack.c.l.b16 %v945
    %v3730 = vunpack.c.h.b16 %v945
    %v3731 = vunpack.c.l.b16 %v946
    %v3732 = vunpack.c.h.b16 %v946
    %v3733 = vunpack.c.l.b16 %v947
    %v3734 = vunpack.c.h.b16 %v947
    %v3735 = vunpack.c.l.b16 %v948
    %v3736 = vunpack.c.h.b16 %v948
    %v3737 = vunpack.c.l.b16 %v949
    %v3738 = vunpack.c.h.b16 %v949
    %v3739 = vunpack.c.l.b16 %v950
    %v3740 = vunpack.c.h.b16 %v950
    %v3741 = vunpack.c.l.b16 %v951
    %v3742 = vunpack.c.h.b16 %v951
    %v3743 = vunpack.c.l.b16 %v952
    %v3744 = vunpack.c.h.b16 %v952
    %v3745 = vunpack.c.l.b16 %v953
    %v3746 = vunpack.c.h.b16 %v953
    %v3747 = vunpack.c.l.b16 %v954
    %v3748 = vunpack.c.h.b16 %v954
    %v3749 = vunpack.c.l.b16 %v955
    %v3750 = vunpack.c.h.b16 %v955
    %v3751 = vunpack.c.l.b16 %v956
    %v3752 = vunpack.c.h.b16 %v956
    %v3753 = vunpack.c.l.b16 %v957
    %v3754 = vunpack.c.h.b16 %v957
    %v3755 = vunpack.c.l.b16 %v958
    %v3756 = vunpack.c.h.b16 %v958
    %v3757 = vunpack.c.l.b16 %v959
    %v3758 = vunpack.c.h.b16 %v959
    %v3759 = vunpack.c.l.b16 %v960
    %v3760 = vunpack.c.h.b16 %v960
    %v3761 = vunpack.c.l.b16 %v961
    %v3762 = vunpack.c.h.b16 %v961
    %v3763 = vunpack.c.l.b16 %v962
    %v3764 = vunpack.c.h.b16 %v962
    %v3765 = vunpack.c.l.b16 %v963
    %v3766 = vunpack.c.h.b16 %v963
    %v3767 = vunpack.c.l.b16 %v964
    %v3768 = vunpack.c.h.b16 %v964
    %v3769 = vunpack.c.l.b16 %v965
    %v3770 = vunpack.c.h.b16 %v965
    %v3771 = vunpack.c.l.b16 %v966
    %v3772 = vunpack.c.h.b16 %v966
    %v3773 = vunpack.c.l.b16 %v967
    %v3774 = vunpack.c.h.b16 %v967
    %v3775 = vunpack.c.l.b16 %v968
    %v3776 = vunpack.c.h.b16 %v968
    %v3777 = vunpack.c.l.b16 %v969
    %v3778 = vunpack.c.h.b16 %v969
    %v3779 = vunpack.c.l.b16 %v970
    %v3780 = vunpack.c.h.b16 %v970
    %v3781 = vunpack.c.l.b16 %v971
    %v3782 = vunpack.c.h.b16 %v971
    %v3783 = vunpack.c.l.b16 %v972
    %v3784 = vunpack.c.h.b16 %v972
    %v3785 = vunpack.c.l.b16 %v973
    %v3786 = vunpack.c.h.b16 %v973
    %v3787 = vunpack.c.l.b16 %v974
    %v3788 = vunpack.c.h.b16 %v974
    %v3789 = vunpack.c.l.b16 %v975
    %v3790 = vunpack.c.h.b16 %v975
    %v3791 = vunpack.c.l.b16 %v976
    %v3792 = vunpack.c.h.b16 %v976
    %v3793 = vunpack.c.l.b16 %v977
    %v3794 = vunpack.c.h.b16 %v977
    %v3795 = vunpack.c.l.b16 %v978
    %v3796 = vunpack.c.h.b16 %v978
    %v3797 = vunpack.c.l.b16 %v979
    %v3798 = vunpack.c.h.b16 %v979
    %v3799 = vunpack.c.l.b16 %v980
    %v3800 = vunpack.c.h.b16 %v980
    %v3801 = vunpack.c.l.b16 %v981
    %v3802 = vunpack.c.h.b16 %v981
    %v3803 = vunpack.c.l.b16 %v982
    %v3804 = vunpack.c.h.b16 %v982
    %v3805 = vunpack.c.l.b16 %v983
    %v3806 = vunpack.c.h.b16 %v983
    %v3807 = vunpack.c.l.b16 %v984
    %v3808 = vunpack.c.h.b16 %v984
    %v3809 = vunpack.c.l.b16 %v985
    %v3810 = vunpack.c.h.b16 %v985
    %v3811 = vunpack.c.l.b16 %v986
    %v3812 = vunpack.c.h.b16 %v986
    %v3813 = vunpack.c.l.b16 %v987
    %v3814 = vunpack.c.h.b16 %v987
    %v3815 = vunpack.c.l.b16 %v988
    %v3816 = vunpack.c.h.b16 %v988
    %v3817 = vunpack.c.l.b16 %v989
    %v3818 = vunpack.c.h.b16 %v989
    %v3819 = vunpack.c.l.b16 %v990
    %v3820 = vunpack.c.h.b16 %v990
    %v3821 = vunpack.c.l.b16 %v991
    %v3822 = vunpack.c.h.b16 %v991
    %v3823 = vunpack.c.l.b16 %v992
    %v3824 = vunpack.c.h.b16 %v992
    %v3825 = vunpack.c.l.b16 %v993
    %v3826 = vunpack.c.h.b16 %v993
    %v3827 = vunpack.c.l.b16 %v994
    %v3828 = vunpack.c.h.b16 %v994
    %v3829 = vunpack.c.l.b16 %v995
    %v3830 = vunpack.c.h.b16 %v995
    %v3831 = vunpack.c.l.b16 %v996
    %v3832 = vunpack.c.h.b16 %v996
    %v3833 = vunpack.c.l.b16 %v997
    %v3834 = vunpack.c.h.b16 %v997
    %v3835 = vunpack.c.l.b16 %v998
    %v3836 = vunpack.c.h.b16 %v998
    %v3837 = vunpack.c.l.b16 %v999
    %v3838 = vunpack.c.h.b16 %v999
    %v3839 = vunpack.c.l.b16 %v1000
    %v3840 = vunpack.c.h.b16 %v1000
    %v3841 = vunpack.c.l.b16 %v1001
    %v3842 = vunpack.c.h.b16 %v1001
    %v3843 = vunpack.c.l.b16 %v1002
    %v3844 = vunpack.c.h.b16 %v1002
    %v3845 = vunpack.c.l.b16 %v1003
    %v3846 = vunpack.c.h.b16 %v1003
    %v3847 = vunpack.c.l.b16 %v1004
    %v3848 = vunpack.c.h.b16 %v1004
    %v3849 = vunpack.c.l.b16 %v1005
    %v3850 = vunpack.c.h.b16 %v1005
    %v3851 = vunpack.c.l.b16 %v1006
    %v3852 = vunpack.c.h.b16 %v1006
    %v3853 = vunpack.c.l.b16 %v1007
    %v3854 = vunpack.c.h.b16 %v1007
    %v3855 = vunpack.c.l.b16 %v1008
    %v3856 = vunpack.c.h.b16 %v1008
    %v3857 = vunpack.c.l.b16 %v1009
    %v3858 = vunpack.c.h.b16 %v1009
    %v3859 = vunpack.c.l.b16 %v1010
    %v3860 = vunpack.c.h.b16 %v1010
    %v3861 = vunpack.c.l.b16 %v1011
    %v3862 = vunpack.c.h.b16 %v1011
    %v3863 = vunpack.c.l.b16 %v1012
    %v3864 = vunpack.c.h.b16 %v1012
    %v3865 = vunpack.c.l.b16 %v1013
    %v3866 = vunpack.c.h.b16 %v1013
    %v3867 = vunpack.c.l.b16 %v1014
    %v3868 = vunpack.c.h.b16 %v1014
    %v3869 = vunpack.c.l.b16 %v1015
    %v3870 = vunpack.c.h.b16 %v1015
    %v3871 = vunpack.c.l.b16 %v1016
    %v3872 = vunpack.c.h.b16 %v1016
    %v3873 = vunpack.c.l.b16 %v1017
    %v3874 = vunpack.c.h.b16 %v1017
    %v3875 = vunpack.c.l.b16 %v1018
    %v3876 = vunpack.c.h.b16 %v1018
    %v3877 = vunpack.c.l.b16 %v1019
    %v3878 = vunpack.c.h.b16 %v1019
    %v3879 = vunpack.c.l.b16 %v1020
    %v3880 = vunpack.c.h.b16 %v1020
    %v3881 = vunpack.c.l.b16 %v1021
    %v3882 = vunpack.c.h.b16 %v1021
    %v3883 = vunpack.c.l.b16 %v1022
    %v3884 = vunpack.c.h.b16 %v1022
    %v3885 = vunpack.c.l.b16 %v1023
    %v3886 = vunpack.c.h.b16 %v1023
    %v3887 = vunpack.c.l.b16 %v1024
    %v3888 = vunpack.c.h.b16 %v1024
    %v3889 = vunpack.c.l.b16 %v1025
    %v3890 = vunpack.c.h.b16 %v1025
    %v3891 = vunpack.c.l.b16 %v1026
    %v3892 = vunpack.c.h.b16 %v1026
    %v3893 = vunpack.c.l.b16 %v1027
    %v3894 = vunpack.c.h.b16 %v1027
    %v3895 = vunpack.c.l.b16 %v1028
    %v3896 = vunpack.c.h.b16 %v1028
    %v3897 = vunpack.c.l.b16 %v1029
    %v3898 = vunpack.c.h.b16 %v1029
    %v3899 = vunpack.c.l.b16 %v1030
    %v3900 = vunpack.c.h.b16 %v1030
    %v3901 = vunpack.c.l.b16 %v1031
    %v3902 = vunpack.c.h.b16 %v1031
    %v3903 = vunpack.c.l.b16 %v1032
    %v3904 = vunpack.c.h.b16 %v1032
    %v3905 = vunpack.c.l.b16 %v1033
    %v3906 = vunpack.c.h.b16 %v1033
    %v3907 = vunpack.c.l.b16 %v1034
    %v3908 = vunpack.c.h.b16 %v1034
    %v3909 = vunpack.c.l.b16 %v1035
    %v3910 = vunpack.c.h.b16 %v1035
    %v3911 = vunpack.c.l.b16 %v1036
    %v3912 = vunpack.c.h.b16 %v1036
    %v3913 = vunpack.c.l.b16 %v1037
    %v3914 = vunpack.c.h.b16 %v1037
    %v3915 = vunpack.c.l.b16 %v1038
    %v3916 = vunpack.c.h.b16 %v1038
    %v3917 = vunpack.c.l.b16 %v1039
    %v3918 = vunpack.c.h.b16 %v1039
    %v3919 = vunpack.c.l.b16 %v1040
    %v3920 = vunpack.c.h.b16 %v1040
    %v3921 = vunpack.c.l.b16 %v1041
    %v3922 = vunpack.c.h.b16 %v1041
    %v3923 = vunpack.c.l.b16 %v1042
    %v3924 = vunpack.c.h.b16 %v1042
    %v3925 = vunpack.c.l.b16 %v1043
    %v3926 = vunpack.c.h.b16 %v1043
    %v3927 = vunpack.c.l.b16 %v1044
    %v3928 = vunpack.c.h.b16 %v1044
    %v3929 = vunpack.c.l.b16 %v1045
    %v3930 = vunpack.c.h.b16 %v1045
    %v3931 = vunpack.c.l.b16 %v1046
    %v3932 = vunpack.c.h.b16 %v1046
    %v3933 = vunpack.c.l.b16 %v1047
    %v3934 = vunpack.c.h.b16 %v1047
    %v3935 = vunpack.c.l.b16 %v1048
    %v3936 = vunpack.c.h.b16 %v1048
    %v3937 = vunpack.c.l.b16 %v1049
    %v3938 = vunpack.c.h.b16 %v1049
    %v3939 = vunpack.c.l.b16 %v1050
    %v3940 = vunpack.c.h.b16 %v1050
    %v3941 = vunpack.c.l.b16 %v1051
    %v3942 = vunpack.c.h.b16 %v1051
    %v3943 = vunpack.c.l.b16 %v1052
    %v3944 = vunpack.c.h.b16 %v1052
    %v3945 = vunpack.c.l.b16 %v1053
    %v3946 = vunpack.c.h.b16 %v1053
    %v3947 = vunpack.c.l.b16 %v1054
    %v3948 = vunpack.c.h.b16 %v1054
    %v3949 = vunpack.c.l.b16 %v1055
    %v3950 = vunpack.c.h.b16 %v1055
    %v3951 = vunpack.c.l.b16 %v1056
    %v3952 = vunpack.c.h.b16 %v1056
    %v3953 = vunpack.c.l.b16 %v1057
    %v3954 = vunpack.c.h.b16 %v1057
    %v3955 = vunpack.c.l.b16 %v1058
    %v3956 = vunpack.c.h.b16 %v1058
    %v3957 = vunpack.c.l.b16 %v1059
    %v3958 = vunpack.c.h.b16 %v1059
    %v3959 = vunpack.c.l.b16 %v1060
    %v3960 = vunpack.c.h.b16 %v1060
    %v3961 = vunpack.c.l.b16 %v1061
    %v3962 = vunpack.c.h.b16 %v1061
    %v3963 = vunpack.c.l.b16 %v1062
    %v3964 = vunpack.c.h.b16 %v1062
    %v3965 = vunpack.c.l.b16 %v1063
    %v3966 = vunpack.c.h.b16 %v1063
    %v3967 = vunpack.c.l.b16 %v1064
    %v3968 = vunpack.c.h.b16 %v1064
    %v3969 = vunpack.c.l.b16 %v1065
    %v3970 = vunpack.c.h.b16 %v1065
    %v3971 = vunpack.c.l.b16 %v1066
    %v3972 = vunpack.c.h.b16 %v1066
    %v3973 = vunpack.c.l.b16 %v1067
    %v3974 = vunpack.c.h.b16 %v1067
    %v3975 = vunpack.c.l.b16 %v1068
    %v3976 = vunpack.c.h.b16 %v1068
    %v3977 = vunpack.c.l.b16 %v1069
    %v3978 = vunpack.c.h.b16 %v1069
    %v3979 = vunpack.c.l.b16 %v1070
    %v3980 = vunpack.c.h.b16 %v1070
    %v3981 = vunpack.c.l.b16 %v1071
    %v3982 = vunpack.c.h.b16 %v1071
    %v3983 = vunpack.c.l.b16 %v1072
    %v3984 = vunpack.c.h.b16 %v1072
    %v3985 = vunpack.c.l.b16 %v1073
    %v3986 = vunpack.c.h.b16 %v1073
    %v3987 = vunpack.c.l.b16 %v1074
    %v3988 = vunpack.c.h.b16 %v1074
    %v3989 = vunpack.c.l.b16 %v1075
    %v3990 = vunpack.c.h.b16 %v1075
    %v3991 = vunpack.c.l.b16 %v1076
    %v3992 = vunpack.c.h.b16 %v1076
    %v3993 = vunpack.c.l.b16 %v1077
    %v3994 = vunpack.c.h.b16 %v1077
    %v3995 = vunpack.c.l.b16 %v1078
    %v3996 = vunpack.c.h.b16 %v1078
    %v3997 = vunpack.c.l.b16 %v1079
    %v3998 = vunpack.c.h.b16 %v1079
    %v3999 = vunpack.c.l.b16 %v1080
    %v4000 = vunpack.c.h.b16 %v1080
    %v4001 = vunpack.c.l.b16 %v1081
    %v4002 = vunpack.c.h.b16 %v1081
    %v4003 = vunpack.c.l.b16 %v1082
    %v4004 = vunpack.c.h.b16 %v1082
    %v4005 = vunpack.c.l.b16 %v1083
    %v4006 = vunpack.c.h.b16 %v1083
    %v4007 = vunpack.c.l.b16 %v1084
    %v4008 = vunpack.c.h.b16 %v1084
    %v4009 = vunpack.c.l.b16 %v1085
    %v4010 = vunpack.c.h.b16 %v1085
    %v4011 = vunpack.c.l.b16 %v1086
    %v4012 = vunpack.c.h.b16 %v1086
    %v4013 = vunpack.c.l.b16 %v1087
    %v4014 = vunpack.c.h.b16 %v1087
    %v4015 = vunpack.c.l.b16 %v1088
    %v4016 = vunpack.c.h.b16 %v1088
    %v4017 = vunpack.c.l.b16 %v1089
    %v4018 = vunpack.c.h.b16 %v1089
    %v4019 = vunpack.c.l.b16 %v1090
    %v4020 = vunpack.c.h.b16 %v1090
    %v4021 = vunpack.c.l.b16 %v1091
    %v4022 = vunpack.c.h.b16 %v1091
    %v4023 = vunpack.c.l.b16 %v1092
    %v4024 = vunpack.c.h.b16 %v1092
    %v4025 = vunpack.c.l.b16 %v1093
    %v4026 = vunpack.c.h.b16 %v1093
    %v4027 = vunpack.c.l.b16 %v1094
    %v4028 = vunpack.c.h.b16 %v1094
    %v4029 = vunpack.c.l.b16 %v1095
    %v4030 = vunpack.c.h.b16 %v1095
    %v4031 = vunpack.c.l.b16 %v1096
    %v4032 = vunpack.c.h.b16 %v1096
    %v4033 = vunpack.c.l.b16 %v1097
    %v4034 = vunpack.c.h.b16 %v1097
    %v4035 = vunpack.c.l.b16 %v1098
    %v4036 = vunpack.c.h.b16 %v1098
    %v4037 = vunpack.c.l.b16 %v1099
    %v4038 = vunpack.c.h.b16 %v1099
    %v4039 = vunpack.c.l.b16 %v1100
    %v4040 = vunpack.c.h.b16 %v1100
    %v4041 = vunpack.c.l.b16 %v1101
    %v4042 = vunpack.c.h.b16 %v1101
    %v4043 = vunpack.c.l.b16 %v1102
    %v4044 = vunpack.c.h.b16 %v1102
    %v4045 = vunpack.c.l.b16 %v1103
    %v4046 = vunpack.c.h.b16 %v1103
    %v4047 = vunpack.c.l.b16 %v1104
    %v4048 = vunpack.c.h.b16 %v1104
    %v4049 = vunpack.c.l.b16 %v1105
    %v4050 = vunpack.c.h.b16 %v1105
    %v4051 = vunpack.c.l.b16 %v1106
    %v4052 = vunpack.c.h.b16 %v1106
    %v4053 = vunpack.c.l.b16 %v1107
    %v4054 = vunpack.c.h.b16 %v1107
    %v4055 = vunpack.c.l.b16 %v1108
    %v4056 = vunpack.c.h.b16 %v1108
    %v4057 = vunpack.c.l.b16 %v1109
    %v4058 = vunpack.c.h.b16 %v1109
    %v4059 = vunpack.c.l.b16 %v1110
    %v4060 = vunpack.c.h.b16 %v1110
    %v4061 = vunpack.c.l.b16 %v1111
    %v4062 = vunpack.c.h.b16 %v1111
    %v4063 = vunpack.c.l.b16 %v1112
    %v4064 = vunpack.c.h.b16 %v1112
    %v4065 = vunpack.c.l.b16 %v1113
    %v4066 = vunpack.c.h.b16 %v1113
    %v4067 = vunpack.c.l.b16 %v1114
    %v4068 = vunpack.c.h.b16 %v1114
    %v4069 = vunpack.c.l.b16 %v1115
    %v4070 = vunpack.c.h.b16 %v1115
    %v4071 = vunpack.c.l.b16 %v1116
    %v4072 = vunpack.c.h.b16 %v1116
    %v4073 = vunpack.c.l.b16 %v1117
    %v4074 = vunpack.c.h.b16 %v1117
    %v4075 = vunpack.c.l.b16 %v1118
    %v4076 = vunpack.c.h.b16 %v1118
    %v4077 = vunpack.c.l.b16 %v1119
    %v4078 = vunpack.c.h.b16 %v1119
    %v4079 = vunpack.c.l.b16 %v1120
    %v4080 = vunpack.c.h.b16 %v1120
    %v4081 = vunpack.c.l.b16 %v1121
    %v4082 = vunpack.c.h.b16 %v1121
    %v4083 = vunpack.c.l.b16 %v1122
    %v4084 = vunpack.c.h.b16 %v1122
    %v4085 = vunpack.c.l.b16 %v1123
    %v4086 = vunpack.c.h.b16 %v1123
    %v4087 = vunpack.c.l.b16 %v1124
    %v4088 = vunpack.c.h.b16 %v1124
    %v4089 = vunpack.c.l.b16 %v1125
    %v4090 = vunpack.c.h.b16 %v1125
    %v4091 = vunpack.c.l.b16 %v1126
    %v4092 = vunpack.c.h.b16 %v1126
    %v4093 = vunpack.c.l.b16 %v1127
    %v4094 = vunpack.c.h.b16 %v1127
    %v4095 = vunpack.c.l.b16 %v1128
    %v4096 = vunpack.c.h.b16 %v1128
    %v4097 = vunpack.c.l.b16 %v1129
    %v4098 = vunpack.c.h.b16 %v1129
    %v4099 = vunpack.c.l.b16 %v1130
    %v4100 = vunpack.c.h.b16 %v1130
    %v4101 = vunpack.c.l.b16 %v1131
    %v4102 = vunpack.c.h.b16 %v1131
    %v4103 = vunpack.c.l.b16 %v1132
    %v4104 = vunpack.c.h.b16 %v1132
    %v4105 = vunpack.c.l.b16 %v1133
    %v4106 = vunpack.c.h.b16 %v1133
    %v4107 = vunpack.c.l.b16 %v1134
    %v4108 = vunpack.c.h.b16 %v1134
    %v4109 = vunpack.c.l.b16 %v1135
    %v4110 = vunpack.c.h.b16 %v1135
    %v4111 = vunpack.c.l.b16 %v1136
    %v4112 = vunpack.c.h.b16 %v1136
    %v4113 = vunpack.c.l.b16 %v1137
    %v4114 = vunpack.c.h.b16 %v1137
    %v4115 = vunpack.c.l.b16 %v1138
    %v4116 = vunpack.c.h.b16 %v1138
    %v4117 = vunpack.c.l.b16 %v1139
    %v4118 = vunpack.c.h.b16 %v1139
    %v4119 = vunpack.c.l.b16 %v1140
    %v4120 = vunpack.c.h.b16 %v1140
    %v4121 = vunpack.c.l.b16 %v1141
    %v4122 = vunpack.c.h.b16 %v1141
    %v4123 = vunpack.c.l.b16 %v1142
    %v4124 = vunpack.c.h.b16 %v1142
    %v4125 = vunpack.c.l.b16 %v1143
    %v4126 = vunpack.c.h.b16 %v1143
    %v4127 = vunpack.c.l.b16 %v1144
    %v4128 = vunpack.c.h.b16 %v1144
    %v4129 = vunpack.c.l.b16 %v1145
    %v4130 = vunpack.c.h.b16 %v1145
    %v4131 = vunpack.c.l.b16 %v1146
    %v4132 = vunpack.c.h.b16 %v1146
    %v4133 = vunpack.c.l.b16 %v1147
    %v4134 = vunpack.c.h.b16 %v1147
    %v4135 = vunpack.c.l.b16 %v1148
    %v4136 = vunpack.c.h.b16 %v1148
    %v4137 = vunpack.c.l.b16 %v1149
    %v4138 = vunpack.c.h.b16 %v1149
    %v4139 = vunpack.c.l.b16 %v1150
    %v4140 = vunpack.c.h.b16 %v1150
    %v4141 = vunpack.c.l.b16 %v1151
    %v4142 = vunpack.c.h.b16 %v1151
    %v4143 = vunpack.c.l.b16 %v1152
    %v4144 = vunpack.c.h.b16 %v1152
    %v4145 = vunpack.c.l.b16 %v1153
    %v4146 = vunpack.c.h.b16 %v1153
    %v4147 = vunpack.c.l.b16 %v1154
    %v4148 = vunpack.c.h.b16 %v1154
    %v4149 = vunpack.c.l.b16 %v1155
    %v4150 = vunpack.c.h.b16 %v1155
    %v4151 = vunpack.c.l.b16 %v1156
    %v4152 = vunpack.c.h.b16 %v1156
    %v4153 = vunpack.c.l.b16 %v1157
    %v4154 = vunpack.c.h.b16 %v1157
    %v4155 = vunpack.c.l.b16 %v1158
    %v4156 = vunpack.c.h.b16 %v1158
    %v4157 = vunpack.c.l.b16 %v1159
    %v4158 = vunpack.c.h.b16 %v1159
    %v4159 = vunpack.c.l.b16 %v1160
    %v4160 = vunpack.c.h.b16 %v1160
    %v4161 = vunpack.c.l.b16 %v1161
    %v4162 = vunpack.c.h.b16 %v1161
    %v4163 = vunpack.c.l.b16 %v1162
    %v4164 = vunpack.c.h.b16 %v1162
    %v4165 = vunpack.c.l.b16 %v1163
    %v4166 = vunpack.c.h.b16 %v1163
    %v4167 = vunpack.c.l.b16 %v1164
    %v4168 = vunpack.c.h.b16 %v1164
    %v4169 = vunpack.c.l.b16 %v1165
    %v4170 = vunpack.c.h.b16 %v1165
    %v4171 = vunpack.c.l.b16 %v1166
    %v4172 = vunpack.c.h.b16 %v1166
    %v4173 = vunpack.c.l.b16 %v1167
    %v4174 = vunpack.c.h.b16 %v1167
    %v4175 = vunpack.c.l.b16 %v1168
    %v4176 = vunpack.c.h.b16 %v1168
    %v4177 = vunpack.c.l.b16 %v1169
    %v4178 = vunpack.c.h.b16 %v1169
    %v4179 = vunpack.c.l.b16 %v1170
    %v4180 = vunpack.c.h.b16 %v1170
    %v4181 = vunpack.c.l.b16 %v1171
    %v4182 = vunpack.c.h.b16 %v1171
    %v4183 = vunpack.c.l.b16 %v1172
    %v4184 = vunpack.c.h.b16 %v1172
    %v4185 = vunpack.c.l.b16 %v1173
    %v4186 = vunpack.c.h.b16 %v1173
    %v4187 = vunpack.c.l.b16 %v1174
    %v4188 = vunpack.c.h.b16 %v1174
    %v4189 = vunpack.c.l.b16 %v1175
    %v4190 = vunpack.c.h.b16 %v1175
    %v4191 = vunpack.c.l.b16 %v1176
    %v4192 = vunpack.c.h.b16 %v1176
    %v4193 = vunpack.c.l.b16 %v1177
    %v4194 = vunpack.c.h.b16 %v1177
    %v4195 = vunpack.c.l.b16 %v1178
    %v4196 = vunpack.c.h.b16 %v1178
    %v4197 = vpack.c.b16 %v2205, %v2197
    %v4198 = vpack.c.b16 %v2206, %v2198
    %v4199 = vpack.c.b16 %v2207, %v2199
    %v4200 = vpack.c.b16 %v2208, %v2200
    %v4201 = vpack.c.b16 %v2209, %v2201
    %v4202 = vpack.c.b16 %v2210, %v2202
    %v4203 = vpack.c.b16 %v2211, %v2203
    %v4204 = vpack.c.b16 %v2212, %v2204
    %v4205 = vpack.c.b16 %v2221, %v2213
    %v4206 = vpack.c.b16 %v2222, %v2214
    %v4207 = vpack.c.b16 %v2223, %v2215
    %v4208 = vpack.c.b16 %v2224, %v2216
    %v4209 = vpack.c.b16 %v2225, %v2217
    %v4210 = vpack.c.b16 %v2226, %v2218
    %v4211 = vpack.c.b16 %v2227, %v2219
    %v4212 = vpack.c.b16 %v2228, %v2220
    %v4213 = vpack.c.b16 %v2237, %v2229
    %v4214 = vpack.c.b16 %v2238, %v2230
    %v4215 = vpack.c.b16 %v2239, %v2231
    %v4216 = vpack.c.b16 %v2240, %v2232
    %v4217 = vpack.c.b16 %v2241, %v2233
    %v4218 = vpack.c.b16 %v2242, %v2234
    %v4219 = vpack.c.b16 %v2243, %v2235
    %v4220 = vpack.c.b16 %v2244, %v2236
    %v4221 = vpack.c.b16 %v2253, %v2245
    %v4222 = vpack.c.b16 %v2254, %v2246
    %v4223 = vpack.c.b16 %v2255, %v2247
    %v4224 = vpack.c.b16 %v2256, %v2248
    %v4225 = vpack.c.b16 %v2257, %v2249
    %v4226 = vpack.c.b16 %v2258, %v2250
    %v4227 = vpack.c.b16 %v2259, %v2251
    %v4228 = vpack.c.b16 %v2260, %v2252
    %v4229 = vpack.c.b16 %v2269, %v2261
    %v4230 = vpack.c.b16 %v2270, %v2262
    %v4231 = vpack.c.b16 %v2271, %v2263
    %v4232 = vpack.c.b16 %v2272, %v2264
    %v4233 = vpack.c.b16 %v2273, %v2265
    %v4234 = vpack.c.b16 %v2274, %v2266
    %v4235 = vpack.c.b16 %v2275, %v2267
    %v4236 = vpack.c.b16 %v2276, %v2268
    %v4237 = vpack.c.b16 %v2285, %v2277
    %v4238 = vpack.c.b16 %v2286, %v2278
    %v4239 = vpack.c.b16 %v2287, %v2279
    %v4240 = vpack.c.b16 %v2288, %v2280
    %v4241 = vpack.c.b16 %v2289, %v2281
    %v4242 = vpack.c.b16 %v2290, %v2282
    %v4243 = vpack.c.b16 %v2291, %v2283
    %v4244 = vpack.c.b16 %v2292, %v2284
    %v4245 = vpack.c.b16 %v2301, %v2293
    %v4246 = vpack.c.b16 %v2302, %v2294
    %v4247 = vpack.c.b16 %v2303, %v2295
    %v4248 = vpack.c.b16 %v2304, %v2296
    %v4249 = vpack.c.b16 %v2305, %v2297
    %v4250 = vpack.c.b16 %v2306, %v2298
    %v4251 = vpack.c.b16 %v2307, %v2299
    %v4252 = vpack.c.b16 %v2308, %v2300
    %v4253 = vpack.c.b16 %v2317, %v2309
    %v4254 = vpack.c.b16 %v2318, %v2310
    %v4255 = vpack.c.b16 %v2319, %v2311
    %v4256 = vpack.c.b16 %v2320, %v2312
    %v4257 = vpack.c.b16 %v2321, %v2313
    %v4258 = vpack.c.b16 %v2322, %v2314
    %v4259 = vpack.c.b16 %v2323, %v2315
    %v4260 = vpack.c.b16 %v2324, %v2316
    %v4261 = vpack.c.b16 %v2333, %v2325
    %v4262 = vpack.c.b16 %v2334, %v2326
    %v4263 = vpack.c.b16 %v2335, %v2327
    %v4264 = vpack.c.b16 %v2336, %v2328
    %v4265 = vpack.c.b16 %v2337, %v2329
    %v4266 = vpack.c.b16 %v2338, %v2330
    %v4267 = vpack.c.b16 %v2339, %v2331
    %v4268 = vpack.c.b16 %v2340, %v2332
    %v4269 = vpack.c.b16 %v2349, %v2341
    %v4270 = vpack.c.b16 %v2350, %v2342
    %v4271 = vpack.c.b16 %v2351, %v2343
    %v4272 = vpack.c.b16 %v2352, %v2344
    %v4273 = vpack.c.b16 %v2353, %v2345
    %v4274 = vpack.c.b16 %v2354, %v2346
    %v4275 = vpack.c.b16 %v2355, %v2347
    %v4276 = vpack.c.b16 %v2356, %v2348
    %v4277 = vpack.c.b16 %v2365, %v2357
    %v4278 = vpack.c.b16 %v2366, %v2358
    %v4279 = vpack.c.b16 %v2367, %v2359
    %v4280 = vpack.c.b16 %v2368, %v2360
    %v4281 = vpack.c.b16 %v2369, %v2361
    %v4282 = vpack.c.b16 %v2370, %v2362
    %v4283 = vpack.c.b16 %v2371, %v2363
    %v4284 = vpack.c.b16 %v2372, %v2364
    %v4285 = vpack.c.b16 %v2381, %v2373
    %v4286 = vpack.c.b16 %v2382, %v2374
    %v4287 = vpack.c.b16 %v2383, %v2375
    %v4288 = vpack.c.b16 %v2384, %v2376
    %v4289 = vpack.c.b16 %v2385, %v2377
    %v4290 = vpack.c.b16 %v2386, %v2378
    %v4291 = vpack.c.b16 %v2387, %v2379
    %v4292 = vpack.c.b16 %v2388, %v2380
    %v4293 = vpack.c.b16 %v2397, %v2389
    %v4294 = vpack.c.b16 %v2398, %v2390
    %v4295 = vpack.c.b16 %v2399, %v2391
    %v4296 = vpack.c.b16 %v2400, %v2392
    %v4297 = vpack.c.b16 %v2401, %v2393
    %v4298 = vpack.c.b16 %v2402, %v2394
    %v4299 = vpack.c.b16 %v2403, %v2395
    %v4300 = vpack.c.b16 %v2404, %v2396
    %v4301 = vpack.c.b16 %v2413, %v2405
    %v4302 = vpack.c.b16 %v2414, %v2406
    %v4303 = vpack.c.b16 %v2415, %v2407
    %v4304 = vpack.c.b16 %v2416, %v2408
    %v4305 = vpack.c.b16 %v2417, %v2409
    %v4306 = vpack.c.b16 %v2418, %v2410
    %v4307 = vpack.c.b16 %v2419, %v2411
    %v4308 = vpack.c.b16 %v2420, %v2412
    %v4309 = vpack.c.b16 %v2429, %v2421
    %v4310 = vpack.c.b16 %v2430, %v2422
    %v4311 = vpack.c.b16 %v2431, %v2423
    %v4312 = vpack.c.b16 %v2432, %v2424
    %v4313 = vpack.c.b16 %v2433, %v2425
    %v4314 = vpack.c.b16 %v2434, %v2426
    %v4315 = vpack.c.b16 %v2435, %v2427
    %v4316 = vpack.c.b16 %v2436, %v2428
    %v4317 = vpack.c.b16 %v2445, %v2437
    %v4318 = vpack.c.b16 %v2446, %v2438
    %v4319 = vpack.c.b16 %v2447, %v2439
    %v4320 = vpack.c.b16 %v2448, %v2440
    %v4321 = vpack.c.b16 %v2449, %v2441
    %v4322 = vpack.c.b16 %v2450, %v2442
    %v4323 = vpack.c.b16 %v2451, %v2443
    %v4324 = vpack.c.b16 %v2452, %v2444
    %v4325 = vpack.c.b16 %v2461, %v2453
    %v4326 = vpack.c.b16 %v2462, %v2454
    %v4327 = vpack.c.b16 %v2463, %v2455
    %v4328 = vpack.c.b16 %v2464, %v2456
    %v4329 = vpack.c.b16 %v2465, %v2457
    %v4330 = vpack.c.b16 %v2466, %v2458
    %v4331 = vpack.c.b16 %v2467, %v2459
    %v4332 = vpack.c.b16 %v2468, %v2460
    %v4333 = vpack.c.b16 %v2477, %v2469
    %v4334 = vpack.c.b16 %v2478, %v2470
    %v4335 = vpack.c.b16 %v2479, %v2471
    %v4336 = vpack.c.b16 %v2480, %v2472
    %v4337 = vpack.c.b16 %v2481, %v2473
    %v4338 = vpack.c.b16 %v2482, %v2474
    %v4339 = vpack.c.b16 %v2483, %v2475
    %v4340 = vpack.c.b16 %v2484, %v2476
    %v4341 = vpack.c.b16 %v2493, %v2485
    %v4342 = vpack.c.b16 %v2494, %v2486
    %v4343 = vpack.c.b16 %v2495, %v2487
    %v4344 = vpack.c.b16 %v2496, %v2488
    %v4345 = vpack.c.b16 %v2497, %v2489
    %v4346 = vpack.c.b16 %v2498, %v2490
    %v4347 = vpack.c.b16 %v2499, %v2491
    %v4348 = vpack.c.b16 %v2500, %v2492
    %v4349 = vpack.c.b16 %v2509, %v2501
    %v4350 = vpack.c.b16 %v2510, %v2502
    %v4351 = vpack.c.b16 %v2511, %v2503
    %v4352 = vpack.c.b16 %v2512, %v2504
    %v4353 = vpack.c.b16 %v2513, %v2505
    %v4354 = vpack.c.b16 %v2514, %v2506
    %v4355 = vpack.c.b16 %v2515, %v2507
    %v4356 = vpack.c.b16 %v2516, %v2508
    %v4357 = vpack.c.b16 %v2525, %v2517
    %v4358 = vpack.c.b16 %v2526, %v2518
    %v4359 = vpack.c.b16 %v2527, %v2519
    %v4360 = vpack.c.b16 %v2528, %v2520
    %v4361 = vpack.c.b16 %v2529, %v2521
    %v4362 = vpack.c.b16 %v2530, %v2522
    %v4363 = vpack.c.b16 %v2531, %v2523
    %v4364 = vpack.c.b16 %v2532, %v2524
    %v4365 = vpack.c.b16 %v2541, %v2533
    %v4366 = vpack.c.b16 %v2542, %v2534
    %v4367 = vpack.c.b16 %v2543, %v2535
    %v4368 = vpack.c.b16 %v2544, %v2536
    %v4369 = vpack.c.b16 %v2545, %v2537
    %v4370 = vpack.c.b16 %v2546, %v2538
    %v4371 = vpack.c.b16 %v2547, %v2539
    %v4372 = vpack.c.b16 %v2548, %v2540
    %v4373 = vpack.c.b16 %v2557, %v2549
    %v4374 = vpack.c.b16 %v2558, %v2550
    %v4375 = vpack.c.b16 %v2559, %v2551
    %v4376 = vpack.c.b16 %v2560, %v2552
    %v4377 = vpack.c.b16 %v2561, %v2553
    %v4378 = vpack.c.b16 %v2562, %v2554
    %v4379 = vpack.c.b16 %v2563, %v2555
    %v4380 = vpack.c.b16 %v2564, %v2556
    %v4381 = vpack.c.b16 %v2573, %v2565
    %v4382 = vpack.c.b16 %v2574, %v2566
    %v4383 = vpack.c.b16 %v2575, %v2567
    %v4384 = vpack.c.b16 %v2576, %v2568
    %v4385 = vpack.c.b16 %v2577, %v2569
    %v4386 = vpack.c.b16 %v2578, %v2570
    %v4387 = vpack.c.b16 %v2579, %v2571
    %v4388 = vpack.c.b16 %v2580, %v2572
    %v4389 = vpack.c.b16 %v2589, %v2581
    %v4390 = vpack.c.b16 %v2590, %v2582
    %v4391 = vpack.c.b16 %v2591, %v2583
    %v4392 = vpack.c.b16 %v2592, %v2584
    %v4393 = vpack.c.b16 %v2593, %v2585
    %v4394 = vpack.c.b16 %v2594, %v2586
    %v4395 = vpack.c.b16 %v2595, %v2587
    %v4396 = vpack.c.b16 %v2596, %v2588
    %v4397 = vpack.c.b16 %v2605, %v2597
    %v4398 = vpack.c.b16 %v2606, %v2598
    %v4399 = vpack.c.b16 %v2607, %v2599
    %v4400 = vpack.c.b16 %v2608, %v2600
    %v4401 = vpack.c.b16 %v2609, %v2601
    %v4402 = vpack.c.b16 %v2610, %v2602
    %v4403 = vpack.c.b16 %v2611, %v2603
    %v4404 = vpack.c.b16 %v2612, %v2604
    %v4405 = vpack.c.b16 %v2621, %v2613
    %v4406 = vpack.c.b16 %v2622, %v2614
    %v4407 = vpack.c.b16 %v2623, %v2615
    %v4408 = vpack.c.b16 %v2624, %v2616
    %v4409 = vpack.c.b16 %v2625, %v2617
    %v4410 = vpack.c.b16 %v2626, %v2618
    %v4411 = vpack.c.b16 %v2627, %v2619
    %v4412 = vpack.c.b16 %v2628, %v2620
    %v4413 = vpack.c.b16 %v2637, %v2629
    %v4414 = vpack.c.b16 %v2638, %v2630
    %v4415 = vpack.c.b16 %v2639, %v2631
    %v4416 = vpack.c.b16 %v2640, %v2632
    %v4417 = vpack.c.b16 %v2641, %v2633
    %v4418 = vpack.c.b16 %v2642, %v2634
    %v4419 = vpack.c.b16 %v2643, %v2635
    %v4420 = vpack.c.b16 %v2644, %v2636
    %v4421 = vpack.c.b16 %v2653, %v2645
    %v4422 = vpack.c.b16 %v2654, %v2646
    %v4423 = vpack.c.b16 %v2655, %v2647
    %v4424 = vpack.c.b16 %v2656, %v2648
    %v4425 = vpack.c.b16 %v2657, %v2649
    %v4426 = vpack.c.b16 %v2658, %v2650
    %v4427 = vpack.c.b16 %v2659, %v2651
    %v4428 = vpack.c.b16 %v2660, %v2652
    %v4429 = vpack.c.b16 %v2669, %v2661
    %v4430 = vpack.c.b16 %v2670, %v2662
    %v4431 = vpack.c.b16 %v2671, %v2663
    %v4432 = vpack.c.b16 %v2672, %v2664
    %v4433 = vpack.c.b16 %v2673, %v2665
    %v4434 = vpack.c.b16 %v2674, %v2666
    %v4435 = vpack.c.b16 %v2675, %v2667
    %v4436 = vpack.c.b16 %v2676, %v2668
    %v4437 = vpack.c.b16 %v2685, %v2677
    %v4438 = vpack.c.b16 %v2686, %v2678
    %v4439 = vpack.c.b16 %v2687, %v2679
    %v4440 = vpack.c.b16 %v2688, %v2680
    %v4441 = vpack.c.b16 %v2689, %v2681
    %v4442 = vpack.c.b16 %v2690, %v2682
    %v4443 = vpack.c.b16 %v2691, %v2683
    %v4444 = vpack.c.b16 %v2692, %v2684
    %v4445 = vpack.c.b16 %v2701, %v2693
    %v4446 = vpack.c.b16 %v2702, %v2694
    %v4447 = vpack.c.b16 %v2703, %v2695
    %v4448 = vpack.c.b16 %v2704, %v2696
    %v4449 = vpack.c.b16 %v2705, %v2697
    %v4450 = vpack.c.b16 %v2706, %v2698
    %v4451 = vpack.c.b16 %v2707, %v2699
    %v4452 = vpack.c.b16 %v2708, %v2700
    %v4453 = vpack.c.b16 %v2717, %v2709
    %v4454 = vpack.c.b16 %v2718, %v2710
    %v4455 = vpack.c.b16 %v2719, %v2711
    %v4456 = vpack.c.b16 %v2720, %v2712
    %v4457 = vpack.c.b16 %v2721, %v2713
    %v4458 = vpack.c.b16 %v2722, %v2714
    %v4459 = vpack.c.b16 %v2723, %v2715
    %v4460 = vpack.c.b16 %v2724, %v2716
    %v4461 = vpack.c.b16 %v2733, %v2725
    %v4462 = vpack.c.b16 %v2734, %v2726
    %v4463 = vpack.c.b16 %v2735, %v2727
    %v4464 = vpack.c.b16 %v2736, %v2728
    %v4465 = vpack.c.b16 %v2737, %v2729
    %v4466 = vpack.c.b16 %v2738, %v2730
    %v4467 = vpack.c.b16 %v2739, %v2731
    %v4468 = vpack.c.b16 %v2740, %v2732
    %v4469 = vpack.c.b16 %v2749, %v2741
    %v4470 = vpack.c.b16 %v2750, %v2742
    %v4471 = vpack.c.b16 %v2751, %v2743
    %v4472 = vpack.c.b16 %v2752, %v2744
    %v4473 = vpack.c.b16 %v2753, %v2745
    %v4474 = vpack.c.b16 %v2754, %v2746
    %v4475 = vpack.c.b16 %v2755, %v2747
    %v4476 = vpack.c.b16 %v2756, %v2748
    %v4477 = vpack.c.b16 %v2765, %v2757
    %v4478 = vpack.c.b16 %v2766, %v2758
    %v4479 = vpack.c.b16 %v2767, %v2759
    %v4480 = vpack.c.b16 %v2768, %v2760
    %v4481 = vpack.c.b16 %v2769, %v2761
    %v4482 = vpack.c.b16 %v2770, %v2762
    %v4483 = vpack.c.b16 %v2771, %v2763
    %v4484 = vpack.c.b16 %v2772, %v2764
    %v4485 = vpack.c.b16 %v2781, %v2773
    %v4486 = vpack.c.b16 %v2782, %v2774
    %v4487 = vpack.c.b16 %v2783, %v2775
    %v4488 = vpack.c.b16 %v2784, %v2776
    %v4489 = vpack.c.b16 %v2785, %v2777
    %v4490 = vpack.c.b16 %v2786, %v2778
    %v4491 = vpack.c.b16 %v2787, %v2779
    %v4492 = vpack.c.b16 %v2788, %v2780
    %v4493 = vpack.c.b16 %v2797, %v2789
    %v4494 = vpack.c.b16 %v2798, %v2790
    %v4495 = vpack.c.b16 %v2799, %v2791
    %v4496 = vpack.c.b16 %v2800, %v2792
    %v4497 = vpack.c.b16 %v2801, %v2793
    %v4498 = vpack.c.b16 %v2802, %v2794
    %v4499 = vpack.c.b16 %v2803, %v2795
    %v4500 = vpack.c.b16 %v2804, %v2796
    %v4501 = vpack.c.b16 %v2813, %v2805
    %v4502 = vpack.c.b16 %v2814, %v2806
    %v4503 = vpack.c.b16 %v2815, %v2807
    %v4504 = vpack.c.b16 %v2816, %v2808
    %v4505 = vpack.c.b16 %v2817, %v2809
    %v4506 = vpack.c.b16 %v2818, %v2810
    %v4507 = vpack.c.b16 %v2819, %v2811
    %v4508 = vpack.c.b16 %v2820, %v2812
    %v4509 = vpack.c.b16 %v2829, %v2821
    %v4510 = vpack.c.b16 %v2830, %v2822
    %v4511 = vpack.c.b16 %v2831, %v2823
    %v4512 = vpack.c.b16 %v2832, %v2824
    %v4513 = vpack.c.b16 %v2833, %v2825
    %v4514 = vpack.c.b16 %v2834, %v2826
    %v4515 = vpack.c.b16 %v2835, %v2827
    %v4516 = vpack.c.b16 %v2836, %v2828
    %v4517 = vpack.c.b16 %v2845, %v2837
    %v4518 = vpack.c.b16 %v2846, %v2838
    %v4519 = vpack.c.b16 %v2847, %v2839
    %v4520 = vpack.c.b16 %v2848, %v2840
    %v4521 = vpack.c.b16 %v2849, %v2841
    %v4522 = vpack.c.b16 %v2850, %v2842
    %v4523 = vpack.c.b16 %v2851, %v2843
    %v4524 = vpack.c.b16 %v2852, %v2844
    %v4525 = vpack.c.b16 %v2861, %v2853
    %v4526 = vpack.c.b16 %v2862, %v2854
    %v4527 = vpack.c.b16 %v2863, %v2855
    %v4528 = vpack.c.b16 %v2864, %v2856
    %v4529 = vpack.c.b16 %v2865, %v2857
    %v4530 = vpack.c.b16 %v2866, %v2858
    %v4531 = vpack.c.b16 %v2867, %v2859
    %v4532 = vpack.c.b16 %v2868, %v2860
    %v4533 = vpack.c.b16 %v2877, %v2869
    %v4534 = vpack.c.b16 %v2878, %v2870
    %v4535 = vpack.c.b16 %v2879, %v2871
    %v4536 = vpack.c.b16 %v2880, %v2872
    %v4537 = vpack.c.b16 %v2881, %v2873
    %v4538 = vpack.c.b16 %v2882, %v2874
    %v4539 = vpack.c.b16 %v2883, %v2875
    %v4540 = vpack.c.b16 %v2884, %v2876
    %v4541 = vpack.c.b16 %v2893, %v2885
    %v4542 = vpack.c.b16 %v2894, %v2886
    %v4543 = vpack.c.b16 %v2895, %v2887
    %v4544 = vpack.c.b16 %v2896, %v2888
    %v4545 = vpack.c.b16 %v2897, %v2889
    %v4546 = vpack.c.b16 %v2898, %v2890
    %v4547 = vpack.c.b16 %v2899, %v2891
    %v4548 = vpack.c.b16 %v2900, %v2892
    %v4549 = vpack.c.b16 %v2909, %v2901
    %v4550 = vpack.c.b16 %v2910, %v2902
    %v4551 = vpack.c.b16 %v2911, %v2903
    %v4552 = vpack.c.b16 %v2912, %v2904
    %v4553 = vpack.c.b16 %v2913, %v2905
    %v4554 = vpack.c.b16 %v2914, %v2906
    %v4555 = vpack.c.b16 %v2915, %v2907
    %v4556 = vpack.c.b16 %v2916, %v2908
    %v4557 = vpack.c.b16 %v2925, %v2917
    %v4558 = vpack.c.b16 %v2926, %v2918
    %v4559 = vpack.c.b16 %v2927, %v2919
    %v4560 = vpack.c.b16 %v2928, %v2920
    %v4561 = vpack.c.b16 %v2929, %v2921
    %v4562 = vpack.c.b16 %v2930, %v2922
    %v4563 = vpack.c.b16 %v2931, %v2923
    %v4564 = vpack.c.b16 %v2932, %v2924
    %v4565 = vpack.c.b16 %v2941, %v2933
    %v4566 = vpack.c.b16 %v2942, %v2934
    %v4567 = vpack.c.b16 %v2943, %v2935
    %v4568 = vpack.c.b16 %v2944, %v2936
    %v4569 = vpack.c.b16 %v2945, %v2937
    %v4570 = vpack.c.b16 %v2946, %v2938
    %v4571 = vpack.c.b16 %v2947, %v2939
    %v4572 = vpack.c.b16 %v2948, %v2940
    %v4573 = vpack.c.b16 %v2957, %v2949
    %v4574 = vpack.c.b16 %v2958, %v2950
    %v4575 = vpack.c.b16 %v2959, %v2951
    %v4576 = vpack.c.b16 %v2960, %v2952
    %v4577 = vpack.c.b16 %v2961, %v2953
    %v4578 = vpack.c.b16 %v2962, %v2954
    %v4579 = vpack.c.b16 %v2963, %v2955
    %v4580 = vpack.c.b16 %v2964, %v2956
    %v4581 = vpack.c.b16 %v2973, %v2965
    %v4582 = vpack.c.b16 %v2974, %v2966
    %v4583 = vpack.c.b16 %v2975, %v2967
    %v4584 = vpack.c.b16 %v2976, %v2968
    %v4585 = vpack.c.b16 %v2977, %v2969
    %v4586 = vpack.c.b16 %v2978, %v2970
    %v4587 = vpack.c.b16 %v2979, %v2971
    %v4588 = vpack.c.b16 %v2980, %v2972
    %v4589 = vpack.c.b16 %v2989, %v2981
    %v4590 = vpack.c.b16 %v2990, %v2982
    %v4591 = vpack.c.b16 %v2991, %v2983
    %v4592 = vpack.c.b16 %v2992, %v2984
    %v4593 = vpack.c.b16 %v2993, %v2985
    %v4594 = vpack.c.b16 %v2994, %v2986
    %v4595 = vpack.c.b16 %v2995, %v2987
    %v4596 = vpack.c.b16 %v2996, %v2988
    %v4597 = vpack.c.b16 %v3005, %v2997
    %v4598 = vpack.c.b16 %v3006, %v2998
    %v4599 = vpack.c.b16 %v3007, %v2999
    %v4600 = vpack.c.b16 %v3008, %v3000
    %v4601 = vpack.c.b16 %v3009, %v3001
    %v4602 = vpack.c.b16 %v3010, %v3002
    %v4603 = vpack.c.b16 %v3011, %v3003
    %v4604 = vpack.c.b16 %v3012, %v3004
    %v4605 = vpack.c.b16 %v3021, %v3013
    %v4606 = vpack.c.b16 %v3022, %v3014
    %v4607 = vpack.c.b16 %v3023, %v3015
    %v4608 = vpack.c.b16 %v3024, %v3016
    %v4609 = vpack.c.b16 %v3025, %v3017
    %v4610 = vpack.c.b16 %v3026, %v3018
    %v4611 = vpack.c.b16 %v3027, %v3019
    %v4612 = vpack.c.b16 %v3028, %v3020
    %v4613 = vpack.c.b16 %v3037, %v3029
    %v4614 = vpack.c.b16 %v3038, %v3030
    %v4615 = vpack.c.b16 %v3039, %v3031
    %v4616 = vpack.c.b16 %v3040, %v3032
    %v4617 = vpack.c.b16 %v3041, %v3033
    %v4618 = vpack.c.b16 %v3042, %v3034
    %v4619 = vpack.c.b16 %v3043, %v3035
    %v4620 = vpack.c.b16 %v3044, %v3036
    %v4621 = vpack.c.b16 %v3053, %v3045
    %v4622 = vpack.c.b16 %v3054, %v3046
    %v4623 = vpack.c.b16 %v3055, %v3047
    %v4624 = vpack.c.b16 %v3056, %v3048
    %v4625 = vpack.c.b16 %v3057, %v3049
    %v4626 = vpack.c.b16 %v3058, %v3050
    %v4627 = vpack.c.b16 %v3059, %v3051
    %v4628 = vpack.c.b16 %v3060, %v3052
    %v4629 = vpack.c.b16 %v3069, %v3061
    %v4630 = vpack.c.b16 %v3070, %v3062
    %v4631 = vpack.c.b16 %v3071, %v3063
    %v4632 = vpack.c.b16 %v3072, %v3064
    %v4633 = vpack.c.b16 %v3073, %v3065
    %v4634 = vpack.c.b16 %v3074, %v3066
    %v4635 = vpack.c.b16 %v3075, %v3067
    %v4636 = vpack.c.b16 %v3076, %v3068
    %v4637 = vpack.c.b16 %v3085, %v3077
    %v4638 = vpack.c.b16 %v3086, %v3078
    %v4639 = vpack.c.b16 %v3087, %v3079
    %v4640 = vpack.c.b16 %v3088, %v3080
    %v4641 = vpack.c.b16 %v3089, %v3081
    %v4642 = vpack.c.b16 %v3090, %v3082
    %v4643 = vpack.c.b16 %v3091, %v3083
    %v4644 = vpack.c.b16 %v3092, %v3084
    %v4645 = vpack.c.b16 %v3101, %v3093
    %v4646 = vpack.c.b16 %v3102, %v3094
    %v4647 = vpack.c.b16 %v3103, %v3095
    %v4648 = vpack.c.b16 %v3104, %v3096
    %v4649 = vpack.c.b16 %v3105, %v3097
    %v4650 = vpack.c.b16 %v3106, %v3098
    %v4651 = vpack.c.b16 %v3107, %v3099
    %v4652 = vpack.c.b16 %v3108, %v3100
    %v4653 = vpack.c.b16 %v3117, %v3109
    %v4654 = vpack.c.b16 %v3118, %v3110
    %v4655 = vpack.c.b16 %v3119, %v3111
    %v4656 = vpack.c.b16 %v3120, %v3112
    %v4657 = vpack.c.b16 %v3121, %v3113
    %v4658 = vpack.c.b16 %v3122, %v3114
    %v4659 = vpack.c.b16 %v3123, %v3115
    %v4660 = vpack.c.b16 %v3124, %v3116
    %v4661 = vpack.c.b16 %v3133, %v3125
    %v4662 = vpack.c.b16 %v3134, %v3126
    %v4663 = vpack.c.b16 %v3135, %v3127
    %v4664 = vpack.c.b16 %v3136, %v3128
    %v4665 = vpack.c.b16 %v3137, %v3129
    %v4666 = vpack.c.b16 %v3138, %v3130
    %v4667 = vpack.c.b16 %v3139, %v3131
    %v4668 = vpack.c.b16 %v3140, %v3132
    %v4669 = vpack.c.b16 %v3149, %v3141
    %v4670 = vpack.c.b16 %v3150, %v3142
    %v4671 = vpack.c.b16 %v3151, %v3143
    %v4672 = vpack.c.b16 %v3152, %v3144
    %v4673 = vpack.c.b16 %v3153, %v3145
    %v4674 = vpack.c.b16 %v3154, %v3146
    %v4675 = vpack.c.b16 %v3155, %v3147
    %v4676 = vpack.c.b16 %v3156, %v3148
    %v4677 = vpack.c.b16 %v3165, %v3157
    %v4678 = vpack.c.b16 %v3166, %v3158
    %v4679 = vpack.c.b16 %v3167, %v3159
    %v4680 = vpack.c.b16 %v3168, %v3160
    %v4681 = vpack.c.b16 %v3169, %v3161
    %v4682 = vpack.c.b16 %v3170, %v3162
    %v4683 = vpack.c.b16 %v3171, %v3163
    %v4684 = vpack.c.b16 %v3172, %v3164
    %v4685 = vpack.c.b16 %v3181, %v3173
    %v4686 = vpack.c.b16 %v3182, %v3174
    %v4687 = vpack.c.b16 %v3183, %v3175
    %v4688 = vpack.c.b16 %v3184, %v3176
    %v4689 = vpack.c.b16 %v3185, %v3177
    %v4690 = vpack.c.b16 %v3186, %v3178
    %v4691 = vpack.c.b16 %v3187, %v3179
    %v4692 = vpack.c.b16 %v3188, %v3180
    %v4693 = vpack.c.b16 %v3197, %v3189
    %v4694 = vpack.c.b16 %v3198, %v3190
    %v4695 = vpack.c.b16 %v3199, %v3191
    %v4696 = vpack.c.b16 %v3200, %v3192
    %v4697 = vpack.c.b16 %v3201, %v3193
    %v4698 = vpack.c.b16 %v3202, %v3194
    %v4699 = vpack.c.b16 %v3203, %v3195
    %v4700 = vpack.c.b16 %v3204, %v3196
    %v4701 = vpack.c.b16 %v3213, %v3205
    %v4702 = vpack.c.b16 %v3214, %v3206
    %v4703 = vpack.c.b16 %v3215, %v3207
    %v4704 = vpack.c.b16 %v3216, %v3208
    %v4705 = vpack.c.b16 %v3217, %v3209
    %v4706 = vpack.c.b16 %v3218, %v3210
    %v4707 = vpack.c.b16 %v3219, %v3211
    %v4708 = vpack.c.b16 %v3220, %v3212
    %v4709 = vpack.c.b16 %v3229, %v3221
    %v4710 = vpack.c.b16 %v3230, %v3222
    %v4711 = vpack.c.b16 %v3231, %v3223
    %v4712 = vpack.c.b16 %v3232, %v3224
    %v4713 = vpack.c.b16 %v3233, %v3225
    %v4714 = vpack.c.b16 %v3234, %v3226
    %v4715 = vpack.c.b16 %v3235, %v3227
    %v4716 = vpack.c.b16 %v3236, %v3228
    %v4717 = vpack.c.b16 %v3245, %v3237
    %v4718 = vpack.c.b16 %v3246, %v3238
    %v4719 = vpack.c.b16 %v3247, %v3239
    %v4720 = vpack.c.b16 %v3248, %v3240
    %v4721 = vpack.c.b16 %v3249, %v3241
    %v4722 = vpack.c.b16 %v3250, %v3242
    %v4723 = vpack.c.b16 %v3251, %v3243
    %v4724 = vpack.c.b16 %v3252, %v3244
    %v4725 = vpack.c.b16 %v3261, %v3253
    %v4726 = vpack.c.b16 %v3262, %v3254
    %v4727 = vpack.c.b16 %v3263, %v3255
    %v4728 = vpack.c.b16 %v3264, %v3256
    %v4729 = vpack.c.b16 %v3265, %v3257
    %v4730 = vpack.c.b16 %v3266, %v3258
    %v4731 = vpack.c.b16 %v3267, %v3259
    %v4732 = vpack.c.b16 %v3268, %v3260
    %v4733 = vpack.c.b16 %v3277, %v3269
    %v4734 = vpack.c.b16 %v3278, %v3270
    %v4735 = vpack.c.b16 %v3279, %v3271
    %v4736 = vpack.c.b16 %v3280, %v3272
    %v4737 = vpack.c.b16 %v3281, %v3273
    %v4738 = vpack.c.b16 %v3282, %v3274
    %v4739 = vpack.c.b16 %v3283, %v3275
    %v4740 = vpack.c.b16 %v3284, %v3276
    %v4741 = vpack.c.b16 %v3293, %v3285
    %v4742 = vpack.c.b16 %v3294, %v3286
    %v4743 = vpack.c.b16 %v3295, %v3287
    %v4744 = vpack.c.b16 %v3296, %v3288
    %v4745 = vpack.c.b16 %v3297, %v3289
    %v4746 = vpack.c.b16 %v3298, %v3290
    %v4747 = vpack.c.b16 %v3299, %v3291
    %v4748 = vpack.c.b16 %v3300, %v3292
    %v4749 = vpack.c.b16 %v3309, %v3301
    %v4750 = vpack.c.b16 %v3310, %v3302
    %v4751 = vpack.c.b16 %v3311, %v3303
    %v4752 = vpack.c.b16 %v3312, %v3304
    %v4753 = vpack.c.b16 %v3313, %v3305
    %v4754 = vpack.c.b16 %v3314, %v3306
    %v4755 = vpack.c.b16 %v3315, %v3307
    %v4756 = vpack.c.b16 %v3316, %v3308
    %v4757 = vpack.c.b16 %v3325, %v3317
    %v4758 = vpack.c.b16 %v3326, %v3318
    %v4759 = vpack.c.b16 %v3327, %v3319
    %v4760 = vpack.c.b16 %v3328, %v3320
    %v4761 = vpack.c.b16 %v3329, %v3321
    %v4762 = vpack.c.b16 %v3330, %v3322
    %v4763 = vpack.c.b16 %v3331, %v3323
    %v4764 = vpack.c.b16 %v3332, %v3324
    %v4765 = vpack.c.b16 %v3341, %v3333
    %v4766 = vpack.c.b16 %v3342, %v3334
    %v4767 = vpack.c.b16 %v3343, %v3335
    %v4768 = vpack.c.b16 %v3344, %v3336
    %v4769 = vpack.c.b16 %v3345, %v3337
    %v4770 = vpack.c.b16 %v3346, %v3338
    %v4771 = vpack.c.b16 %v3347, %v3339
    %v4772 = vpack.c.b16 %v3348, %v3340
    %v4773 = vpack.c.b16 %v3357, %v3349
    %v4774 = vpack.c.b16 %v3358, %v3350
    %v4775 = vpack.c.b16 %v3359, %v3351
    %v4776 = vpack.c.b16 %v3360, %v3352
    %v4777 = vpack.c.b16 %v3361, %v3353
    %v4778 = vpack.c.b16 %v3362, %v3354
    %v4779 = vpack.c.b16 %v3363, %v3355
    %v4780 = vpack.c.b16 %v3364, %v3356
    %v4781 = vpack.c.b16 %v3373, %v3365
    %v4782 = vpack.c.b16 %v3374, %v3366
    %v4783 = vpack.c.b16 %v3375, %v3367
    %v4784 = vpack.c.b16 %v3376, %v3368
    %v4785 = vpack.c.b16 %v3377, %v3369
    %v4786 = vpack.c.b16 %v3378, %v3370
    %v4787 = vpack.c.b16 %v3379, %v3371
    %v4788 = vpack.c.b16 %v3380, %v3372
    %v4789 = vpack.c.b16 %v3389, %v3381
    %v4790 = vpack.c.b16 %v3390, %v3382
    %v4791 = vpack.c.b16 %v3391, %v3383
    %v4792 = vpack.c.b16 %v3392, %v3384
    %v4793 = vpack.c.b16 %v3393, %v3385
    %v4794 = vpack.c.b16 %v3394, %v3386
    %v4795 = vpack.c.b16 %v3395, %v3387
    %v4796 = vpack.c.b16 %v3396, %v3388
    %v4797 = vpack.c.b16 %v3405, %v3397
    %v4798 = vpack.c.b16 %v3406, %v3398
    %v4799 = vpack.c.b16 %v3407, %v3399
    %v4800 = vpack.c.b16 %v3408, %v3400
    %v4801 = vpack.c.b16 %v3409, %v3401
    %v4802 = vpack.c.b16 %v3410, %v3402
    %v4803 = vpack.c.b16 %v3411, %v3403
    %v4804 = vpack.c.b16 %v3412, %v3404
    %v4805 = vpack.c.b16 %v3421, %v3413
    %v4806 = vpack.c.b16 %v3422, %v3414
    %v4807 = vpack.c.b16 %v3423, %v3415
    %v4808 = vpack.c.b16 %v3424, %v3416
    %v4809 = vpack.c.b16 %v3425, %v3417
    %v4810 = vpack.c.b16 %v3426, %v3418
    %v4811 = vpack.c.b16 %v3427, %v3419
    %v4812 = vpack.c.b16 %v3428, %v3420
    %v4813 = vpack.c.b16 %v3437, %v3429
    %v4814 = vpack.c.b16 %v3438, %v3430
    %v4815 = vpack.c.b16 %v3439, %v3431
    %v4816 = vpack.c.b16 %v3440, %v3432
    %v4817 = vpack.c.b16 %v3441, %v3433
    %v4818 = vpack.c.b16 %v3442, %v3434
    %v4819 = vpack.c.b16 %v3443, %v3435
    %v4820 = vpack.c.b16 %v3444, %v3436
    %v4821 = vpack.c.b16 %v3453, %v3445
    %v4822 = vpack.c.b16 %v3454, %v3446
    %v4823 = vpack.c.b16 %v3455, %v3447
    %v4824 = vpack.c.b16 %v3456, %v3448
    %v4825 = vpack.c.b16 %v3457, %v3449
    %v4826 = vpack.c.b16 %v3458, %v3450
    %v4827 = vpack.c.b16 %v3459, %v3451
    %v4828 = vpack.c.b16 %v3460, %v3452
    %v4829 = vpack.c.b16 %v3469, %v3461
    %v4830 = vpack.c.b16 %v3470, %v3462
    %v4831 = vpack.c.b16 %v3471, %v3463
    %v4832 = vpack.c.b16 %v3472, %v3464
    %v4833 = vpack.c.b16 %v3473, %v3465
    %v4834 = vpack.c.b16 %v3474, %v3466
    %v4835 = vpack.c.b16 %v3475, %v3467
    %v4836 = vpack.c.b16 %v3476, %v3468
    %v4837 = vpack.c.b16 %v3485, %v3477
    %v4838 = vpack.c.b16 %v3486, %v3478
    %v4839 = vpack.c.b16 %v3487, %v3479
    %v4840 = vpack.c.b16 %v3488, %v3480
    %v4841 = vpack.c.b16 %v3489, %v3481
    %v4842 = vpack.c.b16 %v3490, %v3482
    %v4843 = vpack.c.b16 %v3491, %v3483
    %v4844 = vpack.c.b16 %v3492, %v3484
    %v4845 = vpack.c.b16 %v3501, %v3493
    %v4846 = vpack.c.b16 %v3502, %v3494
    %v4847 = vpack.c.b16 %v3503, %v3495
    %v4848 = vpack.c.b16 %v3504, %v3496
    %v4849 = vpack.c.b16 %v3505, %v3497
    %v4850 = vpack.c.b16 %v3506, %v3498
    %v4851 = vpack.c.b16 %v3507, %v3499
    %v4852 = vpack.c.b16 %v3508, %v3500
    %v4853 = vpack.c.b16 %v3517, %v3509
    %v4854 = vpack.c.b16 %v3518, %v3510
    %v4855 = vpack.c.b16 %v3519, %v3511
    %v4856 = vpack.c.b16 %v3520, %v3512
    %v4857 = vpack.c.b16 %v3521, %v3513
    %v4858 = vpack.c.b16 %v3522, %v3514
    %v4859 = vpack.c.b16 %v3523, %v3515
    %v4860 = vpack.c.b16 %v3524, %v3516
    %v4861 = vpack.c.b16 %v3533, %v3525
    %v4862 = vpack.c.b16 %v3534, %v3526
    %v4863 = vpack.c.b16 %v3535, %v3527
    %v4864 = vpack.c.b16 %v3536, %v3528
    %v4865 = vpack.c.b16 %v3537, %v3529
    %v4866 = vpack.c.b16 %v3538, %v3530
    %v4867 = vpack.c.b16 %v3539, %v3531
    %v4868 = vpack.c.b16 %v3540, %v3532
    %v4869 = vpack.c.b16 %v3549, %v3541
    %v4870 = vpack.c.b16 %v3550, %v3542
    %v4871 = vpack.c.b16 %v3551, %v3543
    %v4872 = vpack.c.b16 %v3552, %v3544
    %v4873 = vpack.c.b16 %v3553, %v3545
    %v4874 = vpack.c.b16 %v3554, %v3546
    %v4875 = vpack.c.b16 %v3555, %v3547
    %v4876 = vpack.c.b16 %v3556, %v3548
    %v4877 = vpack.c.b16 %v3565, %v3557
    %v4878 = vpack.c.b16 %v3566, %v3558
    %v4879 = vpack.c.b16 %v3567, %v3559
    %v4880 = vpack.c.b16 %v3568, %v3560
    %v4881 = vpack.c.b16 %v3569, %v3561
    %v4882 = vpack.c.b16 %v3570, %v3562
    %v4883 = vpack.c.b16 %v3571, %v3563
    %v4884 = vpack.c.b16 %v3572, %v3564
    %v4885 = vpack.c.b16 %v3581, %v3573
    %v4886 = vpack.c.b16 %v3582, %v3574
    %v4887 = vpack.c.b16 %v3583, %v3575
    %v4888 = vpack.c.b16 %v3584, %v3576
    %v4889 = vpack.c.b16 %v3585, %v3577
    %v4890 = vpack.c.b16 %v3586, %v3578
    %v4891 = vpack.c.b16 %v3587, %v3579
    %v4892 = vpack.c.b16 %v3588, %v3580
    %v4893 = vpack.c.b16 %v3597, %v3589
    %v4894 = vpack.c.b16 %v3598, %v3590
    %v4895 = vpack.c.b16 %v3599, %v3591
    %v4896 = vpack.c.b16 %v3600, %v3592
    %v4897 = vpack.c.b16 %v3601, %v3593
    %v4898 = vpack.c.b16 %v3602, %v3594
    %v4899 = vpack.c.b16 %v3603, %v3595
    %v4900 = vpack.c.b16 %v3604, %v3596
    %v4901 = vpack.c.b16 %v3613, %v3605
    %v4902 = vpack.c.b16 %v3614, %v3606
    %v4903 = vpack.c.b16 %v3615, %v3607
    %v4904 = vpack.c.b16 %v3616, %v3608
    %v4905 = vpack.c.b16 %v3617, %v3609
    %v4906 = vpack.c.b16 %v3618, %v3610
    %v4907 = vpack.c.b16 %v3619, %v3611
    %v4908 = vpack.c.b16 %v3620, %v3612
    %v4909 = vpack.c.b16 %v3629, %v3621
    %v4910 = vpack.c.b16 %v3630, %v3622
    %v4911 = vpack.c.b16 %v3631, %v3623
    %v4912 = vpack.c.b16 %v3632, %v3624
    %v4913 = vpack.c.b16 %v3633, %v3625
    %v4914 = vpack.c.b16 %v3634, %v3626
    %v4915 = vpack.c.b16 %v3635, %v3627
    %v4916 = vpack.c.b16 %v3636, %v3628
    %v4917 = vpack.c.b16 %v3645, %v3637
    %v4918 = vpack.c.b16 %v3646, %v3638
    %v4919 = vpack.c.b16 %v3647, %v3639
    %v4920 = vpack.c.b16 %v3648, %v3640
    %v4921 = vpack.c.b16 %v3649, %v3641
    %v4922 = vpack.c.b16 %v3650, %v3642
    %v4923 = vpack.c.b16 %v3651, %v3643
    %v4924 = vpack.c.b16 %v3652, %v3644
    %v4925 = vpack.c.b16 %v3661, %v3653
    %v4926 = vpack.c.b16 %v3662, %v3654
    %v4927 = vpack.c.b16 %v3663, %v3655
    %v4928 = vpack.c.b16 %v3664, %v3656
    %v4929 = vpack.c.b16 %v3665, %v3657
    %v4930 = vpack.c.b16 %v3666, %v3658
    %v4931 = vpack.c.b16 %v3667, %v3659
    %v4932 = vpack.c.b16 %v3668, %v3660
    %v4933 = vpack.c.b16 %v3677, %v3669
    %v4934 = vpack.c.b16 %v3678, %v3670
    %v4935 = vpack.c.b16 %v3679, %v3671
    %v4936 = vpack.c.b16 %v3680, %v3672
    %v4937 = vpack.c.b16 %v3681, %v3673
    %v4938 = vpack.c.b16 %v3682, %v3674
    %v4939 = vpack.c.b16 %v3683, %v3675
    %v4940 = vpack.c.b16 %v3684, %v3676
    %v4941 = vpack.c.b16 %v3693, %v3685
    %v4942 = vpack.c.b16 %v3694, %v3686
    %v4943 = vpack.c.b16 %v3695, %v3687
    %v4944 = vpack.c.b16 %v3696, %v3688
    %v4945 = vpack.c.b16 %v3697, %v3689
    %v4946 = vpack.c.b16 %v3698, %v3690
    %v4947 = vpack.c.b16 %v3699, %v3691
    %v4948 = vpack.c.b16 %v3700, %v3692
    %v4949 = vpack.c.b16 %v3709, %v3701
    %v4950 = vpack.c.b16 %v3710, %v3702
    %v4951 = vpack.c.b16 %v3711, %v3703
    %v4952 = vpack.c.b16 %v3712, %v3704
    %v4953 = vpack.c.b16 %v3713, %v3705
    %v4954 = vpack.c.b16 %v3714, %v3706
    %v4955 = vpack.c.b16 %v3715, %v3707
    %v4956 = vpack.c.b16 %v3716, %v3708
    %v4957 = vpack.c.b16 %v3725, %v3717
    %v4958 = vpack.c.b16 %v3726, %v3718
    %v4959 = vpack.c.b16 %v3727, %v3719
    %v4960 = vpack.c.b16 %v3728, %v3720
    %v4961 = vpack.c.b16 %v3729, %v3721
    %v4962 = vpack.c.b16 %v3730, %v3722
    %v4963 = vpack.c.b16 %v3731, %v3723
    %v4964 = vpack.c.b16 %v3732, %v3724
    %v4965 = vpack.c.b16 %v3741, %v3733
    %v4966 = vpack.c.b16 %v3742, %v3734
    %v4967 = vpack.c.b16 %v3743, %v3735
    %v4968 = vpack.c.b16 %v3744, %v3736
    %v4969 = vpack.c.b16 %v3745, %v3737
    %v4970 = vpack.c.b16 %v3746, %v3738
    %v4971 = vpack.c.b16 %v3747, %v3739
    %v4972 = vpack.c.b16 %v3748, %v3740
    %v4973 = vpack.c.b16 %v3757, %v3749
    %v4974 = vpack.c.b16 %v3758, %v3750
    %v4975 = vpack.c.b16 %v3759, %v3751
    %v4976 = vpack.c.b16 %v3760, %v3752
    %v4977 = vpack.c.b16 %v3761, %v3753
    %v4978 = vpack.c.b16 %v3762, %v3754
    %v4979 = vpack.c.b16 %v3763, %v3755
    %v4980 = vpack.c.b16 %v3764, %v3756
    %v4981 = vpack.c.b16 %v3773, %v3765
    %v4982 = vpack.c.b16 %v3774, %v3766
    %v4983 = vpack.c.b16 %v3775, %v3767
    %v4984 = vpack.c.b16 %v3776, %v3768
    %v4985 = vpack.c.b16 %v3777, %v3769
    %v4986 = vpack.c.b16 %v3778, %v3770
    %v4987 = vpack.c.b16 %v3779, %v3771
    %v4988 = vpack.c.b16 %v3780, %v3772
    %v4989 = vpack.c.b16 %v3789, %v3781
    %v4990 = vpack.c.b16 %v3790, %v3782
    %v4991 = vpack.c.b16 %v3791, %v3783
    %v4992 = vpack.c.b16 %v3792, %v3784
    %v4993 = vpack.c.b16 %v3793, %v3785
    %v4994 = vpack.c.b16 %v3794, %v3786
    %v4995 = vpack.c.b16 %v3795, %v3787
    %v4996 = vpack.c.b16 %v3796, %v3788
    %v4997 = vpack.c.b16 %v3805, %v3797
    %v4998 = vpack.c.b16 %v3806, %v3798
    %v4999 = vpack.c.b16 %v3807, %v3799
    %v5000 = vpack.c.b16 %v3808, %v3800
    %v5001 = vpack.c.b16 %v3809, %v3801
    %v5002 = vpack.c.b16 %v3810, %v3802
    %v5003 = vpack.c.b16 %v3811, %v3803
    %v5004 = vpack.c.b16 %v3812, %v3804
    %v5005 = vpack.c.b16 %v3821, %v3813
    %v5006 = vpack.c.b16 %v3822, %v3814
    %v5007 = vpack.c.b16 %v3823, %v3815
    %v5008 = vpack.c.b16 %v3824, %v3816
    %v5009 = vpack.c.b16 %v3825, %v3817
    %v5010 = vpack.c.b16 %v3826, %v3818
    %v5011 = vpack.c.b16 %v3827, %v3819
    %v5012 = vpack.c.b16 %v3828, %v3820
    %v5013 = vpack.c.b16 %v3837, %v3829
    %v5014 = vpack.c.b16 %v3838, %v3830
    %v5015 = vpack.c.b16 %v3839, %v3831
    %v5016 = vpack.c.b16 %v3840, %v3832
    %v5017 = vpack.c.b16 %v3841, %v3833
    %v5018 = vpack.c.b16 %v3842, %v3834
    %v5019 = vpack.c.b16 %v3843, %v3835
    %v5020 = vpack.c.b16 %v3844, %v3836
    %v5021 = vpack.c.b16 %v3853, %v3845
    %v5022 = vpack.c.b16 %v3854, %v3846
    %v5023 = vpack.c.b16 %v3855, %v3847
    %v5024 = vpack.c.b16 %v3856, %v3848
    %v5025 = vpack.c.b16 %v3857, %v3849
    %v5026 = vpack.c.b16 %v3858, %v3850
    %v5027 = vpack.c.b16 %v3859, %v3851
    %v5028 = vpack.c.b16 %v3860, %v3852
    %v5029 = vpack.c.b16 %v3869, %v3861
    %v5030 = vpack.c.b16 %v3870, %v3862
    %v5031 = vpack.c.b16 %v3871, %v3863
    %v5032 = vpack.c.b16 %v3872, %v3864
    %v5033 = vpack.c.b16 %v3873, %v3865
    %v5034 = vpack.c.b16 %v3874, %v3866
    %v5035 = vpack.c.b16 %v3875, %v3867
    %v5036 = vpack.c.b16 %v3876, %v3868
    %v5037 = vpack.c.b16 %v3885, %v3877
    %v5038 = vpack.c.b16 %v3886, %v3878
    %v5039 = vpack.c.b16 %v3887, %v3879
    %v5040 = vpack.c.b16 %v3888, %v3880
    %v5041 = vpack.c.b16 %v3889, %v3881
    %v5042 = vpack.c.b16 %v3890, %v3882
    %v5043 = vpack.c.b16 %v3891, %v3883
    %v5044 = vpack.c.b16 %v3892, %v3884
    %v5045 = vpack.c.b16 %v3901, %v3893
    %v5046 = vpack.c.b16 %v3902, %v3894
    %v5047 = vpack.c.b16 %v3903, %v3895
    %v5048 = vpack.c.b16 %v3904, %v3896
    %v5049 = vpack.c.b16 %v3905, %v3897
    %v5050 = vpack.c.b16 %v3906, %v3898
    %v5051 = vpack.c.b16 %v3907, %v3899
    %v5052 = vpack.c.b16 %v3908, %v3900
    %v5053 = vpack.c.b16 %v3917, %v3909
    %v5054 = vpack.c.b16 %v3918, %v3910
    %v5055 = vpack.c.b16 %v3919, %v3911
    %v5056 = vpack.c.b16 %v3920, %v3912
    %v5057 = vpack.c.b16 %v3921, %v3913
    %v5058 = vpack.c.b16 %v3922, %v3914
    %v5059 = vpack.c.b16 %v3923, %v3915
    %v5060 = vpack.c.b16 %v3924, %v3916
    %v5061 = vpack.c.b16 %v3933, %v3925
    %v5062 = vpack.c.b16 %v3934, %v3926
    %v5063 = vpack.c.b16 %v3935, %v3927
    %v5064 = vpack.c.b16 %v3936, %v3928
    %v5065 = vpack.c.b16 %v3937, %v3929
    %v5066 = vpack.c.b16 %v3938, %v3930
    %v5067 = vpack.c.b16 %v3939, %v3931
    %v5068 = vpack.c.b16 %v3940, %v3932
    %v5069 = vpack.c.b16 %v3949, %v3941
    %v5070 = vpack.c.b16 %v3950, %v3942
    %v5071 = vpack.c.b16 %v3951, %v3943
    %v5072 = vpack.c.b16 %v3952, %v3944
    %v5073 = vpack.c.b16 %v3953, %v3945
    %v5074 = vpack.c.b16 %v3954, %v3946
    %v5075 = vpack.c.b16 %v3955, %v3947
    %v5076 = vpack.c.b16 %v3956, %v3948
    %v5077 = vpack.c.b16 %v3965, %v3957
    %v5078 = vpack.c.b16 %v3966, %v3958
    %v5079 = vpack.c.b16 %v3967, %v3959
    %v5080 = vpack.c.b16 %v3968, %v3960
    %v5081 = vpack.c.b16 %v3969, %v3961
    %v5082 = vpack.c.b16 %v3970, %v3962
    %v5083 = vpack.c.b16 %v3971, %v3963
    %v5084 = vpack.c.b16 %v3972, %v3964
    %v5085 = vpack.c.b16 %v3981, %v3973
    %v5086 = vpack.c.b16 %v3982, %v3974
    %v5087 = vpack.c.b16 %v3983, %v3975
    %v5088 = vpack.c.b16 %v3984, %v3976
    %v5089 = vpack.c.b16 %v3985, %v3977
    %v5090 = vpack.c.b16 %v3986, %v3978
    %v5091 = vpack.c.b16 %v3987, %v3979
    %v5092 = vpack.c.b16 %v3988, %v3980
    %v5093 = vpack.c.b16 %v3997, %v3989
    %v5094 = vpack.c.b16 %v3998, %v3990
    %v5095 = vpack.c.b16 %v3999, %v3991
    %v5096 = vpack.c.b16 %v4000, %v3992
    %v5097 = vpack.c.b16 %v4001, %v3993
    %v5098 = vpack.c.b16 %v4002, %v3994
    %v5099 = vpack.c.b16 %v4003, %v3995
    %v5100 = vpack.c.b16 %v4004, %v3996
    %v5101 = vpack.c.b16 %v4013, %v4005
    %v5102 = vpack.c.b16 %v4014, %v4006
    %v5103 = vpack.c.b16 %v4015, %v4007
    %v5104 = vpack.c.b16 %v4016, %v4008
    %v5105 = vpack.c.b16 %v4017, %v4009
    %v5106 = vpack.c.b16 %v4018, %v4010
    %v5107 = vpack.c.b16 %v4019, %v4011
    %v5108 = vpack.c.b16 %v4020, %v4012
    %v5109 = vpack.c.b16 %v4029, %v4021
    %v5110 = vpack.c.b16 %v4030, %v4022
    %v5111 = vpack.c.b16 %v4031, %v4023
    %v5112 = vpack.c.b16 %v4032, %v4024
    %v5113 = vpack.c.b16 %v4033, %v4025
    %v5114 = vpack.c.b16 %v4034, %v4026
    %v5115 = vpack.c.b16 %v4035, %v4027
    %v5116 = vpack.c.b16 %v4036, %v4028
    %v5117 = vpack.c.b16 %v4045, %v4037
    %v5118 = vpack.c.b16 %v4046, %v4038
    %v5119 = vpack.c.b16 %v4047, %v4039
    %v5120 = vpack.c.b16 %v4048, %v4040
    %v5121 = vpack.c.b16 %v4049, %v4041
    %v5122 = vpack.c.b16 %v4050, %v4042
    %v5123 = vpack.c.b16 %v4051, %v4043
    %v5124 = vpack.c.b16 %v4052, %v4044
    %v5125 = vpack.c.b16 %v4061, %v4053
    %v5126 = vpack.c.b16 %v4062, %v4054
    %v5127 = vpack.c.b16 %v4063, %v4055
    %v5128 = vpack.c.b16 %v4064, %v4056
    %v5129 = vpack.c.b16 %v4065, %v4057
    %v5130 = vpack.c.b16 %v4066, %v4058
    %v5131 = vpack.c.b16 %v4067, %v4059
    %v5132 = vpack.c.b16 %v4068, %v4060
    %v5133 = vpack.c.b16 %v4077, %v4069
    %v5134 = vpack.c.b16 %v4078, %v4070
    %v5135 = vpack.c.b16 %v4079, %v4071
    %v5136 = vpack.c.b16 %v4080, %v4072
    %v5137 = vpack.c.b16 %v4081, %v4073
    %v5138 = vpack.c.b16 %v4082, %v4074
    %v5139 = vpack.c.b16 %v4083, %v4075
    %v5140 = vpack.c.b16 %v4084, %v4076
    %v5141 = vpack.c.b16 %v4093, %v4085
    %v5142 = vpack.c.b16 %v4094, %v4086
    %v5143 = vpack.c.b16 %v4095, %v4087
    %v5144 = vpack.c.b16 %v4096, %v4088
    %v5145 = vpack.c.b16 %v4097, %v4089
    %v5146 = vpack.c.b16 %v4098, %v4090
    %v5147 = vpack.c.b16 %v4099, %v4091
    %v5148 = vpack.c.b16 %v4100, %v4092
    %v5149 = vpack.c.b16 %v4109, %v4101
    %v5150 = vpack.c.b16 %v4110, %v4102
    %v5151 = vpack.c.b16 %v4111, %v4103
    %v5152 = vpack.c.b16 %v4112, %v4104
    %v5153 = vpack.c.b16 %v4113, %v4105
    %v5154 = vpack.c.b16 %v4114, %v4106
    %v5155 = vpack.c.b16 %v4115, %v4107
    %v5156 = vpack.c.b16 %v4116, %v4108
    %v5157 = vpack.c.b16 %v4125, %v4117
    %v5158 = vpack.c.b16 %v4126, %v4118
    %v5159 = vpack.c.b16 %v4127, %v4119
    %v5160 = vpack.c.b16 %v4128, %v4120
    %v5161 = vpack.c.b16 %v4129, %v4121
    %v5162 = vpack.c.b16 %v4130, %v4122
    %v5163 = vpack.c.b16 %v4131, %v4123
    %v5164 = vpack.c.b16 %v4132, %v4124
    %v5165 = vpack.c.b16 %v4141, %v4133
    %v5166 = vpack.c.b16 %v4142, %v4134
    %v5167 = vpack.c.b16 %v4143, %v4135
    %v5168 = vpack.c.b16 %v4144, %v4136
    %v5169 = vpack.c.b16 %v4145, %v4137
    %v5170 = vpack.c.b16 %v4146, %v4138
    %v5171 = vpack.c.b16 %v4147, %v4139
    %v5172 = vpack.c.b16 %v4148, %v4140
    %v5173 = vpack.c.b16 %v4157, %v4149
    %v5174 = vpack.c.b16 %v4158, %v4150
    %v5175 = vpack.c.b16 %v4159, %v4151
    %v5176 = vpack.c.b16 %v4160, %v4152
    %v5177 = vpack.c.b16 %v4161, %v4153
    %v5178 = vpack.c.b16 %v4162, %v4154
    %v5179 = vpack.c.b16 %v4163, %v4155
    %v5180 = vpack.c.b16 %v4164, %v4156
    %v5181 = vpack.c.b16 %v4173, %v4165
    %v5182 = vpack.c.b16 %v4174, %v4166
    %v5183 = vpack.c.b16 %v4175, %v4167
    %v5184 = vpack.c.b16 %v4176, %v4168
    %v5185 = vpack.c.b16 %v4177, %v4169
    %v5186 = vpack.c.b16 %v4178, %v4170
    %v5187 = vpack.c.b16 %v4179, %v4171
    %v5188 = vpack.c.b16 %v4180, %v4172
    %v5189 = vpack.c.b16 %v4189, %v4181
    %v5190 = vpack.c.b16 %v4190, %v4182
    %v5191 = vpack.c.b16 %v4191, %v4183
    %v5192 = vpack.c.b16 %v4192, %v4184
    %v5193 = vpack.c.b16 %v4193, %v4185
    %v5194 = vpack.c.b16 %v4194, %v4186
    %v5195 = vpack.c.b16 %v4195, %v4187
    %v5196 = vpack.c.b16 %v4196, %v4188
    %vm6197 = vcmask 654336
    %v6199 = vsel %vm6197, %v178, 0
    %6201 = vmatpush.bf16.msra.mxu0 %v4253
    %6202 = vmatpush.bf16.msra.mxu0 %v4245
    %6203 = vmatpush.bf16.msra.mxu0 %v4237
    %6204 = vmatpush.bf16.msra.mxu0 %v4229
    %6205 = vmatpush.bf16.msra.mxu0 %v4221
    %6206 = vmatpush.bf16.msra.mxu0 %v4213
    %6207 = vmatpush.bf16.msra.mxu0 %v4205
    %6208 = vmatpush.bf16.msra.mxu0 %v4197
    %6209 = vmatmul.bf16.gmra.mxu0 %v163
    %v6210 = vpop.f32.mrf.mxu0
    %v6211 = vadd.f32 %v1181, %v6210
    %v6212 = vpop.f32.mrf.mxu0
    %v6213 = vadd.f32 %v1181, %v6212
    %6214 = vdwg.mxu0
    %6215 = vmatpush.bf16.msra.mxu0 %v4317
    %6216 = vmatpush.bf16.msra.mxu0 %v4309
    %6217 = vmatpush.bf16.msra.mxu0 %v4301
    %6218 = vmatpush.bf16.msra.mxu0 %v4293
    %6219 = vmatpush.bf16.msra.mxu0 %v4285
    %6220 = vmatpush.bf16.msra.mxu0 %v4277
    %6221 = vmatpush.bf16.msra.mxu0 %v4269
    %6222 = vmatpush.bf16.msra.mxu0 %v4261
    %6223 = vmatmul.bf16.gmra.mxu0 %v164
    %v6224 = vpop.f32.mrf.mxu0
    %v6225 = vadd.f32 %v6211, %v6224
    %v6226 = vpop.f32.mrf.mxu0
    %v6227 = vadd.f32 %v6213, %v6226
    %6228 = vdwg.mxu0
    %6229 = vmatpush.bf16.msra.mxu0 %v4381
    %6230 = vmatpush.bf16.msra.mxu0 %v4373
    %6231 = vmatpush.bf16.msra.mxu0 %v4365
    %6232 = vmatpush.bf16.msra.mxu0 %v4357
    %6233 = vmatpush.bf16.msra.mxu0 %v4349
    %6234 = vmatpush.bf16.msra.mxu0 %v4341
    %6235 = vmatpush.bf16.msra.mxu0 %v4333
    %6236 = vmatpush.bf16.msra.mxu0 %v4325
    %6237 = vmatmul.bf16.gmra.mxu0 %v165
    %v6238 = vpop.f32.mrf.mxu0
    %v6239 = vadd.f32 %v6225, %v6238
    %v6240 = vpop.f32.mrf.mxu0
    %v6241 = vadd.f32 %v6227, %v6240
    %6242 = vdwg.mxu0
    %6243 = vmatpush.bf16.msra.mxu0 %v4445
    %6244 = vmatpush.bf16.msra.mxu0 %v4437
    %6245 = vmatpush.bf16.msra.mxu0 %v4429
    %6246 = vmatpush.bf16.msra.mxu0 %v4421
    %6247 = vmatpush.bf16.msra.mxu0 %v4413
    %6248 = vmatpush.bf16.msra.mxu0 %v4405
    %6249 = vmatpush.bf16.msra.mxu0 %v4397
    %6250 = vmatpush.bf16.msra.mxu0 %v4389
    %6251 = vmatmul.bf16.gmra.mxu0 %v166
    %v6252 = vpop.f32.mrf.mxu0
    %v6253 = vadd.f32 %v6239, %v6252
    %v6254 = vpop.f32.mrf.mxu0
    %v6255 = vadd.f32 %v6241, %v6254
    %6256 = vdwg.mxu0
    %6257 = vmatpush.bf16.msra.mxu0 %v4509
    %6258 = vmatpush.bf16.msra.mxu0 %v4501
    %6259 = vmatpush.bf16.msra.mxu0 %v4493
    %6260 = vmatpush.bf16.msra.mxu0 %v4485
    %6261 = vmatpush.bf16.msra.mxu0 %v4477
    %6262 = vmatpush.bf16.msra.mxu0 %v4469
    %6263 = vmatpush.bf16.msra.mxu0 %v4461
    %6264 = vmatpush.bf16.msra.mxu0 %v4453
    %6265 = vmatmul.bf16.gmra.mxu0 %v167
    %v6266 = vpop.f32.mrf.mxu0
    %v6267 = vadd.f32 %v6253, %v6266
    %v6268 = vpop.f32.mrf.mxu0
    %v6269 = vadd.f32 %v6255, %v6268
    %6270 = vdwg.mxu0
    %6271 = vmatpush.bf16.msra.mxu0 %v4573
    %6272 = vmatpush.bf16.msra.mxu0 %v4565
    %6273 = vmatpush.bf16.msra.mxu0 %v4557
    %6274 = vmatpush.bf16.msra.mxu0 %v4549
    %6275 = vmatpush.bf16.msra.mxu0 %v4541
    %6276 = vmatpush.bf16.msra.mxu0 %v4533
    %6277 = vmatpush.bf16.msra.mxu0 %v4525
    %6278 = vmatpush.bf16.msra.mxu0 %v4517
    %6279 = vmatmul.bf16.gmra.mxu0 %v168
    %v6280 = vpop.f32.mrf.mxu0
    %v6281 = vadd.f32 %v6267, %v6280
    %v6282 = vpop.f32.mrf.mxu0
    %v6283 = vadd.f32 %v6269, %v6282
    %6284 = vdwg.mxu0
    %6285 = vmatpush.bf16.msra.mxu0 %v4637
    %6286 = vmatpush.bf16.msra.mxu0 %v4629
    %6287 = vmatpush.bf16.msra.mxu0 %v4621
    %6288 = vmatpush.bf16.msra.mxu0 %v4613
    %6289 = vmatpush.bf16.msra.mxu0 %v4605
    %6290 = vmatpush.bf16.msra.mxu0 %v4597
    %6291 = vmatpush.bf16.msra.mxu0 %v4589
    %6292 = vmatpush.bf16.msra.mxu0 %v4581
    %6293 = vmatmul.bf16.gmra.mxu0 %v169
    %v6294 = vpop.f32.mrf.mxu0
    %v6295 = vadd.f32 %v6281, %v6294
    %v6296 = vpop.f32.mrf.mxu0
    %v6297 = vadd.f32 %v6283, %v6296
    %6298 = vdwg.mxu0
    %6299 = vmatpush.bf16.msra.mxu0 %v4701
    %6300 = vmatpush.bf16.msra.mxu0 %v4693
    %6301 = vmatpush.bf16.msra.mxu0 %v4685
    %6302 = vmatpush.bf16.msra.mxu0 %v4677
    %6303 = vmatpush.bf16.msra.mxu0 %v4669
    %6304 = vmatpush.bf16.msra.mxu0 %v4661
    %6305 = vmatpush.bf16.msra.mxu0 %v4653
    %6306 = vmatpush.bf16.msra.mxu0 %v4645
    %6307 = vmatmul.bf16.gmra.mxu0 %v170
    %v6308 = vpop.f32.mrf.mxu0
    %v6309 = vadd.f32 %v6295, %v6308
    %v6310 = vpop.f32.mrf.mxu0
    %v6311 = vadd.f32 %v6297, %v6310
    %6312 = vdwg.mxu0
    %6313 = vmatpush.bf16.msra.mxu0 %v4765
    %6314 = vmatpush.bf16.msra.mxu0 %v4757
    %6315 = vmatpush.bf16.msra.mxu0 %v4749
    %6316 = vmatpush.bf16.msra.mxu0 %v4741
    %6317 = vmatpush.bf16.msra.mxu0 %v4733
    %6318 = vmatpush.bf16.msra.mxu0 %v4725
    %6319 = vmatpush.bf16.msra.mxu0 %v4717
    %6320 = vmatpush.bf16.msra.mxu0 %v4709
    %6321 = vmatmul.bf16.gmra.mxu0 %v171
    %v6322 = vpop.f32.mrf.mxu0
    %v6323 = vadd.f32 %v6309, %v6322
    %v6324 = vpop.f32.mrf.mxu0
    %v6325 = vadd.f32 %v6311, %v6324
    %6326 = vdwg.mxu0
    %6327 = vmatpush.bf16.msra.mxu0 %v4829
    %6328 = vmatpush.bf16.msra.mxu0 %v4821
    %6329 = vmatpush.bf16.msra.mxu0 %v4813
    %6330 = vmatpush.bf16.msra.mxu0 %v4805
    %6331 = vmatpush.bf16.msra.mxu0 %v4797
    %6332 = vmatpush.bf16.msra.mxu0 %v4789
    %6333 = vmatpush.bf16.msra.mxu0 %v4781
    %6334 = vmatpush.bf16.msra.mxu0 %v4773
    %6335 = vmatmul.bf16.gmra.mxu0 %v172
    %v6336 = vpop.f32.mrf.mxu0
    %v6337 = vadd.f32 %v6323, %v6336
    %v6338 = vpop.f32.mrf.mxu0
    %v6339 = vadd.f32 %v6325, %v6338
    %6340 = vdwg.mxu0
    %6341 = vmatpush.bf16.msra.mxu0 %v4893
    %6342 = vmatpush.bf16.msra.mxu0 %v4885
    %6343 = vmatpush.bf16.msra.mxu0 %v4877
    %6344 = vmatpush.bf16.msra.mxu0 %v4869
    %6345 = vmatpush.bf16.msra.mxu0 %v4861
    %6346 = vmatpush.bf16.msra.mxu0 %v4853
    %6347 = vmatpush.bf16.msra.mxu0 %v4845
    %6348 = vmatpush.bf16.msra.mxu0 %v4837
    %6349 = vmatmul.bf16.gmra.mxu0 %v173
    %v6350 = vpop.f32.mrf.mxu0
    %v6351 = vadd.f32 %v6337, %v6350
    %v6352 = vpop.f32.mrf.mxu0
    %v6353 = vadd.f32 %v6339, %v6352
    %6354 = vdwg.mxu0
    %6355 = vmatpush.bf16.msra.mxu0 %v4957
    %6356 = vmatpush.bf16.msra.mxu0 %v4949
    %6357 = vmatpush.bf16.msra.mxu0 %v4941
    %6358 = vmatpush.bf16.msra.mxu0 %v4933
    %6359 = vmatpush.bf16.msra.mxu0 %v4925
    %6360 = vmatpush.bf16.msra.mxu0 %v4917
    %6361 = vmatpush.bf16.msra.mxu0 %v4909
    %6362 = vmatpush.bf16.msra.mxu0 %v4901
    %6363 = vmatmul.bf16.gmra.mxu0 %v174
    %v6364 = vpop.f32.mrf.mxu0
    %v6365 = vadd.f32 %v6351, %v6364
    %v6366 = vpop.f32.mrf.mxu0
    %v6367 = vadd.f32 %v6353, %v6366
    %6368 = vdwg.mxu0
    %6369 = vmatpush.bf16.msra.mxu0 %v5021
    %6370 = vmatpush.bf16.msra.mxu0 %v5013
    %6371 = vmatpush.bf16.msra.mxu0 %v5005
    %6372 = vmatpush.bf16.msra.mxu0 %v4997
    %6373 = vmatpush.bf16.msra.mxu0 %v4989
    %6374 = vmatpush.bf16.msra.mxu0 %v4981
    %6375 = vmatpush.bf16.msra.mxu0 %v4973
    %6376 = vmatpush.bf16.msra.mxu0 %v4965
    %6377 = vmatmul.bf16.gmra.mxu0 %v175
    %v6378 = vpop.f32.mrf.mxu0
    %v6379 = vadd.f32 %v6365, %v6378
    %v6380 = vpop.f32.mrf.mxu0
    %v6381 = vadd.f32 %v6367, %v6380
    %6382 = vdwg.mxu0
    %6383 = vmatpush.bf16.msra.mxu0 %v5085
    %6384 = vmatpush.bf16.msra.mxu0 %v5077
    %6385 = vmatpush.bf16.msra.mxu0 %v5069
    %6386 = vmatpush.bf16.msra.mxu0 %v5061
    %6387 = vmatpush.bf16.msra.mxu0 %v5053
    %6388 = vmatpush.bf16.msra.mxu0 %v5045
    %6389 = vmatpush.bf16.msra.mxu0 %v5037
    %6390 = vmatpush.bf16.msra.mxu0 %v5029
    %6391 = vmatmul.bf16.gmra.mxu0 %v176
    %v6392 = vpop.f32.mrf.mxu0
    %v6393 = vadd.f32 %v6379, %v6392
    %v6394 = vpop.f32.mrf.mxu0
    %v6395 = vadd.f32 %v6381, %v6394
    %6396 = vdwg.mxu0
    %6397 = vmatpush.bf16.msra.mxu0 %v5149
    %6398 = vmatpush.bf16.msra.mxu0 %v5141
    %6399 = vmatpush.bf16.msra.mxu0 %v5133
    %6400 = vmatpush.bf16.msra.mxu0 %v5125
    %6401 = vmatpush.bf16.msra.mxu0 %v5117
    %6402 = vmatpush.bf16.msra.mxu0 %v5109
    %6403 = vmatpush.bf16.msra.mxu0 %v5101
    %6404 = vmatpush.bf16.msra.mxu0 %v5093
    %6405 = vmatmul.bf16.gmra.mxu0 %v177
    %v6406 = vpop.f32.mrf.mxu0
    %v6407 = vadd.f32 %v6393, %v6406
    %v6408 = vpop.f32.mrf.mxu0
    %v6409 = vadd.f32 %v6395, %v6408
    %6410 = vdwg.mxu0
    %6411 = vmatpush.bf16.msra.mxu0 0
    %6412 = vmatpush.bf16.msra.mxu0 0
    %6413 = vmatpush.bf16.msra.mxu0 0
    %6414 = vmatpush.bf16.msra.mxu0 %v5189
    %6415 = vmatpush.bf16.msra.mxu0 %v5181
    %6416 = vmatpush.bf16.msra.mxu0 %v5173
    %6417 = vmatpush.bf16.msra.mxu0 %v5165
    %6418 = vmatpush.bf16.msra.mxu0 %v5157
    %6419 = vmatmul.bf16.gmra.mxu0 %v6199
    %v6420 = vpop.f32.mrf.mxu0
    %v6421 = vadd.f32 %v6407, %v6420
    %v6422 = vpop.f32.mrf.mxu0
    %v6423 = vadd.f32 %v6409, %v6422
    %6424 = vdwg.mxu0
    %6425 = vmatpush.bf16.msra.mxu0 %v4254
    %6426 = vmatpush.bf16.msra.mxu0 %v4246
    %6427 = vmatpush.bf16.msra.mxu0 %v4238
    %6428 = vmatpush.bf16.msra.mxu0 %v4230
    %6429 = vmatpush.bf16.msra.mxu0 %v4222
    %6430 = vmatpush.bf16.msra.mxu0 %v4214
    %6431 = vmatpush.bf16.msra.mxu0 %v4206
    %6432 = vmatpush.bf16.msra.mxu0 %v4198
    %6433 = vmatmul.bf16.gmra.mxu0 %v163
    %v6434 = vpop.f32.mrf.mxu0
    %v6435 = vadd.f32 %v1182, %v6434
    %v6436 = vpop.f32.mrf.mxu0
    %v6437 = vadd.f32 %v1182, %v6436
    %6438 = vdwg.mxu0
    %6439 = vmatpush.bf16.msra.mxu0 %v4318
    %6440 = vmatpush.bf16.msra.mxu0 %v4310
    %6441 = vmatpush.bf16.msra.mxu0 %v4302
    %6442 = vmatpush.bf16.msra.mxu0 %v4294
    %6443 = vmatpush.bf16.msra.mxu0 %v4286
    %6444 = vmatpush.bf16.msra.mxu0 %v4278
    %6445 = vmatpush.bf16.msra.mxu0 %v4270
    %6446 = vmatpush.bf16.msra.mxu0 %v4262
    %6447 = vmatmul.bf16.gmra.mxu0 %v164
    %v6448 = vpop.f32.mrf.mxu0
    %v6449 = vadd.f32 %v6435, %v6448
    %v6450 = vpop.f32.mrf.mxu0
    %v6451 = vadd.f32 %v6437, %v6450
    %6452 = vdwg.mxu0
    %6453 = vmatpush.bf16.msra.mxu0 %v4382
    %6454 = vmatpush.bf16.msra.mxu0 %v4374
    %6455 = vmatpush.bf16.msra.mxu0 %v4366
    %6456 = vmatpush.bf16.msra.mxu0 %v4358
    %6457 = vmatpush.bf16.msra.mxu0 %v4350
    %6458 = vmatpush.bf16.msra.mxu0 %v4342
    %6459 = vmatpush.bf16.msra.mxu0 %v4334
    %6460 = vmatpush.bf16.msra.mxu0 %v4326
    %6461 = vmatmul.bf16.gmra.mxu0 %v165
    %v6462 = vpop.f32.mrf.mxu0
    %v6463 = vadd.f32 %v6449, %v6462
    %v6464 = vpop.f32.mrf.mxu0
    %v6465 = vadd.f32 %v6451, %v6464
    %6466 = vdwg.mxu0
    %6467 = vmatpush.bf16.msra.mxu0 %v4446
    %6468 = vmatpush.bf16.msra.mxu0 %v4438
    %6469 = vmatpush.bf16.msra.mxu0 %v4430
    %6470 = vmatpush.bf16.msra.mxu0 %v4422
    %6471 = vmatpush.bf16.msra.mxu0 %v4414
    %6472 = vmatpush.bf16.msra.mxu0 %v4406
    %6473 = vmatpush.bf16.msra.mxu0 %v4398
    %6474 = vmatpush.bf16.msra.mxu0 %v4390
    %6475 = vmatmul.bf16.gmra.mxu0 %v166
    %v6476 = vpop.f32.mrf.mxu0
    %v6477 = vadd.f32 %v6463, %v6476
    %v6478 = vpop.f32.mrf.mxu0
    %v6479 = vadd.f32 %v6465, %v6478
    %6480 = vdwg.mxu0
    %6481 = vmatpush.bf16.msra.mxu0 %v4510
    %6482 = vmatpush.bf16.msra.mxu0 %v4502
    %6483 = vmatpush.bf16.msra.mxu0 %v4494
    %6484 = vmatpush.bf16.msra.mxu0 %v4486
    %6485 = vmatpush.bf16.msra.mxu0 %v4478
    %6486 = vmatpush.bf16.msra.mxu0 %v4470
    %6487 = vmatpush.bf16.msra.mxu0 %v4462
    %6488 = vmatpush.bf16.msra.mxu0 %v4454
    %6489 = vmatmul.bf16.gmra.mxu0 %v167
    %v6490 = vpop.f32.mrf.mxu0
    %v6491 = vadd.f32 %v6477, %v6490
    %v6492 = vpop.f32.mrf.mxu0
    %v6493 = vadd.f32 %v6479, %v6492
    %6494 = vdwg.mxu0
    %6495 = vmatpush.bf16.msra.mxu0 %v4574
    %6496 = vmatpush.bf16.msra.mxu0 %v4566
    %6497 = vmatpush.bf16.msra.mxu0 %v4558
    %6498 = vmatpush.bf16.msra.mxu0 %v4550
    %6499 = vmatpush.bf16.msra.mxu0 %v4542
    %6500 = vmatpush.bf16.msra.mxu0 %v4534
    %6501 = vmatpush.bf16.msra.mxu0 %v4526
    %6502 = vmatpush.bf16.msra.mxu0 %v4518
    %6503 = vmatmul.bf16.gmra.mxu0 %v168
    %v6504 = vpop.f32.mrf.mxu0
    %v6505 = vadd.f32 %v6491, %v6504
    %v6506 = vpop.f32.mrf.mxu0
    %v6507 = vadd.f32 %v6493, %v6506
    %6508 = vdwg.mxu0
    %6509 = vmatpush.bf16.msra.mxu0 %v4638
    %6510 = vmatpush.bf16.msra.mxu0 %v4630
    %6511 = vmatpush.bf16.msra.mxu0 %v4622
    %6512 = vmatpush.bf16.msra.mxu0 %v4614
    %6513 = vmatpush.bf16.msra.mxu0 %v4606
    %6514 = vmatpush.bf16.msra.mxu0 %v4598
    %6515 = vmatpush.bf16.msra.mxu0 %v4590
    %6516 = vmatpush.bf16.msra.mxu0 %v4582
    %6517 = vmatmul.bf16.gmra.mxu0 %v169
    %v6518 = vpop.f32.mrf.mxu0
    %v6519 = vadd.f32 %v6505, %v6518
    %v6520 = vpop.f32.mrf.mxu0
    %v6521 = vadd.f32 %v6507, %v6520
    %6522 = vdwg.mxu0
    %6523 = vmatpush.bf16.msra.mxu0 %v4702
    %6524 = vmatpush.bf16.msra.mxu0 %v4694
    %6525 = vmatpush.bf16.msra.mxu0 %v4686
    %6526 = vmatpush.bf16.msra.mxu0 %v4678
    %6527 = vmatpush.bf16.msra.mxu0 %v4670
    %6528 = vmatpush.bf16.msra.mxu0 %v4662
    %6529 = vmatpush.bf16.msra.mxu0 %v4654
    %6530 = vmatpush.bf16.msra.mxu0 %v4646
    %6531 = vmatmul.bf16.gmra.mxu0 %v170
    %v6532 = vpop.f32.mrf.mxu0
    %v6533 = vadd.f32 %v6519, %v6532
    %v6534 = vpop.f32.mrf.mxu0
    %v6535 = vadd.f32 %v6521, %v6534
    %6536 = vdwg.mxu0
    %6537 = vmatpush.bf16.msra.mxu0 %v4766
    %6538 = vmatpush.bf16.msra.mxu0 %v4758
    %6539 = vmatpush.bf16.msra.mxu0 %v4750
    %6540 = vmatpush.bf16.msra.mxu0 %v4742
    %6541 = vmatpush.bf16.msra.mxu0 %v4734
    %6542 = vmatpush.bf16.msra.mxu0 %v4726
    %6543 = vmatpush.bf16.msra.mxu0 %v4718
    %6544 = vmatpush.bf16.msra.mxu0 %v4710
    %6545 = vmatmul.bf16.gmra.mxu0 %v171
    %v6546 = vpop.f32.mrf.mxu0
    %v6547 = vadd.f32 %v6533, %v6546
    %v6548 = vpop.f32.mrf.mxu0
    %v6549 = vadd.f32 %v6535, %v6548
    %6550 = vdwg.mxu0
    %6551 = vmatpush.bf16.msra.mxu0 %v4830
    %6552 = vmatpush.bf16.msra.mxu0 %v4822
    %6553 = vmatpush.bf16.msra.mxu0 %v4814
    %6554 = vmatpush.bf16.msra.mxu0 %v4806
    %6555 = vmatpush.bf16.msra.mxu0 %v4798
    %6556 = vmatpush.bf16.msra.mxu0 %v4790
    %6557 = vmatpush.bf16.msra.mxu0 %v4782
    %6558 = vmatpush.bf16.msra.mxu0 %v4774
    %6559 = vmatmul.bf16.gmra.mxu0 %v172
    %v6560 = vpop.f32.mrf.mxu0
    %v6561 = vadd.f32 %v6547, %v6560
    %v6562 = vpop.f32.mrf.mxu0
    %v6563 = vadd.f32 %v6549, %v6562
    %6564 = vdwg.mxu0
    %6565 = vmatpush.bf16.msra.mxu0 %v4894
    %6566 = vmatpush.bf16.msra.mxu0 %v4886
    %6567 = vmatpush.bf16.msra.mxu0 %v4878
    %6568 = vmatpush.bf16.msra.mxu0 %v4870
    %6569 = vmatpush.bf16.msra.mxu0 %v4862
    %6570 = vmatpush.bf16.msra.mxu0 %v4854
    %6571 = vmatpush.bf16.msra.mxu0 %v4846
    %6572 = vmatpush.bf16.msra.mxu0 %v4838
    %6573 = vmatmul.bf16.gmra.mxu0 %v173
    %v6574 = vpop.f32.mrf.mxu0
    %v6575 = vadd.f32 %v6561, %v6574
    %v6576 = vpop.f32.mrf.mxu0
    %v6577 = vadd.f32 %v6563, %v6576
    %6578 = vdwg.mxu0
    %6579 = vmatpush.bf16.msra.mxu0 %v4958
    %6580 = vmatpush.bf16.msra.mxu0 %v4950
    %6581 = vmatpush.bf16.msra.mxu0 %v4942
    %6582 = vmatpush.bf16.msra.mxu0 %v4934
    %6583 = vmatpush.bf16.msra.mxu0 %v4926
    %6584 = vmatpush.bf16.msra.mxu0 %v4918
    %6585 = vmatpush.bf16.msra.mxu0 %v4910
    %6586 = vmatpush.bf16.msra.mxu0 %v4902
    %6587 = vmatmul.bf16.gmra.mxu0 %v174
    %v6588 = vpop.f32.mrf.mxu0
    %v6589 = vadd.f32 %v6575, %v6588
    %v6590 = vpop.f32.mrf.mxu0
    %v6591 = vadd.f32 %v6577, %v6590
    %6592 = vdwg.mxu0
    %6593 = vmatpush.bf16.msra.mxu0 %v5022
    %6594 = vmatpush.bf16.msra.mxu0 %v5014
    %6595 = vmatpush.bf16.msra.mxu0 %v5006
    %6596 = vmatpush.bf16.msra.mxu0 %v4998
    %6597 = vmatpush.bf16.msra.mxu0 %v4990
    %6598 = vmatpush.bf16.msra.mxu0 %v4982
    %6599 = vmatpush.bf16.msra.mxu0 %v4974
    %6600 = vmatpush.bf16.msra.mxu0 %v4966
    %6601 = vmatmul.bf16.gmra.mxu0 %v175
    %v6602 = vpop.f32.mrf.mxu0
    %v6603 = vadd.f32 %v6589, %v6602
    %v6604 = vpop.f32.mrf.mxu0
    %v6605 = vadd.f32 %v6591, %v6604
    %6606 = vdwg.mxu0
    %6607 = vmatpush.bf16.msra.mxu0 %v5086
    %6608 = vmatpush.bf16.msra.mxu0 %v5078
    %6609 = vmatpush.bf16.msra.mxu0 %v5070
    %6610 = vmatpush.bf16.msra.mxu0 %v5062
    %6611 = vmatpush.bf16.msra.mxu0 %v5054
    %6612 = vmatpush.bf16.msra.mxu0 %v5046
    %6613 = vmatpush.bf16.msra.mxu0 %v5038
    %6614 = vmatpush.bf16.msra.mxu0 %v5030
    %6615 = vmatmul.bf16.gmra.mxu0 %v176
    %v6616 = vpop.f32.mrf.mxu0
    %v6617 = vadd.f32 %v6603, %v6616
    %v6618 = vpop.f32.mrf.mxu0
    %v6619 = vadd.f32 %v6605, %v6618
    %6620 = vdwg.mxu0
    %6621 = vmatpush.bf16.msra.mxu0 %v5150
    %6622 = vmatpush.bf16.msra.mxu0 %v5142
    %6623 = vmatpush.bf16.msra.mxu0 %v5134
    %6624 = vmatpush.bf16.msra.mxu0 %v5126
    %6625 = vmatpush.bf16.msra.mxu0 %v5118
    %6626 = vmatpush.bf16.msra.mxu0 %v5110
    %6627 = vmatpush.bf16.msra.mxu0 %v5102
    %6628 = vmatpush.bf16.msra.mxu0 %v5094
    %6629 = vmatmul.bf16.gmra.mxu0 %v177
    %v6630 = vpop.f32.mrf.mxu0
    %v6631 = vadd.f32 %v6617, %v6630
    %v6632 = vpop.f32.mrf.mxu0
    %v6633 = vadd.f32 %v6619, %v6632
    %6634 = vdwg.mxu0
    %6635 = vmatpush.bf16.msra.mxu0 0
    %6636 = vmatpush.bf16.msra.mxu0 0
    %6637 = vmatpush.bf16.msra.mxu0 0
    %6638 = vmatpush.bf16.msra.mxu0 %v5190
    %6639 = vmatpush.bf16.msra.mxu0 %v5182
    %6640 = vmatpush.bf16.msra.mxu0 %v5174
    %6641 = vmatpush.bf16.msra.mxu0 %v5166
    %6642 = vmatpush.bf16.msra.mxu0 %v5158
    %6643 = vmatmul.bf16.gmra.mxu0 %v6199
    %v6644 = vpop.f32.mrf.mxu0
    %v6645 = vadd.f32 %v6631, %v6644
    %v6646 = vpop.f32.mrf.mxu0
    %v6647 = vadd.f32 %v6633, %v6646
    %6648 = vdwg.mxu0
    %6649 = vmatpush.bf16.msra.mxu0 %v4255
    %6650 = vmatpush.bf16.msra.mxu0 %v4247
    %6651 = vmatpush.bf16.msra.mxu0 %v4239
    %6652 = vmatpush.bf16.msra.mxu0 %v4231
    %6653 = vmatpush.bf16.msra.mxu0 %v4223
    %6654 = vmatpush.bf16.msra.mxu0 %v4215
    %6655 = vmatpush.bf16.msra.mxu0 %v4207
    %6656 = vmatpush.bf16.msra.mxu0 %v4199
    %6657 = vmatmul.bf16.gmra.mxu0 %v163
    %v6658 = vpop.f32.mrf.mxu0
    %v6659 = vadd.f32 %v1183, %v6658
    %v6660 = vpop.f32.mrf.mxu0
    %v6661 = vadd.f32 %v1183, %v6660
    %6662 = vdwg.mxu0
    %6663 = vmatpush.bf16.msra.mxu0 %v4319
    %6664 = vmatpush.bf16.msra.mxu0 %v4311
    %6665 = vmatpush.bf16.msra.mxu0 %v4303
    %6666 = vmatpush.bf16.msra.mxu0 %v4295
    %6667 = vmatpush.bf16.msra.mxu0 %v4287
    %6668 = vmatpush.bf16.msra.mxu0 %v4279
    %6669 = vmatpush.bf16.msra.mxu0 %v4271
    %6670 = vmatpush.bf16.msra.mxu0 %v4263
    %6671 = vmatmul.bf16.gmra.mxu0 %v164
    %v6672 = vpop.f32.mrf.mxu0
    %v6673 = vadd.f32 %v6659, %v6672
    %v6674 = vpop.f32.mrf.mxu0
    %v6675 = vadd.f32 %v6661, %v6674
    %6676 = vdwg.mxu0
    %6677 = vmatpush.bf16.msra.mxu0 %v4383
    %6678 = vmatpush.bf16.msra.mxu0 %v4375
    %6679 = vmatpush.bf16.msra.mxu0 %v4367
    %6680 = vmatpush.bf16.msra.mxu0 %v4359
    %6681 = vmatpush.bf16.msra.mxu0 %v4351
    %6682 = vmatpush.bf16.msra.mxu0 %v4343
    %6683 = vmatpush.bf16.msra.mxu0 %v4335
    %6684 = vmatpush.bf16.msra.mxu0 %v4327
    %6685 = vmatmul.bf16.gmra.mxu0 %v165
    %v6686 = vpop.f32.mrf.mxu0
    %v6687 = vadd.f32 %v6673, %v6686
    %v6688 = vpop.f32.mrf.mxu0
    %v6689 = vadd.f32 %v6675, %v6688
    %6690 = vdwg.mxu0
    %6691 = vmatpush.bf16.msra.mxu0 %v4447
    %6692 = vmatpush.bf16.msra.mxu0 %v4439
    %6693 = vmatpush.bf16.msra.mxu0 %v4431
    %6694 = vmatpush.bf16.msra.mxu0 %v4423
    %6695 = vmatpush.bf16.msra.mxu0 %v4415
    %6696 = vmatpush.bf16.msra.mxu0 %v4407
    %6697 = vmatpush.bf16.msra.mxu0 %v4399
    %6698 = vmatpush.bf16.msra.mxu0 %v4391
    %6699 = vmatmul.bf16.gmra.mxu0 %v166
    %v6700 = vpop.f32.mrf.mxu0
    %v6701 = vadd.f32 %v6687, %v6700
    %v6702 = vpop.f32.mrf.mxu0
    %v6703 = vadd.f32 %v6689, %v6702
    %6704 = vdwg.mxu0
    %6705 = vmatpush.bf16.msra.mxu0 %v4511
    %6706 = vmatpush.bf16.msra.mxu0 %v4503
    %6707 = vmatpush.bf16.msra.mxu0 %v4495
    %6708 = vmatpush.bf16.msra.mxu0 %v4487
    %6709 = vmatpush.bf16.msra.mxu0 %v4479
    %6710 = vmatpush.bf16.msra.mxu0 %v4471
    %6711 = vmatpush.bf16.msra.mxu0 %v4463
    %6712 = vmatpush.bf16.msra.mxu0 %v4455
    %6713 = vmatmul.bf16.gmra.mxu0 %v167
    %v6714 = vpop.f32.mrf.mxu0
    %v6715 = vadd.f32 %v6701, %v6714
    %v6716 = vpop.f32.mrf.mxu0
    %v6717 = vadd.f32 %v6703, %v6716
    %6718 = vdwg.mxu0
    %6719 = vmatpush.bf16.msra.mxu0 %v4575
    %6720 = vmatpush.bf16.msra.mxu0 %v4567
    %6721 = vmatpush.bf16.msra.mxu0 %v4559
    %6722 = vmatpush.bf16.msra.mxu0 %v4551
    %6723 = vmatpush.bf16.msra.mxu0 %v4543
    %6724 = vmatpush.bf16.msra.mxu0 %v4535
    %6725 = vmatpush.bf16.msra.mxu0 %v4527
    %6726 = vmatpush.bf16.msra.mxu0 %v4519
    %6727 = vmatmul.bf16.gmra.mxu0 %v168
    %v6728 = vpop.f32.mrf.mxu0
    %v6729 = vadd.f32 %v6715, %v6728
    %v6730 = vpop.f32.mrf.mxu0
    %v6731 = vadd.f32 %v6717, %v6730
    %6732 = vdwg.mxu0
    %6733 = vmatpush.bf16.msra.mxu0 %v4639
    %6734 = vmatpush.bf16.msra.mxu0 %v4631
    %6735 = vmatpush.bf16.msra.mxu0 %v4623
    %6736 = vmatpush.bf16.msra.mxu0 %v4615
    %6737 = vmatpush.bf16.msra.mxu0 %v4607
    %6738 = vmatpush.bf16.msra.mxu0 %v4599
    %6739 = vmatpush.bf16.msra.mxu0 %v4591
    %6740 = vmatpush.bf16.msra.mxu0 %v4583
    %6741 = vmatmul.bf16.gmra.mxu0 %v169
    %v6742 = vpop.f32.mrf.mxu0
    %v6743 = vadd.f32 %v6729, %v6742
    %v6744 = vpop.f32.mrf.mxu0
    %v6745 = vadd.f32 %v6731, %v6744
    %6746 = vdwg.mxu0
    %6747 = vmatpush.bf16.msra.mxu0 %v4703
    %6748 = vmatpush.bf16.msra.mxu0 %v4695
    %6749 = vmatpush.bf16.msra.mxu0 %v4687
    %6750 = vmatpush.bf16.msra.mxu0 %v4679
    %6751 = vmatpush.bf16.msra.mxu0 %v4671
    %6752 = vmatpush.bf16.msra.mxu0 %v4663
    %6753 = vmatpush.bf16.msra.mxu0 %v4655
    %6754 = vmatpush.bf16.msra.mxu0 %v4647
    %6755 = vmatmul.bf16.gmra.mxu0 %v170
    %v6756 = vpop.f32.mrf.mxu0
    %v6757 = vadd.f32 %v6743, %v6756
    %v6758 = vpop.f32.mrf.mxu0
    %v6759 = vadd.f32 %v6745, %v6758
    %6760 = vdwg.mxu0
    %6761 = vmatpush.bf16.msra.mxu0 %v4767
    %6762 = vmatpush.bf16.msra.mxu0 %v4759
    %6763 = vmatpush.bf16.msra.mxu0 %v4751
    %6764 = vmatpush.bf16.msra.mxu0 %v4743
    %6765 = vmatpush.bf16.msra.mxu0 %v4735
    %6766 = vmatpush.bf16.msra.mxu0 %v4727
    %6767 = vmatpush.bf16.msra.mxu0 %v4719
    %6768 = vmatpush.bf16.msra.mxu0 %v4711
    %6769 = vmatmul.bf16.gmra.mxu0 %v171
    %v6770 = vpop.f32.mrf.mxu0
    %v6771 = vadd.f32 %v6757, %v6770
    %v6772 = vpop.f32.mrf.mxu0
    %v6773 = vadd.f32 %v6759, %v6772
    %6774 = vdwg.mxu0
    %6775 = vmatpush.bf16.msra.mxu0 %v4831
    %6776 = vmatpush.bf16.msra.mxu0 %v4823
    %6777 = vmatpush.bf16.msra.mxu0 %v4815
    %6778 = vmatpush.bf16.msra.mxu0 %v4807
    %6779 = vmatpush.bf16.msra.mxu0 %v4799
    %6780 = vmatpush.bf16.msra.mxu0 %v4791
    %6781 = vmatpush.bf16.msra.mxu0 %v4783
    %6782 = vmatpush.bf16.msra.mxu0 %v4775
    %6783 = vmatmul.bf16.gmra.mxu0 %v172
    %v6784 = vpop.f32.mrf.mxu0
    %v6785 = vadd.f32 %v6771, %v6784
    %v6786 = vpop.f32.mrf.mxu0
    %v6787 = vadd.f32 %v6773, %v6786
    %6788 = vdwg.mxu0
    %6789 = vmatpush.bf16.msra.mxu0 %v4895
    %6790 = vmatpush.bf16.msra.mxu0 %v4887
    %6791 = vmatpush.bf16.msra.mxu0 %v4879
    %6792 = vmatpush.bf16.msra.mxu0 %v4871
    %6793 = vmatpush.bf16.msra.mxu0 %v4863
    %6794 = vmatpush.bf16.msra.mxu0 %v4855
    %6795 = vmatpush.bf16.msra.mxu0 %v4847
    %6796 = vmatpush.bf16.msra.mxu0 %v4839
    %6797 = vmatmul.bf16.gmra.mxu0 %v173
    %v6798 = vpop.f32.mrf.mxu0
    %v6799 = vadd.f32 %v6785, %v6798
    %v6800 = vpop.f32.mrf.mxu0
    %v6801 = vadd.f32 %v6787, %v6800
    %6802 = vdwg.mxu0
    %6803 = vmatpush.bf16.msra.mxu0 %v4959
    %6804 = vmatpush.bf16.msra.mxu0 %v4951
    %6805 = vmatpush.bf16.msra.mxu0 %v4943
    %6806 = vmatpush.bf16.msra.mxu0 %v4935
    %6807 = vmatpush.bf16.msra.mxu0 %v4927
    %6808 = vmatpush.bf16.msra.mxu0 %v4919
    %6809 = vmatpush.bf16.msra.mxu0 %v4911
    %6810 = vmatpush.bf16.msra.mxu0 %v4903
    %6811 = vmatmul.bf16.gmra.mxu0 %v174
    %v6812 = vpop.f32.mrf.mxu0
    %v6813 = vadd.f32 %v6799, %v6812
    %v6814 = vpop.f32.mrf.mxu0
    %v6815 = vadd.f32 %v6801, %v6814
    %6816 = vdwg.mxu0
    %6817 = vmatpush.bf16.msra.mxu0 %v5023
    %6818 = vmatpush.bf16.msra.mxu0 %v5015
    %6819 = vmatpush.bf16.msra.mxu0 %v5007
    %6820 = vmatpush.bf16.msra.mxu0 %v4999
    %6821 = vmatpush.bf16.msra.mxu0 %v4991
    %6822 = vmatpush.bf16.msra.mxu0 %v4983
    %6823 = vmatpush.bf16.msra.mxu0 %v4975
    %6824 = vmatpush.bf16.msra.mxu0 %v4967
    %6825 = vmatmul.bf16.gmra.mxu0 %v175
    %v6826 = vpop.f32.mrf.mxu0
    %v6827 = vadd.f32 %v6813, %v6826
    %v6828 = vpop.f32.mrf.mxu0
    %v6829 = vadd.f32 %v6815, %v6828
    %6830 = vdwg.mxu0
    %6831 = vmatpush.bf16.msra.mxu0 %v5087
    %6832 = vmatpush.bf16.msra.mxu0 %v5079
    %6833 = vmatpush.bf16.msra.mxu0 %v5071
    %6834 = vmatpush.bf16.msra.mxu0 %v5063
    %6835 = vmatpush.bf16.msra.mxu0 %v5055
    %6836 = vmatpush.bf16.msra.mxu0 %v5047
    %6837 = vmatpush.bf16.msra.mxu0 %v5039
    %6838 = vmatpush.bf16.msra.mxu0 %v5031
    %6839 = vmatmul.bf16.gmra.mxu0 %v176
    %v6840 = vpop.f32.mrf.mxu0
    %v6841 = vadd.f32 %v6827, %v6840
    %v6842 = vpop.f32.mrf.mxu0
    %v6843 = vadd.f32 %v6829, %v6842
    %6844 = vdwg.mxu0
    %6845 = vmatpush.bf16.msra.mxu0 %v5151
    %6846 = vmatpush.bf16.msra.mxu0 %v5143
    %6847 = vmatpush.bf16.msra.mxu0 %v5135
    %6848 = vmatpush.bf16.msra.mxu0 %v5127
    %6849 = vmatpush.bf16.msra.mxu0 %v5119
    %6850 = vmatpush.bf16.msra.mxu0 %v5111
    %6851 = vmatpush.bf16.msra.mxu0 %v5103
    %6852 = vmatpush.bf16.msra.mxu0 %v5095
    %6853 = vmatmul.bf16.gmra.mxu0 %v177
    %v6854 = vpop.f32.mrf.mxu0
    %v6855 = vadd.f32 %v6841, %v6854
    %v6856 = vpop.f32.mrf.mxu0
    %v6857 = vadd.f32 %v6843, %v6856
    %6858 = vdwg.mxu0
    %6859 = vmatpush.bf16.msra.mxu0 0
    %6860 = vmatpush.bf16.msra.mxu0 0
    %6861 = vmatpush.bf16.msra.mxu0 0
    %6862 = vmatpush.bf16.msra.mxu0 %v5191
    %6863 = vmatpush.bf16.msra.mxu0 %v5183
    %6864 = vmatpush.bf16.msra.mxu0 %v5175
    %6865 = vmatpush.bf16.msra.mxu0 %v5167
    %6866 = vmatpush.bf16.msra.mxu0 %v5159
    %6867 = vmatmul.bf16.gmra.mxu0 %v6199
    %v6868 = vpop.f32.mrf.mxu0
    %v6869 = vadd.f32 %v6855, %v6868
    %v6870 = vpop.f32.mrf.mxu0
    %v6871 = vadd.f32 %v6857, %v6870
    %6872 = vdwg.mxu0
    %6873 = vmatpush.bf16.msra.mxu0 %v4256
    %6874 = vmatpush.bf16.msra.mxu0 %v4248
    %6875 = vmatpush.bf16.msra.mxu0 %v4240
    %6876 = vmatpush.bf16.msra.mxu0 %v4232
    %6877 = vmatpush.bf16.msra.mxu0 %v4224
    %6878 = vmatpush.bf16.msra.mxu0 %v4216
    %6879 = vmatpush.bf16.msra.mxu0 %v4208
    %6880 = vmatpush.bf16.msra.mxu0 %v4200
    %6881 = vmatmul.bf16.gmra.mxu0 %v163
    %v6882 = vpop.f32.mrf.mxu0
    %v6883 = vadd.f32 %v1184, %v6882
    %v6884 = vpop.f32.mrf.mxu0
    %v6885 = vadd.f32 %v1184, %v6884
    %6886 = vdwg.mxu0
    %6887 = vmatpush.bf16.msra.mxu0 %v4320
    %6888 = vmatpush.bf16.msra.mxu0 %v4312
    %6889 = vmatpush.bf16.msra.mxu0 %v4304
    %6890 = vmatpush.bf16.msra.mxu0 %v4296
    %6891 = vmatpush.bf16.msra.mxu0 %v4288
    %6892 = vmatpush.bf16.msra.mxu0 %v4280
    %6893 = vmatpush.bf16.msra.mxu0 %v4272
    %6894 = vmatpush.bf16.msra.mxu0 %v4264
    %6895 = vmatmul.bf16.gmra.mxu0 %v164
    %v6896 = vpop.f32.mrf.mxu0
    %v6897 = vadd.f32 %v6883, %v6896
    %v6898 = vpop.f32.mrf.mxu0
    %v6899 = vadd.f32 %v6885, %v6898
    %6900 = vdwg.mxu0
    %6901 = vmatpush.bf16.msra.mxu0 %v4384
    %6902 = vmatpush.bf16.msra.mxu0 %v4376
    %6903 = vmatpush.bf16.msra.mxu0 %v4368
    %6904 = vmatpush.bf16.msra.mxu0 %v4360
    %6905 = vmatpush.bf16.msra.mxu0 %v4352
    %6906 = vmatpush.bf16.msra.mxu0 %v4344
    %6907 = vmatpush.bf16.msra.mxu0 %v4336
    %6908 = vmatpush.bf16.msra.mxu0 %v4328
    %6909 = vmatmul.bf16.gmra.mxu0 %v165
    %v6910 = vpop.f32.mrf.mxu0
    %v6911 = vadd.f32 %v6897, %v6910
    %v6912 = vpop.f32.mrf.mxu0
    %v6913 = vadd.f32 %v6899, %v6912
    %6914 = vdwg.mxu0
    %6915 = vmatpush.bf16.msra.mxu0 %v4448
    %6916 = vmatpush.bf16.msra.mxu0 %v4440
    %6917 = vmatpush.bf16.msra.mxu0 %v4432
    %6918 = vmatpush.bf16.msra.mxu0 %v4424
    %6919 = vmatpush.bf16.msra.mxu0 %v4416
    %6920 = vmatpush.bf16.msra.mxu0 %v4408
    %6921 = vmatpush.bf16.msra.mxu0 %v4400
    %6922 = vmatpush.bf16.msra.mxu0 %v4392
    %6923 = vmatmul.bf16.gmra.mxu0 %v166
    %v6924 = vpop.f32.mrf.mxu0
    %v6925 = vadd.f32 %v6911, %v6924
    %v6926 = vpop.f32.mrf.mxu0
    %v6927 = vadd.f32 %v6913, %v6926
    %6928 = vdwg.mxu0
    %6929 = vmatpush.bf16.msra.mxu0 %v4512
    %6930 = vmatpush.bf16.msra.mxu0 %v4504
    %6931 = vmatpush.bf16.msra.mxu0 %v4496
    %6932 = vmatpush.bf16.msra.mxu0 %v4488
    %6933 = vmatpush.bf16.msra.mxu0 %v4480
    %6934 = vmatpush.bf16.msra.mxu0 %v4472
    %6935 = vmatpush.bf16.msra.mxu0 %v4464
    %6936 = vmatpush.bf16.msra.mxu0 %v4456
    %6937 = vmatmul.bf16.gmra.mxu0 %v167
    %v6938 = vpop.f32.mrf.mxu0
    %v6939 = vadd.f32 %v6925, %v6938
    %v6940 = vpop.f32.mrf.mxu0
    %v6941 = vadd.f32 %v6927, %v6940
    %6942 = vdwg.mxu0
    %6943 = vmatpush.bf16.msra.mxu0 %v4576
    %6944 = vmatpush.bf16.msra.mxu0 %v4568
    %6945 = vmatpush.bf16.msra.mxu0 %v4560
    %6946 = vmatpush.bf16.msra.mxu0 %v4552
    %6947 = vmatpush.bf16.msra.mxu0 %v4544
    %6948 = vmatpush.bf16.msra.mxu0 %v4536
    %6949 = vmatpush.bf16.msra.mxu0 %v4528
    %6950 = vmatpush.bf16.msra.mxu0 %v4520
    %6951 = vmatmul.bf16.gmra.mxu0 %v168
    %v6952 = vpop.f32.mrf.mxu0
    %v6953 = vadd.f32 %v6939, %v6952
    %v6954 = vpop.f32.mrf.mxu0
    %v6955 = vadd.f32 %v6941, %v6954
    %6956 = vdwg.mxu0
    %6957 = vmatpush.bf16.msra.mxu0 %v4640
    %6958 = vmatpush.bf16.msra.mxu0 %v4632
    %6959 = vmatpush.bf16.msra.mxu0 %v4624
    %6960 = vmatpush.bf16.msra.mxu0 %v4616
    %6961 = vmatpush.bf16.msra.mxu0 %v4608
    %6962 = vmatpush.bf16.msra.mxu0 %v4600
    %6963 = vmatpush.bf16.msra.mxu0 %v4592
    %6964 = vmatpush.bf16.msra.mxu0 %v4584
    %6965 = vmatmul.bf16.gmra.mxu0 %v169
    %v6966 = vpop.f32.mrf.mxu0
    %v6967 = vadd.f32 %v6953, %v6966
    %v6968 = vpop.f32.mrf.mxu0
    %v6969 = vadd.f32 %v6955, %v6968
    %6970 = vdwg.mxu0
    %6971 = vmatpush.bf16.msra.mxu0 %v4704
    %6972 = vmatpush.bf16.msra.mxu0 %v4696
    %6973 = vmatpush.bf16.msra.mxu0 %v4688
    %6974 = vmatpush.bf16.msra.mxu0 %v4680
    %6975 = vmatpush.bf16.msra.mxu0 %v4672
    %6976 = vmatpush.bf16.msra.mxu0 %v4664
    %6977 = vmatpush.bf16.msra.mxu0 %v4656
    %6978 = vmatpush.bf16.msra.mxu0 %v4648
    %6979 = vmatmul.bf16.gmra.mxu0 %v170
    %v6980 = vpop.f32.mrf.mxu0
    %v6981 = vadd.f32 %v6967, %v6980
    %v6982 = vpop.f32.mrf.mxu0
    %v6983 = vadd.f32 %v6969, %v6982
    %6984 = vdwg.mxu0
    %6985 = vmatpush.bf16.msra.mxu0 %v4768
    %6986 = vmatpush.bf16.msra.mxu0 %v4760
    %6987 = vmatpush.bf16.msra.mxu0 %v4752
    %6988 = vmatpush.bf16.msra.mxu0 %v4744
    %6989 = vmatpush.bf16.msra.mxu0 %v4736
    %6990 = vmatpush.bf16.msra.mxu0 %v4728
    %6991 = vmatpush.bf16.msra.mxu0 %v4720
    %6992 = vmatpush.bf16.msra.mxu0 %v4712
    %6993 = vmatmul.bf16.gmra.mxu0 %v171
    %v6994 = vpop.f32.mrf.mxu0
    %v6995 = vadd.f32 %v6981, %v6994
    %v6996 = vpop.f32.mrf.mxu0
    %v6997 = vadd.f32 %v6983, %v6996
    %6998 = vdwg.mxu0
    %6999 = vmatpush.bf16.msra.mxu0 %v4832
    %7000 = vmatpush.bf16.msra.mxu0 %v4824
    %7001 = vmatpush.bf16.msra.mxu0 %v4816
    %7002 = vmatpush.bf16.msra.mxu0 %v4808
    %7003 = vmatpush.bf16.msra.mxu0 %v4800
    %7004 = vmatpush.bf16.msra.mxu0 %v4792
    %7005 = vmatpush.bf16.msra.mxu0 %v4784
    %7006 = vmatpush.bf16.msra.mxu0 %v4776
    %7007 = vmatmul.bf16.gmra.mxu0 %v172
    %v7008 = vpop.f32.mrf.mxu0
    %v7009 = vadd.f32 %v6995, %v7008
    %v7010 = vpop.f32.mrf.mxu0
    %v7011 = vadd.f32 %v6997, %v7010
    %7012 = vdwg.mxu0
    %7013 = vmatpush.bf16.msra.mxu0 %v4896
    %7014 = vmatpush.bf16.msra.mxu0 %v4888
    %7015 = vmatpush.bf16.msra.mxu0 %v4880
    %7016 = vmatpush.bf16.msra.mxu0 %v4872
    %7017 = vmatpush.bf16.msra.mxu0 %v4864
    %7018 = vmatpush.bf16.msra.mxu0 %v4856
    %7019 = vmatpush.bf16.msra.mxu0 %v4848
    %7020 = vmatpush.bf16.msra.mxu0 %v4840
    %7021 = vmatmul.bf16.gmra.mxu0 %v173
    %v7022 = vpop.f32.mrf.mxu0
    %v7023 = vadd.f32 %v7009, %v7022
    %v7024 = vpop.f32.mrf.mxu0
    %v7025 = vadd.f32 %v7011, %v7024
    %7026 = vdwg.mxu0
    %7027 = vmatpush.bf16.msra.mxu0 %v4960
    %7028 = vmatpush.bf16.msra.mxu0 %v4952
    %7029 = vmatpush.bf16.msra.mxu0 %v4944
    %7030 = vmatpush.bf16.msra.mxu0 %v4936
    %7031 = vmatpush.bf16.msra.mxu0 %v4928
    %7032 = vmatpush.bf16.msra.mxu0 %v4920
    %7033 = vmatpush.bf16.msra.mxu0 %v4912
    %7034 = vmatpush.bf16.msra.mxu0 %v4904
    %7035 = vmatmul.bf16.gmra.mxu0 %v174
    %v7036 = vpop.f32.mrf.mxu0
    %v7037 = vadd.f32 %v7023, %v7036
    %v7038 = vpop.f32.mrf.mxu0
    %v7039 = vadd.f32 %v7025, %v7038
    %7040 = vdwg.mxu0
    %7041 = vmatpush.bf16.msra.mxu0 %v5024
    %7042 = vmatpush.bf16.msra.mxu0 %v5016
    %7043 = vmatpush.bf16.msra.mxu0 %v5008
    %7044 = vmatpush.bf16.msra.mxu0 %v5000
    %7045 = vmatpush.bf16.msra.mxu0 %v4992
    %7046 = vmatpush.bf16.msra.mxu0 %v4984
    %7047 = vmatpush.bf16.msra.mxu0 %v4976
    %7048 = vmatpush.bf16.msra.mxu0 %v4968
    %7049 = vmatmul.bf16.gmra.mxu0 %v175
    %v7050 = vpop.f32.mrf.mxu0
    %v7051 = vadd.f32 %v7037, %v7050
    %v7052 = vpop.f32.mrf.mxu0
    %v7053 = vadd.f32 %v7039, %v7052
    %7054 = vdwg.mxu0
    %7055 = vmatpush.bf16.msra.mxu0 %v5088
    %7056 = vmatpush.bf16.msra.mxu0 %v5080
    %7057 = vmatpush.bf16.msra.mxu0 %v5072
    %7058 = vmatpush.bf16.msra.mxu0 %v5064
    %7059 = vmatpush.bf16.msra.mxu0 %v5056
    %7060 = vmatpush.bf16.msra.mxu0 %v5048
    %7061 = vmatpush.bf16.msra.mxu0 %v5040
    %7062 = vmatpush.bf16.msra.mxu0 %v5032
    %7063 = vmatmul.bf16.gmra.mxu0 %v176
    %v7064 = vpop.f32.mrf.mxu0
    %v7065 = vadd.f32 %v7051, %v7064
    %v7066 = vpop.f32.mrf.mxu0
    %v7067 = vadd.f32 %v7053, %v7066
    %7068 = vdwg.mxu0
    %7069 = vmatpush.bf16.msra.mxu0 %v5152
    %7070 = vmatpush.bf16.msra.mxu0 %v5144
    %7071 = vmatpush.bf16.msra.mxu0 %v5136
    %7072 = vmatpush.bf16.msra.mxu0 %v5128
    %7073 = vmatpush.bf16.msra.mxu0 %v5120
    %7074 = vmatpush.bf16.msra.mxu0 %v5112
    %7075 = vmatpush.bf16.msra.mxu0 %v5104
    %7076 = vmatpush.bf16.msra.mxu0 %v5096
    %7077 = vmatmul.bf16.gmra.mxu0 %v177
    %v7078 = vpop.f32.mrf.mxu0
    %v7079 = vadd.f32 %v7065, %v7078
    %v7080 = vpop.f32.mrf.mxu0
    %v7081 = vadd.f32 %v7067, %v7080
    %7082 = vdwg.mxu0
    %7083 = vmatpush.bf16.msra.mxu0 0
    %7084 = vmatpush.bf16.msra.mxu0 0
    %7085 = vmatpush.bf16.msra.mxu0 0
    %7086 = vmatpush.bf16.msra.mxu0 %v5192
    %7087 = vmatpush.bf16.msra.mxu0 %v5184
    %7088 = vmatpush.bf16.msra.mxu0 %v5176
    %7089 = vmatpush.bf16.msra.mxu0 %v5168
    %7090 = vmatpush.bf16.msra.mxu0 %v5160
    %7091 = vmatmul.bf16.gmra.mxu0 %v6199
    %v7092 = vpop.f32.mrf.mxu0
    %v7093 = vadd.f32 %v7079, %v7092
    %v7094 = vpop.f32.mrf.mxu0
    %v7095 = vadd.f32 %v7081, %v7094
    %7096 = vdwg.mxu0
    %7097 = vmatpush.bf16.msra.mxu0 %v4257
    %7098 = vmatpush.bf16.msra.mxu0 %v4249
    %7099 = vmatpush.bf16.msra.mxu0 %v4241
    %7100 = vmatpush.bf16.msra.mxu0 %v4233
    %7101 = vmatpush.bf16.msra.mxu0 %v4225
    %7102 = vmatpush.bf16.msra.mxu0 %v4217
    %7103 = vmatpush.bf16.msra.mxu0 %v4209
    %7104 = vmatpush.bf16.msra.mxu0 %v4201
    %7105 = vmatmul.bf16.gmra.mxu0 %v163
    %v7106 = vpop.f32.mrf.mxu0
    %v7107 = vadd.f32 %v1185, %v7106
    %v7108 = vpop.f32.mrf.mxu0
    %v7109 = vadd.f32 %v1185, %v7108
    %7110 = vdwg.mxu0
    %7111 = vmatpush.bf16.msra.mxu0 %v4321
    %7112 = vmatpush.bf16.msra.mxu0 %v4313
    %7113 = vmatpush.bf16.msra.mxu0 %v4305
    %7114 = vmatpush.bf16.msra.mxu0 %v4297
    %7115 = vmatpush.bf16.msra.mxu0 %v4289
    %7116 = vmatpush.bf16.msra.mxu0 %v4281
    %7117 = vmatpush.bf16.msra.mxu0 %v4273
    %7118 = vmatpush.bf16.msra.mxu0 %v4265
    %7119 = vmatmul.bf16.gmra.mxu0 %v164
    %v7120 = vpop.f32.mrf.mxu0
    %v7121 = vadd.f32 %v7107, %v7120
    %v7122 = vpop.f32.mrf.mxu0
    %v7123 = vadd.f32 %v7109, %v7122
    %7124 = vdwg.mxu0
    %7125 = vmatpush.bf16.msra.mxu0 %v4385
    %7126 = vmatpush.bf16.msra.mxu0 %v4377
    %7127 = vmatpush.bf16.msra.mxu0 %v4369
    %7128 = vmatpush.bf16.msra.mxu0 %v4361
    %7129 = vmatpush.bf16.msra.mxu0 %v4353
    %7130 = vmatpush.bf16.msra.mxu0 %v4345
    %7131 = vmatpush.bf16.msra.mxu0 %v4337
    %7132 = vmatpush.bf16.msra.mxu0 %v4329
    %7133 = vmatmul.bf16.gmra.mxu0 %v165
    %v7134 = vpop.f32.mrf.mxu0
    %v7135 = vadd.f32 %v7121, %v7134
    %v7136 = vpop.f32.mrf.mxu0
    %v7137 = vadd.f32 %v7123, %v7136
    %7138 = vdwg.mxu0
    %7139 = vmatpush.bf16.msra.mxu0 %v4449
    %7140 = vmatpush.bf16.msra.mxu0 %v4441
    %7141 = vmatpush.bf16.msra.mxu0 %v4433
    %7142 = vmatpush.bf16.msra.mxu0 %v4425
    %7143 = vmatpush.bf16.msra.mxu0 %v4417
    %7144 = vmatpush.bf16.msra.mxu0 %v4409
    %7145 = vmatpush.bf16.msra.mxu0 %v4401
    %7146 = vmatpush.bf16.msra.mxu0 %v4393
    %7147 = vmatmul.bf16.gmra.mxu0 %v166
    %v7148 = vpop.f32.mrf.mxu0
    %v7149 = vadd.f32 %v7135, %v7148
    %v7150 = vpop.f32.mrf.mxu0
    %v7151 = vadd.f32 %v7137, %v7150
    %7152 = vdwg.mxu0
    %7153 = vmatpush.bf16.msra.mxu0 %v4513
    %7154 = vmatpush.bf16.msra.mxu0 %v4505
    %7155 = vmatpush.bf16.msra.mxu0 %v4497
    %7156 = vmatpush.bf16.msra.mxu0 %v4489
    %7157 = vmatpush.bf16.msra.mxu0 %v4481
    %7158 = vmatpush.bf16.msra.mxu0 %v4473
    %7159 = vmatpush.bf16.msra.mxu0 %v4465
    %7160 = vmatpush.bf16.msra.mxu0 %v4457
    %7161 = vmatmul.bf16.gmra.mxu0 %v167
    %v7162 = vpop.f32.mrf.mxu0
    %v7163 = vadd.f32 %v7149, %v7162
    %v7164 = vpop.f32.mrf.mxu0
    %v7165 = vadd.f32 %v7151, %v7164
    %7166 = vdwg.mxu0
    %7167 = vmatpush.bf16.msra.mxu0 %v4577
    %7168 = vmatpush.bf16.msra.mxu0 %v4569
    %7169 = vmatpush.bf16.msra.mxu0 %v4561
    %7170 = vmatpush.bf16.msra.mxu0 %v4553
    %7171 = vmatpush.bf16.msra.mxu0 %v4545
    %7172 = vmatpush.bf16.msra.mxu0 %v4537
    %7173 = vmatpush.bf16.msra.mxu0 %v4529
    %7174 = vmatpush.bf16.msra.mxu0 %v4521
    %7175 = vmatmul.bf16.gmra.mxu0 %v168
    %v7176 = vpop.f32.mrf.mxu0
    %v7177 = vadd.f32 %v7163, %v7176
    %v7178 = vpop.f32.mrf.mxu0
    %v7179 = vadd.f32 %v7165, %v7178
    %7180 = vdwg.mxu0
    %7181 = vmatpush.bf16.msra.mxu0 %v4641
    %7182 = vmatpush.bf16.msra.mxu0 %v4633
    %7183 = vmatpush.bf16.msra.mxu0 %v4625
    %7184 = vmatpush.bf16.msra.mxu0 %v4617
    %7185 = vmatpush.bf16.msra.mxu0 %v4609
    %7186 = vmatpush.bf16.msra.mxu0 %v4601
    %7187 = vmatpush.bf16.msra.mxu0 %v4593
    %7188 = vmatpush.bf16.msra.mxu0 %v4585
    %7189 = vmatmul.bf16.gmra.mxu0 %v169
    %v7190 = vpop.f32.mrf.mxu0
    %v7191 = vadd.f32 %v7177, %v7190
    %v7192 = vpop.f32.mrf.mxu0
    %v7193 = vadd.f32 %v7179, %v7192
    %7194 = vdwg.mxu0
    %7195 = vmatpush.bf16.msra.mxu0 %v4705
    %7196 = vmatpush.bf16.msra.mxu0 %v4697
    %7197 = vmatpush.bf16.msra.mxu0 %v4689
    %7198 = vmatpush.bf16.msra.mxu0 %v4681
    %7199 = vmatpush.bf16.msra.mxu0 %v4673
    %7200 = vmatpush.bf16.msra.mxu0 %v4665
    %7201 = vmatpush.bf16.msra.mxu0 %v4657
    %7202 = vmatpush.bf16.msra.mxu0 %v4649
    %7203 = vmatmul.bf16.gmra.mxu0 %v170
    %v7204 = vpop.f32.mrf.mxu0
    %v7205 = vadd.f32 %v7191, %v7204
    %v7206 = vpop.f32.mrf.mxu0
    %v7207 = vadd.f32 %v7193, %v7206
    %7208 = vdwg.mxu0
    %7209 = vmatpush.bf16.msra.mxu0 %v4769
    %7210 = vmatpush.bf16.msra.mxu0 %v4761
    %7211 = vmatpush.bf16.msra.mxu0 %v4753
    %7212 = vmatpush.bf16.msra.mxu0 %v4745
    %7213 = vmatpush.bf16.msra.mxu0 %v4737
    %7214 = vmatpush.bf16.msra.mxu0 %v4729
    %7215 = vmatpush.bf16.msra.mxu0 %v4721
    %7216 = vmatpush.bf16.msra.mxu0 %v4713
    %7217 = vmatmul.bf16.gmra.mxu0 %v171
    %v7218 = vpop.f32.mrf.mxu0
    %v7219 = vadd.f32 %v7205, %v7218
    %v7220 = vpop.f32.mrf.mxu0
    %v7221 = vadd.f32 %v7207, %v7220
    %7222 = vdwg.mxu0
    %7223 = vmatpush.bf16.msra.mxu0 %v4833
    %7224 = vmatpush.bf16.msra.mxu0 %v4825
    %7225 = vmatpush.bf16.msra.mxu0 %v4817
    %7226 = vmatpush.bf16.msra.mxu0 %v4809
    %7227 = vmatpush.bf16.msra.mxu0 %v4801
    %7228 = vmatpush.bf16.msra.mxu0 %v4793
    %7229 = vmatpush.bf16.msra.mxu0 %v4785
    %7230 = vmatpush.bf16.msra.mxu0 %v4777
    %7231 = vmatmul.bf16.gmra.mxu0 %v172
    %v7232 = vpop.f32.mrf.mxu0
    %v7233 = vadd.f32 %v7219, %v7232
    %v7234 = vpop.f32.mrf.mxu0
    %v7235 = vadd.f32 %v7221, %v7234
    %7236 = vdwg.mxu0
    %7237 = vmatpush.bf16.msra.mxu0 %v4897
    %7238 = vmatpush.bf16.msra.mxu0 %v4889
    %7239 = vmatpush.bf16.msra.mxu0 %v4881
    %7240 = vmatpush.bf16.msra.mxu0 %v4873
    %7241 = vmatpush.bf16.msra.mxu0 %v4865
    %7242 = vmatpush.bf16.msra.mxu0 %v4857
    %7243 = vmatpush.bf16.msra.mxu0 %v4849
    %7244 = vmatpush.bf16.msra.mxu0 %v4841
    %7245 = vmatmul.bf16.gmra.mxu0 %v173
    %v7246 = vpop.f32.mrf.mxu0
    %v7247 = vadd.f32 %v7233, %v7246
    %v7248 = vpop.f32.mrf.mxu0
    %v7249 = vadd.f32 %v7235, %v7248
    %7250 = vdwg.mxu0
    %7251 = vmatpush.bf16.msra.mxu0 %v4961
    %7252 = vmatpush.bf16.msra.mxu0 %v4953
    %7253 = vmatpush.bf16.msra.mxu0 %v4945
    %7254 = vmatpush.bf16.msra.mxu0 %v4937
    %7255 = vmatpush.bf16.msra.mxu0 %v4929
    %7256 = vmatpush.bf16.msra.mxu0 %v4921
    %7257 = vmatpush.bf16.msra.mxu0 %v4913
    %7258 = vmatpush.bf16.msra.mxu0 %v4905
    %7259 = vmatmul.bf16.gmra.mxu0 %v174
    %v7260 = vpop.f32.mrf.mxu0
    %v7261 = vadd.f32 %v7247, %v7260
    %v7262 = vpop.f32.mrf.mxu0
    %v7263 = vadd.f32 %v7249, %v7262
    %7264 = vdwg.mxu0
    %7265 = vmatpush.bf16.msra.mxu0 %v5025
    %7266 = vmatpush.bf16.msra.mxu0 %v5017
    %7267 = vmatpush.bf16.msra.mxu0 %v5009
    %7268 = vmatpush.bf16.msra.mxu0 %v5001
    %7269 = vmatpush.bf16.msra.mxu0 %v4993
    %7270 = vmatpush.bf16.msra.mxu0 %v4985
    %7271 = vmatpush.bf16.msra.mxu0 %v4977
    %7272 = vmatpush.bf16.msra.mxu0 %v4969
    %7273 = vmatmul.bf16.gmra.mxu0 %v175
    %v7274 = vpop.f32.mrf.mxu0
    %v7275 = vadd.f32 %v7261, %v7274
    %v7276 = vpop.f32.mrf.mxu0
    %v7277 = vadd.f32 %v7263, %v7276
    %7278 = vdwg.mxu0
    %7279 = vmatpush.bf16.msra.mxu0 %v5089
    %7280 = vmatpush.bf16.msra.mxu0 %v5081
    %7281 = vmatpush.bf16.msra.mxu0 %v5073
    %7282 = vmatpush.bf16.msra.mxu0 %v5065
    %7283 = vmatpush.bf16.msra.mxu0 %v5057
    %7284 = vmatpush.bf16.msra.mxu0 %v5049
    %7285 = vmatpush.bf16.msra.mxu0 %v5041
    %7286 = vmatpush.bf16.msra.mxu0 %v5033
    %7287 = vmatmul.bf16.gmra.mxu0 %v176
    %v7288 = vpop.f32.mrf.mxu0
    %v7289 = vadd.f32 %v7275, %v7288
    %v7290 = vpop.f32.mrf.mxu0
    %v7291 = vadd.f32 %v7277, %v7290
    %7292 = vdwg.mxu0
    %7293 = vmatpush.bf16.msra.mxu0 %v5153
    %7294 = vmatpush.bf16.msra.mxu0 %v5145
    %7295 = vmatpush.bf16.msra.mxu0 %v5137
    %7296 = vmatpush.bf16.msra.mxu0 %v5129
    %7297 = vmatpush.bf16.msra.mxu0 %v5121
    %7298 = vmatpush.bf16.msra.mxu0 %v5113
    %7299 = vmatpush.bf16.msra.mxu0 %v5105
    %7300 = vmatpush.bf16.msra.mxu0 %v5097
    %7301 = vmatmul.bf16.gmra.mxu0 %v177
    %v7302 = vpop.f32.mrf.mxu0
    %v7303 = vadd.f32 %v7289, %v7302
    %v7304 = vpop.f32.mrf.mxu0
    %v7305 = vadd.f32 %v7291, %v7304
    %7306 = vdwg.mxu0
    %7307 = vmatpush.bf16.msra.mxu0 0
    %7308 = vmatpush.bf16.msra.mxu0 0
    %7309 = vmatpush.bf16.msra.mxu0 0
    %7310 = vmatpush.bf16.msra.mxu0 %v5193
    %7311 = vmatpush.bf16.msra.mxu0 %v5185
    %7312 = vmatpush.bf16.msra.mxu0 %v5177
    %7313 = vmatpush.bf16.msra.mxu0 %v5169
    %7314 = vmatpush.bf16.msra.mxu0 %v5161
    %7315 = vmatmul.bf16.gmra.mxu0 %v6199
    %v7316 = vpop.f32.mrf.mxu0
    %v7317 = vadd.f32 %v7303, %v7316
    %v7318 = vpop.f32.mrf.mxu0
    %v7319 = vadd.f32 %v7305, %v7318
    %7320 = vdwg.mxu0
    %7321 = vmatpush.bf16.msra.mxu0 %v4258
    %7322 = vmatpush.bf16.msra.mxu0 %v4250
    %7323 = vmatpush.bf16.msra.mxu0 %v4242
    %7324 = vmatpush.bf16.msra.mxu0 %v4234
    %7325 = vmatpush.bf16.msra.mxu0 %v4226
    %7326 = vmatpush.bf16.msra.mxu0 %v4218
    %7327 = vmatpush.bf16.msra.mxu0 %v4210
    %7328 = vmatpush.bf16.msra.mxu0 %v4202
    %7329 = vmatmul.bf16.gmra.mxu0 %v163
    %v7330 = vpop.f32.mrf.mxu0
    %v7331 = vadd.f32 %v1186, %v7330
    %v7332 = vpop.f32.mrf.mxu0
    %v7333 = vadd.f32 %v1186, %v7332
    %7334 = vdwg.mxu0
    %7335 = vmatpush.bf16.msra.mxu0 %v4322
    %7336 = vmatpush.bf16.msra.mxu0 %v4314
    %7337 = vmatpush.bf16.msra.mxu0 %v4306
    %7338 = vmatpush.bf16.msra.mxu0 %v4298
    %7339 = vmatpush.bf16.msra.mxu0 %v4290
    %7340 = vmatpush.bf16.msra.mxu0 %v4282
    %7341 = vmatpush.bf16.msra.mxu0 %v4274
    %7342 = vmatpush.bf16.msra.mxu0 %v4266
    %7343 = vmatmul.bf16.gmra.mxu0 %v164
    %v7344 = vpop.f32.mrf.mxu0
    %v7345 = vadd.f32 %v7331, %v7344
    %v7346 = vpop.f32.mrf.mxu0
    %v7347 = vadd.f32 %v7333, %v7346
    %7348 = vdwg.mxu0
    %7349 = vmatpush.bf16.msra.mxu0 %v4386
    %7350 = vmatpush.bf16.msra.mxu0 %v4378
    %7351 = vmatpush.bf16.msra.mxu0 %v4370
    %7352 = vmatpush.bf16.msra.mxu0 %v4362
    %7353 = vmatpush.bf16.msra.mxu0 %v4354
    %7354 = vmatpush.bf16.msra.mxu0 %v4346
    %7355 = vmatpush.bf16.msra.mxu0 %v4338
    %7356 = vmatpush.bf16.msra.mxu0 %v4330
    %7357 = vmatmul.bf16.gmra.mxu0 %v165
    %v7358 = vpop.f32.mrf.mxu0
    %v7359 = vadd.f32 %v7345, %v7358
    %v7360 = vpop.f32.mrf.mxu0
    %v7361 = vadd.f32 %v7347, %v7360
    %7362 = vdwg.mxu0
    %7363 = vmatpush.bf16.msra.mxu0 %v4450
    %7364 = vmatpush.bf16.msra.mxu0 %v4442
    %7365 = vmatpush.bf16.msra.mxu0 %v4434
    %7366 = vmatpush.bf16.msra.mxu0 %v4426
    %7367 = vmatpush.bf16.msra.mxu0 %v4418
    %7368 = vmatpush.bf16.msra.mxu0 %v4410
    %7369 = vmatpush.bf16.msra.mxu0 %v4402
    %7370 = vmatpush.bf16.msra.mxu0 %v4394
    %7371 = vmatmul.bf16.gmra.mxu0 %v166
    %v7372 = vpop.f32.mrf.mxu0
    %v7373 = vadd.f32 %v7359, %v7372
    %v7374 = vpop.f32.mrf.mxu0
    %v7375 = vadd.f32 %v7361, %v7374
    %7376 = vdwg.mxu0
    %7377 = vmatpush.bf16.msra.mxu0 %v4514
    %7378 = vmatpush.bf16.msra.mxu0 %v4506
    %7379 = vmatpush.bf16.msra.mxu0 %v4498
    %7380 = vmatpush.bf16.msra.mxu0 %v4490
    %7381 = vmatpush.bf16.msra.mxu0 %v4482
    %7382 = vmatpush.bf16.msra.mxu0 %v4474
    %7383 = vmatpush.bf16.msra.mxu0 %v4466
    %7384 = vmatpush.bf16.msra.mxu0 %v4458
    %7385 = vmatmul.bf16.gmra.mxu0 %v167
    %v7386 = vpop.f32.mrf.mxu0
    %v7387 = vadd.f32 %v7373, %v7386
    %v7388 = vpop.f32.mrf.mxu0
    %v7389 = vadd.f32 %v7375, %v7388
    %7390 = vdwg.mxu0
    %7391 = vmatpush.bf16.msra.mxu0 %v4578
    %7392 = vmatpush.bf16.msra.mxu0 %v4570
    %7393 = vmatpush.bf16.msra.mxu0 %v4562
    %7394 = vmatpush.bf16.msra.mxu0 %v4554
    %7395 = vmatpush.bf16.msra.mxu0 %v4546
    %7396 = vmatpush.bf16.msra.mxu0 %v4538
    %7397 = vmatpush.bf16.msra.mxu0 %v4530
    %7398 = vmatpush.bf16.msra.mxu0 %v4522
    %7399 = vmatmul.bf16.gmra.mxu0 %v168
    %v7400 = vpop.f32.mrf.mxu0
    %v7401 = vadd.f32 %v7387, %v7400
    %v7402 = vpop.f32.mrf.mxu0
    %v7403 = vadd.f32 %v7389, %v7402
    %7404 = vdwg.mxu0
    %7405 = vmatpush.bf16.msra.mxu0 %v4642
    %7406 = vmatpush.bf16.msra.mxu0 %v4634
    %7407 = vmatpush.bf16.msra.mxu0 %v4626
    %7408 = vmatpush.bf16.msra.mxu0 %v4618
    %7409 = vmatpush.bf16.msra.mxu0 %v4610
    %7410 = vmatpush.bf16.msra.mxu0 %v4602
    %7411 = vmatpush.bf16.msra.mxu0 %v4594
    %7412 = vmatpush.bf16.msra.mxu0 %v4586
    %7413 = vmatmul.bf16.gmra.mxu0 %v169
    %v7414 = vpop.f32.mrf.mxu0
    %v7415 = vadd.f32 %v7401, %v7414
    %v7416 = vpop.f32.mrf.mxu0
    %v7417 = vadd.f32 %v7403, %v7416
    %7418 = vdwg.mxu0
    %7419 = vmatpush.bf16.msra.mxu0 %v4706
    %7420 = vmatpush.bf16.msra.mxu0 %v4698
    %7421 = vmatpush.bf16.msra.mxu0 %v4690
    %7422 = vmatpush.bf16.msra.mxu0 %v4682
    %7423 = vmatpush.bf16.msra.mxu0 %v4674
    %7424 = vmatpush.bf16.msra.mxu0 %v4666
    %7425 = vmatpush.bf16.msra.mxu0 %v4658
    %7426 = vmatpush.bf16.msra.mxu0 %v4650
    %7427 = vmatmul.bf16.gmra.mxu0 %v170
    %v7428 = vpop.f32.mrf.mxu0
    %v7429 = vadd.f32 %v7415, %v7428
    %v7430 = vpop.f32.mrf.mxu0
    %v7431 = vadd.f32 %v7417, %v7430
    %7432 = vdwg.mxu0
    %7433 = vmatpush.bf16.msra.mxu0 %v4770
    %7434 = vmatpush.bf16.msra.mxu0 %v4762
    %7435 = vmatpush.bf16.msra.mxu0 %v4754
    %7436 = vmatpush.bf16.msra.mxu0 %v4746
    %7437 = vmatpush.bf16.msra.mxu0 %v4738
    %7438 = vmatpush.bf16.msra.mxu0 %v4730
    %7439 = vmatpush.bf16.msra.mxu0 %v4722
    %7440 = vmatpush.bf16.msra.mxu0 %v4714
    %7441 = vmatmul.bf16.gmra.mxu0 %v171
    %v7442 = vpop.f32.mrf.mxu0
    %v7443 = vadd.f32 %v7429, %v7442
    %v7444 = vpop.f32.mrf.mxu0
    %v7445 = vadd.f32 %v7431, %v7444
    %7446 = vdwg.mxu0
    %7447 = vmatpush.bf16.msra.mxu0 %v4834
    %7448 = vmatpush.bf16.msra.mxu0 %v4826
    %7449 = vmatpush.bf16.msra.mxu0 %v4818
    %7450 = vmatpush.bf16.msra.mxu0 %v4810
    %7451 = vmatpush.bf16.msra.mxu0 %v4802
    %7452 = vmatpush.bf16.msra.mxu0 %v4794
    %7453 = vmatpush.bf16.msra.mxu0 %v4786
    %7454 = vmatpush.bf16.msra.mxu0 %v4778
    %7455 = vmatmul.bf16.gmra.mxu0 %v172
    %v7456 = vpop.f32.mrf.mxu0
    %v7457 = vadd.f32 %v7443, %v7456
    %v7458 = vpop.f32.mrf.mxu0
    %v7459 = vadd.f32 %v7445, %v7458
    %7460 = vdwg.mxu0
    %7461 = vmatpush.bf16.msra.mxu0 %v4898
    %7462 = vmatpush.bf16.msra.mxu0 %v4890
    %7463 = vmatpush.bf16.msra.mxu0 %v4882
    %7464 = vmatpush.bf16.msra.mxu0 %v4874
    %7465 = vmatpush.bf16.msra.mxu0 %v4866
    %7466 = vmatpush.bf16.msra.mxu0 %v4858
    %7467 = vmatpush.bf16.msra.mxu0 %v4850
    %7468 = vmatpush.bf16.msra.mxu0 %v4842
    %7469 = vmatmul.bf16.gmra.mxu0 %v173
    %v7470 = vpop.f32.mrf.mxu0
    %v7471 = vadd.f32 %v7457, %v7470
    %v7472 = vpop.f32.mrf.mxu0
    %v7473 = vadd.f32 %v7459, %v7472
    %7474 = vdwg.mxu0
    %7475 = vmatpush.bf16.msra.mxu0 %v4962
    %7476 = vmatpush.bf16.msra.mxu0 %v4954
    %7477 = vmatpush.bf16.msra.mxu0 %v4946
    %7478 = vmatpush.bf16.msra.mxu0 %v4938
    %7479 = vmatpush.bf16.msra.mxu0 %v4930
    %7480 = vmatpush.bf16.msra.mxu0 %v4922
    %7481 = vmatpush.bf16.msra.mxu0 %v4914
    %7482 = vmatpush.bf16.msra.mxu0 %v4906
    %7483 = vmatmul.bf16.gmra.mxu0 %v174
    %v7484 = vpop.f32.mrf.mxu0
    %v7485 = vadd.f32 %v7471, %v7484
    %v7486 = vpop.f32.mrf.mxu0
    %v7487 = vadd.f32 %v7473, %v7486
    %7488 = vdwg.mxu0
    %7489 = vmatpush.bf16.msra.mxu0 %v5026
    %7490 = vmatpush.bf16.msra.mxu0 %v5018
    %7491 = vmatpush.bf16.msra.mxu0 %v5010
    %7492 = vmatpush.bf16.msra.mxu0 %v5002
    %7493 = vmatpush.bf16.msra.mxu0 %v4994
    %7494 = vmatpush.bf16.msra.mxu0 %v4986
    %7495 = vmatpush.bf16.msra.mxu0 %v4978
    %7496 = vmatpush.bf16.msra.mxu0 %v4970
    %7497 = vmatmul.bf16.gmra.mxu0 %v175
    %v7498 = vpop.f32.mrf.mxu0
    %v7499 = vadd.f32 %v7485, %v7498
    %v7500 = vpop.f32.mrf.mxu0
    %v7501 = vadd.f32 %v7487, %v7500
    %7502 = vdwg.mxu0
    %7503 = vmatpush.bf16.msra.mxu0 %v5090
    %7504 = vmatpush.bf16.msra.mxu0 %v5082
    %7505 = vmatpush.bf16.msra.mxu0 %v5074
    %7506 = vmatpush.bf16.msra.mxu0 %v5066
    %7507 = vmatpush.bf16.msra.mxu0 %v5058
    %7508 = vmatpush.bf16.msra.mxu0 %v5050
    %7509 = vmatpush.bf16.msra.mxu0 %v5042
    %7510 = vmatpush.bf16.msra.mxu0 %v5034
    %7511 = vmatmul.bf16.gmra.mxu0 %v176
    %v7512 = vpop.f32.mrf.mxu0
    %v7513 = vadd.f32 %v7499, %v7512
    %v7514 = vpop.f32.mrf.mxu0
    %v7515 = vadd.f32 %v7501, %v7514
    %7516 = vdwg.mxu0
    %7517 = vmatpush.bf16.msra.mxu0 %v5154
    %7518 = vmatpush.bf16.msra.mxu0 %v5146
    %7519 = vmatpush.bf16.msra.mxu0 %v5138
    %7520 = vmatpush.bf16.msra.mxu0 %v5130
    %7521 = vmatpush.bf16.msra.mxu0 %v5122
    %7522 = vmatpush.bf16.msra.mxu0 %v5114
    %7523 = vmatpush.bf16.msra.mxu0 %v5106
    %7524 = vmatpush.bf16.msra.mxu0 %v5098
    %7525 = vmatmul.bf16.gmra.mxu0 %v177
    %v7526 = vpop.f32.mrf.mxu0
    %v7527 = vadd.f32 %v7513, %v7526
    %v7528 = vpop.f32.mrf.mxu0
    %v7529 = vadd.f32 %v7515, %v7528
    %7530 = vdwg.mxu0
    %7531 = vmatpush.bf16.msra.mxu0 0
    %7532 = vmatpush.bf16.msra.mxu0 0
    %7533 = vmatpush.bf16.msra.mxu0 0
    %7534 = vmatpush.bf16.msra.mxu0 %v5194
    %7535 = vmatpush.bf16.msra.mxu0 %v5186
    %7536 = vmatpush.bf16.msra.mxu0 %v5178
    %7537 = vmatpush.bf16.msra.mxu0 %v5170
    %7538 = vmatpush.bf16.msra.mxu0 %v5162
    %7539 = vmatmul.bf16.gmra.mxu0 %v6199
    %v7540 = vpop.f32.mrf.mxu0
    %v7541 = vadd.f32 %v7527, %v7540
    %v7542 = vpop.f32.mrf.mxu0
    %v7543 = vadd.f32 %v7529, %v7542
    %7544 = vdwg.mxu0
    %7545 = vmatpush.bf16.msra.mxu0 %v4259
    %7546 = vmatpush.bf16.msra.mxu0 %v4251
    %7547 = vmatpush.bf16.msra.mxu0 %v4243
    %7548 = vmatpush.bf16.msra.mxu0 %v4235
    %7549 = vmatpush.bf16.msra.mxu0 %v4227
    %7550 = vmatpush.bf16.msra.mxu0 %v4219
    %7551 = vmatpush.bf16.msra.mxu0 %v4211
    %7552 = vmatpush.bf16.msra.mxu0 %v4203
    %7553 = vmatmul.bf16.gmra.mxu0 %v163
    %v7554 = vpop.f32.mrf.mxu0
    %v7555 = vadd.f32 %v1187, %v7554
    %v7556 = vpop.f32.mrf.mxu0
    %v7557 = vadd.f32 %v1187, %v7556
    %7558 = vdwg.mxu0
    %7559 = vmatpush.bf16.msra.mxu0 %v4323
    %7560 = vmatpush.bf16.msra.mxu0 %v4315
    %7561 = vmatpush.bf16.msra.mxu0 %v4307
    %7562 = vmatpush.bf16.msra.mxu0 %v4299
    %7563 = vmatpush.bf16.msra.mxu0 %v4291
    %7564 = vmatpush.bf16.msra.mxu0 %v4283
    %7565 = vmatpush.bf16.msra.mxu0 %v4275
    %7566 = vmatpush.bf16.msra.mxu0 %v4267
    %7567 = vmatmul.bf16.gmra.mxu0 %v164
    %v7568 = vpop.f32.mrf.mxu0
    %v7569 = vadd.f32 %v7555, %v7568
    %v7570 = vpop.f32.mrf.mxu0
    %v7571 = vadd.f32 %v7557, %v7570
    %7572 = vdwg.mxu0
    %7573 = vmatpush.bf16.msra.mxu0 %v4387
    %7574 = vmatpush.bf16.msra.mxu0 %v4379
    %7575 = vmatpush.bf16.msra.mxu0 %v4371
    %7576 = vmatpush.bf16.msra.mxu0 %v4363
    %7577 = vmatpush.bf16.msra.mxu0 %v4355
    %7578 = vmatpush.bf16.msra.mxu0 %v4347
    %7579 = vmatpush.bf16.msra.mxu0 %v4339
    %7580 = vmatpush.bf16.msra.mxu0 %v4331
    %7581 = vmatmul.bf16.gmra.mxu0 %v165
    %v7582 = vpop.f32.mrf.mxu0
    %v7583 = vadd.f32 %v7569, %v7582
    %v7584 = vpop.f32.mrf.mxu0
    %v7585 = vadd.f32 %v7571, %v7584
    %7586 = vdwg.mxu0
    %7587 = vmatpush.bf16.msra.mxu0 %v4451
    %7588 = vmatpush.bf16.msra.mxu0 %v4443
    %7589 = vmatpush.bf16.msra.mxu0 %v4435
    %7590 = vmatpush.bf16.msra.mxu0 %v4427
    %7591 = vmatpush.bf16.msra.mxu0 %v4419
    %7592 = vmatpush.bf16.msra.mxu0 %v4411
    %7593 = vmatpush.bf16.msra.mxu0 %v4403
    %7594 = vmatpush.bf16.msra.mxu0 %v4395
    %7595 = vmatmul.bf16.gmra.mxu0 %v166
    %v7596 = vpop.f32.mrf.mxu0
    %v7597 = vadd.f32 %v7583, %v7596
    %v7598 = vpop.f32.mrf.mxu0
    %v7599 = vadd.f32 %v7585, %v7598
    %7600 = vdwg.mxu0
    %7601 = vmatpush.bf16.msra.mxu0 %v4515
    %7602 = vmatpush.bf16.msra.mxu0 %v4507
    %7603 = vmatpush.bf16.msra.mxu0 %v4499
    %7604 = vmatpush.bf16.msra.mxu0 %v4491
    %7605 = vmatpush.bf16.msra.mxu0 %v4483
    %7606 = vmatpush.bf16.msra.mxu0 %v4475
    %7607 = vmatpush.bf16.msra.mxu0 %v4467
    %7608 = vmatpush.bf16.msra.mxu0 %v4459
    %7609 = vmatmul.bf16.gmra.mxu0 %v167
    %v7610 = vpop.f32.mrf.mxu0
    %v7611 = vadd.f32 %v7597, %v7610
    %v7612 = vpop.f32.mrf.mxu0
    %v7613 = vadd.f32 %v7599, %v7612
    %7614 = vdwg.mxu0
    %7615 = vmatpush.bf16.msra.mxu0 %v4579
    %7616 = vmatpush.bf16.msra.mxu0 %v4571
    %7617 = vmatpush.bf16.msra.mxu0 %v4563
    %7618 = vmatpush.bf16.msra.mxu0 %v4555
    %7619 = vmatpush.bf16.msra.mxu0 %v4547
    %7620 = vmatpush.bf16.msra.mxu0 %v4539
    %7621 = vmatpush.bf16.msra.mxu0 %v4531
    %7622 = vmatpush.bf16.msra.mxu0 %v4523
    %7623 = vmatmul.bf16.gmra.mxu0 %v168
    %v7624 = vpop.f32.mrf.mxu0
    %v7625 = vadd.f32 %v7611, %v7624
    %v7626 = vpop.f32.mrf.mxu0
    %v7627 = vadd.f32 %v7613, %v7626
    %7628 = vdwg.mxu0
    %7629 = vmatpush.bf16.msra.mxu0 %v4643
    %7630 = vmatpush.bf16.msra.mxu0 %v4635
    %7631 = vmatpush.bf16.msra.mxu0 %v4627
    %7632 = vmatpush.bf16.msra.mxu0 %v4619
    %7633 = vmatpush.bf16.msra.mxu0 %v4611
    %7634 = vmatpush.bf16.msra.mxu0 %v4603
    %7635 = vmatpush.bf16.msra.mxu0 %v4595
    %7636 = vmatpush.bf16.msra.mxu0 %v4587
    %7637 = vmatmul.bf16.gmra.mxu0 %v169
    %v7638 = vpop.f32.mrf.mxu0
    %v7639 = vadd.f32 %v7625, %v7638
    %v7640 = vpop.f32.mrf.mxu0
    %v7641 = vadd.f32 %v7627, %v7640
    %7642 = vdwg.mxu0
    %7643 = vmatpush.bf16.msra.mxu0 %v4707
    %7644 = vmatpush.bf16.msra.mxu0 %v4699
    %7645 = vmatpush.bf16.msra.mxu0 %v4691
    %7646 = vmatpush.bf16.msra.mxu0 %v4683
    %7647 = vmatpush.bf16.msra.mxu0 %v4675
    %7648 = vmatpush.bf16.msra.mxu0 %v4667
    %7649 = vmatpush.bf16.msra.mxu0 %v4659
    %7650 = vmatpush.bf16.msra.mxu0 %v4651
    %7651 = vmatmul.bf16.gmra.mxu0 %v170
    %v7652 = vpop.f32.mrf.mxu0
    %v7653 = vadd.f32 %v7639, %v7652
    %v7654 = vpop.f32.mrf.mxu0
    %v7655 = vadd.f32 %v7641, %v7654
    %7656 = vdwg.mxu0
    %7657 = vmatpush.bf16.msra.mxu0 %v4771
    %7658 = vmatpush.bf16.msra.mxu0 %v4763
    %7659 = vmatpush.bf16.msra.mxu0 %v4755
    %7660 = vmatpush.bf16.msra.mxu0 %v4747
    %7661 = vmatpush.bf16.msra.mxu0 %v4739
    %7662 = vmatpush.bf16.msra.mxu0 %v4731
    %7663 = vmatpush.bf16.msra.mxu0 %v4723
    %7664 = vmatpush.bf16.msra.mxu0 %v4715
    %7665 = vmatmul.bf16.gmra.mxu0 %v171
    %v7666 = vpop.f32.mrf.mxu0
    %v7667 = vadd.f32 %v7653, %v7666
    %v7668 = vpop.f32.mrf.mxu0
    %v7669 = vadd.f32 %v7655, %v7668
    %7670 = vdwg.mxu0
    %7671 = vmatpush.bf16.msra.mxu0 %v4835
    %7672 = vmatpush.bf16.msra.mxu0 %v4827
    %7673 = vmatpush.bf16.msra.mxu0 %v4819
    %7674 = vmatpush.bf16.msra.mxu0 %v4811
    %7675 = vmatpush.bf16.msra.mxu0 %v4803
    %7676 = vmatpush.bf16.msra.mxu0 %v4795
    %7677 = vmatpush.bf16.msra.mxu0 %v4787
    %7678 = vmatpush.bf16.msra.mxu0 %v4779
    %7679 = vmatmul.bf16.gmra.mxu0 %v172
    %v7680 = vpop.f32.mrf.mxu0
    %v7681 = vadd.f32 %v7667, %v7680
    %v7682 = vpop.f32.mrf.mxu0
    %v7683 = vadd.f32 %v7669, %v7682
    %7684 = vdwg.mxu0
    %7685 = vmatpush.bf16.msra.mxu0 %v4899
    %7686 = vmatpush.bf16.msra.mxu0 %v4891
    %7687 = vmatpush.bf16.msra.mxu0 %v4883
    %7688 = vmatpush.bf16.msra.mxu0 %v4875
    %7689 = vmatpush.bf16.msra.mxu0 %v4867
    %7690 = vmatpush.bf16.msra.mxu0 %v4859
    %7691 = vmatpush.bf16.msra.mxu0 %v4851
    %7692 = vmatpush.bf16.msra.mxu0 %v4843
    %7693 = vmatmul.bf16.gmra.mxu0 %v173
    %v7694 = vpop.f32.mrf.mxu0
    %v7695 = vadd.f32 %v7681, %v7694
    %v7696 = vpop.f32.mrf.mxu0
    %v7697 = vadd.f32 %v7683, %v7696
    %7698 = vdwg.mxu0
    %7699 = vmatpush.bf16.msra.mxu0 %v4963
    %7700 = vmatpush.bf16.msra.mxu0 %v4955
    %7701 = vmatpush.bf16.msra.mxu0 %v4947
    %7702 = vmatpush.bf16.msra.mxu0 %v4939
    %7703 = vmatpush.bf16.msra.mxu0 %v4931
    %7704 = vmatpush.bf16.msra.mxu0 %v4923
    %7705 = vmatpush.bf16.msra.mxu0 %v4915
    %7706 = vmatpush.bf16.msra.mxu0 %v4907
    %7707 = vmatmul.bf16.gmra.mxu0 %v174
    %v7708 = vpop.f32.mrf.mxu0
    %v7709 = vadd.f32 %v7695, %v7708
    %v7710 = vpop.f32.mrf.mxu0
    %v7711 = vadd.f32 %v7697, %v7710
    %7712 = vdwg.mxu0
    %7713 = vmatpush.bf16.msra.mxu0 %v5027
    %7714 = vmatpush.bf16.msra.mxu0 %v5019
    %7715 = vmatpush.bf16.msra.mxu0 %v5011
    %7716 = vmatpush.bf16.msra.mxu0 %v5003
    %7717 = vmatpush.bf16.msra.mxu0 %v4995
    %7718 = vmatpush.bf16.msra.mxu0 %v4987
    %7719 = vmatpush.bf16.msra.mxu0 %v4979
    %7720 = vmatpush.bf16.msra.mxu0 %v4971
    %7721 = vmatmul.bf16.gmra.mxu0 %v175
    %v7722 = vpop.f32.mrf.mxu0
    %v7723 = vadd.f32 %v7709, %v7722
    %v7724 = vpop.f32.mrf.mxu0
    %v7725 = vadd.f32 %v7711, %v7724
    %7726 = vdwg.mxu0
    %7727 = vmatpush.bf16.msra.mxu0 %v5091
    %7728 = vmatpush.bf16.msra.mxu0 %v5083
    %7729 = vmatpush.bf16.msra.mxu0 %v5075
    %7730 = vmatpush.bf16.msra.mxu0 %v5067
    %7731 = vmatpush.bf16.msra.mxu0 %v5059
    %7732 = vmatpush.bf16.msra.mxu0 %v5051
    %7733 = vmatpush.bf16.msra.mxu0 %v5043
    %7734 = vmatpush.bf16.msra.mxu0 %v5035
    %7735 = vmatmul.bf16.gmra.mxu0 %v176
    %v7736 = vpop.f32.mrf.mxu0
    %v7737 = vadd.f32 %v7723, %v7736
    %v7738 = vpop.f32.mrf.mxu0
    %v7739 = vadd.f32 %v7725, %v7738
    %7740 = vdwg.mxu0
    %7741 = vmatpush.bf16.msra.mxu0 %v5155
    %7742 = vmatpush.bf16.msra.mxu0 %v5147
    %7743 = vmatpush.bf16.msra.mxu0 %v5139
    %7744 = vmatpush.bf16.msra.mxu0 %v5131
    %7745 = vmatpush.bf16.msra.mxu0 %v5123
    %7746 = vmatpush.bf16.msra.mxu0 %v5115
    %7747 = vmatpush.bf16.msra.mxu0 %v5107
    %7748 = vmatpush.bf16.msra.mxu0 %v5099
    %7749 = vmatmul.bf16.gmra.mxu0 %v177
    %v7750 = vpop.f32.mrf.mxu0
    %v7751 = vadd.f32 %v7737, %v7750
    %v7752 = vpop.f32.mrf.mxu0
    %v7753 = vadd.f32 %v7739, %v7752
    %7754 = vdwg.mxu0
    %7755 = vmatpush.bf16.msra.mxu0 0
    %7756 = vmatpush.bf16.msra.mxu0 0
    %7757 = vmatpush.bf16.msra.mxu0 0
    %7758 = vmatpush.bf16.msra.mxu0 %v5195
    %7759 = vmatpush.bf16.msra.mxu0 %v5187
    %7760 = vmatpush.bf16.msra.mxu0 %v5179
    %7761 = vmatpush.bf16.msra.mxu0 %v5171
    %7762 = vmatpush.bf16.msra.mxu0 %v5163
    %7763 = vmatmul.bf16.gmra.mxu0 %v6199
    %v7764 = vpop.f32.mrf.mxu0
    %v7765 = vadd.f32 %v7751, %v7764
    %v7766 = vpop.f32.mrf.mxu0
    %v7767 = vadd.f32 %v7753, %v7766
    %7768 = vdwg.mxu0
    %7769 = vmatpush.bf16.msra.mxu0 %v4260
    %7770 = vmatpush.bf16.msra.mxu0 %v4252
    %7771 = vmatpush.bf16.msra.mxu0 %v4244
    %7772 = vmatpush.bf16.msra.mxu0 %v4236
    %7773 = vmatpush.bf16.msra.mxu0 %v4228
    %7774 = vmatpush.bf16.msra.mxu0 %v4220
    %7775 = vmatpush.bf16.msra.mxu0 %v4212
    %7776 = vmatpush.bf16.msra.mxu0 %v4204
    %7777 = vmatmul.bf16.gmra.mxu0 %v163
    %v7778 = vpop.f32.mrf.mxu0
    %v7779 = vadd.f32 %v1188, %v7778
    %v7780 = vpop.f32.mrf.mxu0
    %v7781 = vadd.f32 %v1188, %v7780
    %7782 = vdwg.mxu0
    %7783 = vmatpush.bf16.msra.mxu0 %v4324
    %7784 = vmatpush.bf16.msra.mxu0 %v4316
    %7785 = vmatpush.bf16.msra.mxu0 %v4308
    %7786 = vmatpush.bf16.msra.mxu0 %v4300
    %7787 = vmatpush.bf16.msra.mxu0 %v4292
    %7788 = vmatpush.bf16.msra.mxu0 %v4284
    %7789 = vmatpush.bf16.msra.mxu0 %v4276
    %7790 = vmatpush.bf16.msra.mxu0 %v4268
    %7791 = vmatmul.bf16.gmra.mxu0 %v164
    %v7792 = vpop.f32.mrf.mxu0
    %v7793 = vadd.f32 %v7779, %v7792
    %v7794 = vpop.f32.mrf.mxu0
    %v7795 = vadd.f32 %v7781, %v7794
    %7796 = vdwg.mxu0
    %7797 = vmatpush.bf16.msra.mxu0 %v4388
    %7798 = vmatpush.bf16.msra.mxu0 %v4380
    %7799 = vmatpush.bf16.msra.mxu0 %v4372
    %7800 = vmatpush.bf16.msra.mxu0 %v4364
    %7801 = vmatpush.bf16.msra.mxu0 %v4356
    %7802 = vmatpush.bf16.msra.mxu0 %v4348
    %7803 = vmatpush.bf16.msra.mxu0 %v4340
    %7804 = vmatpush.bf16.msra.mxu0 %v4332
    %7805 = vmatmul.bf16.gmra.mxu0 %v165
    %v7806 = vpop.f32.mrf.mxu0
    %v7807 = vadd.f32 %v7793, %v7806
    %v7808 = vpop.f32.mrf.mxu0
    %v7809 = vadd.f32 %v7795, %v7808
    %7810 = vdwg.mxu0
    %7811 = vmatpush.bf16.msra.mxu0 %v4452
    %7812 = vmatpush.bf16.msra.mxu0 %v4444
    %7813 = vmatpush.bf16.msra.mxu0 %v4436
    %7814 = vmatpush.bf16.msra.mxu0 %v4428
    %7815 = vmatpush.bf16.msra.mxu0 %v4420
    %7816 = vmatpush.bf16.msra.mxu0 %v4412
    %7817 = vmatpush.bf16.msra.mxu0 %v4404
    %7818 = vmatpush.bf16.msra.mxu0 %v4396
    %7819 = vmatmul.bf16.gmra.mxu0 %v166
    %v7820 = vpop.f32.mrf.mxu0
    %v7821 = vadd.f32 %v7807, %v7820
    %v7822 = vpop.f32.mrf.mxu0
    %v7823 = vadd.f32 %v7809, %v7822
    %7824 = vdwg.mxu0
    %7825 = vmatpush.bf16.msra.mxu0 %v4516
    %7826 = vmatpush.bf16.msra.mxu0 %v4508
    %7827 = vmatpush.bf16.msra.mxu0 %v4500
    %7828 = vmatpush.bf16.msra.mxu0 %v4492
    %7829 = vmatpush.bf16.msra.mxu0 %v4484
    %7830 = vmatpush.bf16.msra.mxu0 %v4476
    %7831 = vmatpush.bf16.msra.mxu0 %v4468
    %7832 = vmatpush.bf16.msra.mxu0 %v4460
    %7833 = vmatmul.bf16.gmra.mxu0 %v167
    %v7834 = vpop.f32.mrf.mxu0
    %v7835 = vadd.f32 %v7821, %v7834
    %v7836 = vpop.f32.mrf.mxu0
    %v7837 = vadd.f32 %v7823, %v7836
    %7838 = vdwg.mxu0
    %7839 = vmatpush.bf16.msra.mxu0 %v4580
    %7840 = vmatpush.bf16.msra.mxu0 %v4572
    %7841 = vmatpush.bf16.msra.mxu0 %v4564
    %7842 = vmatpush.bf16.msra.mxu0 %v4556
    %7843 = vmatpush.bf16.msra.mxu0 %v4548
    %7844 = vmatpush.bf16.msra.mxu0 %v4540
    %7845 = vmatpush.bf16.msra.mxu0 %v4532
    %7846 = vmatpush.bf16.msra.mxu0 %v4524
    %7847 = vmatmul.bf16.gmra.mxu0 %v168
    %v7848 = vpop.f32.mrf.mxu0
    %v7849 = vadd.f32 %v7835, %v7848
    %v7850 = vpop.f32.mrf.mxu0
    %v7851 = vadd.f32 %v7837, %v7850
    %7852 = vdwg.mxu0
    %7853 = vmatpush.bf16.msra.mxu0 %v4644
    %7854 = vmatpush.bf16.msra.mxu0 %v4636
    %7855 = vmatpush.bf16.msra.mxu0 %v4628
    %7856 = vmatpush.bf16.msra.mxu0 %v4620
    %7857 = vmatpush.bf16.msra.mxu0 %v4612
    %7858 = vmatpush.bf16.msra.mxu0 %v4604
    %7859 = vmatpush.bf16.msra.mxu0 %v4596
    %7860 = vmatpush.bf16.msra.mxu0 %v4588
    %7861 = vmatmul.bf16.gmra.mxu0 %v169
    %v7862 = vpop.f32.mrf.mxu0
    %v7863 = vadd.f32 %v7849, %v7862
    %v7864 = vpop.f32.mrf.mxu0
    %v7865 = vadd.f32 %v7851, %v7864
    %7866 = vdwg.mxu0
    %7867 = vmatpush.bf16.msra.mxu0 %v4708
    %7868 = vmatpush.bf16.msra.mxu0 %v4700
    %7869 = vmatpush.bf16.msra.mxu0 %v4692
    %7870 = vmatpush.bf16.msra.mxu0 %v4684
    %7871 = vmatpush.bf16.msra.mxu0 %v4676
    %7872 = vmatpush.bf16.msra.mxu0 %v4668
    %7873 = vmatpush.bf16.msra.mxu0 %v4660
    %7874 = vmatpush.bf16.msra.mxu0 %v4652
    %7875 = vmatmul.bf16.gmra.mxu0 %v170
    %v7876 = vpop.f32.mrf.mxu0
    %v7877 = vadd.f32 %v7863, %v7876
    %v7878 = vpop.f32.mrf.mxu0
    %v7879 = vadd.f32 %v7865, %v7878
    %7880 = vdwg.mxu0
    %7881 = vmatpush.bf16.msra.mxu0 %v4772
    %7882 = vmatpush.bf16.msra.mxu0 %v4764
    %7883 = vmatpush.bf16.msra.mxu0 %v4756
    %7884 = vmatpush.bf16.msra.mxu0 %v4748
    %7885 = vmatpush.bf16.msra.mxu0 %v4740
    %7886 = vmatpush.bf16.msra.mxu0 %v4732
    %7887 = vmatpush.bf16.msra.mxu0 %v4724
    %7888 = vmatpush.bf16.msra.mxu0 %v4716
    %7889 = vmatmul.bf16.gmra.mxu0 %v171
    %v7890 = vpop.f32.mrf.mxu0
    %v7891 = vadd.f32 %v7877, %v7890
    %v7892 = vpop.f32.mrf.mxu0
    %v7893 = vadd.f32 %v7879, %v7892
    %7894 = vdwg.mxu0
    %7895 = vmatpush.bf16.msra.mxu0 %v4836
    %7896 = vmatpush.bf16.msra.mxu0 %v4828
    %7897 = vmatpush.bf16.msra.mxu0 %v4820
    %7898 = vmatpush.bf16.msra.mxu0 %v4812
    %7899 = vmatpush.bf16.msra.mxu0 %v4804
    %7900 = vmatpush.bf16.msra.mxu0 %v4796
    %7901 = vmatpush.bf16.msra.mxu0 %v4788
    %7902 = vmatpush.bf16.msra.mxu0 %v4780
    %7903 = vmatmul.bf16.gmra.mxu0 %v172
    %v7904 = vpop.f32.mrf.mxu0
    %v7905 = vadd.f32 %v7891, %v7904
    %v7906 = vpop.f32.mrf.mxu0
    %v7907 = vadd.f32 %v7893, %v7906
    %7908 = vdwg.mxu0
    %7909 = vmatpush.bf16.msra.mxu0 %v4900
    %7910 = vmatpush.bf16.msra.mxu0 %v4892
    %7911 = vmatpush.bf16.msra.mxu0 %v4884
    %7912 = vmatpush.bf16.msra.mxu0 %v4876
    %7913 = vmatpush.bf16.msra.mxu0 %v4868
    %7914 = vmatpush.bf16.msra.mxu0 %v4860
    %7915 = vmatpush.bf16.msra.mxu0 %v4852
    %7916 = vmatpush.bf16.msra.mxu0 %v4844
    %7917 = vmatmul.bf16.gmra.mxu0 %v173
    %v7918 = vpop.f32.mrf.mxu0
    %v7919 = vadd.f32 %v7905, %v7918
    %v7920 = vpop.f32.mrf.mxu0
    %v7921 = vadd.f32 %v7907, %v7920
    %7922 = vdwg.mxu0
    %7923 = vmatpush.bf16.msra.mxu0 %v4964
    %7924 = vmatpush.bf16.msra.mxu0 %v4956
    %7925 = vmatpush.bf16.msra.mxu0 %v4948
    %7926 = vmatpush.bf16.msra.mxu0 %v4940
    %7927 = vmatpush.bf16.msra.mxu0 %v4932
    %7928 = vmatpush.bf16.msra.mxu0 %v4924
    %7929 = vmatpush.bf16.msra.mxu0 %v4916
    %7930 = vmatpush.bf16.msra.mxu0 %v4908
    %7931 = vmatmul.bf16.gmra.mxu0 %v174
    %v7932 = vpop.f32.mrf.mxu0
    %v7933 = vadd.f32 %v7919, %v7932
    %v7934 = vpop.f32.mrf.mxu0
    %v7935 = vadd.f32 %v7921, %v7934
    %7936 = vdwg.mxu0
    %7937 = vmatpush.bf16.msra.mxu0 %v5028
    %7938 = vmatpush.bf16.msra.mxu0 %v5020
    %7939 = vmatpush.bf16.msra.mxu0 %v5012
    %7940 = vmatpush.bf16.msra.mxu0 %v5004
    %7941 = vmatpush.bf16.msra.mxu0 %v4996
    %7942 = vmatpush.bf16.msra.mxu0 %v4988
    %7943 = vmatpush.bf16.msra.mxu0 %v4980
    %7944 = vmatpush.bf16.msra.mxu0 %v4972
    %7945 = vmatmul.bf16.gmra.mxu0 %v175
    %v7946 = vpop.f32.mrf.mxu0
    %v7947 = vadd.f32 %v7933, %v7946
    %v7948 = vpop.f32.mrf.mxu0
    %v7949 = vadd.f32 %v7935, %v7948
    %7950 = vdwg.mxu0
    %7951 = vmatpush.bf16.msra.mxu0 %v5092
    %7952 = vmatpush.bf16.msra.mxu0 %v5084
    %7953 = vmatpush.bf16.msra.mxu0 %v5076
    %7954 = vmatpush.bf16.msra.mxu0 %v5068
    %7955 = vmatpush.bf16.msra.mxu0 %v5060
    %7956 = vmatpush.bf16.msra.mxu0 %v5052
    %7957 = vmatpush.bf16.msra.mxu0 %v5044
    %7958 = vmatpush.bf16.msra.mxu0 %v5036
    %7959 = vmatmul.bf16.gmra.mxu0 %v176
    %v7960 = vpop.f32.mrf.mxu0
    %v7961 = vadd.f32 %v7947, %v7960
    %v7962 = vpop.f32.mrf.mxu0
    %v7963 = vadd.f32 %v7949, %v7962
    %7964 = vdwg.mxu0
    %7965 = vmatpush.bf16.msra.mxu0 %v5156
    %7966 = vmatpush.bf16.msra.mxu0 %v5148
    %7967 = vmatpush.bf16.msra.mxu0 %v5140
    %7968 = vmatpush.bf16.msra.mxu0 %v5132
    %7969 = vmatpush.bf16.msra.mxu0 %v5124
    %7970 = vmatpush.bf16.msra.mxu0 %v5116
    %7971 = vmatpush.bf16.msra.mxu0 %v5108
    %7972 = vmatpush.bf16.msra.mxu0 %v5100
    %7973 = vmatmul.bf16.gmra.mxu0 %v177
    %v7974 = vpop.f32.mrf.mxu0
    %v7975 = vadd.f32 %v7961, %v7974
    %v7976 = vpop.f32.mrf.mxu0
    %v7977 = vadd.f32 %v7963, %v7976
    %7978 = vdwg.mxu0
    %7979 = vmatpush.bf16.msra.mxu0 0
    %7980 = vmatpush.bf16.msra.mxu0 0
    %7981 = vmatpush.bf16.msra.mxu0 0
    %7982 = vmatpush.bf16.msra.mxu0 %v5196
    %7983 = vmatpush.bf16.msra.mxu0 %v5188
    %7984 = vmatpush.bf16.msra.mxu0 %v5180
    %7985 = vmatpush.bf16.msra.mxu0 %v5172
    %7986 = vmatpush.bf16.msra.mxu0 %v5164
    %7987 = vmatmul.bf16.gmra.mxu0 %v6199
    %v7988 = vpop.f32.mrf.mxu0
    %v7989 = vadd.f32 %v7975, %v7988
    %v7990 = vpop.f32.mrf.mxu0
    %v7991 = vadd.f32 %v7977, %v7990
    %7992 = vdwg.mxu0
    %v7993 = vmul.f32 %v6421, 0.5
    %v7994 = vmul.f32 %v6645, 0.5
    %v7995 = vmul.f32 %v6869, 0.5
    %v7996 = vmul.f32 %v7093, 0.5
    %v7997 = vmul.f32 %v7317, 0.5
    %v7998 = vmul.f32 %v7541, 0.5
    %v7999 = vmul.f32 %v7765, 0.5
    %v8000 = vmul.f32 %v7989, 0.5
    %v8001 = vmul.f32 %v6423, 0.5
    %v8002 = vmul.f32 %v6647, 0.5
    %v8003 = vmul.f32 %v6871, 0.5
    %v8004 = vmul.f32 %v7095, 0.5
    %v8005 = vmul.f32 %v7319, 0.5
    %v8006 = vmul.f32 %v7543, 0.5
    %v8007 = vmul.f32 %v7767, 0.5
    %v8008 = vmul.f32 %v7991, 0.5
    %v8009 = vtanh.pop %v7993
    %v8010 = vtanh.pop %v7994
    %v8011 = vtanh.pop %v7995
    %v8012 = vtanh.pop %v7996
    %v8013 = vtanh.pop %v7997
    %v8014 = vtanh.pop %v7998
    %v8015 = vtanh.pop %v7999
    %v8016 = vtanh.pop %v8000
    %v8017 = vtanh.pop %v8001
    %v8018 = vtanh.pop %v8002
    %v8019 = vtanh.pop %v8003
    %v8020 = vtanh.pop %v8004
    %v8021 = vtanh.pop %v8005
    %v8022 = vtanh.pop %v8006
    %v8023 = vtanh.pop %v8007
    %v8024 = vtanh.pop %v8008
    %v8025 = vmul.f32 %v8009, 0.5
    %v8026 = vmul.f32 %v8010, 0.5
    %v8027 = vmul.f32 %v8011, 0.5
    %v8028 = vmul.f32 %v8012, 0.5
    %v8029 = vmul.f32 %v8013, 0.5
    %v8030 = vmul.f32 %v8014, 0.5
    %v8031 = vmul.f32 %v8015, 0.5
    %v8032 = vmul.f32 %v8016, 0.5
    %v8033 = vmul.f32 %v8017, 0.5
    %v8034 = vmul.f32 %v8018, 0.5
    %v8035 = vmul.f32 %v8019, 0.5
    %v8036 = vmul.f32 %v8020, 0.5
    %v8037 = vmul.f32 %v8021, 0.5
    %v8038 = vmul.f32 %v8022, 0.5
    %v8039 = vmul.f32 %v8023, 0.5
    %v8040 = vmul.f32 %v8024, 0.5
    %v8041 = vadd.f32 %v8025, 0.5
    %v8042 = vadd.f32 %v8026, 0.5
    %v8043 = vadd.f32 %v8027, 0.5
    %v8044 = vadd.f32 %v8028, 0.5
    %v8045 = vadd.f32 %v8029, 0.5
    %v8046 = vadd.f32 %v8030, 0.5
    %v8047 = vadd.f32 %v8031, 0.5
    %v8048 = vadd.f32 %v8032, 0.5
    %v8049 = vadd.f32 %v8033, 0.5
    %v8050 = vadd.f32 %v8034, 0.5
    %v8051 = vadd.f32 %v8035, 0.5
    %v8052 = vadd.f32 %v8036, 0.5
    %v8053 = vadd.f32 %v8037, 0.5
    %v8054 = vadd.f32 %v8038, 0.5
    %v8055 = vadd.f32 %v8039, 0.5
    %v8056 = vadd.f32 %v8040, 0.5
    %v8057 = vmul.f32 %v6421, %v8041
    %v8058 = vmul.f32 %v6645, %v8042
    %v8059 = vmul.f32 %v6869, %v8043
    %v8060 = vmul.f32 %v7093, %v8044
    %v8061 = vmul.f32 %v7317, %v8045
    %v8062 = vmul.f32 %v7541, %v8046
    %v8063 = vmul.f32 %v7765, %v8047
    %v8064 = vmul.f32 %v7989, %v8048
    %v8065 = vmul.f32 %v6423, %v8049
    %v8066 = vmul.f32 %v6647, %v8050
    %v8067 = vmul.f32 %v6871, %v8051
    %v8068 = vmul.f32 %v7095, %v8052
    %v8069 = vmul.f32 %v7319, %v8053
    %v8070 = vmul.f32 %v7543, %v8054
    %v8071 = vmul.f32 %v7767, %v8055
    %v8072 = vmul.f32 %v7991, %v8056
    %v8073 = vpack.c.bf16 %v8065, %v8057
    %v8074 = vpack.c.bf16 %v8066, %v8058
    %v8075 = vpack.c.bf16 %v8067, %v8059
    %v8076 = vpack.c.bf16 %v8068, %v8060
    %v8077 = vpack.c.bf16 %v8069, %v8061
    %v8078 = vpack.c.bf16 %v8070, %v8062
    %v8079 = vpack.c.bf16 %v8071, %v8063
    %v8080 = vpack.c.bf16 %v8072, %v8064
    %v8081 = vld [vmem:[#allocation8] sm:$0xff]
    %v8082 = vld [vmem:[#allocation8 + $0x8] sm:$0xff]
    %v8083 = vld [vmem:[#allocation8 + $0x10] sm:$0xff]
    %v8084 = vld [vmem:[#allocation8 + $0x18] sm:$0xff]
    %v8085 = vld [vmem:[#allocation8 + $0x20] sm:$0xff]
    %v8086 = vld [vmem:[#allocation8 + $0x28] sm:$0xff]
    %v8087 = vld [vmem:[#allocation8 + $0x30] sm:$0xff]
    %v8088 = vld [vmem:[#allocation8 + $0x38] sm:$0xff]
    %v8089 = vld [vmem:[#allocation8 + $0x40] sm:$0xff]
    %v8090 = vld [vmem:[#allocation8 + $0x48] sm:$0xff]
    %v8091 = vld [vmem:[#allocation8 + $0x50] sm:$0xff]
    %v8092 = vld [vmem:[#allocation8 + $0x58] sm:$0xff]
    %v8093 = vld [vmem:[#allocation8 + $0x60] sm:$0xff]
    %v8094 = vld [vmem:[#allocation8 + $0x68] sm:$0xff]
    %v8095 = vld [vmem:[#allocation8 + $0x70] sm:$0xff]
    %v8096 = vld [vmem:[#allocation8 + $0x78] sm:$0xff]
    %v8097 = vld [vmem:[#allocation8 + $0x80] sm:$0xff]
    %v8098 = vld [vmem:[#allocation8 + $0x88] sm:$0xff]
    %v8099 = vld [vmem:[#allocation8 + $0x90] sm:$0xff]
    %v8100 = vld [vmem:[#allocation8 + $0x98] sm:$0xff]
    %v8101 = vld [vmem:[#allocation8 + $0xa0] sm:$0xff]
    %v8102 = vld [vmem:[#allocation8 + $0xa8] sm:$0xff]
    %v8103 = vld [vmem:[#allocation8 + $0xb0] sm:$0xff]
    %v8104 = vld [vmem:[#allocation8 + $0xb8] sm:$0xff]
    %v8105 = vld [vmem:[#allocation8 + $0xc0] sm:$0xff]
    %v8106 = vld [vmem:[#allocation8 + $0xc8] sm:$0xff]
    %v8107 = vld [vmem:[#allocation8 + $0xd0] sm:$0xff]
    %v8108 = vld [vmem:[#allocation8 + $0xd8] sm:$0xff]
    %v8109 = vld [vmem:[#allocation8 + $0xe0] sm:$0xff]
    %v8110 = vld [vmem:[#allocation8 + $0xe8] sm:$0xff]
    %v8111 = vld [vmem:[#allocation8 + $0xf0] sm:$0xff]
    %v8112 = vld [vmem:[#allocation8 + $0xf8] sm:$0xff]
    %v8113 = vld [vmem:[#allocation8 + $0x100] sm:$0xff]
    %v8114 = vld [vmem:[#allocation8 + $0x108] sm:$0xff]
    %v8115 = vld [vmem:[#allocation8 + $0x110] sm:$0xff]
    %v8116 = vld [vmem:[#allocation8 + $0x118] sm:$0xff]
    %v8117 = vld [vmem:[#allocation8 + $0x120] sm:$0xff]
    %v8118 = vld [vmem:[#allocation8 + $0x128] sm:$0xff]
    %v8119 = vld [vmem:[#allocation8 + $0x130] sm:$0xff]
    %v8120 = vld [vmem:[#allocation8 + $0x138] sm:$0xff]
    %v8121 = vld [vmem:[#allocation8 + $0x140] sm:$0xff]
    %v8122 = vld [vmem:[#allocation8 + $0x148] sm:$0xff]
    %v8123 = vld [vmem:[#allocation8 + $0x150] sm:$0xff]
    %v8124 = vld [vmem:[#allocation8 + $0x158] sm:$0xff]
    %v8125 = vld [vmem:[#allocation8 + $0x160] sm:$0xff]
    %v8126 = vld [vmem:[#allocation8 + $0x168] sm:$0xff]
    %v8127 = vld [vmem:[#allocation8 + $0x170] sm:$0xff]
    %v8128 = vld [vmem:[#allocation8 + $0x178] sm:$0xff]
    %v8129 = vld [vmem:[#allocation8 + $0x180] sm:$0xff]
    %v8130 = vld [vmem:[#allocation8 + $0x188] sm:$0xff]
    %v8131 = vld [vmem:[#allocation8 + $0x190] sm:$0xff]
    %v8132 = vld [vmem:[#allocation8 + $0x198] sm:$0xff]
    %v8133 = vld [vmem:[#allocation8 + $0x1a0] sm:$0xff]
    %v8134 = vld [vmem:[#allocation8 + $0x1a8] sm:$0xff]
    %v8135 = vld [vmem:[#allocation8 + $0x1b0] sm:$0xff]
    %v8136 = vld [vmem:[#allocation8 + $0x1b8] sm:$0xff]
    %v8137 = vld [vmem:[#allocation8 + $0x1c0] sm:$0xff]
    %v8138 = vld [vmem:[#allocation8 + $0x1c8] sm:$0xff]
    %v8139 = vld [vmem:[#allocation8 + $0x1d0] sm:$0xff]
    %v8140 = vld [vmem:[#allocation8 + $0x1d8] sm:$0xff]
    %v8141 = vld [vmem:[#allocation8 + $0x1e0] sm:$0xff]
    %v8142 = vld [vmem:[#allocation8 + $0x1e8] sm:$0xff]
    %v8143 = vld [vmem:[#allocation8 + $0x1f0] sm:$0xff]
    %v8144 = vld [vmem:[#allocation8 + $0x1f8] sm:$0xff]
    %v8145 = vld [vmem:[#allocation8 + $0x200] sm:$0xff]
    %v8146 = vld [vmem:[#allocation8 + $0x208] sm:$0xff]
    %v8147 = vld [vmem:[#allocation8 + $0x210] sm:$0xff]
    %v8148 = vld [vmem:[#allocation8 + $0x218] sm:$0xff]
    %v8149 = vld [vmem:[#allocation8 + $0x220] sm:$0xff]
    %v8150 = vld [vmem:[#allocation8 + $0x228] sm:$0xff]
    %v8151 = vld [vmem:[#allocation8 + $0x230] sm:$0xff]
    %v8152 = vld [vmem:[#allocation8 + $0x238] sm:$0xff]
    %v8153 = vld [vmem:[#allocation8 + $0x240] sm:$0xff]
    %v8154 = vld [vmem:[#allocation8 + $0x248] sm:$0xff]
    %v8155 = vld [vmem:[#allocation8 + $0x250] sm:$0xff]
    %v8156 = vld [vmem:[#allocation8 + $0x258] sm:$0xff]
    %v8157 = vld [vmem:[#allocation8 + $0x260] sm:$0xff]
    %v8158 = vld [vmem:[#allocation8 + $0x268] sm:$0xff]
    %v8159 = vld [vmem:[#allocation8 + $0x270] sm:$0xff]
    %v8160 = vld [vmem:[#allocation8 + $0x278] sm:$0xff]
    %v8161 = vld [vmem:[#allocation8 + $0x280] sm:$0xff]
    %v8162 = vld [vmem:[#allocation8 + $0x288] sm:$0xff]
    %v8163 = vld [vmem:[#allocation8 + $0x290] sm:$0xff]
    %v8164 = vld [vmem:[#allocation8 + $0x298] sm:$0xff]
    %v8165 = vld [vmem:[#allocation8 + $0x2a0] sm:$0xff]
    %v8166 = vld [vmem:[#allocation8 + $0x2a8] sm:$0xff]
    %v8167 = vld [vmem:[#allocation8 + $0x2b0] sm:$0xff]
    %v8168 = vld [vmem:[#allocation8 + $0x2b8] sm:$0xff]
    %v8169 = vld [vmem:[#allocation8 + $0x2c0] sm:$0xff]
    %v8170 = vld [vmem:[#allocation8 + $0x2c8] sm:$0xff]
    %v8171 = vld [vmem:[#allocation8 + $0x2d0] sm:$0xff]
    %v8172 = vld [vmem:[#allocation8 + $0x2d8] sm:$0xff]
    %v8173 = vld [vmem:[#allocation8 + $0x2e0] sm:$0xff]
    %v8174 = vld [vmem:[#allocation8 + $0x2e8] sm:$0xff]
    %v8175 = vld [vmem:[#allocation8 + $0x2f0] sm:$0xff]
    %v8176 = vld [vmem:[#allocation8 + $0x2f8] sm:$0xff]
    %v8177 = vld [vmem:[#allocation8 + $0x300] sm:$0xff]
    %v8178 = vld [vmem:[#allocation8 + $0x308] sm:$0xff]
    %v8179 = vld [vmem:[#allocation8 + $0x310] sm:$0xff]
    %v8180 = vld [vmem:[#allocation8 + $0x318] sm:$0xff]
    %v8181 = vld [vmem:[#allocation8 + $0x320] sm:$0xff]
    %v8182 = vld [vmem:[#allocation8 + $0x328] sm:$0xff]
    %v8183 = vld [vmem:[#allocation8 + $0x330] sm:$0xff]
    %v8184 = vld [vmem:[#allocation8 + $0x338] sm:$0xff]
    %v8185 = vld [vmem:[#allocation8 + $0x340] sm:$0xff]
    %v8186 = vld [vmem:[#allocation8 + $0x348] sm:$0xff]
    %v8187 = vld [vmem:[#allocation8 + $0x350] sm:$0xff]
    %v8188 = vld [vmem:[#allocation8 + $0x358] sm:$0xff]
    %v8189 = vld [vmem:[#allocation8 + $0x360] sm:$0xff]
    %v8190 = vld [vmem:[#allocation8 + $0x368] sm:$0xff]
    %v8191 = vld [vmem:[#allocation8 + $0x370] sm:$0xff]
    %v8192 = vld [vmem:[#allocation8 + $0x378] sm:$0xff]
    %v8193 = vld [vmem:[#allocation8 + $0x380] sm:$0xff]
    %v8194 = vld [vmem:[#allocation8 + $0x388] sm:$0xff]
    %v8195 = vld [vmem:[#allocation8 + $0x390] sm:$0xff]
    %v8196 = vld [vmem:[#allocation8 + $0x398] sm:$0xff]
    %v8197 = vld [vmem:[#allocation8 + $0x3a0] sm:$0xff]
    %v8198 = vld [vmem:[#allocation8 + $0x3a8] sm:$0xff]
    %v8199 = vld [vmem:[#allocation8 + $0x3b0] sm:$0xff]
    %v8200 = vld [vmem:[#allocation8 + $0x3b8] sm:$0xff]
    %v8201 = vld [vmem:[#allocation8 + $0x3c0] sm:$0xff]
    %v8202 = vld [vmem:[#allocation8 + $0x3c8] sm:$0xff]
    %v8203 = vld [vmem:[#allocation8 + $0x3d0] sm:$0xff]
    %v8204 = vld [vmem:[#allocation8 + $0x3d8] sm:$0xff]
    %v8205 = vld [vmem:[#allocation8 + $0x3e0] sm:$0xff]
    %v8206 = vld [vmem:[#allocation8 + $0x3e8] sm:$0xff]
    %v8207 = vld [vmem:[#allocation8 + $0x3f0] sm:$0xff]
    %v8208 = vld [vmem:[#allocation8 + $0x3f8] sm:$0xff]
    %v8209 = vld [vmem:[#allocation8 + $0x400] sm:$0xff]
    %v8210 = vld [vmem:[#allocation8 + $0x408] sm:$0xff]
    %v8211 = vld [vmem:[#allocation8 + $0x410] sm:$0xff]
    %v8212 = vld [vmem:[#allocation8 + $0x418] sm:$0xff]
    %v8213 = vld [vmem:[#allocation8 + $0x420] sm:$0xff]
    %v8214 = vld [vmem:[#allocation8 + $0x428] sm:$0xff]
    %v8215 = vld [vmem:[#allocation8 + $0x430] sm:$0xff]
    %v8216 = vld [vmem:[#allocation8 + $0x438] sm:$0xff]
    %v8217 = vld [vmem:[#allocation8 + $0x440] sm:$0xff]
    %v8218 = vld [vmem:[#allocation8 + $0x448] sm:$0xff]
    %v8219 = vld [vmem:[#allocation8 + $0x450] sm:$0xff]
    %v8220 = vld [vmem:[#allocation8 + $0x458] sm:$0xff]
    %v8221 = vld [vmem:[#allocation8 + $0x460] sm:$0xff]
    %v8222 = vld [vmem:[#allocation8 + $0x468] sm:$0xff]
    %v8223 = vld [vmem:[#allocation8 + $0x470] sm:$0xff]
    %v8224 = vld [vmem:[#allocation8 + $0x478] sm:$0xff]
    %v8225 = vld [vmem:[#allocation8 + $0x480] sm:$0xff]
    %v8226 = vld [vmem:[#allocation8 + $0x488] sm:$0xff]
    %v8227 = vld [vmem:[#allocation8 + $0x490] sm:$0xff]
    %v8228 = vld [vmem:[#allocation8 + $0x498] sm:$0xff]
    %v8229 = vld [vmem:[#allocation8 + $0x4a0] sm:$0xff]
    %v8230 = vld [vmem:[#allocation8 + $0x4a8] sm:$0xff]
    %v8231 = vld [vmem:[#allocation8 + $0x4b0] sm:$0xff]
    %v8232 = vld [vmem:[#allocation8 + $0x4b8] sm:$0xff]
    %v8233 = vld [vmem:[#allocation8 + $0x4c0] sm:$0xff]
    %v8234 = vld [vmem:[#allocation8 + $0x4c8] sm:$0xff]
    %v8235 = vld [vmem:[#allocation8 + $0x4d0] sm:$0xff]
    %v8236 = vld [vmem:[#allocation8 + $0x4d8] sm:$0xff]
    %v8237 = vld [vmem:[#allocation8 + $0x4e0] sm:$0xff]
    %v8238 = vld [vmem:[#allocation8 + $0x4e8] sm:$0xff]
    %v8239 = vld [vmem:[#allocation8 + $0x4f0] sm:$0xff]
    %v8240 = vld [vmem:[#allocation8 + $0x4f8] sm:$0xff]
    %v8241 = vld [vmem:[#allocation8 + $0x500] sm:$0xff]
    %v8242 = vld [vmem:[#allocation8 + $0x508] sm:$0xff]
    %v8243 = vld [vmem:[#allocation8 + $0x510] sm:$0xff]
    %v8244 = vld [vmem:[#allocation8 + $0x518] sm:$0xff]
    %v8245 = vld [vmem:[#allocation8 + $0x520] sm:$0xff]
    %v8246 = vld [vmem:[#allocation8 + $0x528] sm:$0xff]
    %v8247 = vld [vmem:[#allocation8 + $0x530] sm:$0xff]
    %v8248 = vld [vmem:[#allocation8 + $0x538] sm:$0xff]
    %v8249 = vld [vmem:[#allocation8 + $0x540] sm:$0xff]
    %v8250 = vld [vmem:[#allocation8 + $0x548] sm:$0xff]
    %v8251 = vld [vmem:[#allocation8 + $0x550] sm:$0xff]
    %v8252 = vld [vmem:[#allocation8 + $0x558] sm:$0xff]
    %v8253 = vld [vmem:[#allocation8 + $0x560] sm:$0xff]
    %v8254 = vld [vmem:[#allocation8 + $0x568] sm:$0xff]
    %v8255 = vld [vmem:[#allocation8 + $0x570] sm:$0xff]
    %v8256 = vld [vmem:[#allocation8 + $0x578] sm:$0xff]
    %v8257 = vld [vmem:[#allocation8 + $0x580] sm:$0xff]
    %v8258 = vld [vmem:[#allocation8 + $0x588] sm:$0xff]
    %v8259 = vld [vmem:[#allocation8 + $0x590] sm:$0xff]
    %v8260 = vld [vmem:[#allocation8 + $0x598] sm:$0xff]
    %v8261 = vld [vmem:[#allocation8 + $0x5a0] sm:$0xff]
    %v8262 = vld [vmem:[#allocation8 + $0x5a8] sm:$0xff]
    %v8263 = vld [vmem:[#allocation8 + $0x5b0] sm:$0xff]
    %v8264 = vld [vmem:[#allocation8 + $0x5b8] sm:$0xff]
    %v8265 = vld [vmem:[#allocation8 + $0x5c0] sm:$0xff]
    %v8266 = vld [vmem:[#allocation8 + $0x5c8] sm:$0xff]
    %v8267 = vld [vmem:[#allocation8 + $0x5d0] sm:$0xff]
    %v8268 = vld [vmem:[#allocation8 + $0x5d8] sm:$0xff]
    %v8269 = vld [vmem:[#allocation8 + $0x5e0] sm:$0xff]
    %v8270 = vld [vmem:[#allocation8 + $0x5e8] sm:$0xff]
    %v8271 = vld [vmem:[#allocation8 + $0x5f0] sm:$0xff]
    %v8272 = vld [vmem:[#allocation8 + $0x5f8] sm:$0xff]
    %v8273 = vld [vmem:[#allocation8 + $0x600] sm:$0xff]
    %v8274 = vld [vmem:[#allocation8 + $0x608] sm:$0xff]
    %v8275 = vld [vmem:[#allocation8 + $0x610] sm:$0xff]
    %v8276 = vld [vmem:[#allocation8 + $0x618] sm:$0xff]
    %v8277 = vld [vmem:[#allocation8 + $0x620] sm:$0xff]
    %v8278 = vld [vmem:[#allocation8 + $0x628] sm:$0xff]
    %v8279 = vld [vmem:[#allocation8 + $0x630] sm:$0xff]
    %v8280 = vld [vmem:[#allocation8 + $0x638] sm:$0xff]
    %v8281 = vld [vmem:[#allocation8 + $0x640] sm:$0xff]
    %v8282 = vld [vmem:[#allocation8 + $0x648] sm:$0xff]
    %v8283 = vld [vmem:[#allocation8 + $0x650] sm:$0xff]
    %v8284 = vld [vmem:[#allocation8 + $0x658] sm:$0xff]
    %v8285 = vld [vmem:[#allocation8 + $0x660] sm:$0xff]
    %v8286 = vld [vmem:[#allocation8 + $0x668] sm:$0xff]
    %v8287 = vld [vmem:[#allocation8 + $0x670] sm:$0xff]
    %v8288 = vld [vmem:[#allocation8 + $0x678] sm:$0xff]
    %v8289 = vld [vmem:[#allocation8 + $0x680] sm:$0xff]
    %v8290 = vld [vmem:[#allocation8 + $0x688] sm:$0xff]
    %v8291 = vld [vmem:[#allocation8 + $0x690] sm:$0xff]
    %v8292 = vld [vmem:[#allocation8 + $0x698] sm:$0xff]
    %v8293 = vld [vmem:[#allocation8 + $0x6a0] sm:$0xff]
    %v8294 = vld [vmem:[#allocation8 + $0x6a8] sm:$0xff]
    %v8295 = vld [vmem:[#allocation8 + $0x6b0] sm:$0xff]
    %v8296 = vld [vmem:[#allocation8 + $0x6b8] sm:$0xff]
    %v8297 = vld [vmem:[#allocation8 + $0x6c0] sm:$0xff]
    %v8298 = vld [vmem:[#allocation8 + $0x6c8] sm:$0xff]
    %v8299 = vld [vmem:[#allocation8 + $0x6d0] sm:$0xff]
    %v8300 = vld [vmem:[#allocation8 + $0x6d8] sm:$0xff]
    %v8301 = vld [vmem:[#allocation8 + $0x6e0] sm:$0xff]
    %v8302 = vld [vmem:[#allocation8 + $0x6e8] sm:$0xff]
    %v8303 = vld [vmem:[#allocation8 + $0x6f0] sm:$0xff]
    %v8304 = vld [vmem:[#allocation8 + $0x6f8] sm:$0xff]
    %v8305 = vld [vmem:[#allocation8 + $0x700] sm:$0xff]
    %v8306 = vld [vmem:[#allocation8 + $0x708] sm:$0xff]
    %v8307 = vld [vmem:[#allocation8 + $0x710] sm:$0xff]
    %v8308 = vld [vmem:[#allocation8 + $0x718] sm:$0xff]
    %v8309 = vld [vmem:[#allocation8 + $0x720] sm:$0xff]
    %v8310 = vld [vmem:[#allocation8 + $0x728] sm:$0xff]
    %v8311 = vld [vmem:[#allocation8 + $0x730] sm:$0xff]
    %v8312 = vld [vmem:[#allocation8 + $0x738] sm:$0xff]
    %v8313 = vld [vmem:[#allocation8 + $0x740] sm:$0xff]
    %v8314 = vld [vmem:[#allocation8 + $0x748] sm:$0xff]
    %v8315 = vld [vmem:[#allocation8 + $0x750] sm:$0xff]
    %v8316 = vld [vmem:[#allocation8 + $0x758] sm:$0xff]
    %v8317 = vld [vmem:[#allocation8 + $0x760] sm:$0xff]
    %v8318 = vld [vmem:[#allocation8 + $0x768] sm:$0xff]
    %v8319 = vld [vmem:[#allocation8 + $0x770] sm:$0xff]
    %v8320 = vld [vmem:[#allocation8 + $0x778] sm:$0xff]
    %v8321 = vld [vmem:[#allocation8 + $0x780] sm:$0xff]
    %v8322 = vld [vmem:[#allocation8 + $0x788] sm:$0xff]
    %v8323 = vld [vmem:[#allocation8 + $0x790] sm:$0xff]
    %v8324 = vld [vmem:[#allocation8 + $0x798] sm:$0xff]
    %v8325 = vld [vmem:[#allocation8 + $0x7a0] sm:$0xff]
    %v8326 = vld [vmem:[#allocation8 + $0x7a8] sm:$0xff]
    %v8327 = vld [vmem:[#allocation8 + $0x7b0] sm:$0xff]
    %v8328 = vld [vmem:[#allocation8 + $0x7b8] sm:$0xff]
    %v8329 = vld [vmem:[#allocation8 + $0x7c0] sm:$0xff]
    %v8330 = vld [vmem:[#allocation8 + $0x7c8] sm:$0xff]
    %v8331 = vld [vmem:[#allocation8 + $0x7d0] sm:$0xff]
    %v8332 = vld [vmem:[#allocation8 + $0x7d8] sm:$0xff]
    %v8333 = vld [vmem:[#allocation8 + $0x7e0] sm:$0xff]
    %v8334 = vld [vmem:[#allocation8 + $0x7e8] sm:$0xff]
    %v8335 = vld [vmem:[#allocation8 + $0x7f0] sm:$0xff]
    %v8336 = vld [vmem:[#allocation8 + $0x7f8] sm:$0xff]
    %v8337 = vld [vmem:[#allocation8 + $0x800] sm:$0xff]
    %v8338 = vld [vmem:[#allocation8 + $0x808] sm:$0xff]
    %v8339 = vld [vmem:[#allocation8 + $0x810] sm:$0xff]
    %v8340 = vld [vmem:[#allocation8 + $0x818] sm:$0xff]
    %v8341 = vld [vmem:[#allocation8 + $0x820] sm:$0xff]
    %v8342 = vld [vmem:[#allocation8 + $0x828] sm:$0xff]
    %v8343 = vld [vmem:[#allocation8 + $0x830] sm:$0xff]
    %v8344 = vld [vmem:[#allocation8 + $0x838] sm:$0xff]
    %v8345 = vld [vmem:[#allocation8 + $0x840] sm:$0xff]
    %v8346 = vld [vmem:[#allocation8 + $0x848] sm:$0xff]
    %v8347 = vld [vmem:[#allocation8 + $0x850] sm:$0xff]
    %v8348 = vld [vmem:[#allocation8 + $0x858] sm:$0xff]
    %v8349 = vld [vmem:[#allocation8 + $0x860] sm:$0xff]
    %v8350 = vld [vmem:[#allocation8 + $0x868] sm:$0xff]
    %v8351 = vld [vmem:[#allocation8 + $0x870] sm:$0xff]
    %v8352 = vld [vmem:[#allocation8 + $0x878] sm:$0xff]
    %v8353 = vld [vmem:[#allocation8 + $0x880] sm:$0xff]
    %v8354 = vld [vmem:[#allocation8 + $0x888] sm:$0xff]
    %v8355 = vld [vmem:[#allocation8 + $0x890] sm:$0xff]
    %v8356 = vld [vmem:[#allocation8 + $0x898] sm:$0xff]
    %v8357 = vld [vmem:[#allocation8 + $0x8a0] sm:$0xff]
    %v8358 = vld [vmem:[#allocation8 + $0x8a8] sm:$0xff]
    %v8359 = vld [vmem:[#allocation8 + $0x8b0] sm:$0xff]
    %v8360 = vld [vmem:[#allocation8 + $0x8b8] sm:$0xff]
    %v8361 = vld [vmem:[#allocation8 + $0x8c0] sm:$0xff]
    %v8362 = vld [vmem:[#allocation8 + $0x8c8] sm:$0xff]
    %v8363 = vld [vmem:[#allocation8 + $0x8d0] sm:$0xff]
    %v8364 = vld [vmem:[#allocation8 + $0x8d8] sm:$0xff]
    %v8365 = vld [vmem:[#allocation8 + $0x8e0] sm:$0xff]
    %v8366 = vld [vmem:[#allocation8 + $0x8e8] sm:$0xff]
    %v8367 = vld [vmem:[#allocation8 + $0x8f0] sm:$0xff]
    %v8368 = vld [vmem:[#allocation8 + $0x8f8] sm:$0xff]
    %v8369 = vld [vmem:[#allocation8 + $0x900] sm:$0xff]
    %v8370 = vld [vmem:[#allocation8 + $0x908] sm:$0xff]
    %v8371 = vld [vmem:[#allocation8 + $0x910] sm:$0xff]
    %v8372 = vld [vmem:[#allocation8 + $0x918] sm:$0xff]
    %v8373 = vld [vmem:[#allocation8 + $0x920] sm:$0xff]
    %v8374 = vld [vmem:[#allocation8 + $0x928] sm:$0xff]
    %v8375 = vld [vmem:[#allocation8 + $0x930] sm:$0xff]
    %v8376 = vld [vmem:[#allocation8 + $0x938] sm:$0xff]
    %v8377 = vld [vmem:[#allocation8 + $0x940] sm:$0xff]
    %v8378 = vld [vmem:[#allocation8 + $0x948] sm:$0xff]
    %v8379 = vld [vmem:[#allocation8 + $0x950] sm:$0xff]
    %v8380 = vld [vmem:[#allocation8 + $0x958] sm:$0xff]
    %v8381 = vld [vmem:[#allocation8 + $0x960] sm:$0xff]
    %v8382 = vld [vmem:[#allocation8 + $0x968] sm:$0xff]
    %v8383 = vld [vmem:[#allocation8 + $0x970] sm:$0xff]
    %v8384 = vld [vmem:[#allocation8 + $0x978] sm:$0xff]
    %v8385 = vld [vmem:[#allocation8 + $0x980] sm:$0xff]
    %v8386 = vld [vmem:[#allocation8 + $0x988] sm:$0xff]
    %v8387 = vld [vmem:[#allocation8 + $0x990] sm:$0xff]
    %v8388 = vld [vmem:[#allocation8 + $0x998] sm:$0xff]
    %v8389 = vld [vmem:[#allocation8 + $0x9a0] sm:$0xff]
    %v8390 = vld [vmem:[#allocation8 + $0x9a8] sm:$0xff]
    %v8391 = vld [vmem:[#allocation8 + $0x9b0] sm:$0xff]
    %v8392 = vld [vmem:[#allocation8 + $0x9b8] sm:$0xff]
    %v8393 = vld [vmem:[#allocation8 + $0x9c0] sm:$0xff]
    %v8394 = vld [vmem:[#allocation8 + $0x9c8] sm:$0xff]
    %v8395 = vld [vmem:[#allocation8 + $0x9d0] sm:$0xff]
    %v8396 = vld [vmem:[#allocation8 + $0x9d8] sm:$0xff]
    %v8397 = vld [vmem:[#allocation8 + $0x9e0] sm:$0xff]
    %v8398 = vld [vmem:[#allocation8 + $0x9e8] sm:$0xff]
    %v8399 = vld [vmem:[#allocation8 + $0x9f0] sm:$0xff]
    %v8400 = vld [vmem:[#allocation8 + $0x9f8] sm:$0xff]
    %v8401 = vld [vmem:[#allocation8 + $0xa00] sm:$0xff]
    %v8402 = vld [vmem:[#allocation8 + $0xa08] sm:$0xff]
    %v8403 = vld [vmem:[#allocation8 + $0xa10] sm:$0xff]
    %v8404 = vld [vmem:[#allocation8 + $0xa18] sm:$0xff]
    %v8405 = vld [vmem:[#allocation8 + $0xa20] sm:$0xff]
    %v8406 = vld [vmem:[#allocation8 + $0xa28] sm:$0xff]
    %v8407 = vld [vmem:[#allocation8 + $0xa30] sm:$0xff]
    %v8408 = vld [vmem:[#allocation8 + $0xa38] sm:$0xff]
    %v8409 = vld [vmem:[#allocation8 + $0xa40] sm:$0xff]
    %v8410 = vld [vmem:[#allocation8 + $0xa48] sm:$0xff]
    %v8411 = vld [vmem:[#allocation8 + $0xa50] sm:$0xff]
    %v8412 = vld [vmem:[#allocation8 + $0xa58] sm:$0xff]
    %v8413 = vld [vmem:[#allocation8 + $0xa60] sm:$0xff]
    %v8414 = vld [vmem:[#allocation8 + $0xa68] sm:$0xff]
    %v8415 = vld [vmem:[#allocation8 + $0xa70] sm:$0xff]
    %v8416 = vld [vmem:[#allocation8 + $0xa78] sm:$0xff]
    %v8417 = vld [vmem:[#allocation8 + $0xa80] sm:$0xff]
    %v8418 = vld [vmem:[#allocation8 + $0xa88] sm:$0xff]
    %v8419 = vld [vmem:[#allocation8 + $0xa90] sm:$0xff]
    %v8420 = vld [vmem:[#allocation8 + $0xa98] sm:$0xff]
    %v8421 = vld [vmem:[#allocation8 + $0xaa0] sm:$0xff]
    %v8422 = vld [vmem:[#allocation8 + $0xaa8] sm:$0xff]
    %v8423 = vld [vmem:[#allocation8 + $0xab0] sm:$0xff]
    %v8424 = vld [vmem:[#allocation8 + $0xab8] sm:$0xff]
    %v8425 = vld [vmem:[#allocation8 + $0xac0] sm:$0xff]
    %v8426 = vld [vmem:[#allocation8 + $0xac8] sm:$0xff]
    %v8427 = vld [vmem:[#allocation8 + $0xad0] sm:$0xff]
    %v8428 = vld [vmem:[#allocation8 + $0xad8] sm:$0xff]
    %v8429 = vld [vmem:[#allocation8 + $0xae0] sm:$0xff]
    %v8430 = vld [vmem:[#allocation8 + $0xae8] sm:$0xff]
    %v8431 = vld [vmem:[#allocation8 + $0xaf0] sm:$0xff]
    %v8432 = vld [vmem:[#allocation8 + $0xaf8] sm:$0xff]
    %v8433 = vld [vmem:[#allocation8 + $0xb00] sm:$0xff]
    %v8434 = vld [vmem:[#allocation8 + $0xb08] sm:$0xff]
    %v8435 = vld [vmem:[#allocation8 + $0xb10] sm:$0xff]
    %v8436 = vld [vmem:[#allocation8 + $0xb18] sm:$0xff]
    %v8437 = vld [vmem:[#allocation8 + $0xb20] sm:$0xff]
    %v8438 = vld [vmem:[#allocation8 + $0xb28] sm:$0xff]
    %v8439 = vld [vmem:[#allocation8 + $0xb30] sm:$0xff]
    %v8440 = vld [vmem:[#allocation8 + $0xb38] sm:$0xff]
    %v8441 = vld [vmem:[#allocation8 + $0xb40] sm:$0xff]
    %v8442 = vld [vmem:[#allocation8 + $0xb48] sm:$0xff]
    %v8443 = vld [vmem:[#allocation8 + $0xb50] sm:$0xff]
    %v8444 = vld [vmem:[#allocation8 + $0xb58] sm:$0xff]
    %v8445 = vld [vmem:[#allocation8 + $0xb60] sm:$0xff]
    %v8446 = vld [vmem:[#allocation8 + $0xb68] sm:$0xff]
    %v8447 = vld [vmem:[#allocation8 + $0xb70] sm:$0xff]
    %v8448 = vld [vmem:[#allocation8 + $0xb78] sm:$0xff]
    %v8449 = vld [vmem:[#allocation8 + $0xb80] sm:$0xff]
    %v8450 = vld [vmem:[#allocation8 + $0xb88] sm:$0xff]
    %v8451 = vld [vmem:[#allocation8 + $0xb90] sm:$0xff]
    %v8452 = vld [vmem:[#allocation8 + $0xb98] sm:$0xff]
    %v8453 = vld [vmem:[#allocation8 + $0xba0] sm:$0xff]
    %v8454 = vld [vmem:[#allocation8 + $0xba8] sm:$0xff]
    %v8455 = vld [vmem:[#allocation8 + $0xbb0] sm:$0xff]
    %v8456 = vld [vmem:[#allocation8 + $0xbb8] sm:$0xff]
    %v8457 = vld [vmem:[#allocation8 + $0xbc0] sm:$0xff]
    %v8458 = vld [vmem:[#allocation8 + $0xbc8] sm:$0xff]
    %v8459 = vld [vmem:[#allocation8 + $0xbd0] sm:$0xff]
    %v8460 = vld [vmem:[#allocation8 + $0xbd8] sm:$0xff]
    %v8461 = vld [vmem:[#allocation8 + $0xbe0] sm:$0xff]
    %v8462 = vld [vmem:[#allocation8 + $0xbe8] sm:$0xff]
    %v8463 = vld [vmem:[#allocation8 + $0xbf0] sm:$0xff]
    %v8464 = vld [vmem:[#allocation8 + $0xbf8] sm:$0xff]
    %v8465 = vld [vmem:[#allocation8 + $0xc00] sm:$0xff]
    %v8466 = vld [vmem:[#allocation8 + $0xc08] sm:$0xff]
    %v8467 = vld [vmem:[#allocation8 + $0xc10] sm:$0xff]
    %v8468 = vld [vmem:[#allocation8 + $0xc18] sm:$0xff]
    %v8469 = vld [vmem:[#allocation8 + $0xc20] sm:$0xff]
    %v8470 = vld [vmem:[#allocation8 + $0xc28] sm:$0xff]
    %v8471 = vld [vmem:[#allocation8 + $0xc30] sm:$0xff]
    %v8472 = vld [vmem:[#allocation8 + $0xc38] sm:$0xff]
    %v8473 = vld [vmem:[#allocation8 + $0xc40] sm:$0xff]
    %v8474 = vld [vmem:[#allocation8 + $0xc48] sm:$0xff]
    %v8475 = vld [vmem:[#allocation8 + $0xc50] sm:$0xff]
    %v8476 = vld [vmem:[#allocation8 + $0xc58] sm:$0xff]
    %v8477 = vld [vmem:[#allocation8 + $0xc60] sm:$0xff]
    %v8478 = vld [vmem:[#allocation8 + $0xc68] sm:$0xff]
    %v8479 = vld [vmem:[#allocation8 + $0xc70] sm:$0xff]
    %v8480 = vld [vmem:[#allocation8 + $0xc78] sm:$0xff]
    %v8481 = vld [vmem:[#allocation8 + $0xc80] sm:$0xff]
    %v8482 = vld [vmem:[#allocation8 + $0xc88] sm:$0xff]
    %v8483 = vld [vmem:[#allocation8 + $0xc90] sm:$0xff]
    %v8484 = vld [vmem:[#allocation8 + $0xc98] sm:$0xff]
    %v8485 = vld [vmem:[#allocation8 + $0xca0] sm:$0xff]
    %v8486 = vld [vmem:[#allocation8 + $0xca8] sm:$0xff]
    %v8487 = vld [vmem:[#allocation8 + $0xcb0] sm:$0xff]
    %v8488 = vld [vmem:[#allocation8 + $0xcb8] sm:$0xff]
    %v8489 = vld [vmem:[#allocation8 + $0xcc0] sm:$0xff]
    %v8490 = vld [vmem:[#allocation8 + $0xcc8] sm:$0xff]
    %v8491 = vld [vmem:[#allocation8 + $0xcd0] sm:$0xff]
    %v8492 = vld [vmem:[#allocation8 + $0xcd8] sm:$0xff]
    %v8493 = vld [vmem:[#allocation8 + $0xce0] sm:$0xff]
    %v8494 = vld [vmem:[#allocation8 + $0xce8] sm:$0xff]
    %v8495 = vld [vmem:[#allocation8 + $0xcf0] sm:$0xff]
    %v8496 = vld [vmem:[#allocation8 + $0xcf8] sm:$0xff]
    %v8497 = vld [vmem:[#allocation8 + $0xd00] sm:$0xff]
    %v8498 = vld [vmem:[#allocation8 + $0xd08] sm:$0xff]
    %v8499 = vld [vmem:[#allocation8 + $0xd10] sm:$0xff]
    %v8500 = vld [vmem:[#allocation8 + $0xd18] sm:$0xff]
    %v8501 = vld [vmem:[#allocation8 + $0xd20] sm:$0xff]
    %v8502 = vld [vmem:[#allocation8 + $0xd28] sm:$0xff]
    %v8503 = vld [vmem:[#allocation8 + $0xd30] sm:$0xff]
    %v8504 = vld [vmem:[#allocation8 + $0xd38] sm:$0xff]
    %v8505 = vld [vmem:[#allocation8 + $0xd40] sm:$0xff]
    %v8506 = vld [vmem:[#allocation8 + $0xd48] sm:$0xff]
    %v8507 = vld [vmem:[#allocation8 + $0xd50] sm:$0xff]
    %v8508 = vld [vmem:[#allocation8 + $0xd58] sm:$0xff]
    %v8509 = vld [vmem:[#allocation8 + $0xd60] sm:$0xff]
    %v8510 = vld [vmem:[#allocation8 + $0xd68] sm:$0xff]
    %v8511 = vld [vmem:[#allocation8 + $0xd70] sm:$0xff]
    %v8512 = vld [vmem:[#allocation8 + $0xd78] sm:$0xff]
    %v8513 = vld [vmem:[#allocation8 + $0xd80] sm:$0xff]
    %v8514 = vld [vmem:[#allocation8 + $0xd88] sm:$0xff]
    %v8515 = vld [vmem:[#allocation8 + $0xd90] sm:$0xff]
    %v8516 = vld [vmem:[#allocation8 + $0xd98] sm:$0xff]
    %v8517 = vld [vmem:[#allocation8 + $0xda0] sm:$0xff]
    %v8518 = vld [vmem:[#allocation8 + $0xda8] sm:$0xff]
    %v8519 = vld [vmem:[#allocation8 + $0xdb0] sm:$0xff]
    %v8520 = vld [vmem:[#allocation8 + $0xdb8] sm:$0xff]
    %v8521 = vld [vmem:[#allocation8 + $0xdc0] sm:$0xff]
    %v8522 = vld [vmem:[#allocation8 + $0xdc8] sm:$0xff]
    %v8523 = vld [vmem:[#allocation8 + $0xdd0] sm:$0xff]
    %v8524 = vld [vmem:[#allocation8 + $0xdd8] sm:$0xff]
    %v8525 = vld [vmem:[#allocation8 + $0xde0] sm:$0xff]
    %v8526 = vld [vmem:[#allocation8 + $0xde8] sm:$0xff]
    %v8527 = vld [vmem:[#allocation8 + $0xdf0] sm:$0xff]
    %v8528 = vld [vmem:[#allocation8 + $0xdf8] sm:$0xff]
    %v8529 = vld [vmem:[#allocation8 + $0xe00] sm:$0xff]
    %v8530 = vld [vmem:[#allocation8 + $0xe08] sm:$0xff]
    %v8531 = vld [vmem:[#allocation8 + $0xe10] sm:$0xff]
    %v8532 = vld [vmem:[#allocation8 + $0xe18] sm:$0xff]
    %v8533 = vld [vmem:[#allocation8 + $0xe20] sm:$0xff]
    %v8534 = vld [vmem:[#allocation8 + $0xe28] sm:$0xff]
    %v8535 = vld [vmem:[#allocation8 + $0xe30] sm:$0xff]
    %v8536 = vld [vmem:[#allocation8 + $0xe38] sm:$0xff]
    %v8537 = vld [vmem:[#allocation8 + $0xe40] sm:$0xff]
    %v8538 = vld [vmem:[#allocation8 + $0xe48] sm:$0xff]
    %v8539 = vld [vmem:[#allocation8 + $0xe50] sm:$0xff]
    %v8540 = vld [vmem:[#allocation8 + $0xe58] sm:$0xff]
    %v8541 = vld [vmem:[#allocation8 + $0xe60] sm:$0xff]
    %v8542 = vld [vmem:[#allocation8 + $0xe68] sm:$0xff]
    %v8543 = vld [vmem:[#allocation8 + $0xe70] sm:$0xff]
    %v8544 = vld [vmem:[#allocation8 + $0xe78] sm:$0xff]
    %v8545 = vld [vmem:[#allocation8 + $0xe80] sm:$0xff]
    %v8546 = vld [vmem:[#allocation8 + $0xe88] sm:$0xff]
    %v8547 = vld [vmem:[#allocation8 + $0xe90] sm:$0xff]
    %v8548 = vld [vmem:[#allocation8 + $0xe98] sm:$0xff]
    %v8549 = vld [vmem:[#allocation8 + $0xea0] sm:$0xff]
    %v8550 = vld [vmem:[#allocation8 + $0xea8] sm:$0xff]
    %v8551 = vld [vmem:[#allocation8 + $0xeb0] sm:$0xff]
    %v8552 = vld [vmem:[#allocation8 + $0xeb8] sm:$0xff]
    %v8553 = vld [vmem:[#allocation8 + $0xec0] sm:$0xff]
    %v8554 = vld [vmem:[#allocation8 + $0xec8] sm:$0xff]
    %v8555 = vld [vmem:[#allocation8 + $0xed0] sm:$0xff]
    %v8556 = vld [vmem:[#allocation8 + $0xed8] sm:$0xff]
    %v8557 = vld [vmem:[#allocation8 + $0xee0] sm:$0xff]
    %v8558 = vld [vmem:[#allocation8 + $0xee8] sm:$0xff]
    %v8559 = vld [vmem:[#allocation8 + $0xef0] sm:$0xff]
    %v8560 = vld [vmem:[#allocation8 + $0xef8] sm:$0xff]
    %v8561 = vld [vmem:[#allocation8 + $0xf00] sm:$0xff]
    %v8562 = vld [vmem:[#allocation8 + $0xf08] sm:$0xff]
    %v8563 = vld [vmem:[#allocation8 + $0xf10] sm:$0xff]
    %v8564 = vld [vmem:[#allocation8 + $0xf18] sm:$0xff]
    %v8565 = vld [vmem:[#allocation8 + $0xf20] sm:$0xff]
    %v8566 = vld [vmem:[#allocation8 + $0xf28] sm:$0xff]
    %v8567 = vld [vmem:[#allocation8 + $0xf30] sm:$0xff]
    %v8568 = vld [vmem:[#allocation8 + $0xf38] sm:$0xff]
    %v8569 = vld [vmem:[#allocation8 + $0xf40] sm:$0xff]
    %v8570 = vld [vmem:[#allocation8 + $0xf48] sm:$0xff]
    %v8571 = vld [vmem:[#allocation8 + $0xf50] sm:$0xff]
    %v8572 = vld [vmem:[#allocation8 + $0xf58] sm:$0xff]
    %v8573 = vld [vmem:[#allocation8 + $0xf60] sm:$0xff]
    %v8574 = vld [vmem:[#allocation8 + $0xf68] sm:$0xff]
    %v8575 = vld [vmem:[#allocation8 + $0xf70] sm:$0xff]
    %v8576 = vld [vmem:[#allocation8 + $0xf78] sm:$0xff]
    %v8577 = vld [vmem:[#allocation8 + $0xf80] sm:$0xff]
    %v8578 = vld [vmem:[#allocation8 + $0xf88] sm:$0xff]
    %v8579 = vld [vmem:[#allocation8 + $0xf90] sm:$0xff]
    %v8580 = vld [vmem:[#allocation8 + $0xf98] sm:$0xff]
    %v8581 = vld [vmem:[#allocation8 + $0xfa0] sm:$0xff]
    %v8582 = vld [vmem:[#allocation8 + $0xfa8] sm:$0xff]
    %v8583 = vld [vmem:[#allocation8 + $0xfb0] sm:$0xff]
    %v8584 = vld [vmem:[#allocation8 + $0xfb8] sm:$0xff]
    %v8585 = vld [vmem:[#allocation8 + $0xfc0] sm:$0xff]
    %v8586 = vld [vmem:[#allocation8 + $0xfc8] sm:$0xff]
    %v8587 = vld [vmem:[#allocation8 + $0xfd0] sm:$0xff]
    %v8588 = vld [vmem:[#allocation8 + $0xfd8] sm:$0xff]
    %v8589 = vld [vmem:[#allocation8 + $0xfe0] sm:$0xff]
    %v8590 = vld [vmem:[#allocation8 + $0xfe8] sm:$0xff]
    %v8591 = vld [vmem:[#allocation8 + $0xff0] sm:$0xff]
    %v8592 = vld [vmem:[#allocation8 + $0xff8] sm:$0xff]
    %v8593 = vld [vmem:[#allocation10] sm:$0xff]
    %v8595 = vperm.slane %v8593, 0
    %v8596 = vperm.slane %v8593, 1
    %v8597 = vperm.slane %v8593, 2
    %v8598 = vperm.slane %v8593, 3
    %v8599 = vperm.slane %v8593, 4
    %v8600 = vperm.slane %v8593, 5
    %v8601 = vperm.slane %v8593, 6
    %v8602 = vperm.slane %v8593, 7
    %v9123 = vunpack.c.l.b16 %v8081
    %v9124 = vunpack.c.h.b16 %v8081
    %v9125 = vunpack.c.l.b16 %v8082
    %v9126 = vunpack.c.h.b16 %v8082
    %v9127 = vunpack.c.l.b16 %v8083
    %v9128 = vunpack.c.h.b16 %v8083
    %v9129 = vunpack.c.l.b16 %v8084
    %v9130 = vunpack.c.h.b16 %v8084
    %v9131 = vunpack.c.l.b16 %v8085
    %v9132 = vunpack.c.h.b16 %v8085
    %v9133 = vunpack.c.l.b16 %v8086
    %v9134 = vunpack.c.h.b16 %v8086
    %v9135 = vunpack.c.l.b16 %v8087
    %v9136 = vunpack.c.h.b16 %v8087
    %v9137 = vunpack.c.l.b16 %v8088
    %v9138 = vunpack.c.h.b16 %v8088
    %v9139 = vunpack.c.l.b16 %v8089
    %v9140 = vunpack.c.h.b16 %v8089
    %v9141 = vunpack.c.l.b16 %v8090
    %v9142 = vunpack.c.h.b16 %v8090
    %v9143 = vunpack.c.l.b16 %v8091
    %v9144 = vunpack.c.h.b16 %v8091
    %v9145 = vunpack.c.l.b16 %v8092
    %v9146 = vunpack.c.h.b16 %v8092
    %v9147 = vunpack.c.l.b16 %v8093
    %v9148 = vunpack.c.h.b16 %v8093
    %v9149 = vunpack.c.l.b16 %v8094
    %v9150 = vunpack.c.h.b16 %v8094
    %v9151 = vunpack.c.l.b16 %v8095
    %v9152 = vunpack.c.h.b16 %v8095
    %v9153 = vunpack.c.l.b16 %v8096
    %v9154 = vunpack.c.h.b16 %v8096
    %v9155 = vunpack.c.l.b16 %v8097
    %v9156 = vunpack.c.h.b16 %v8097
    %v9157 = vunpack.c.l.b16 %v8098
    %v9158 = vunpack.c.h.b16 %v8098
    %v9159 = vunpack.c.l.b16 %v8099
    %v9160 = vunpack.c.h.b16 %v8099
    %v9161 = vunpack.c.l.b16 %v8100
    %v9162 = vunpack.c.h.b16 %v8100
    %v9163 = vunpack.c.l.b16 %v8101
    %v9164 = vunpack.c.h.b16 %v8101
    %v9165 = vunpack.c.l.b16 %v8102
    %v9166 = vunpack.c.h.b16 %v8102
    %v9167 = vunpack.c.l.b16 %v8103
    %v9168 = vunpack.c.h.b16 %v8103
    %v9169 = vunpack.c.l.b16 %v8104
    %v9170 = vunpack.c.h.b16 %v8104
    %v9171 = vunpack.c.l.b16 %v8105
    %v9172 = vunpack.c.h.b16 %v8105
    %v9173 = vunpack.c.l.b16 %v8106
    %v9174 = vunpack.c.h.b16 %v8106
    %v9175 = vunpack.c.l.b16 %v8107
    %v9176 = vunpack.c.h.b16 %v8107
    %v9177 = vunpack.c.l.b16 %v8108
    %v9178 = vunpack.c.h.b16 %v8108
    %v9179 = vunpack.c.l.b16 %v8109
    %v9180 = vunpack.c.h.b16 %v8109
    %v9181 = vunpack.c.l.b16 %v8110
    %v9182 = vunpack.c.h.b16 %v8110
    %v9183 = vunpack.c.l.b16 %v8111
    %v9184 = vunpack.c.h.b16 %v8111
    %v9185 = vunpack.c.l.b16 %v8112
    %v9186 = vunpack.c.h.b16 %v8112
    %v9187 = vunpack.c.l.b16 %v8113
    %v9188 = vunpack.c.h.b16 %v8113
    %v9189 = vunpack.c.l.b16 %v8114
    %v9190 = vunpack.c.h.b16 %v8114
    %v9191 = vunpack.c.l.b16 %v8115
    %v9192 = vunpack.c.h.b16 %v8115
    %v9193 = vunpack.c.l.b16 %v8116
    %v9194 = vunpack.c.h.b16 %v8116
    %v9195 = vunpack.c.l.b16 %v8117
    %v9196 = vunpack.c.h.b16 %v8117
    %v9197 = vunpack.c.l.b16 %v8118
    %v9198 = vunpack.c.h.b16 %v8118
    %v9199 = vunpack.c.l.b16 %v8119
    %v9200 = vunpack.c.h.b16 %v8119
    %v9201 = vunpack.c.l.b16 %v8120
    %v9202 = vunpack.c.h.b16 %v8120
    %v9203 = vunpack.c.l.b16 %v8121
    %v9204 = vunpack.c.h.b16 %v8121
    %v9205 = vunpack.c.l.b16 %v8122
    %v9206 = vunpack.c.h.b16 %v8122
    %v9207 = vunpack.c.l.b16 %v8123
    %v9208 = vunpack.c.h.b16 %v8123
    %v9209 = vunpack.c.l.b16 %v8124
    %v9210 = vunpack.c.h.b16 %v8124
    %v9211 = vunpack.c.l.b16 %v8125
    %v9212 = vunpack.c.h.b16 %v8125
    %v9213 = vunpack.c.l.b16 %v8126
    %v9214 = vunpack.c.h.b16 %v8126
    %v9215 = vunpack.c.l.b16 %v8127
    %v9216 = vunpack.c.h.b16 %v8127
    %v9217 = vunpack.c.l.b16 %v8128
    %v9218 = vunpack.c.h.b16 %v8128
    %v9219 = vunpack.c.l.b16 %v8129
    %v9220 = vunpack.c.h.b16 %v8129
    %v9221 = vunpack.c.l.b16 %v8130
    %v9222 = vunpack.c.h.b16 %v8130
    %v9223 = vunpack.c.l.b16 %v8131
    %v9224 = vunpack.c.h.b16 %v8131
    %v9225 = vunpack.c.l.b16 %v8132
    %v9226 = vunpack.c.h.b16 %v8132
    %v9227 = vunpack.c.l.b16 %v8133
    %v9228 = vunpack.c.h.b16 %v8133
    %v9229 = vunpack.c.l.b16 %v8134
    %v9230 = vunpack.c.h.b16 %v8134
    %v9231 = vunpack.c.l.b16 %v8135
    %v9232 = vunpack.c.h.b16 %v8135
    %v9233 = vunpack.c.l.b16 %v8136
    %v9234 = vunpack.c.h.b16 %v8136
    %v9235 = vunpack.c.l.b16 %v8137
    %v9236 = vunpack.c.h.b16 %v8137
    %v9237 = vunpack.c.l.b16 %v8138
    %v9238 = vunpack.c.h.b16 %v8138
    %v9239 = vunpack.c.l.b16 %v8139
    %v9240 = vunpack.c.h.b16 %v8139
    %v9241 = vunpack.c.l.b16 %v8140
    %v9242 = vunpack.c.h.b16 %v8140
    %v9243 = vunpack.c.l.b16 %v8141
    %v9244 = vunpack.c.h.b16 %v8141
    %v9245 = vunpack.c.l.b16 %v8142
    %v9246 = vunpack.c.h.b16 %v8142
    %v9247 = vunpack.c.l.b16 %v8143
    %v9248 = vunpack.c.h.b16 %v8143
    %v9249 = vunpack.c.l.b16 %v8144
    %v9250 = vunpack.c.h.b16 %v8144
    %v9251 = vunpack.c.l.b16 %v8145
    %v9252 = vunpack.c.h.b16 %v8145
    %v9253 = vunpack.c.l.b16 %v8146
    %v9254 = vunpack.c.h.b16 %v8146
    %v9255 = vunpack.c.l.b16 %v8147
    %v9256 = vunpack.c.h.b16 %v8147
    %v9257 = vunpack.c.l.b16 %v8148
    %v9258 = vunpack.c.h.b16 %v8148
    %v9259 = vunpack.c.l.b16 %v8149
    %v9260 = vunpack.c.h.b16 %v8149
    %v9261 = vunpack.c.l.b16 %v8150
    %v9262 = vunpack.c.h.b16 %v8150
    %v9263 = vunpack.c.l.b16 %v8151
    %v9264 = vunpack.c.h.b16 %v8151
    %v9265 = vunpack.c.l.b16 %v8152
    %v9266 = vunpack.c.h.b16 %v8152
    %v9267 = vunpack.c.l.b16 %v8153
    %v9268 = vunpack.c.h.b16 %v8153
    %v9269 = vunpack.c.l.b16 %v8154
    %v9270 = vunpack.c.h.b16 %v8154
    %v9271 = vunpack.c.l.b16 %v8155
    %v9272 = vunpack.c.h.b16 %v8155
    %v9273 = vunpack.c.l.b16 %v8156
    %v9274 = vunpack.c.h.b16 %v8156
    %v9275 = vunpack.c.l.b16 %v8157
    %v9276 = vunpack.c.h.b16 %v8157
    %v9277 = vunpack.c.l.b16 %v8158
    %v9278 = vunpack.c.h.b16 %v8158
    %v9279 = vunpack.c.l.b16 %v8159
    %v9280 = vunpack.c.h.b16 %v8159
    %v9281 = vunpack.c.l.b16 %v8160
    %v9282 = vunpack.c.h.b16 %v8160
    %v9283 = vunpack.c.l.b16 %v8161
    %v9284 = vunpack.c.h.b16 %v8161
    %v9285 = vunpack.c.l.b16 %v8162
    %v9286 = vunpack.c.h.b16 %v8162
    %v9287 = vunpack.c.l.b16 %v8163
    %v9288 = vunpack.c.h.b16 %v8163
    %v9289 = vunpack.c.l.b16 %v8164
    %v9290 = vunpack.c.h.b16 %v8164
    %v9291 = vunpack.c.l.b16 %v8165
    %v9292 = vunpack.c.h.b16 %v8165
    %v9293 = vunpack.c.l.b16 %v8166
    %v9294 = vunpack.c.h.b16 %v8166
    %v9295 = vunpack.c.l.b16 %v8167
    %v9296 = vunpack.c.h.b16 %v8167
    %v9297 = vunpack.c.l.b16 %v8168
    %v9298 = vunpack.c.h.b16 %v8168
    %v9299 = vunpack.c.l.b16 %v8169
    %v9300 = vunpack.c.h.b16 %v8169
    %v9301 = vunpack.c.l.b16 %v8170
    %v9302 = vunpack.c.h.b16 %v8170
    %v9303 = vunpack.c.l.b16 %v8171
    %v9304 = vunpack.c.h.b16 %v8171
    %v9305 = vunpack.c.l.b16 %v8172
    %v9306 = vunpack.c.h.b16 %v8172
    %v9307 = vunpack.c.l.b16 %v8173
    %v9308 = vunpack.c.h.b16 %v8173
    %v9309 = vunpack.c.l.b16 %v8174
    %v9310 = vunpack.c.h.b16 %v8174
    %v9311 = vunpack.c.l.b16 %v8175
    %v9312 = vunpack.c.h.b16 %v8175
    %v9313 = vunpack.c.l.b16 %v8176
    %v9314 = vunpack.c.h.b16 %v8176
    %v9315 = vunpack.c.l.b16 %v8177
    %v9316 = vunpack.c.h.b16 %v8177
    %v9317 = vunpack.c.l.b16 %v8178
    %v9318 = vunpack.c.h.b16 %v8178
    %v9319 = vunpack.c.l.b16 %v8179
    %v9320 = vunpack.c.h.b16 %v8179
    %v9321 = vunpack.c.l.b16 %v8180
    %v9322 = vunpack.c.h.b16 %v8180
    %v9323 = vunpack.c.l.b16 %v8181
    %v9324 = vunpack.c.h.b16 %v8181
    %v9325 = vunpack.c.l.b16 %v8182
    %v9326 = vunpack.c.h.b16 %v8182
    %v9327 = vunpack.c.l.b16 %v8183
    %v9328 = vunpack.c.h.b16 %v8183
    %v9329 = vunpack.c.l.b16 %v8184
    %v9330 = vunpack.c.h.b16 %v8184
    %v9331 = vunpack.c.l.b16 %v8185
    %v9332 = vunpack.c.h.b16 %v8185
    %v9333 = vunpack.c.l.b16 %v8186
    %v9334 = vunpack.c.h.b16 %v8186
    %v9335 = vunpack.c.l.b16 %v8187
    %v9336 = vunpack.c.h.b16 %v8187
    %v9337 = vunpack.c.l.b16 %v8188
    %v9338 = vunpack.c.h.b16 %v8188
    %v9339 = vunpack.c.l.b16 %v8189
    %v9340 = vunpack.c.h.b16 %v8189
    %v9341 = vunpack.c.l.b16 %v8190
    %v9342 = vunpack.c.h.b16 %v8190
    %v9343 = vunpack.c.l.b16 %v8191
    %v9344 = vunpack.c.h.b16 %v8191
    %v9345 = vunpack.c.l.b16 %v8192
    %v9346 = vunpack.c.h.b16 %v8192
    %v9347 = vunpack.c.l.b16 %v8193
    %v9348 = vunpack.c.h.b16 %v8193
    %v9349 = vunpack.c.l.b16 %v8194
    %v9350 = vunpack.c.h.b16 %v8194
    %v9351 = vunpack.c.l.b16 %v8195
    %v9352 = vunpack.c.h.b16 %v8195
    %v9353 = vunpack.c.l.b16 %v8196
    %v9354 = vunpack.c.h.b16 %v8196
    %v9355 = vunpack.c.l.b16 %v8197
    %v9356 = vunpack.c.h.b16 %v8197
    %v9357 = vunpack.c.l.b16 %v8198
    %v9358 = vunpack.c.h.b16 %v8198
    %v9359 = vunpack.c.l.b16 %v8199
    %v9360 = vunpack.c.h.b16 %v8199
    %v9361 = vunpack.c.l.b16 %v8200
    %v9362 = vunpack.c.h.b16 %v8200
    %v9363 = vunpack.c.l.b16 %v8201
    %v9364 = vunpack.c.h.b16 %v8201
    %v9365 = vunpack.c.l.b16 %v8202
    %v9366 = vunpack.c.h.b16 %v8202
    %v9367 = vunpack.c.l.b16 %v8203
    %v9368 = vunpack.c.h.b16 %v8203
    %v9369 = vunpack.c.l.b16 %v8204
    %v9370 = vunpack.c.h.b16 %v8204
    %v9371 = vunpack.c.l.b16 %v8205
    %v9372 = vunpack.c.h.b16 %v8205
    %v9373 = vunpack.c.l.b16 %v8206
    %v9374 = vunpack.c.h.b16 %v8206
    %v9375 = vunpack.c.l.b16 %v8207
    %v9376 = vunpack.c.h.b16 %v8207
    %v9377 = vunpack.c.l.b16 %v8208
    %v9378 = vunpack.c.h.b16 %v8208
    %v9379 = vunpack.c.l.b16 %v8209
    %v9380 = vunpack.c.h.b16 %v8209
    %v9381 = vunpack.c.l.b16 %v8210
    %v9382 = vunpack.c.h.b16 %v8210
    %v9383 = vunpack.c.l.b16 %v8211
    %v9384 = vunpack.c.h.b16 %v8211
    %v9385 = vunpack.c.l.b16 %v8212
    %v9386 = vunpack.c.h.b16 %v8212
    %v9387 = vunpack.c.l.b16 %v8213
    %v9388 = vunpack.c.h.b16 %v8213
    %v9389 = vunpack.c.l.b16 %v8214
    %v9390 = vunpack.c.h.b16 %v8214
    %v9391 = vunpack.c.l.b16 %v8215
    %v9392 = vunpack.c.h.b16 %v8215
    %v9393 = vunpack.c.l.b16 %v8216
    %v9394 = vunpack.c.h.b16 %v8216
    %v9395 = vunpack.c.l.b16 %v8217
    %v9396 = vunpack.c.h.b16 %v8217
    %v9397 = vunpack.c.l.b16 %v8218
    %v9398 = vunpack.c.h.b16 %v8218
    %v9399 = vunpack.c.l.b16 %v8219
    %v9400 = vunpack.c.h.b16 %v8219
    %v9401 = vunpack.c.l.b16 %v8220
    %v9402 = vunpack.c.h.b16 %v8220
    %v9403 = vunpack.c.l.b16 %v8221
    %v9404 = vunpack.c.h.b16 %v8221
    %v9405 = vunpack.c.l.b16 %v8222
    %v9406 = vunpack.c.h.b16 %v8222
    %v9407 = vunpack.c.l.b16 %v8223
    %v9408 = vunpack.c.h.b16 %v8223
    %v9409 = vunpack.c.l.b16 %v8224
    %v9410 = vunpack.c.h.b16 %v8224
    %v9411 = vunpack.c.l.b16 %v8225
    %v9412 = vunpack.c.h.b16 %v8225
    %v9413 = vunpack.c.l.b16 %v8226
    %v9414 = vunpack.c.h.b16 %v8226
    %v9415 = vunpack.c.l.b16 %v8227
    %v9416 = vunpack.c.h.b16 %v8227
    %v9417 = vunpack.c.l.b16 %v8228
    %v9418 = vunpack.c.h.b16 %v8228
    %v9419 = vunpack.c.l.b16 %v8229
    %v9420 = vunpack.c.h.b16 %v8229
    %v9421 = vunpack.c.l.b16 %v8230
    %v9422 = vunpack.c.h.b16 %v8230
    %v9423 = vunpack.c.l.b16 %v8231
    %v9424 = vunpack.c.h.b16 %v8231
    %v9425 = vunpack.c.l.b16 %v8232
    %v9426 = vunpack.c.h.b16 %v8232
    %v9427 = vunpack.c.l.b16 %v8233
    %v9428 = vunpack.c.h.b16 %v8233
    %v9429 = vunpack.c.l.b16 %v8234
    %v9430 = vunpack.c.h.b16 %v8234
    %v9431 = vunpack.c.l.b16 %v8235
    %v9432 = vunpack.c.h.b16 %v8235
    %v9433 = vunpack.c.l.b16 %v8236
    %v9434 = vunpack.c.h.b16 %v8236
    %v9435 = vunpack.c.l.b16 %v8237
    %v9436 = vunpack.c.h.b16 %v8237
    %v9437 = vunpack.c.l.b16 %v8238
    %v9438 = vunpack.c.h.b16 %v8238
    %v9439 = vunpack.c.l.b16 %v8239
    %v9440 = vunpack.c.h.b16 %v8239
    %v9441 = vunpack.c.l.b16 %v8240
    %v9442 = vunpack.c.h.b16 %v8240
    %v9443 = vunpack.c.l.b16 %v8241
    %v9444 = vunpack.c.h.b16 %v8241
    %v9445 = vunpack.c.l.b16 %v8242
    %v9446 = vunpack.c.h.b16 %v8242
    %v9447 = vunpack.c.l.b16 %v8243
    %v9448 = vunpack.c.h.b16 %v8243
    %v9449 = vunpack.c.l.b16 %v8244
    %v9450 = vunpack.c.h.b16 %v8244
    %v9451 = vunpack.c.l.b16 %v8245
    %v9452 = vunpack.c.h.b16 %v8245
    %v9453 = vunpack.c.l.b16 %v8246
    %v9454 = vunpack.c.h.b16 %v8246
    %v9455 = vunpack.c.l.b16 %v8247
    %v9456 = vunpack.c.h.b16 %v8247
    %v9457 = vunpack.c.l.b16 %v8248
    %v9458 = vunpack.c.h.b16 %v8248
    %v9459 = vunpack.c.l.b16 %v8249
    %v9460 = vunpack.c.h.b16 %v8249
    %v9461 = vunpack.c.l.b16 %v8250
    %v9462 = vunpack.c.h.b16 %v8250
    %v9463 = vunpack.c.l.b16 %v8251
    %v9464 = vunpack.c.h.b16 %v8251
    %v9465 = vunpack.c.l.b16 %v8252
    %v9466 = vunpack.c.h.b16 %v8252
    %v9467 = vunpack.c.l.b16 %v8253
    %v9468 = vunpack.c.h.b16 %v8253
    %v9469 = vunpack.c.l.b16 %v8254
    %v9470 = vunpack.c.h.b16 %v8254
    %v9471 = vunpack.c.l.b16 %v8255
    %v9472 = vunpack.c.h.b16 %v8255
    %v9473 = vunpack.c.l.b16 %v8256
    %v9474 = vunpack.c.h.b16 %v8256
    %v9475 = vunpack.c.l.b16 %v8257
    %v9476 = vunpack.c.h.b16 %v8257
    %v9477 = vunpack.c.l.b16 %v8258
    %v9478 = vunpack.c.h.b16 %v8258
    %v9479 = vunpack.c.l.b16 %v8259
    %v9480 = vunpack.c.h.b16 %v8259
    %v9481 = vunpack.c.l.b16 %v8260
    %v9482 = vunpack.c.h.b16 %v8260
    %v9483 = vunpack.c.l.b16 %v8261
    %v9484 = vunpack.c.h.b16 %v8261
    %v9485 = vunpack.c.l.b16 %v8262
    %v9486 = vunpack.c.h.b16 %v8262
    %v9487 = vunpack.c.l.b16 %v8263
    %v9488 = vunpack.c.h.b16 %v8263
    %v9489 = vunpack.c.l.b16 %v8264
    %v9490 = vunpack.c.h.b16 %v8264
    %v9491 = vunpack.c.l.b16 %v8265
    %v9492 = vunpack.c.h.b16 %v8265
    %v9493 = vunpack.c.l.b16 %v8266
    %v9494 = vunpack.c.h.b16 %v8266
    %v9495 = vunpack.c.l.b16 %v8267
    %v9496 = vunpack.c.h.b16 %v8267
    %v9497 = vunpack.c.l.b16 %v8268
    %v9498 = vunpack.c.h.b16 %v8268
    %v9499 = vunpack.c.l.b16 %v8269
    %v9500 = vunpack.c.h.b16 %v8269
    %v9501 = vunpack.c.l.b16 %v8270
    %v9502 = vunpack.c.h.b16 %v8270
    %v9503 = vunpack.c.l.b16 %v8271
    %v9504 = vunpack.c.h.b16 %v8271
    %v9505 = vunpack.c.l.b16 %v8272
    %v9506 = vunpack.c.h.b16 %v8272
    %v9507 = vunpack.c.l.b16 %v8273
    %v9508 = vunpack.c.h.b16 %v8273
    %v9509 = vunpack.c.l.b16 %v8274
    %v9510 = vunpack.c.h.b16 %v8274
    %v9511 = vunpack.c.l.b16 %v8275
    %v9512 = vunpack.c.h.b16 %v8275
    %v9513 = vunpack.c.l.b16 %v8276
    %v9514 = vunpack.c.h.b16 %v8276
    %v9515 = vunpack.c.l.b16 %v8277
    %v9516 = vunpack.c.h.b16 %v8277
    %v9517 = vunpack.c.l.b16 %v8278
    %v9518 = vunpack.c.h.b16 %v8278
    %v9519 = vunpack.c.l.b16 %v8279
    %v9520 = vunpack.c.h.b16 %v8279
    %v9521 = vunpack.c.l.b16 %v8280
    %v9522 = vunpack.c.h.b16 %v8280
    %v9523 = vunpack.c.l.b16 %v8281
    %v9524 = vunpack.c.h.b16 %v8281
    %v9525 = vunpack.c.l.b16 %v8282
    %v9526 = vunpack.c.h.b16 %v8282
    %v9527 = vunpack.c.l.b16 %v8283
    %v9528 = vunpack.c.h.b16 %v8283
    %v9529 = vunpack.c.l.b16 %v8284
    %v9530 = vunpack.c.h.b16 %v8284
    %v9531 = vunpack.c.l.b16 %v8285
    %v9532 = vunpack.c.h.b16 %v8285
    %v9533 = vunpack.c.l.b16 %v8286
    %v9534 = vunpack.c.h.b16 %v8286
    %v9535 = vunpack.c.l.b16 %v8287
    %v9536 = vunpack.c.h.b16 %v8287
    %v9537 = vunpack.c.l.b16 %v8288
    %v9538 = vunpack.c.h.b16 %v8288
    %v9539 = vunpack.c.l.b16 %v8289
    %v9540 = vunpack.c.h.b16 %v8289
    %v9541 = vunpack.c.l.b16 %v8290
    %v9542 = vunpack.c.h.b16 %v8290
    %v9543 = vunpack.c.l.b16 %v8291
    %v9544 = vunpack.c.h.b16 %v8291
    %v9545 = vunpack.c.l.b16 %v8292
    %v9546 = vunpack.c.h.b16 %v8292
    %v9547 = vunpack.c.l.b16 %v8293
    %v9548 = vunpack.c.h.b16 %v8293
    %v9549 = vunpack.c.l.b16 %v8294
    %v9550 = vunpack.c.h.b16 %v8294
    %v9551 = vunpack.c.l.b16 %v8295
    %v9552 = vunpack.c.h.b16 %v8295
    %v9553 = vunpack.c.l.b16 %v8296
    %v9554 = vunpack.c.h.b16 %v8296
    %v9555 = vunpack.c.l.b16 %v8297
    %v9556 = vunpack.c.h.b16 %v8297
    %v9557 = vunpack.c.l.b16 %v8298
    %v9558 = vunpack.c.h.b16 %v8298
    %v9559 = vunpack.c.l.b16 %v8299
    %v9560 = vunpack.c.h.b16 %v8299
    %v9561 = vunpack.c.l.b16 %v8300
    %v9562 = vunpack.c.h.b16 %v8300
    %v9563 = vunpack.c.l.b16 %v8301
    %v9564 = vunpack.c.h.b16 %v8301
    %v9565 = vunpack.c.l.b16 %v8302
    %v9566 = vunpack.c.h.b16 %v8302
    %v9567 = vunpack.c.l.b16 %v8303
    %v9568 = vunpack.c.h.b16 %v8303
    %v9569 = vunpack.c.l.b16 %v8304
    %v9570 = vunpack.c.h.b16 %v8304
    %v9571 = vunpack.c.l.b16 %v8305
    %v9572 = vunpack.c.h.b16 %v8305
    %v9573 = vunpack.c.l.b16 %v8306
    %v9574 = vunpack.c.h.b16 %v8306
    %v9575 = vunpack.c.l.b16 %v8307
    %v9576 = vunpack.c.h.b16 %v8307
    %v9577 = vunpack.c.l.b16 %v8308
    %v9578 = vunpack.c.h.b16 %v8308
    %v9579 = vunpack.c.l.b16 %v8309
    %v9580 = vunpack.c.h.b16 %v8309
    %v9581 = vunpack.c.l.b16 %v8310
    %v9582 = vunpack.c.h.b16 %v8310
    %v9583 = vunpack.c.l.b16 %v8311
    %v9584 = vunpack.c.h.b16 %v8311
    %v9585 = vunpack.c.l.b16 %v8312
    %v9586 = vunpack.c.h.b16 %v8312
    %v9587 = vunpack.c.l.b16 %v8313
    %v9588 = vunpack.c.h.b16 %v8313
    %v9589 = vunpack.c.l.b16 %v8314
    %v9590 = vunpack.c.h.b16 %v8314
    %v9591 = vunpack.c.l.b16 %v8315
    %v9592 = vunpack.c.h.b16 %v8315
    %v9593 = vunpack.c.l.b16 %v8316
    %v9594 = vunpack.c.h.b16 %v8316
    %v9595 = vunpack.c.l.b16 %v8317
    %v9596 = vunpack.c.h.b16 %v8317
    %v9597 = vunpack.c.l.b16 %v8318
    %v9598 = vunpack.c.h.b16 %v8318
    %v9599 = vunpack.c.l.b16 %v8319
    %v9600 = vunpack.c.h.b16 %v8319
    %v9601 = vunpack.c.l.b16 %v8320
    %v9602 = vunpack.c.h.b16 %v8320
    %v9603 = vunpack.c.l.b16 %v8321
    %v9604 = vunpack.c.h.b16 %v8321
    %v9605 = vunpack.c.l.b16 %v8322
    %v9606 = vunpack.c.h.b16 %v8322
    %v9607 = vunpack.c.l.b16 %v8323
    %v9608 = vunpack.c.h.b16 %v8323
    %v9609 = vunpack.c.l.b16 %v8324
    %v9610 = vunpack.c.h.b16 %v8324
    %v9611 = vunpack.c.l.b16 %v8325
    %v9612 = vunpack.c.h.b16 %v8325
    %v9613 = vunpack.c.l.b16 %v8326
    %v9614 = vunpack.c.h.b16 %v8326
    %v9615 = vunpack.c.l.b16 %v8327
    %v9616 = vunpack.c.h.b16 %v8327
    %v9617 = vunpack.c.l.b16 %v8328
    %v9618 = vunpack.c.h.b16 %v8328
    %v9619 = vunpack.c.l.b16 %v8329
    %v9620 = vunpack.c.h.b16 %v8329
    %v9621 = vunpack.c.l.b16 %v8330
    %v9622 = vunpack.c.h.b16 %v8330
    %v9623 = vunpack.c.l.b16 %v8331
    %v9624 = vunpack.c.h.b16 %v8331
    %v9625 = vunpack.c.l.b16 %v8332
    %v9626 = vunpack.c.h.b16 %v8332
    %v9627 = vunpack.c.l.b16 %v8333
    %v9628 = vunpack.c.h.b16 %v8333
    %v9629 = vunpack.c.l.b16 %v8334
    %v9630 = vunpack.c.h.b16 %v8334
    %v9631 = vunpack.c.l.b16 %v8335
    %v9632 = vunpack.c.h.b16 %v8335
    %v9633 = vunpack.c.l.b16 %v8336
    %v9634 = vunpack.c.h.b16 %v8336
    %v9635 = vunpack.c.l.b16 %v8337
    %v9636 = vunpack.c.h.b16 %v8337
    %v9637 = vunpack.c.l.b16 %v8338
    %v9638 = vunpack.c.h.b16 %v8338
    %v9639 = vunpack.c.l.b16 %v8339
    %v9640 = vunpack.c.h.b16 %v8339
    %v9641 = vunpack.c.l.b16 %v8340
    %v9642 = vunpack.c.h.b16 %v8340
    %v9643 = vunpack.c.l.b16 %v8341
    %v9644 = vunpack.c.h.b16 %v8341
    %v9645 = vunpack.c.l.b16 %v8342
    %v9646 = vunpack.c.h.b16 %v8342
    %v9647 = vunpack.c.l.b16 %v8343
    %v9648 = vunpack.c.h.b16 %v8343
    %v9649 = vunpack.c.l.b16 %v8344
    %v9650 = vunpack.c.h.b16 %v8344
    %v9651 = vunpack.c.l.b16 %v8345
    %v9652 = vunpack.c.h.b16 %v8345
    %v9653 = vunpack.c.l.b16 %v8346
    %v9654 = vunpack.c.h.b16 %v8346
    %v9655 = vunpack.c.l.b16 %v8347
    %v9656 = vunpack.c.h.b16 %v8347
    %v9657 = vunpack.c.l.b16 %v8348
    %v9658 = vunpack.c.h.b16 %v8348
    %v9659 = vunpack.c.l.b16 %v8349
    %v9660 = vunpack.c.h.b16 %v8349
    %v9661 = vunpack.c.l.b16 %v8350
    %v9662 = vunpack.c.h.b16 %v8350
    %v9663 = vunpack.c.l.b16 %v8351
    %v9664 = vunpack.c.h.b16 %v8351
    %v9665 = vunpack.c.l.b16 %v8352
    %v9666 = vunpack.c.h.b16 %v8352
    %v9667 = vunpack.c.l.b16 %v8353
    %v9668 = vunpack.c.h.b16 %v8353
    %v9669 = vunpack.c.l.b16 %v8354
    %v9670 = vunpack.c.h.b16 %v8354
    %v9671 = vunpack.c.l.b16 %v8355
    %v9672 = vunpack.c.h.b16 %v8355
    %v9673 = vunpack.c.l.b16 %v8356
    %v9674 = vunpack.c.h.b16 %v8356
    %v9675 = vunpack.c.l.b16 %v8357
    %v9676 = vunpack.c.h.b16 %v8357
    %v9677 = vunpack.c.l.b16 %v8358
    %v9678 = vunpack.c.h.b16 %v8358
    %v9679 = vunpack.c.l.b16 %v8359
    %v9680 = vunpack.c.h.b16 %v8359
    %v9681 = vunpack.c.l.b16 %v8360
    %v9682 = vunpack.c.h.b16 %v8360
    %v9683 = vunpack.c.l.b16 %v8361
    %v9684 = vunpack.c.h.b16 %v8361
    %v9685 = vunpack.c.l.b16 %v8362
    %v9686 = vunpack.c.h.b16 %v8362
    %v9687 = vunpack.c.l.b16 %v8363
    %v9688 = vunpack.c.h.b16 %v8363
    %v9689 = vunpack.c.l.b16 %v8364
    %v9690 = vunpack.c.h.b16 %v8364
    %v9691 = vunpack.c.l.b16 %v8365
    %v9692 = vunpack.c.h.b16 %v8365
    %v9693 = vunpack.c.l.b16 %v8366
    %v9694 = vunpack.c.h.b16 %v8366
    %v9695 = vunpack.c.l.b16 %v8367
    %v9696 = vunpack.c.h.b16 %v8367
    %v9697 = vunpack.c.l.b16 %v8368
    %v9698 = vunpack.c.h.b16 %v8368
    %v9699 = vunpack.c.l.b16 %v8369
    %v9700 = vunpack.c.h.b16 %v8369
    %v9701 = vunpack.c.l.b16 %v8370
    %v9702 = vunpack.c.h.b16 %v8370
    %v9703 = vunpack.c.l.b16 %v8371
    %v9704 = vunpack.c.h.b16 %v8371
    %v9705 = vunpack.c.l.b16 %v8372
    %v9706 = vunpack.c.h.b16 %v8372
    %v9707 = vunpack.c.l.b16 %v8373
    %v9708 = vunpack.c.h.b16 %v8373
    %v9709 = vunpack.c.l.b16 %v8374
    %v9710 = vunpack.c.h.b16 %v8374
    %v9711 = vunpack.c.l.b16 %v8375
    %v9712 = vunpack.c.h.b16 %v8375
    %v9713 = vunpack.c.l.b16 %v8376
    %v9714 = vunpack.c.h.b16 %v8376
    %v9715 = vunpack.c.l.b16 %v8377
    %v9716 = vunpack.c.h.b16 %v8377
    %v9717 = vunpack.c.l.b16 %v8378
    %v9718 = vunpack.c.h.b16 %v8378
    %v9719 = vunpack.c.l.b16 %v8379
    %v9720 = vunpack.c.h.b16 %v8379
    %v9721 = vunpack.c.l.b16 %v8380
    %v9722 = vunpack.c.h.b16 %v8380
    %v9723 = vunpack.c.l.b16 %v8381
    %v9724 = vunpack.c.h.b16 %v8381
    %v9725 = vunpack.c.l.b16 %v8382
    %v9726 = vunpack.c.h.b16 %v8382
    %v9727 = vunpack.c.l.b16 %v8383
    %v9728 = vunpack.c.h.b16 %v8383
    %v9729 = vunpack.c.l.b16 %v8384
    %v9730 = vunpack.c.h.b16 %v8384
    %v9731 = vunpack.c.l.b16 %v8385
    %v9732 = vunpack.c.h.b16 %v8385
    %v9733 = vunpack.c.l.b16 %v8386
    %v9734 = vunpack.c.h.b16 %v8386
    %v9735 = vunpack.c.l.b16 %v8387
    %v9736 = vunpack.c.h.b16 %v8387
    %v9737 = vunpack.c.l.b16 %v8388
    %v9738 = vunpack.c.h.b16 %v8388
    %v9739 = vunpack.c.l.b16 %v8389
    %v9740 = vunpack.c.h.b16 %v8389
    %v9741 = vunpack.c.l.b16 %v8390
    %v9742 = vunpack.c.h.b16 %v8390
    %v9743 = vunpack.c.l.b16 %v8391
    %v9744 = vunpack.c.h.b16 %v8391
    %v9745 = vunpack.c.l.b16 %v8392
    %v9746 = vunpack.c.h.b16 %v8392
    %v9747 = vunpack.c.l.b16 %v8393
    %v9748 = vunpack.c.h.b16 %v8393
    %v9749 = vunpack.c.l.b16 %v8394
    %v9750 = vunpack.c.h.b16 %v8394
    %v9751 = vunpack.c.l.b16 %v8395
    %v9752 = vunpack.c.h.b16 %v8395
    %v9753 = vunpack.c.l.b16 %v8396
    %v9754 = vunpack.c.h.b16 %v8396
    %v9755 = vunpack.c.l.b16 %v8397
    %v9756 = vunpack.c.h.b16 %v8397
    %v9757 = vunpack.c.l.b16 %v8398
    %v9758 = vunpack.c.h.b16 %v8398
    %v9759 = vunpack.c.l.b16 %v8399
    %v9760 = vunpack.c.h.b16 %v8399
    %v9761 = vunpack.c.l.b16 %v8400
    %v9762 = vunpack.c.h.b16 %v8400
    %v9763 = vunpack.c.l.b16 %v8401
    %v9764 = vunpack.c.h.b16 %v8401
    %v9765 = vunpack.c.l.b16 %v8402
    %v9766 = vunpack.c.h.b16 %v8402
    %v9767 = vunpack.c.l.b16 %v8403
    %v9768 = vunpack.c.h.b16 %v8403
    %v9769 = vunpack.c.l.b16 %v8404
    %v9770 = vunpack.c.h.b16 %v8404
    %v9771 = vunpack.c.l.b16 %v8405
    %v9772 = vunpack.c.h.b16 %v8405
    %v9773 = vunpack.c.l.b16 %v8406
    %v9774 = vunpack.c.h.b16 %v8406
    %v9775 = vunpack.c.l.b16 %v8407
    %v9776 = vunpack.c.h.b16 %v8407
    %v9777 = vunpack.c.l.b16 %v8408
    %v9778 = vunpack.c.h.b16 %v8408
    %v9779 = vunpack.c.l.b16 %v8409
    %v9780 = vunpack.c.h.b16 %v8409
    %v9781 = vunpack.c.l.b16 %v8410
    %v9782 = vunpack.c.h.b16 %v8410
    %v9783 = vunpack.c.l.b16 %v8411
    %v9784 = vunpack.c.h.b16 %v8411
    %v9785 = vunpack.c.l.b16 %v8412
    %v9786 = vunpack.c.h.b16 %v8412
    %v9787 = vunpack.c.l.b16 %v8413
    %v9788 = vunpack.c.h.b16 %v8413
    %v9789 = vunpack.c.l.b16 %v8414
    %v9790 = vunpack.c.h.b16 %v8414
    %v9791 = vunpack.c.l.b16 %v8415
    %v9792 = vunpack.c.h.b16 %v8415
    %v9793 = vunpack.c.l.b16 %v8416
    %v9794 = vunpack.c.h.b16 %v8416
    %v9795 = vunpack.c.l.b16 %v8417
    %v9796 = vunpack.c.h.b16 %v8417
    %v9797 = vunpack.c.l.b16 %v8418
    %v9798 = vunpack.c.h.b16 %v8418
    %v9799 = vunpack.c.l.b16 %v8419
    %v9800 = vunpack.c.h.b16 %v8419
    %v9801 = vunpack.c.l.b16 %v8420
    %v9802 = vunpack.c.h.b16 %v8420
    %v9803 = vunpack.c.l.b16 %v8421
    %v9804 = vunpack.c.h.b16 %v8421
    %v9805 = vunpack.c.l.b16 %v8422
    %v9806 = vunpack.c.h.b16 %v8422
    %v9807 = vunpack.c.l.b16 %v8423
    %v9808 = vunpack.c.h.b16 %v8423
    %v9809 = vunpack.c.l.b16 %v8424
    %v9810 = vunpack.c.h.b16 %v8424
    %v9811 = vunpack.c.l.b16 %v8425
    %v9812 = vunpack.c.h.b16 %v8425
    %v9813 = vunpack.c.l.b16 %v8426
    %v9814 = vunpack.c.h.b16 %v8426
    %v9815 = vunpack.c.l.b16 %v8427
    %v9816 = vunpack.c.h.b16 %v8427
    %v9817 = vunpack.c.l.b16 %v8428
    %v9818 = vunpack.c.h.b16 %v8428
    %v9819 = vunpack.c.l.b16 %v8429
    %v9820 = vunpack.c.h.b16 %v8429
    %v9821 = vunpack.c.l.b16 %v8430
    %v9822 = vunpack.c.h.b16 %v8430
    %v9823 = vunpack.c.l.b16 %v8431
    %v9824 = vunpack.c.h.b16 %v8431
    %v9825 = vunpack.c.l.b16 %v8432
    %v9826 = vunpack.c.h.b16 %v8432
    %v9827 = vunpack.c.l.b16 %v8433
    %v9828 = vunpack.c.h.b16 %v8433
    %v9829 = vunpack.c.l.b16 %v8434
    %v9830 = vunpack.c.h.b16 %v8434
    %v9831 = vunpack.c.l.b16 %v8435
    %v9832 = vunpack.c.h.b16 %v8435
    %v9833 = vunpack.c.l.b16 %v8436
    %v9834 = vunpack.c.h.b16 %v8436
    %v9835 = vunpack.c.l.b16 %v8437
    %v9836 = vunpack.c.h.b16 %v8437
    %v9837 = vunpack.c.l.b16 %v8438
    %v9838 = vunpack.c.h.b16 %v8438
    %v9839 = vunpack.c.l.b16 %v8439
    %v9840 = vunpack.c.h.b16 %v8439
    %v9841 = vunpack.c.l.b16 %v8440
    %v9842 = vunpack.c.h.b16 %v8440
    %v9843 = vunpack.c.l.b16 %v8441
    %v9844 = vunpack.c.h.b16 %v8441
    %v9845 = vunpack.c.l.b16 %v8442
    %v9846 = vunpack.c.h.b16 %v8442
    %v9847 = vunpack.c.l.b16 %v8443
    %v9848 = vunpack.c.h.b16 %v8443
    %v9849 = vunpack.c.l.b16 %v8444
    %v9850 = vunpack.c.h.b16 %v8444
    %v9851 = vunpack.c.l.b16 %v8445
    %v9852 = vunpack.c.h.b16 %v8445
    %v9853 = vunpack.c.l.b16 %v8446
    %v9854 = vunpack.c.h.b16 %v8446
    %v9855 = vunpack.c.l.b16 %v8447
    %v9856 = vunpack.c.h.b16 %v8447
    %v9857 = vunpack.c.l.b16 %v8448
    %v9858 = vunpack.c.h.b16 %v8448
    %v9859 = vunpack.c.l.b16 %v8449
    %v9860 = vunpack.c.h.b16 %v8449
    %v9861 = vunpack.c.l.b16 %v8450
    %v9862 = vunpack.c.h.b16 %v8450
    %v9863 = vunpack.c.l.b16 %v8451
    %v9864 = vunpack.c.h.b16 %v8451
    %v9865 = vunpack.c.l.b16 %v8452
    %v9866 = vunpack.c.h.b16 %v8452
    %v9867 = vunpack.c.l.b16 %v8453
    %v9868 = vunpack.c.h.b16 %v8453
    %v9869 = vunpack.c.l.b16 %v8454
    %v9870 = vunpack.c.h.b16 %v8454
    %v9871 = vunpack.c.l.b16 %v8455
    %v9872 = vunpack.c.h.b16 %v8455
    %v9873 = vunpack.c.l.b16 %v8456
    %v9874 = vunpack.c.h.b16 %v8456
    %v9875 = vunpack.c.l.b16 %v8457
    %v9876 = vunpack.c.h.b16 %v8457
    %v9877 = vunpack.c.l.b16 %v8458
    %v9878 = vunpack.c.h.b16 %v8458
    %v9879 = vunpack.c.l.b16 %v8459
    %v9880 = vunpack.c.h.b16 %v8459
    %v9881 = vunpack.c.l.b16 %v8460
    %v9882 = vunpack.c.h.b16 %v8460
    %v9883 = vunpack.c.l.b16 %v8461
    %v9884 = vunpack.c.h.b16 %v8461
    %v9885 = vunpack.c.l.b16 %v8462
    %v9886 = vunpack.c.h.b16 %v8462
    %v9887 = vunpack.c.l.b16 %v8463
    %v9888 = vunpack.c.h.b16 %v8463
    %v9889 = vunpack.c.l.b16 %v8464
    %v9890 = vunpack.c.h.b16 %v8464
    %v9891 = vunpack.c.l.b16 %v8465
    %v9892 = vunpack.c.h.b16 %v8465
    %v9893 = vunpack.c.l.b16 %v8466
    %v9894 = vunpack.c.h.b16 %v8466
    %v9895 = vunpack.c.l.b16 %v8467
    %v9896 = vunpack.c.h.b16 %v8467
    %v9897 = vunpack.c.l.b16 %v8468
    %v9898 = vunpack.c.h.b16 %v8468
    %v9899 = vunpack.c.l.b16 %v8469
    %v9900 = vunpack.c.h.b16 %v8469
    %v9901 = vunpack.c.l.b16 %v8470
    %v9902 = vunpack.c.h.b16 %v8470
    %v9903 = vunpack.c.l.b16 %v8471
    %v9904 = vunpack.c.h.b16 %v8471
    %v9905 = vunpack.c.l.b16 %v8472
    %v9906 = vunpack.c.h.b16 %v8472
    %v9907 = vunpack.c.l.b16 %v8473
    %v9908 = vunpack.c.h.b16 %v8473
    %v9909 = vunpack.c.l.b16 %v8474
    %v9910 = vunpack.c.h.b16 %v8474
    %v9911 = vunpack.c.l.b16 %v8475
    %v9912 = vunpack.c.h.b16 %v8475
    %v9913 = vunpack.c.l.b16 %v8476
    %v9914 = vunpack.c.h.b16 %v8476
    %v9915 = vunpack.c.l.b16 %v8477
    %v9916 = vunpack.c.h.b16 %v8477
    %v9917 = vunpack.c.l.b16 %v8478
    %v9918 = vunpack.c.h.b16 %v8478
    %v9919 = vunpack.c.l.b16 %v8479
    %v9920 = vunpack.c.h.b16 %v8479
    %v9921 = vunpack.c.l.b16 %v8480
    %v9922 = vunpack.c.h.b16 %v8480
    %v9923 = vunpack.c.l.b16 %v8481
    %v9924 = vunpack.c.h.b16 %v8481
    %v9925 = vunpack.c.l.b16 %v8482
    %v9926 = vunpack.c.h.b16 %v8482
    %v9927 = vunpack.c.l.b16 %v8483
    %v9928 = vunpack.c.h.b16 %v8483
    %v9929 = vunpack.c.l.b16 %v8484
    %v9930 = vunpack.c.h.b16 %v8484
    %v9931 = vunpack.c.l.b16 %v8485
    %v9932 = vunpack.c.h.b16 %v8485
    %v9933 = vunpack.c.l.b16 %v8486
    %v9934 = vunpack.c.h.b16 %v8486
    %v9935 = vunpack.c.l.b16 %v8487
    %v9936 = vunpack.c.h.b16 %v8487
    %v9937 = vunpack.c.l.b16 %v8488
    %v9938 = vunpack.c.h.b16 %v8488
    %v9939 = vunpack.c.l.b16 %v8489
    %v9940 = vunpack.c.h.b16 %v8489
    %v9941 = vunpack.c.l.b16 %v8490
    %v9942 = vunpack.c.h.b16 %v8490
    %v9943 = vunpack.c.l.b16 %v8491
    %v9944 = vunpack.c.h.b16 %v8491
    %v9945 = vunpack.c.l.b16 %v8492
    %v9946 = vunpack.c.h.b16 %v8492
    %v9947 = vunpack.c.l.b16 %v8493
    %v9948 = vunpack.c.h.b16 %v8493
    %v9949 = vunpack.c.l.b16 %v8494
    %v9950 = vunpack.c.h.b16 %v8494
    %v9951 = vunpack.c.l.b16 %v8495
    %v9952 = vunpack.c.h.b16 %v8495
    %v9953 = vunpack.c.l.b16 %v8496
    %v9954 = vunpack.c.h.b16 %v8496
    %v9955 = vunpack.c.l.b16 %v8497
    %v9956 = vunpack.c.h.b16 %v8497
    %v9957 = vunpack.c.l.b16 %v8498
    %v9958 = vunpack.c.h.b16 %v8498
    %v9959 = vunpack.c.l.b16 %v8499
    %v9960 = vunpack.c.h.b16 %v8499
    %v9961 = vunpack.c.l.b16 %v8500
    %v9962 = vunpack.c.h.b16 %v8500
    %v9963 = vunpack.c.l.b16 %v8501
    %v9964 = vunpack.c.h.b16 %v8501
    %v9965 = vunpack.c.l.b16 %v8502
    %v9966 = vunpack.c.h.b16 %v8502
    %v9967 = vunpack.c.l.b16 %v8503
    %v9968 = vunpack.c.h.b16 %v8503
    %v9969 = vunpack.c.l.b16 %v8504
    %v9970 = vunpack.c.h.b16 %v8504
    %v9971 = vunpack.c.l.b16 %v8505
    %v9972 = vunpack.c.h.b16 %v8505
    %v9973 = vunpack.c.l.b16 %v8506
    %v9974 = vunpack.c.h.b16 %v8506
    %v9975 = vunpack.c.l.b16 %v8507
    %v9976 = vunpack.c.h.b16 %v8507
    %v9977 = vunpack.c.l.b16 %v8508
    %v9978 = vunpack.c.h.b16 %v8508
    %v9979 = vunpack.c.l.b16 %v8509
    %v9980 = vunpack.c.h.b16 %v8509
    %v9981 = vunpack.c.l.b16 %v8510
    %v9982 = vunpack.c.h.b16 %v8510
    %v9983 = vunpack.c.l.b16 %v8511
    %v9984 = vunpack.c.h.b16 %v8511
    %v9985 = vunpack.c.l.b16 %v8512
    %v9986 = vunpack.c.h.b16 %v8512
    %v9987 = vunpack.c.l.b16 %v8513
    %v9988 = vunpack.c.h.b16 %v8513
    %v9989 = vunpack.c.l.b16 %v8514
    %v9990 = vunpack.c.h.b16 %v8514
    %v9991 = vunpack.c.l.b16 %v8515
    %v9992 = vunpack.c.h.b16 %v8515
    %v9993 = vunpack.c.l.b16 %v8516
    %v9994 = vunpack.c.h.b16 %v8516
    %v9995 = vunpack.c.l.b16 %v8517
    %v9996 = vunpack.c.h.b16 %v8517
    %v9997 = vunpack.c.l.b16 %v8518
    %v9998 = vunpack.c.h.b16 %v8518
    %v9999 = vunpack.c.l.b16 %v8519
    %v10000 = vunpack.c.h.b16 %v8519
    %v10001 = vunpack.c.l.b16 %v8520
    %v10002 = vunpack.c.h.b16 %v8520
    %v10003 = vunpack.c.l.b16 %v8521
    %v10004 = vunpack.c.h.b16 %v8521
    %v10005 = vunpack.c.l.b16 %v8522
    %v10006 = vunpack.c.h.b16 %v8522
    %v10007 = vunpack.c.l.b16 %v8523
    %v10008 = vunpack.c.h.b16 %v8523
    %v10009 = vunpack.c.l.b16 %v8524
    %v10010 = vunpack.c.h.b16 %v8524
    %v10011 = vunpack.c.l.b16 %v8525
    %v10012 = vunpack.c.h.b16 %v8525
    %v10013 = vunpack.c.l.b16 %v8526
    %v10014 = vunpack.c.h.b16 %v8526
    %v10015 = vunpack.c.l.b16 %v8527
    %v10016 = vunpack.c.h.b16 %v8527
    %v10017 = vunpack.c.l.b16 %v8528
    %v10018 = vunpack.c.h.b16 %v8528
    %v10019 = vunpack.c.l.b16 %v8529
    %v10020 = vunpack.c.h.b16 %v8529
    %v10021 = vunpack.c.l.b16 %v8530
    %v10022 = vunpack.c.h.b16 %v8530
    %v10023 = vunpack.c.l.b16 %v8531
    %v10024 = vunpack.c.h.b16 %v8531
    %v10025 = vunpack.c.l.b16 %v8532
    %v10026 = vunpack.c.h.b16 %v8532
    %v10027 = vunpack.c.l.b16 %v8533
    %v10028 = vunpack.c.h.b16 %v8533
    %v10029 = vunpack.c.l.b16 %v8534
    %v10030 = vunpack.c.h.b16 %v8534
    %v10031 = vunpack.c.l.b16 %v8535
    %v10032 = vunpack.c.h.b16 %v8535
    %v10033 = vunpack.c.l.b16 %v8536
    %v10034 = vunpack.c.h.b16 %v8536
    %v10035 = vunpack.c.l.b16 %v8537
    %v10036 = vunpack.c.h.b16 %v8537
    %v10037 = vunpack.c.l.b16 %v8538
    %v10038 = vunpack.c.h.b16 %v8538
    %v10039 = vunpack.c.l.b16 %v8539
    %v10040 = vunpack.c.h.b16 %v8539
    %v10041 = vunpack.c.l.b16 %v8540
    %v10042 = vunpack.c.h.b16 %v8540
    %v10043 = vunpack.c.l.b16 %v8541
    %v10044 = vunpack.c.h.b16 %v8541
    %v10045 = vunpack.c.l.b16 %v8542
    %v10046 = vunpack.c.h.b16 %v8542
    %v10047 = vunpack.c.l.b16 %v8543
    %v10048 = vunpack.c.h.b16 %v8543
    %v10049 = vunpack.c.l.b16 %v8544
    %v10050 = vunpack.c.h.b16 %v8544
    %v10051 = vunpack.c.l.b16 %v8545
    %v10052 = vunpack.c.h.b16 %v8545
    %v10053 = vunpack.c.l.b16 %v8546
    %v10054 = vunpack.c.h.b16 %v8546
    %v10055 = vunpack.c.l.b16 %v8547
    %v10056 = vunpack.c.h.b16 %v8547
    %v10057 = vunpack.c.l.b16 %v8548
    %v10058 = vunpack.c.h.b16 %v8548
    %v10059 = vunpack.c.l.b16 %v8549
    %v10060 = vunpack.c.h.b16 %v8549
    %v10061 = vunpack.c.l.b16 %v8550
    %v10062 = vunpack.c.h.b16 %v8550
    %v10063 = vunpack.c.l.b16 %v8551
    %v10064 = vunpack.c.h.b16 %v8551
    %v10065 = vunpack.c.l.b16 %v8552
    %v10066 = vunpack.c.h.b16 %v8552
    %v10067 = vunpack.c.l.b16 %v8553
    %v10068 = vunpack.c.h.b16 %v8553
    %v10069 = vunpack.c.l.b16 %v8554
    %v10070 = vunpack.c.h.b16 %v8554
    %v10071 = vunpack.c.l.b16 %v8555
    %v10072 = vunpack.c.h.b16 %v8555
    %v10073 = vunpack.c.l.b16 %v8556
    %v10074 = vunpack.c.h.b16 %v8556
    %v10075 = vunpack.c.l.b16 %v8557
    %v10076 = vunpack.c.h.b16 %v8557
    %v10077 = vunpack.c.l.b16 %v8558
    %v10078 = vunpack.c.h.b16 %v8558
    %v10079 = vunpack.c.l.b16 %v8559
    %v10080 = vunpack.c.h.b16 %v8559
    %v10081 = vunpack.c.l.b16 %v8560
    %v10082 = vunpack.c.h.b16 %v8560
    %v10083 = vunpack.c.l.b16 %v8561
    %v10084 = vunpack.c.h.b16 %v8561
    %v10085 = vunpack.c.l.b16 %v8562
    %v10086 = vunpack.c.h.b16 %v8562
    %v10087 = vunpack.c.l.b16 %v8563
    %v10088 = vunpack.c.h.b16 %v8563
    %v10089 = vunpack.c.l.b16 %v8564
    %v10090 = vunpack.c.h.b16 %v8564
    %v10091 = vunpack.c.l.b16 %v8565
    %v10092 = vunpack.c.h.b16 %v8565
    %v10093 = vunpack.c.l.b16 %v8566
    %v10094 = vunpack.c.h.b16 %v8566
    %v10095 = vunpack.c.l.b16 %v8567
    %v10096 = vunpack.c.h.b16 %v8567
    %v10097 = vunpack.c.l.b16 %v8568
    %v10098 = vunpack.c.h.b16 %v8568
    %v10099 = vunpack.c.l.b16 %v8569
    %v10100 = vunpack.c.h.b16 %v8569
    %v10101 = vunpack.c.l.b16 %v8570
    %v10102 = vunpack.c.h.b16 %v8570
    %v10103 = vunpack.c.l.b16 %v8571
    %v10104 = vunpack.c.h.b16 %v8571
    %v10105 = vunpack.c.l.b16 %v8572
    %v10106 = vunpack.c.h.b16 %v8572
    %v10107 = vunpack.c.l.b16 %v8573
    %v10108 = vunpack.c.h.b16 %v8573
    %v10109 = vunpack.c.l.b16 %v8574
    %v10110 = vunpack.c.h.b16 %v8574
    %v10111 = vunpack.c.l.b16 %v8575
    %v10112 = vunpack.c.h.b16 %v8575
    %v10113 = vunpack.c.l.b16 %v8576
    %v10114 = vunpack.c.h.b16 %v8576
    %v10115 = vunpack.c.l.b16 %v8577
    %v10116 = vunpack.c.h.b16 %v8577
    %v10117 = vunpack.c.l.b16 %v8578
    %v10118 = vunpack.c.h.b16 %v8578
    %v10119 = vunpack.c.l.b16 %v8579
    %v10120 = vunpack.c.h.b16 %v8579
    %v10121 = vunpack.c.l.b16 %v8580
    %v10122 = vunpack.c.h.b16 %v8580
    %v10123 = vunpack.c.l.b16 %v8581
    %v10124 = vunpack.c.h.b16 %v8581
    %v10125 = vunpack.c.l.b16 %v8582
    %v10126 = vunpack.c.h.b16 %v8582
    %v10127 = vunpack.c.l.b16 %v8583
    %v10128 = vunpack.c.h.b16 %v8583
    %v10129 = vunpack.c.l.b16 %v8584
    %v10130 = vunpack.c.h.b16 %v8584
    %v10131 = vunpack.c.l.b16 %v8585
    %v10132 = vunpack.c.h.b16 %v8585
    %v10133 = vunpack.c.l.b16 %v8586
    %v10134 = vunpack.c.h.b16 %v8586
    %v10135 = vunpack.c.l.b16 %v8587
    %v10136 = vunpack.c.h.b16 %v8587
    %v10137 = vunpack.c.l.b16 %v8588
    %v10138 = vunpack.c.h.b16 %v8588
    %v10139 = vunpack.c.l.b16 %v8589
    %v10140 = vunpack.c.h.b16 %v8589
    %v10141 = vunpack.c.l.b16 %v8590
    %v10142 = vunpack.c.h.b16 %v8590
    %v10143 = vunpack.c.l.b16 %v8591
    %v10144 = vunpack.c.h.b16 %v8591
    %v10145 = vunpack.c.l.b16 %v8592
    %v10146 = vunpack.c.h.b16 %v8592
    %v10147 = vpack.c.b16 %v9131, %v9123
    %v10148 = vpack.c.b16 %v9132, %v9124
    %v10149 = vpack.c.b16 %v9133, %v9125
    %v10150 = vpack.c.b16 %v9134, %v9126
    %v10151 = vpack.c.b16 %v9135, %v9127
    %v10152 = vpack.c.b16 %v9136, %v9128
    %v10153 = vpack.c.b16 %v9137, %v9129
    %v10154 = vpack.c.b16 %v9138, %v9130
    %v10155 = vpack.c.b16 %v9147, %v9139
    %v10156 = vpack.c.b16 %v9148, %v9140
    %v10157 = vpack.c.b16 %v9149, %v9141
    %v10158 = vpack.c.b16 %v9150, %v9142
    %v10159 = vpack.c.b16 %v9151, %v9143
    %v10160 = vpack.c.b16 %v9152, %v9144
    %v10161 = vpack.c.b16 %v9153, %v9145
    %v10162 = vpack.c.b16 %v9154, %v9146
    %v10163 = vpack.c.b16 %v9163, %v9155
    %v10164 = vpack.c.b16 %v9164, %v9156
    %v10165 = vpack.c.b16 %v9165, %v9157
    %v10166 = vpack.c.b16 %v9166, %v9158
    %v10167 = vpack.c.b16 %v9167, %v9159
    %v10168 = vpack.c.b16 %v9168, %v9160
    %v10169 = vpack.c.b16 %v9169, %v9161
    %v10170 = vpack.c.b16 %v9170, %v9162
    %v10171 = vpack.c.b16 %v9179, %v9171
    %v10172 = vpack.c.b16 %v9180, %v9172
    %v10173 = vpack.c.b16 %v9181, %v9173
    %v10174 = vpack.c.b16 %v9182, %v9174
    %v10175 = vpack.c.b16 %v9183, %v9175
    %v10176 = vpack.c.b16 %v9184, %v9176
    %v10177 = vpack.c.b16 %v9185, %v9177
    %v10178 = vpack.c.b16 %v9186, %v9178
    %v10179 = vpack.c.b16 %v9195, %v9187
    %v10180 = vpack.c.b16 %v9196, %v9188
    %v10181 = vpack.c.b16 %v9197, %v9189
    %v10182 = vpack.c.b16 %v9198, %v9190
    %v10183 = vpack.c.b16 %v9199, %v9191
    %v10184 = vpack.c.b16 %v9200, %v9192
    %v10185 = vpack.c.b16 %v9201, %v9193
    %v10186 = vpack.c.b16 %v9202, %v9194
    %v10187 = vpack.c.b16 %v9211, %v9203
    %v10188 = vpack.c.b16 %v9212, %v9204
    %v10189 = vpack.c.b16 %v9213, %v9205
    %v10190 = vpack.c.b16 %v9214, %v9206
    %v10191 = vpack.c.b16 %v9215, %v9207
    %v10192 = vpack.c.b16 %v9216, %v9208
    %v10193 = vpack.c.b16 %v9217, %v9209
    %v10194 = vpack.c.b16 %v9218, %v9210
    %v10195 = vpack.c.b16 %v9227, %v9219
    %v10196 = vpack.c.b16 %v9228, %v9220
    %v10197 = vpack.c.b16 %v9229, %v9221
    %v10198 = vpack.c.b16 %v9230, %v9222
    %v10199 = vpack.c.b16 %v9231, %v9223
    %v10200 = vpack.c.b16 %v9232, %v9224
    %v10201 = vpack.c.b16 %v9233, %v9225
    %v10202 = vpack.c.b16 %v9234, %v9226
    %v10203 = vpack.c.b16 %v9243, %v9235
    %v10204 = vpack.c.b16 %v9244, %v9236
    %v10205 = vpack.c.b16 %v9245, %v9237
    %v10206 = vpack.c.b16 %v9246, %v9238
    %v10207 = vpack.c.b16 %v9247, %v9239
    %v10208 = vpack.c.b16 %v9248, %v9240
    %v10209 = vpack.c.b16 %v9249, %v9241
    %v10210 = vpack.c.b16 %v9250, %v9242
    %v10211 = vpack.c.b16 %v9259, %v9251
    %v10212 = vpack.c.b16 %v9260, %v9252
    %v10213 = vpack.c.b16 %v9261, %v9253
    %v10214 = vpack.c.b16 %v9262, %v9254
    %v10215 = vpack.c.b16 %v9263, %v9255
    %v10216 = vpack.c.b16 %v9264, %v9256
    %v10217 = vpack.c.b16 %v9265, %v9257
    %v10218 = vpack.c.b16 %v9266, %v9258
    %v10219 = vpack.c.b16 %v9275, %v9267
    %v10220 = vpack.c.b16 %v9276, %v9268
    %v10221 = vpack.c.b16 %v9277, %v9269
    %v10222 = vpack.c.b16 %v9278, %v9270
    %v10223 = vpack.c.b16 %v9279, %v9271
    %v10224 = vpack.c.b16 %v9280, %v9272
    %v10225 = vpack.c.b16 %v9281, %v9273
    %v10226 = vpack.c.b16 %v9282, %v9274
    %v10227 = vpack.c.b16 %v9291, %v9283
    %v10228 = vpack.c.b16 %v9292, %v9284
    %v10229 = vpack.c.b16 %v9293, %v9285
    %v10230 = vpack.c.b16 %v9294, %v9286
    %v10231 = vpack.c.b16 %v9295, %v9287
    %v10232 = vpack.c.b16 %v9296, %v9288
    %v10233 = vpack.c.b16 %v9297, %v9289
    %v10234 = vpack.c.b16 %v9298, %v9290
    %v10235 = vpack.c.b16 %v9307, %v9299
    %v10236 = vpack.c.b16 %v9308, %v9300
    %v10237 = vpack.c.b16 %v9309, %v9301
    %v10238 = vpack.c.b16 %v9310, %v9302
    %v10239 = vpack.c.b16 %v9311, %v9303
    %v10240 = vpack.c.b16 %v9312, %v9304
    %v10241 = vpack.c.b16 %v9313, %v9305
    %v10242 = vpack.c.b16 %v9314, %v9306
    %v10243 = vpack.c.b16 %v9323, %v9315
    %v10244 = vpack.c.b16 %v9324, %v9316
    %v10245 = vpack.c.b16 %v9325, %v9317
    %v10246 = vpack.c.b16 %v9326, %v9318
    %v10247 = vpack.c.b16 %v9327, %v9319
    %v10248 = vpack.c.b16 %v9328, %v9320
    %v10249 = vpack.c.b16 %v9329, %v9321
    %v10250 = vpack.c.b16 %v9330, %v9322
    %v10251 = vpack.c.b16 %v9339, %v9331
    %v10252 = vpack.c.b16 %v9340, %v9332
    %v10253 = vpack.c.b16 %v9341, %v9333
    %v10254 = vpack.c.b16 %v9342, %v9334
    %v10255 = vpack.c.b16 %v9343, %v9335
    %v10256 = vpack.c.b16 %v9344, %v9336
    %v10257 = vpack.c.b16 %v9345, %v9337
    %v10258 = vpack.c.b16 %v9346, %v9338
    %v10259 = vpack.c.b16 %v9355, %v9347
    %v10260 = vpack.c.b16 %v9356, %v9348
    %v10261 = vpack.c.b16 %v9357, %v9349
    %v10262 = vpack.c.b16 %v9358, %v9350
    %v10263 = vpack.c.b16 %v9359, %v9351
    %v10264 = vpack.c.b16 %v9360, %v9352
    %v10265 = vpack.c.b16 %v9361, %v9353
    %v10266 = vpack.c.b16 %v9362, %v9354
    %v10267 = vpack.c.b16 %v9371, %v9363
    %v10268 = vpack.c.b16 %v9372, %v9364
    %v10269 = vpack.c.b16 %v9373, %v9365
    %v10270 = vpack.c.b16 %v9374, %v9366
    %v10271 = vpack.c.b16 %v9375, %v9367
    %v10272 = vpack.c.b16 %v9376, %v9368
    %v10273 = vpack.c.b16 %v9377, %v9369
    %v10274 = vpack.c.b16 %v9378, %v9370
    %v10275 = vpack.c.b16 %v9387, %v9379
    %v10276 = vpack.c.b16 %v9388, %v9380
    %v10277 = vpack.c.b16 %v9389, %v9381
    %v10278 = vpack.c.b16 %v9390, %v9382
    %v10279 = vpack.c.b16 %v9391, %v9383
    %v10280 = vpack.c.b16 %v9392, %v9384
    %v10281 = vpack.c.b16 %v9393, %v9385
    %v10282 = vpack.c.b16 %v9394, %v9386
    %v10283 = vpack.c.b16 %v9403, %v9395
    %v10284 = vpack.c.b16 %v9404, %v9396
    %v10285 = vpack.c.b16 %v9405, %v9397
    %v10286 = vpack.c.b16 %v9406, %v9398
    %v10287 = vpack.c.b16 %v9407, %v9399
    %v10288 = vpack.c.b16 %v9408, %v9400
    %v10289 = vpack.c.b16 %v9409, %v9401
    %v10290 = vpack.c.b16 %v9410, %v9402
    %v10291 = vpack.c.b16 %v9419, %v9411
    %v10292 = vpack.c.b16 %v9420, %v9412
    %v10293 = vpack.c.b16 %v9421, %v9413
    %v10294 = vpack.c.b16 %v9422, %v9414
    %v10295 = vpack.c.b16 %v9423, %v9415
    %v10296 = vpack.c.b16 %v9424, %v9416
    %v10297 = vpack.c.b16 %v9425, %v9417
    %v10298 = vpack.c.b16 %v9426, %v9418
    %v10299 = vpack.c.b16 %v9435, %v9427
    %v10300 = vpack.c.b16 %v9436, %v9428
    %v10301 = vpack.c.b16 %v9437, %v9429
    %v10302 = vpack.c.b16 %v9438, %v9430
    %v10303 = vpack.c.b16 %v9439, %v9431
    %v10304 = vpack.c.b16 %v9440, %v9432
    %v10305 = vpack.c.b16 %v9441, %v9433
    %v10306 = vpack.c.b16 %v9442, %v9434
    %v10307 = vpack.c.b16 %v9451, %v9443
    %v10308 = vpack.c.b16 %v9452, %v9444
    %v10309 = vpack.c.b16 %v9453, %v9445
    %v10310 = vpack.c.b16 %v9454, %v9446
    %v10311 = vpack.c.b16 %v9455, %v9447
    %v10312 = vpack.c.b16 %v9456, %v9448
    %v10313 = vpack.c.b16 %v9457, %v9449
    %v10314 = vpack.c.b16 %v9458, %v9450
    %v10315 = vpack.c.b16 %v9467, %v9459
    %v10316 = vpack.c.b16 %v9468, %v9460
    %v10317 = vpack.c.b16 %v9469, %v9461
    %v10318 = vpack.c.b16 %v9470, %v9462
    %v10319 = vpack.c.b16 %v9471, %v9463
    %v10320 = vpack.c.b16 %v9472, %v9464
    %v10321 = vpack.c.b16 %v9473, %v9465
    %v10322 = vpack.c.b16 %v9474, %v9466
    %v10323 = vpack.c.b16 %v9483, %v9475
    %v10324 = vpack.c.b16 %v9484, %v9476
    %v10325 = vpack.c.b16 %v9485, %v9477
    %v10326 = vpack.c.b16 %v9486, %v9478
    %v10327 = vpack.c.b16 %v9487, %v9479
    %v10328 = vpack.c.b16 %v9488, %v9480
    %v10329 = vpack.c.b16 %v9489, %v9481
    %v10330 = vpack.c.b16 %v9490, %v9482
    %v10331 = vpack.c.b16 %v9499, %v9491
    %v10332 = vpack.c.b16 %v9500, %v9492
    %v10333 = vpack.c.b16 %v9501, %v9493
    %v10334 = vpack.c.b16 %v9502, %v9494
    %v10335 = vpack.c.b16 %v9503, %v9495
    %v10336 = vpack.c.b16 %v9504, %v9496
    %v10337 = vpack.c.b16 %v9505, %v9497
    %v10338 = vpack.c.b16 %v9506, %v9498
    %v10339 = vpack.c.b16 %v9515, %v9507
    %v10340 = vpack.c.b16 %v9516, %v9508
    %v10341 = vpack.c.b16 %v9517, %v9509
    %v10342 = vpack.c.b16 %v9518, %v9510
    %v10343 = vpack.c.b16 %v9519, %v9511
    %v10344 = vpack.c.b16 %v9520, %v9512
    %v10345 = vpack.c.b16 %v9521, %v9513
    %v10346 = vpack.c.b16 %v9522, %v9514
    %v10347 = vpack.c.b16 %v9531, %v9523
    %v10348 = vpack.c.b16 %v9532, %v9524
    %v10349 = vpack.c.b16 %v9533, %v9525
    %v10350 = vpack.c.b16 %v9534, %v9526
    %v10351 = vpack.c.b16 %v9535, %v9527
    %v10352 = vpack.c.b16 %v9536, %v9528
    %v10353 = vpack.c.b16 %v9537, %v9529
    %v10354 = vpack.c.b16 %v9538, %v9530
    %v10355 = vpack.c.b16 %v9547, %v9539
    %v10356 = vpack.c.b16 %v9548, %v9540
    %v10357 = vpack.c.b16 %v9549, %v9541
    %v10358 = vpack.c.b16 %v9550, %v9542
    %v10359 = vpack.c.b16 %v9551, %v9543
    %v10360 = vpack.c.b16 %v9552, %v9544
    %v10361 = vpack.c.b16 %v9553, %v9545
    %v10362 = vpack.c.b16 %v9554, %v9546
    %v10363 = vpack.c.b16 %v9563, %v9555
    %v10364 = vpack.c.b16 %v9564, %v9556
    %v10365 = vpack.c.b16 %v9565, %v9557
    %v10366 = vpack.c.b16 %v9566, %v9558
    %v10367 = vpack.c.b16 %v9567, %v9559
    %v10368 = vpack.c.b16 %v9568, %v9560
    %v10369 = vpack.c.b16 %v9569, %v9561
    %v10370 = vpack.c.b16 %v9570, %v9562
    %v10371 = vpack.c.b16 %v9579, %v9571
    %v10372 = vpack.c.b16 %v9580, %v9572
    %v10373 = vpack.c.b16 %v9581, %v9573
    %v10374 = vpack.c.b16 %v9582, %v9574
    %v10375 = vpack.c.b16 %v9583, %v9575
    %v10376 = vpack.c.b16 %v9584, %v9576
    %v10377 = vpack.c.b16 %v9585, %v9577
    %v10378 = vpack.c.b16 %v9586, %v9578
    %v10379 = vpack.c.b16 %v9595, %v9587
    %v10380 = vpack.c.b16 %v9596, %v9588
    %v10381 = vpack.c.b16 %v9597, %v9589
    %v10382 = vpack.c.b16 %v9598, %v9590
    %v10383 = vpack.c.b16 %v9599, %v9591
    %v10384 = vpack.c.b16 %v9600, %v9592
    %v10385 = vpack.c.b16 %v9601, %v9593
    %v10386 = vpack.c.b16 %v9602, %v9594
    %v10387 = vpack.c.b16 %v9611, %v9603
    %v10388 = vpack.c.b16 %v9612, %v9604
    %v10389 = vpack.c.b16 %v9613, %v9605
    %v10390 = vpack.c.b16 %v9614, %v9606
    %v10391 = vpack.c.b16 %v9615, %v9607
    %v10392 = vpack.c.b16 %v9616, %v9608
    %v10393 = vpack.c.b16 %v9617, %v9609
    %v10394 = vpack.c.b16 %v9618, %v9610
    %v10395 = vpack.c.b16 %v9627, %v9619
    %v10396 = vpack.c.b16 %v9628, %v9620
    %v10397 = vpack.c.b16 %v9629, %v9621
    %v10398 = vpack.c.b16 %v9630, %v9622
    %v10399 = vpack.c.b16 %v9631, %v9623
    %v10400 = vpack.c.b16 %v9632, %v9624
    %v10401 = vpack.c.b16 %v9633, %v9625
    %v10402 = vpack.c.b16 %v9634, %v9626
    %v10403 = vpack.c.b16 %v9643, %v9635
    %v10404 = vpack.c.b16 %v9644, %v9636
    %v10405 = vpack.c.b16 %v9645, %v9637
    %v10406 = vpack.c.b16 %v9646, %v9638
    %v10407 = vpack.c.b16 %v9647, %v9639
    %v10408 = vpack.c.b16 %v9648, %v9640
    %v10409 = vpack.c.b16 %v9649, %v9641
    %v10410 = vpack.c.b16 %v9650, %v9642
    %v10411 = vpack.c.b16 %v9659, %v9651
    %v10412 = vpack.c.b16 %v9660, %v9652
    %v10413 = vpack.c.b16 %v9661, %v9653
    %v10414 = vpack.c.b16 %v9662, %v9654
    %v10415 = vpack.c.b16 %v9663, %v9655
    %v10416 = vpack.c.b16 %v9664, %v9656
    %v10417 = vpack.c.b16 %v9665, %v9657
    %v10418 = vpack.c.b16 %v9666, %v9658
    %v10419 = vpack.c.b16 %v9675, %v9667
    %v10420 = vpack.c.b16 %v9676, %v9668
    %v10421 = vpack.c.b16 %v9677, %v9669
    %v10422 = vpack.c.b16 %v9678, %v9670
    %v10423 = vpack.c.b16 %v9679, %v9671
    %v10424 = vpack.c.b16 %v9680, %v9672
    %v10425 = vpack.c.b16 %v9681, %v9673
    %v10426 = vpack.c.b16 %v9682, %v9674
    %v10427 = vpack.c.b16 %v9691, %v9683
    %v10428 = vpack.c.b16 %v9692, %v9684
    %v10429 = vpack.c.b16 %v9693, %v9685
    %v10430 = vpack.c.b16 %v9694, %v9686
    %v10431 = vpack.c.b16 %v9695, %v9687
    %v10432 = vpack.c.b16 %v9696, %v9688
    %v10433 = vpack.c.b16 %v9697, %v9689
    %v10434 = vpack.c.b16 %v9698, %v9690
    %v10435 = vpack.c.b16 %v9707, %v9699
    %v10436 = vpack.c.b16 %v9708, %v9700
    %v10437 = vpack.c.b16 %v9709, %v9701
    %v10438 = vpack.c.b16 %v9710, %v9702
    %v10439 = vpack.c.b16 %v9711, %v9703
    %v10440 = vpack.c.b16 %v9712, %v9704
    %v10441 = vpack.c.b16 %v9713, %v9705
    %v10442 = vpack.c.b16 %v9714, %v9706
    %v10443 = vpack.c.b16 %v9723, %v9715
    %v10444 = vpack.c.b16 %v9724, %v9716
    %v10445 = vpack.c.b16 %v9725, %v9717
    %v10446 = vpack.c.b16 %v9726, %v9718
    %v10447 = vpack.c.b16 %v9727, %v9719
    %v10448 = vpack.c.b16 %v9728, %v9720
    %v10449 = vpack.c.b16 %v9729, %v9721
    %v10450 = vpack.c.b16 %v9730, %v9722
    %v10451 = vpack.c.b16 %v9739, %v9731
    %v10452 = vpack.c.b16 %v9740, %v9732
    %v10453 = vpack.c.b16 %v9741, %v9733
    %v10454 = vpack.c.b16 %v9742, %v9734
    %v10455 = vpack.c.b16 %v9743, %v9735
    %v10456 = vpack.c.b16 %v9744, %v9736
    %v10457 = vpack.c.b16 %v9745, %v9737
    %v10458 = vpack.c.b16 %v9746, %v9738
    %v10459 = vpack.c.b16 %v9755, %v9747
    %v10460 = vpack.c.b16 %v9756, %v9748
    %v10461 = vpack.c.b16 %v9757, %v9749
    %v10462 = vpack.c.b16 %v9758, %v9750
    %v10463 = vpack.c.b16 %v9759, %v9751
    %v10464 = vpack.c.b16 %v9760, %v9752
    %v10465 = vpack.c.b16 %v9761, %v9753
    %v10466 = vpack.c.b16 %v9762, %v9754
    %v10467 = vpack.c.b16 %v9771, %v9763
    %v10468 = vpack.c.b16 %v9772, %v9764
    %v10469 = vpack.c.b16 %v9773, %v9765
    %v10470 = vpack.c.b16 %v9774, %v9766
    %v10471 = vpack.c.b16 %v9775, %v9767
    %v10472 = vpack.c.b16 %v9776, %v9768
    %v10473 = vpack.c.b16 %v9777, %v9769
    %v10474 = vpack.c.b16 %v9778, %v9770
    %v10475 = vpack.c.b16 %v9787, %v9779
    %v10476 = vpack.c.b16 %v9788, %v9780
    %v10477 = vpack.c.b16 %v9789, %v9781
    %v10478 = vpack.c.b16 %v9790, %v9782
    %v10479 = vpack.c.b16 %v9791, %v9783
    %v10480 = vpack.c.b16 %v9792, %v9784
    %v10481 = vpack.c.b16 %v9793, %v9785
    %v10482 = vpack.c.b16 %v9794, %v9786
    %v10483 = vpack.c.b16 %v9803, %v9795
    %v10484 = vpack.c.b16 %v9804, %v9796
    %v10485 = vpack.c.b16 %v9805, %v9797
    %v10486 = vpack.c.b16 %v9806, %v9798
    %v10487 = vpack.c.b16 %v9807, %v9799
    %v10488 = vpack.c.b16 %v9808, %v9800
    %v10489 = vpack.c.b16 %v9809, %v9801
    %v10490 = vpack.c.b16 %v9810, %v9802
    %v10491 = vpack.c.b16 %v9819, %v9811
    %v10492 = vpack.c.b16 %v9820, %v9812
    %v10493 = vpack.c.b16 %v9821, %v9813
    %v10494 = vpack.c.b16 %v9822, %v9814
    %v10495 = vpack.c.b16 %v9823, %v9815
    %v10496 = vpack.c.b16 %v9824, %v9816
    %v10497 = vpack.c.b16 %v9825, %v9817
    %v10498 = vpack.c.b16 %v9826, %v9818
    %v10499 = vpack.c.b16 %v9835, %v9827
    %v10500 = vpack.c.b16 %v9836, %v9828
    %v10501 = vpack.c.b16 %v9837, %v9829
    %v10502 = vpack.c.b16 %v9838, %v9830
    %v10503 = vpack.c.b16 %v9839, %v9831
    %v10504 = vpack.c.b16 %v9840, %v9832
    %v10505 = vpack.c.b16 %v9841, %v9833
    %v10506 = vpack.c.b16 %v9842, %v9834
    %v10507 = vpack.c.b16 %v9851, %v9843
    %v10508 = vpack.c.b16 %v9852, %v9844
    %v10509 = vpack.c.b16 %v9853, %v9845
    %v10510 = vpack.c.b16 %v9854, %v9846
    %v10511 = vpack.c.b16 %v9855, %v9847
    %v10512 = vpack.c.b16 %v9856, %v9848
    %v10513 = vpack.c.b16 %v9857, %v9849
    %v10514 = vpack.c.b16 %v9858, %v9850
    %v10515 = vpack.c.b16 %v9867, %v9859
    %v10516 = vpack.c.b16 %v9868, %v9860
    %v10517 = vpack.c.b16 %v9869, %v9861
    %v10518 = vpack.c.b16 %v9870, %v9862
    %v10519 = vpack.c.b16 %v9871, %v9863
    %v10520 = vpack.c.b16 %v9872, %v9864
    %v10521 = vpack.c.b16 %v9873, %v9865
    %v10522 = vpack.c.b16 %v9874, %v9866
    %v10523 = vpack.c.b16 %v9883, %v9875
    %v10524 = vpack.c.b16 %v9884, %v9876
    %v10525 = vpack.c.b16 %v9885, %v9877
    %v10526 = vpack.c.b16 %v9886, %v9878
    %v10527 = vpack.c.b16 %v9887, %v9879
    %v10528 = vpack.c.b16 %v9888, %v9880
    %v10529 = vpack.c.b16 %v9889, %v9881
    %v10530 = vpack.c.b16 %v9890, %v9882
    %v10531 = vpack.c.b16 %v9899, %v9891
    %v10532 = vpack.c.b16 %v9900, %v9892
    %v10533 = vpack.c.b16 %v9901, %v9893
    %v10534 = vpack.c.b16 %v9902, %v9894
    %v10535 = vpack.c.b16 %v9903, %v9895
    %v10536 = vpack.c.b16 %v9904, %v9896
    %v10537 = vpack.c.b16 %v9905, %v9897
    %v10538 = vpack.c.b16 %v9906, %v9898
    %v10539 = vpack.c.b16 %v9915, %v9907
    %v10540 = vpack.c.b16 %v9916, %v9908
    %v10541 = vpack.c.b16 %v9917, %v9909
    %v10542 = vpack.c.b16 %v9918, %v9910
    %v10543 = vpack.c.b16 %v9919, %v9911
    %v10544 = vpack.c.b16 %v9920, %v9912
    %v10545 = vpack.c.b16 %v9921, %v9913
    %v10546 = vpack.c.b16 %v9922, %v9914
    %v10547 = vpack.c.b16 %v9931, %v9923
    %v10548 = vpack.c.b16 %v9932, %v9924
    %v10549 = vpack.c.b16 %v9933, %v9925
    %v10550 = vpack.c.b16 %v9934, %v9926
    %v10551 = vpack.c.b16 %v9935, %v9927
    %v10552 = vpack.c.b16 %v9936, %v9928
    %v10553 = vpack.c.b16 %v9937, %v9929
    %v10554 = vpack.c.b16 %v9938, %v9930
    %v10555 = vpack.c.b16 %v9947, %v9939
    %v10556 = vpack.c.b16 %v9948, %v9940
    %v10557 = vpack.c.b16 %v9949, %v9941
    %v10558 = vpack.c.b16 %v9950, %v9942
    %v10559 = vpack.c.b16 %v9951, %v9943
    %v10560 = vpack.c.b16 %v9952, %v9944
    %v10561 = vpack.c.b16 %v9953, %v9945
    %v10562 = vpack.c.b16 %v9954, %v9946
    %v10563 = vpack.c.b16 %v9963, %v9955
    %v10564 = vpack.c.b16 %v9964, %v9956
    %v10565 = vpack.c.b16 %v9965, %v9957
    %v10566 = vpack.c.b16 %v9966, %v9958
    %v10567 = vpack.c.b16 %v9967, %v9959
    %v10568 = vpack.c.b16 %v9968, %v9960
    %v10569 = vpack.c.b16 %v9969, %v9961
    %v10570 = vpack.c.b16 %v9970, %v9962
    %v10571 = vpack.c.b16 %v9979, %v9971
    %v10572 = vpack.c.b16 %v9980, %v9972
    %v10573 = vpack.c.b16 %v9981, %v9973
    %v10574 = vpack.c.b16 %v9982, %v9974
    %v10575 = vpack.c.b16 %v9983, %v9975
    %v10576 = vpack.c.b16 %v9984, %v9976
    %v10577 = vpack.c.b16 %v9985, %v9977
    %v10578 = vpack.c.b16 %v9986, %v9978
    %v10579 = vpack.c.b16 %v9995, %v9987
    %v10580 = vpack.c.b16 %v9996, %v9988
    %v10581 = vpack.c.b16 %v9997, %v9989
    %v10582 = vpack.c.b16 %v9998, %v9990
    %v10583 = vpack.c.b16 %v9999, %v9991
    %v10584 = vpack.c.b16 %v10000, %v9992
    %v10585 = vpack.c.b16 %v10001, %v9993
    %v10586 = vpack.c.b16 %v10002, %v9994
    %v10587 = vpack.c.b16 %v10011, %v10003
    %v10588 = vpack.c.b16 %v10012, %v10004
    %v10589 = vpack.c.b16 %v10013, %v10005
    %v10590 = vpack.c.b16 %v10014, %v10006
    %v10591 = vpack.c.b16 %v10015, %v10007
    %v10592 = vpack.c.b16 %v10016, %v10008
    %v10593 = vpack.c.b16 %v10017, %v10009
    %v10594 = vpack.c.b16 %v10018, %v10010
    %v10595 = vpack.c.b16 %v10027, %v10019
    %v10596 = vpack.c.b16 %v10028, %v10020
    %v10597 = vpack.c.b16 %v10029, %v10021
    %v10598 = vpack.c.b16 %v10030, %v10022
    %v10599 = vpack.c.b16 %v10031, %v10023
    %v10600 = vpack.c.b16 %v10032, %v10024
    %v10601 = vpack.c.b16 %v10033, %v10025
    %v10602 = vpack.c.b16 %v10034, %v10026
    %v10603 = vpack.c.b16 %v10043, %v10035
    %v10604 = vpack.c.b16 %v10044, %v10036
    %v10605 = vpack.c.b16 %v10045, %v10037
    %v10606 = vpack.c.b16 %v10046, %v10038
    %v10607 = vpack.c.b16 %v10047, %v10039
    %v10608 = vpack.c.b16 %v10048, %v10040
    %v10609 = vpack.c.b16 %v10049, %v10041
    %v10610 = vpack.c.b16 %v10050, %v10042
    %v10611 = vpack.c.b16 %v10059, %v10051
    %v10612 = vpack.c.b16 %v10060, %v10052
    %v10613 = vpack.c.b16 %v10061, %v10053
    %v10614 = vpack.c.b16 %v10062, %v10054
    %v10615 = vpack.c.b16 %v10063, %v10055
    %v10616 = vpack.c.b16 %v10064, %v10056
    %v10617 = vpack.c.b16 %v10065, %v10057
    %v10618 = vpack.c.b16 %v10066, %v10058
    %v10619 = vpack.c.b16 %v10075, %v10067
    %v10620 = vpack.c.b16 %v10076, %v10068
    %v10621 = vpack.c.b16 %v10077, %v10069
    %v10622 = vpack.c.b16 %v10078, %v10070
    %v10623 = vpack.c.b16 %v10079, %v10071
    %v10624 = vpack.c.b16 %v10080, %v10072
    %v10625 = vpack.c.b16 %v10081, %v10073
    %v10626 = vpack.c.b16 %v10082, %v10074
    %v10627 = vpack.c.b16 %v10091, %v10083
    %v10628 = vpack.c.b16 %v10092, %v10084
    %v10629 = vpack.c.b16 %v10093, %v10085
    %v10630 = vpack.c.b16 %v10094, %v10086
    %v10631 = vpack.c.b16 %v10095, %v10087
    %v10632 = vpack.c.b16 %v10096, %v10088
    %v10633 = vpack.c.b16 %v10097, %v10089
    %v10634 = vpack.c.b16 %v10098, %v10090
    %v10635 = vpack.c.b16 %v10107, %v10099
    %v10636 = vpack.c.b16 %v10108, %v10100
    %v10637 = vpack.c.b16 %v10109, %v10101
    %v10638 = vpack.c.b16 %v10110, %v10102
    %v10639 = vpack.c.b16 %v10111, %v10103
    %v10640 = vpack.c.b16 %v10112, %v10104
    %v10641 = vpack.c.b16 %v10113, %v10105
    %v10642 = vpack.c.b16 %v10114, %v10106
    %v10643 = vpack.c.b16 %v10123, %v10115
    %v10644 = vpack.c.b16 %v10124, %v10116
    %v10645 = vpack.c.b16 %v10125, %v10117
    %v10646 = vpack.c.b16 %v10126, %v10118
    %v10647 = vpack.c.b16 %v10127, %v10119
    %v10648 = vpack.c.b16 %v10128, %v10120
    %v10649 = vpack.c.b16 %v10129, %v10121
    %v10650 = vpack.c.b16 %v10130, %v10122
    %v10651 = vpack.c.b16 %v10139, %v10131
    %v10652 = vpack.c.b16 %v10140, %v10132
    %v10653 = vpack.c.b16 %v10141, %v10133
    %v10654 = vpack.c.b16 %v10142, %v10134
    %v10655 = vpack.c.b16 %v10143, %v10135
    %v10656 = vpack.c.b16 %v10144, %v10136
    %v10657 = vpack.c.b16 %v10145, %v10137
    %v10658 = vpack.c.b16 %v10146, %v10138
    %11171 = vmatpush.bf16.msra.mxu0 %v10203
    %11172 = vmatpush.bf16.msra.mxu0 %v10195
    %11173 = vmatpush.bf16.msra.mxu0 %v10187
    %11174 = vmatpush.bf16.msra.mxu0 %v10179
    %11175 = vmatpush.bf16.msra.mxu0 %v10171
    %11176 = vmatpush.bf16.msra.mxu0 %v10163
    %11177 = vmatpush.bf16.msra.mxu0 %v10155
    %11178 = vmatpush.bf16.msra.mxu0 %v10147
    %11179 = vmatmul.bf16.gmra.mxu0 %v8073
    %v11180 = vpop.f32.mrf.mxu0
    %v11181 = vadd.f32 %v8595, %v11180
    %v11182 = vpop.f32.mrf.mxu0
    %v11183 = vadd.f32 %v8595, %v11182
    %11184 = vdwg.mxu0
    %11185 = vmatpush.bf16.msra.mxu0 %v10267
    %11186 = vmatpush.bf16.msra.mxu0 %v10259
    %11187 = vmatpush.bf16.msra.mxu0 %v10251
    %11188 = vmatpush.bf16.msra.mxu0 %v10243
    %11189 = vmatpush.bf16.msra.mxu0 %v10235
    %11190 = vmatpush.bf16.msra.mxu0 %v10227
    %11191 = vmatpush.bf16.msra.mxu0 %v10219
    %11192 = vmatpush.bf16.msra.mxu0 %v10211
    %11193 = vmatmul.bf16.gmra.mxu0 %v8074
    %v11194 = vpop.f32.mrf.mxu0
    %v11195 = vadd.f32 %v11181, %v11194
    %v11196 = vpop.f32.mrf.mxu0
    %v11197 = vadd.f32 %v11183, %v11196
    %11198 = vdwg.mxu0
    %11199 = vmatpush.bf16.msra.mxu0 %v10331
    %11200 = vmatpush.bf16.msra.mxu0 %v10323
    %11201 = vmatpush.bf16.msra.mxu0 %v10315
    %11202 = vmatpush.bf16.msra.mxu0 %v10307
    %11203 = vmatpush.bf16.msra.mxu0 %v10299
    %11204 = vmatpush.bf16.msra.mxu0 %v10291
    %11205 = vmatpush.bf16.msra.mxu0 %v10283
    %11206 = vmatpush.bf16.msra.mxu0 %v10275
    %11207 = vmatmul.bf16.gmra.mxu0 %v8075
    %v11208 = vpop.f32.mrf.mxu0
    %v11209 = vadd.f32 %v11195, %v11208
    %v11210 = vpop.f32.mrf.mxu0
    %v11211 = vadd.f32 %v11197, %v11210
    %11212 = vdwg.mxu0
    %11213 = vmatpush.bf16.msra.mxu0 %v10395
    %11214 = vmatpush.bf16.msra.mxu0 %v10387
    %11215 = vmatpush.bf16.msra.mxu0 %v10379
    %11216 = vmatpush.bf16.msra.mxu0 %v10371
    %11217 = vmatpush.bf16.msra.mxu0 %v10363
    %11218 = vmatpush.bf16.msra.mxu0 %v10355
    %11219 = vmatpush.bf16.msra.mxu0 %v10347
    %11220 = vmatpush.bf16.msra.mxu0 %v10339
    %11221 = vmatmul.bf16.gmra.mxu0 %v8076
    %v11222 = vpop.f32.mrf.mxu0
    %v11223 = vadd.f32 %v11209, %v11222
    %v11224 = vpop.f32.mrf.mxu0
    %v11225 = vadd.f32 %v11211, %v11224
    %11226 = vdwg.mxu0
    %11227 = vmatpush.bf16.msra.mxu0 %v10459
    %11228 = vmatpush.bf16.msra.mxu0 %v10451
    %11229 = vmatpush.bf16.msra.mxu0 %v10443
    %11230 = vmatpush.bf16.msra.mxu0 %v10435
    %11231 = vmatpush.bf16.msra.mxu0 %v10427
    %11232 = vmatpush.bf16.msra.mxu0 %v10419
    %11233 = vmatpush.bf16.msra.mxu0 %v10411
    %11234 = vmatpush.bf16.msra.mxu0 %v10403
    %11235 = vmatmul.bf16.gmra.mxu0 %v8077
    %v11236 = vpop.f32.mrf.mxu0
    %v11237 = vadd.f32 %v11223, %v11236
    %v11238 = vpop.f32.mrf.mxu0
    %v11239 = vadd.f32 %v11225, %v11238
    %11240 = vdwg.mxu0
    %11241 = vmatpush.bf16.msra.mxu0 %v10523
    %11242 = vmatpush.bf16.msra.mxu0 %v10515
    %11243 = vmatpush.bf16.msra.mxu0 %v10507
    %11244 = vmatpush.bf16.msra.mxu0 %v10499
    %11245 = vmatpush.bf16.msra.mxu0 %v10491
    %11246 = vmatpush.bf16.msra.mxu0 %v10483
    %11247 = vmatpush.bf16.msra.mxu0 %v10475
    %11248 = vmatpush.bf16.msra.mxu0 %v10467
    %11249 = vmatmul.bf16.gmra.mxu0 %v8078
    %v11250 = vpop.f32.mrf.mxu0
    %v11251 = vadd.f32 %v11237, %v11250
    %v11252 = vpop.f32.mrf.mxu0
    %v11253 = vadd.f32 %v11239, %v11252
    %11254 = vdwg.mxu0
    %11255 = vmatpush.bf16.msra.mxu0 %v10587
    %11256 = vmatpush.bf16.msra.mxu0 %v10579
    %11257 = vmatpush.bf16.msra.mxu0 %v10571
    %11258 = vmatpush.bf16.msra.mxu0 %v10563
    %11259 = vmatpush.bf16.msra.mxu0 %v10555
    %11260 = vmatpush.bf16.msra.mxu0 %v10547
    %11261 = vmatpush.bf16.msra.mxu0 %v10539
    %11262 = vmatpush.bf16.msra.mxu0 %v10531
    %11263 = vmatmul.bf16.gmra.mxu0 %v8079
    %v11264 = vpop.f32.mrf.mxu0
    %v11265 = vadd.f32 %v11251, %v11264
    %v11266 = vpop.f32.mrf.mxu0
    %v11267 = vadd.f32 %v11253, %v11266
    %11268 = vdwg.mxu0
    %11269 = vmatpush.bf16.msra.mxu0 %v10651
    %11270 = vmatpush.bf16.msra.mxu0 %v10643
    %11271 = vmatpush.bf16.msra.mxu0 %v10635
    %11272 = vmatpush.bf16.msra.mxu0 %v10627
    %11273 = vmatpush.bf16.msra.mxu0 %v10619
    %11274 = vmatpush.bf16.msra.mxu0 %v10611
    %11275 = vmatpush.bf16.msra.mxu0 %v10603
    %11276 = vmatpush.bf16.msra.mxu0 %v10595
    %11277 = vmatmul.bf16.gmra.mxu0 %v8080
    %v11278 = vpop.f32.mrf.mxu0
    %v11279 = vadd.f32 %v11265, %v11278
    %v11280 = vpop.f32.mrf.mxu0
    %v11281 = vadd.f32 %v11267, %v11280
    %11282 = vdwg.mxu0
    %11283 = vmatpush.bf16.msra.mxu0 %v10204
    %11284 = vmatpush.bf16.msra.mxu0 %v10196
    %11285 = vmatpush.bf16.msra.mxu0 %v10188
    %11286 = vmatpush.bf16.msra.mxu0 %v10180
    %11287 = vmatpush.bf16.msra.mxu0 %v10172
    %11288 = vmatpush.bf16.msra.mxu0 %v10164
    %11289 = vmatpush.bf16.msra.mxu0 %v10156
    %11290 = vmatpush.bf16.msra.mxu0 %v10148
    %11291 = vmatmul.bf16.gmra.mxu0 %v8073
    %v11292 = vpop.f32.mrf.mxu0
    %v11293 = vadd.f32 %v8596, %v11292
    %v11294 = vpop.f32.mrf.mxu0
    %v11295 = vadd.f32 %v8596, %v11294
    %11296 = vdwg.mxu0
    %11297 = vmatpush.bf16.msra.mxu0 %v10268
    %11298 = vmatpush.bf16.msra.mxu0 %v10260
    %11299 = vmatpush.bf16.msra.mxu0 %v10252
    %11300 = vmatpush.bf16.msra.mxu0 %v10244
    %11301 = vmatpush.bf16.msra.mxu0 %v10236
    %11302 = vmatpush.bf16.msra.mxu0 %v10228
    %11303 = vmatpush.bf16.msra.mxu0 %v10220
    %11304 = vmatpush.bf16.msra.mxu0 %v10212
    %11305 = vmatmul.bf16.gmra.mxu0 %v8074
    %v11306 = vpop.f32.mrf.mxu0
    %v11307 = vadd.f32 %v11293, %v11306
    %v11308 = vpop.f32.mrf.mxu0
    %v11309 = vadd.f32 %v11295, %v11308
    %11310 = vdwg.mxu0
    %11311 = vmatpush.bf16.msra.mxu0 %v10332
    %11312 = vmatpush.bf16.msra.mxu0 %v10324
    %11313 = vmatpush.bf16.msra.mxu0 %v10316
    %11314 = vmatpush.bf16.msra.mxu0 %v10308
    %11315 = vmatpush.bf16.msra.mxu0 %v10300
    %11316 = vmatpush.bf16.msra.mxu0 %v10292
    %11317 = vmatpush.bf16.msra.mxu0 %v10284
    %11318 = vmatpush.bf16.msra.mxu0 %v10276
    %11319 = vmatmul.bf16.gmra.mxu0 %v8075
    %v11320 = vpop.f32.mrf.mxu0
    %v11321 = vadd.f32 %v11307, %v11320
    %v11322 = vpop.f32.mrf.mxu0
    %v11323 = vadd.f32 %v11309, %v11322
    %11324 = vdwg.mxu0
    %11325 = vmatpush.bf16.msra.mxu0 %v10396
    %11326 = vmatpush.bf16.msra.mxu0 %v10388
    %11327 = vmatpush.bf16.msra.mxu0 %v10380
    %11328 = vmatpush.bf16.msra.mxu0 %v10372
    %11329 = vmatpush.bf16.msra.mxu0 %v10364
    %11330 = vmatpush.bf16.msra.mxu0 %v10356
    %11331 = vmatpush.bf16.msra.mxu0 %v10348
    %11332 = vmatpush.bf16.msra.mxu0 %v10340
    %11333 = vmatmul.bf16.gmra.mxu0 %v8076
    %v11334 = vpop.f32.mrf.mxu0
    %v11335 = vadd.f32 %v11321, %v11334
    %v11336 = vpop.f32.mrf.mxu0
    %v11337 = vadd.f32 %v11323, %v11336
    %11338 = vdwg.mxu0
    %11339 = vmatpush.bf16.msra.mxu0 %v10460
    %11340 = vmatpush.bf16.msra.mxu0 %v10452
    %11341 = vmatpush.bf16.msra.mxu0 %v10444
    %11342 = vmatpush.bf16.msra.mxu0 %v10436
    %11343 = vmatpush.bf16.msra.mxu0 %v10428
    %11344 = vmatpush.bf16.msra.mxu0 %v10420
    %11345 = vmatpush.bf16.msra.mxu0 %v10412
    %11346 = vmatpush.bf16.msra.mxu0 %v10404
    %11347 = vmatmul.bf16.gmra.mxu0 %v8077
    %v11348 = vpop.f32.mrf.mxu0
    %v11349 = vadd.f32 %v11335, %v11348
    %v11350 = vpop.f32.mrf.mxu0
    %v11351 = vadd.f32 %v11337, %v11350
    %11352 = vdwg.mxu0
    %11353 = vmatpush.bf16.msra.mxu0 %v10524
    %11354 = vmatpush.bf16.msra.mxu0 %v10516
    %11355 = vmatpush.bf16.msra.mxu0 %v10508
    %11356 = vmatpush.bf16.msra.mxu0 %v10500
    %11357 = vmatpush.bf16.msra.mxu0 %v10492
    %11358 = vmatpush.bf16.msra.mxu0 %v10484
    %11359 = vmatpush.bf16.msra.mxu0 %v10476
    %11360 = vmatpush.bf16.msra.mxu0 %v10468
    %11361 = vmatmul.bf16.gmra.mxu0 %v8078
    %v11362 = vpop.f32.mrf.mxu0
    %v11363 = vadd.f32 %v11349, %v11362
    %v11364 = vpop.f32.mrf.mxu0
    %v11365 = vadd.f32 %v11351, %v11364
    %11366 = vdwg.mxu0
    %11367 = vmatpush.bf16.msra.mxu0 %v10588
    %11368 = vmatpush.bf16.msra.mxu0 %v10580
    %11369 = vmatpush.bf16.msra.mxu0 %v10572
    %11370 = vmatpush.bf16.msra.mxu0 %v10564
    %11371 = vmatpush.bf16.msra.mxu0 %v10556
    %11372 = vmatpush.bf16.msra.mxu0 %v10548
    %11373 = vmatpush.bf16.msra.mxu0 %v10540
    %11374 = vmatpush.bf16.msra.mxu0 %v10532
    %11375 = vmatmul.bf16.gmra.mxu0 %v8079
    %v11376 = vpop.f32.mrf.mxu0
    %v11377 = vadd.f32 %v11363, %v11376
    %v11378 = vpop.f32.mrf.mxu0
    %v11379 = vadd.f32 %v11365, %v11378
    %11380 = vdwg.mxu0
    %11381 = vmatpush.bf16.msra.mxu0 %v10652
    %11382 = vmatpush.bf16.msra.mxu0 %v10644
    %11383 = vmatpush.bf16.msra.mxu0 %v10636
    %11384 = vmatpush.bf16.msra.mxu0 %v10628
    %11385 = vmatpush.bf16.msra.mxu0 %v10620
    %11386 = vmatpush.bf16.msra.mxu0 %v10612
    %11387 = vmatpush.bf16.msra.mxu0 %v10604
    %11388 = vmatpush.bf16.msra.mxu0 %v10596
    %11389 = vmatmul.bf16.gmra.mxu0 %v8080
    %v11390 = vpop.f32.mrf.mxu0
    %v11391 = vadd.f32 %v11377, %v11390
    %v11392 = vpop.f32.mrf.mxu0
    %v11393 = vadd.f32 %v11379, %v11392
    %11394 = vdwg.mxu0
    %11395 = vmatpush.bf16.msra.mxu0 %v10205
    %11396 = vmatpush.bf16.msra.mxu0 %v10197
    %11397 = vmatpush.bf16.msra.mxu0 %v10189
    %11398 = vmatpush.bf16.msra.mxu0 %v10181
    %11399 = vmatpush.bf16.msra.mxu0 %v10173
    %11400 = vmatpush.bf16.msra.mxu0 %v10165
    %11401 = vmatpush.bf16.msra.mxu0 %v10157
    %11402 = vmatpush.bf16.msra.mxu0 %v10149
    %11403 = vmatmul.bf16.gmra.mxu0 %v8073
    %v11404 = vpop.f32.mrf.mxu0
    %v11405 = vadd.f32 %v8597, %v11404
    %v11406 = vpop.f32.mrf.mxu0
    %v11407 = vadd.f32 %v8597, %v11406
    %11408 = vdwg.mxu0
    %11409 = vmatpush.bf16.msra.mxu0 %v10269
    %11410 = vmatpush.bf16.msra.mxu0 %v10261
    %11411 = vmatpush.bf16.msra.mxu0 %v10253
    %11412 = vmatpush.bf16.msra.mxu0 %v10245
    %11413 = vmatpush.bf16.msra.mxu0 %v10237
    %11414 = vmatpush.bf16.msra.mxu0 %v10229
    %11415 = vmatpush.bf16.msra.mxu0 %v10221
    %11416 = vmatpush.bf16.msra.mxu0 %v10213
    %11417 = vmatmul.bf16.gmra.mxu0 %v8074
    %v11418 = vpop.f32.mrf.mxu0
    %v11419 = vadd.f32 %v11405, %v11418
    %v11420 = vpop.f32.mrf.mxu0
    %v11421 = vadd.f32 %v11407, %v11420
    %11422 = vdwg.mxu0
    %11423 = vmatpush.bf16.msra.mxu0 %v10333
    %11424 = vmatpush.bf16.msra.mxu0 %v10325
    %11425 = vmatpush.bf16.msra.mxu0 %v10317
    %11426 = vmatpush.bf16.msra.mxu0 %v10309
    %11427 = vmatpush.bf16.msra.mxu0 %v10301
    %11428 = vmatpush.bf16.msra.mxu0 %v10293
    %11429 = vmatpush.bf16.msra.mxu0 %v10285
    %11430 = vmatpush.bf16.msra.mxu0 %v10277
    %11431 = vmatmul.bf16.gmra.mxu0 %v8075
    %v11432 = vpop.f32.mrf.mxu0
    %v11433 = vadd.f32 %v11419, %v11432
    %v11434 = vpop.f32.mrf.mxu0
    %v11435 = vadd.f32 %v11421, %v11434
    %11436 = vdwg.mxu0
    %11437 = vmatpush.bf16.msra.mxu0 %v10397
    %11438 = vmatpush.bf16.msra.mxu0 %v10389
    %11439 = vmatpush.bf16.msra.mxu0 %v10381
    %11440 = vmatpush.bf16.msra.mxu0 %v10373
    %11441 = vmatpush.bf16.msra.mxu0 %v10365
    %11442 = vmatpush.bf16.msra.mxu0 %v10357
    %11443 = vmatpush.bf16.msra.mxu0 %v10349
    %11444 = vmatpush.bf16.msra.mxu0 %v10341
    %11445 = vmatmul.bf16.gmra.mxu0 %v8076
    %v11446 = vpop.f32.mrf.mxu0
    %v11447 = vadd.f32 %v11433, %v11446
    %v11448 = vpop.f32.mrf.mxu0
    %v11449 = vadd.f32 %v11435, %v11448
    %11450 = vdwg.mxu0
    %11451 = vmatpush.bf16.msra.mxu0 %v10461
    %11452 = vmatpush.bf16.msra.mxu0 %v10453
    %11453 = vmatpush.bf16.msra.mxu0 %v10445
    %11454 = vmatpush.bf16.msra.mxu0 %v10437
    %11455 = vmatpush.bf16.msra.mxu0 %v10429
    %11456 = vmatpush.bf16.msra.mxu0 %v10421
    %11457 = vmatpush.bf16.msra.mxu0 %v10413
    %11458 = vmatpush.bf16.msra.mxu0 %v10405
    %11459 = vmatmul.bf16.gmra.mxu0 %v8077
    %v11460 = vpop.f32.mrf.mxu0
    %v11461 = vadd.f32 %v11447, %v11460
    %v11462 = vpop.f32.mrf.mxu0
    %v11463 = vadd.f32 %v11449, %v11462
    %11464 = vdwg.mxu0
    %11465 = vmatpush.bf16.msra.mxu0 %v10525
    %11466 = vmatpush.bf16.msra.mxu0 %v10517
    %11467 = vmatpush.bf16.msra.mxu0 %v10509
    %11468 = vmatpush.bf16.msra.mxu0 %v10501
    %11469 = vmatpush.bf16.msra.mxu0 %v10493
    %11470 = vmatpush.bf16.msra.mxu0 %v10485
    %11471 = vmatpush.bf16.msra.mxu0 %v10477
    %11472 = vmatpush.bf16.msra.mxu0 %v10469
    %11473 = vmatmul.bf16.gmra.mxu0 %v8078
    %v11474 = vpop.f32.mrf.mxu0
    %v11475 = vadd.f32 %v11461, %v11474
    %v11476 = vpop.f32.mrf.mxu0
    %v11477 = vadd.f32 %v11463, %v11476
    %11478 = vdwg.mxu0
    %11479 = vmatpush.bf16.msra.mxu0 %v10589
    %11480 = vmatpush.bf16.msra.mxu0 %v10581
    %11481 = vmatpush.bf16.msra.mxu0 %v10573
    %11482 = vmatpush.bf16.msra.mxu0 %v10565
    %11483 = vmatpush.bf16.msra.mxu0 %v10557
    %11484 = vmatpush.bf16.msra.mxu0 %v10549
    %11485 = vmatpush.bf16.msra.mxu0 %v10541
    %11486 = vmatpush.bf16.msra.mxu0 %v10533
    %11487 = vmatmul.bf16.gmra.mxu0 %v8079
    %v11488 = vpop.f32.mrf.mxu0
    %v11489 = vadd.f32 %v11475, %v11488
    %v11490 = vpop.f32.mrf.mxu0
    %v11491 = vadd.f32 %v11477, %v11490
    %11492 = vdwg.mxu0
    %11493 = vmatpush.bf16.msra.mxu0 %v10653
    %11494 = vmatpush.bf16.msra.mxu0 %v10645
    %11495 = vmatpush.bf16.msra.mxu0 %v10637
    %11496 = vmatpush.bf16.msra.mxu0 %v10629
    %11497 = vmatpush.bf16.msra.mxu0 %v10621
    %11498 = vmatpush.bf16.msra.mxu0 %v10613
    %11499 = vmatpush.bf16.msra.mxu0 %v10605
    %11500 = vmatpush.bf16.msra.mxu0 %v10597
    %11501 = vmatmul.bf16.gmra.mxu0 %v8080
    %v11502 = vpop.f32.mrf.mxu0
    %v11503 = vadd.f32 %v11489, %v11502
    %v11504 = vpop.f32.mrf.mxu0
    %v11505 = vadd.f32 %v11491, %v11504
    %11506 = vdwg.mxu0
    %11507 = vmatpush.bf16.msra.mxu0 %v10206
    %11508 = vmatpush.bf16.msra.mxu0 %v10198
    %11509 = vmatpush.bf16.msra.mxu0 %v10190
    %11510 = vmatpush.bf16.msra.mxu0 %v10182
    %11511 = vmatpush.bf16.msra.mxu0 %v10174
    %11512 = vmatpush.bf16.msra.mxu0 %v10166
    %11513 = vmatpush.bf16.msra.mxu0 %v10158
    %11514 = vmatpush.bf16.msra.mxu0 %v10150
    %11515 = vmatmul.bf16.gmra.mxu0 %v8073
    %v11516 = vpop.f32.mrf.mxu0
    %v11517 = vadd.f32 %v8598, %v11516
    %v11518 = vpop.f32.mrf.mxu0
    %v11519 = vadd.f32 %v8598, %v11518
    %11520 = vdwg.mxu0
    %11521 = vmatpush.bf16.msra.mxu0 %v10270
    %11522 = vmatpush.bf16.msra.mxu0 %v10262
    %11523 = vmatpush.bf16.msra.mxu0 %v10254
    %11524 = vmatpush.bf16.msra.mxu0 %v10246
    %11525 = vmatpush.bf16.msra.mxu0 %v10238
    %11526 = vmatpush.bf16.msra.mxu0 %v10230
    %11527 = vmatpush.bf16.msra.mxu0 %v10222
    %11528 = vmatpush.bf16.msra.mxu0 %v10214
    %11529 = vmatmul.bf16.gmra.mxu0 %v8074
    %v11530 = vpop.f32.mrf.mxu0
    %v11531 = vadd.f32 %v11517, %v11530
    %v11532 = vpop.f32.mrf.mxu0
    %v11533 = vadd.f32 %v11519, %v11532
    %11534 = vdwg.mxu0
    %11535 = vmatpush.bf16.msra.mxu0 %v10334
    %11536 = vmatpush.bf16.msra.mxu0 %v10326
    %11537 = vmatpush.bf16.msra.mxu0 %v10318
    %11538 = vmatpush.bf16.msra.mxu0 %v10310
    %11539 = vmatpush.bf16.msra.mxu0 %v10302
    %11540 = vmatpush.bf16.msra.mxu0 %v10294
    %11541 = vmatpush.bf16.msra.mxu0 %v10286
    %11542 = vmatpush.bf16.msra.mxu0 %v10278
    %11543 = vmatmul.bf16.gmra.mxu0 %v8075
    %v11544 = vpop.f32.mrf.mxu0
    %v11545 = vadd.f32 %v11531, %v11544
    %v11546 = vpop.f32.mrf.mxu0
    %v11547 = vadd.f32 %v11533, %v11546
    %11548 = vdwg.mxu0
    %11549 = vmatpush.bf16.msra.mxu0 %v10398
    %11550 = vmatpush.bf16.msra.mxu0 %v10390
    %11551 = vmatpush.bf16.msra.mxu0 %v10382
    %11552 = vmatpush.bf16.msra.mxu0 %v10374
    %11553 = vmatpush.bf16.msra.mxu0 %v10366
    %11554 = vmatpush.bf16.msra.mxu0 %v10358
    %11555 = vmatpush.bf16.msra.mxu0 %v10350
    %11556 = vmatpush.bf16.msra.mxu0 %v10342
    %11557 = vmatmul.bf16.gmra.mxu0 %v8076
    %v11558 = vpop.f32.mrf.mxu0
    %v11559 = vadd.f32 %v11545, %v11558
    %v11560 = vpop.f32.mrf.mxu0
    %v11561 = vadd.f32 %v11547, %v11560
    %11562 = vdwg.mxu0
    %11563 = vmatpush.bf16.msra.mxu0 %v10462
    %11564 = vmatpush.bf16.msra.mxu0 %v10454
    %11565 = vmatpush.bf16.msra.mxu0 %v10446
    %11566 = vmatpush.bf16.msra.mxu0 %v10438
    %11567 = vmatpush.bf16.msra.mxu0 %v10430
    %11568 = vmatpush.bf16.msra.mxu0 %v10422
    %11569 = vmatpush.bf16.msra.mxu0 %v10414
    %11570 = vmatpush.bf16.msra.mxu0 %v10406
    %11571 = vmatmul.bf16.gmra.mxu0 %v8077
    %v11572 = vpop.f32.mrf.mxu0
    %v11573 = vadd.f32 %v11559, %v11572
    %v11574 = vpop.f32.mrf.mxu0
    %v11575 = vadd.f32 %v11561, %v11574
    %11576 = vdwg.mxu0
    %11577 = vmatpush.bf16.msra.mxu0 %v10526
    %11578 = vmatpush.bf16.msra.mxu0 %v10518
    %11579 = vmatpush.bf16.msra.mxu0 %v10510
    %11580 = vmatpush.bf16.msra.mxu0 %v10502
    %11581 = vmatpush.bf16.msra.mxu0 %v10494
    %11582 = vmatpush.bf16.msra.mxu0 %v10486
    %11583 = vmatpush.bf16.msra.mxu0 %v10478
    %11584 = vmatpush.bf16.msra.mxu0 %v10470
    %11585 = vmatmul.bf16.gmra.mxu0 %v8078
    %v11586 = vpop.f32.mrf.mxu0
    %v11587 = vadd.f32 %v11573, %v11586
    %v11588 = vpop.f32.mrf.mxu0
    %v11589 = vadd.f32 %v11575, %v11588
    %11590 = vdwg.mxu0
    %11591 = vmatpush.bf16.msra.mxu0 %v10590
    %11592 = vmatpush.bf16.msra.mxu0 %v10582
    %11593 = vmatpush.bf16.msra.mxu0 %v10574
    %11594 = vmatpush.bf16.msra.mxu0 %v10566
    %11595 = vmatpush.bf16.msra.mxu0 %v10558
    %11596 = vmatpush.bf16.msra.mxu0 %v10550
    %11597 = vmatpush.bf16.msra.mxu0 %v10542
    %11598 = vmatpush.bf16.msra.mxu0 %v10534
    %11599 = vmatmul.bf16.gmra.mxu0 %v8079
    %v11600 = vpop.f32.mrf.mxu0
    %v11601 = vadd.f32 %v11587, %v11600
    %v11602 = vpop.f32.mrf.mxu0
    %v11603 = vadd.f32 %v11589, %v11602
    %11604 = vdwg.mxu0
    %11605 = vmatpush.bf16.msra.mxu0 %v10654
    %11606 = vmatpush.bf16.msra.mxu0 %v10646
    %11607 = vmatpush.bf16.msra.mxu0 %v10638
    %11608 = vmatpush.bf16.msra.mxu0 %v10630
    %11609 = vmatpush.bf16.msra.mxu0 %v10622
    %11610 = vmatpush.bf16.msra.mxu0 %v10614
    %11611 = vmatpush.bf16.msra.mxu0 %v10606
    %11612 = vmatpush.bf16.msra.mxu0 %v10598
    %11613 = vmatmul.bf16.gmra.mxu0 %v8080
    %v11614 = vpop.f32.mrf.mxu0
    %v11615 = vadd.f32 %v11601, %v11614
    %v11616 = vpop.f32.mrf.mxu0
    %v11617 = vadd.f32 %v11603, %v11616
    %11618 = vdwg.mxu0
    %11619 = vmatpush.bf16.msra.mxu0 %v10207
    %11620 = vmatpush.bf16.msra.mxu0 %v10199
    %11621 = vmatpush.bf16.msra.mxu0 %v10191
    %11622 = vmatpush.bf16.msra.mxu0 %v10183
    %11623 = vmatpush.bf16.msra.mxu0 %v10175
    %11624 = vmatpush.bf16.msra.mxu0 %v10167
    %11625 = vmatpush.bf16.msra.mxu0 %v10159
    %11626 = vmatpush.bf16.msra.mxu0 %v10151
    %11627 = vmatmul.bf16.gmra.mxu0 %v8073
    %v11628 = vpop.f32.mrf.mxu0
    %v11629 = vadd.f32 %v8599, %v11628
    %v11630 = vpop.f32.mrf.mxu0
    %v11631 = vadd.f32 %v8599, %v11630
    %11632 = vdwg.mxu0
    %11633 = vmatpush.bf16.msra.mxu0 %v10271
    %11634 = vmatpush.bf16.msra.mxu0 %v10263
    %11635 = vmatpush.bf16.msra.mxu0 %v10255
    %11636 = vmatpush.bf16.msra.mxu0 %v10247
    %11637 = vmatpush.bf16.msra.mxu0 %v10239
    %11638 = vmatpush.bf16.msra.mxu0 %v10231
    %11639 = vmatpush.bf16.msra.mxu0 %v10223
    %11640 = vmatpush.bf16.msra.mxu0 %v10215
    %11641 = vmatmul.bf16.gmra.mxu0 %v8074
    %v11642 = vpop.f32.mrf.mxu0
    %v11643 = vadd.f32 %v11629, %v11642
    %v11644 = vpop.f32.mrf.mxu0
    %v11645 = vadd.f32 %v11631, %v11644
    %11646 = vdwg.mxu0
    %11647 = vmatpush.bf16.msra.mxu0 %v10335
    %11648 = vmatpush.bf16.msra.mxu0 %v10327
    %11649 = vmatpush.bf16.msra.mxu0 %v10319
    %11650 = vmatpush.bf16.msra.mxu0 %v10311
    %11651 = vmatpush.bf16.msra.mxu0 %v10303
    %11652 = vmatpush.bf16.msra.mxu0 %v10295
    %11653 = vmatpush.bf16.msra.mxu0 %v10287
    %11654 = vmatpush.bf16.msra.mxu0 %v10279
    %11655 = vmatmul.bf16.gmra.mxu0 %v8075
    %v11656 = vpop.f32.mrf.mxu0
    %v11657 = vadd.f32 %v11643, %v11656
    %v11658 = vpop.f32.mrf.mxu0
    %v11659 = vadd.f32 %v11645, %v11658
    %11660 = vdwg.mxu0
    %11661 = vmatpush.bf16.msra.mxu0 %v10399
    %11662 = vmatpush.bf16.msra.mxu0 %v10391
    %11663 = vmatpush.bf16.msra.mxu0 %v10383
    %11664 = vmatpush.bf16.msra.mxu0 %v10375
    %11665 = vmatpush.bf16.msra.mxu0 %v10367
    %11666 = vmatpush.bf16.msra.mxu0 %v10359
    %11667 = vmatpush.bf16.msra.mxu0 %v10351
    %11668 = vmatpush.bf16.msra.mxu0 %v10343
    %11669 = vmatmul.bf16.gmra.mxu0 %v8076
    %v11670 = vpop.f32.mrf.mxu0
    %v11671 = vadd.f32 %v11657, %v11670
    %v11672 = vpop.f32.mrf.mxu0
    %v11673 = vadd.f32 %v11659, %v11672
    %11674 = vdwg.mxu0
    %11675 = vmatpush.bf16.msra.mxu0 %v10463
    %11676 = vmatpush.bf16.msra.mxu0 %v10455
    %11677 = vmatpush.bf16.msra.mxu0 %v10447
    %11678 = vmatpush.bf16.msra.mxu0 %v10439
    %11679 = vmatpush.bf16.msra.mxu0 %v10431
    %11680 = vmatpush.bf16.msra.mxu0 %v10423
    %11681 = vmatpush.bf16.msra.mxu0 %v10415
    %11682 = vmatpush.bf16.msra.mxu0 %v10407
    %11683 = vmatmul.bf16.gmra.mxu0 %v8077
    %v11684 = vpop.f32.mrf.mxu0
    %v11685 = vadd.f32 %v11671, %v11684
    %v11686 = vpop.f32.mrf.mxu0
    %v11687 = vadd.f32 %v11673, %v11686
    %11688 = vdwg.mxu0
    %11689 = vmatpush.bf16.msra.mxu0 %v10527
    %11690 = vmatpush.bf16.msra.mxu0 %v10519
    %11691 = vmatpush.bf16.msra.mxu0 %v10511
    %11692 = vmatpush.bf16.msra.mxu0 %v10503
    %11693 = vmatpush.bf16.msra.mxu0 %v10495
    %11694 = vmatpush.bf16.msra.mxu0 %v10487
    %11695 = vmatpush.bf16.msra.mxu0 %v10479
    %11696 = vmatpush.bf16.msra.mxu0 %v10471
    %11697 = vmatmul.bf16.gmra.mxu0 %v8078
    %v11698 = vpop.f32.mrf.mxu0
    %v11699 = vadd.f32 %v11685, %v11698
    %v11700 = vpop.f32.mrf.mxu0
    %v11701 = vadd.f32 %v11687, %v11700
    %11702 = vdwg.mxu0
    %11703 = vmatpush.bf16.msra.mxu0 %v10591
    %11704 = vmatpush.bf16.msra.mxu0 %v10583
    %11705 = vmatpush.bf16.msra.mxu0 %v10575
    %11706 = vmatpush.bf16.msra.mxu0 %v10567
    %11707 = vmatpush.bf16.msra.mxu0 %v10559
    %11708 = vmatpush.bf16.msra.mxu0 %v10551
    %11709 = vmatpush.bf16.msra.mxu0 %v10543
    %11710 = vmatpush.bf16.msra.mxu0 %v10535
    %11711 = vmatmul.bf16.gmra.mxu0 %v8079
    %v11712 = vpop.f32.mrf.mxu0
    %v11713 = vadd.f32 %v11699, %v11712
    %v11714 = vpop.f32.mrf.mxu0
    %v11715 = vadd.f32 %v11701, %v11714
    %11716 = vdwg.mxu0
    %11717 = vmatpush.bf16.msra.mxu0 %v10655
    %11718 = vmatpush.bf16.msra.mxu0 %v10647
    %11719 = vmatpush.bf16.msra.mxu0 %v10639
    %11720 = vmatpush.bf16.msra.mxu0 %v10631
    %11721 = vmatpush.bf16.msra.mxu0 %v10623
    %11722 = vmatpush.bf16.msra.mxu0 %v10615
    %11723 = vmatpush.bf16.msra.mxu0 %v10607
    %11724 = vmatpush.bf16.msra.mxu0 %v10599
    %11725 = vmatmul.bf16.gmra.mxu0 %v8080
    %v11726 = vpop.f32.mrf.mxu0
    %v11727 = vadd.f32 %v11713, %v11726
    %v11728 = vpop.f32.mrf.mxu0
    %v11729 = vadd.f32 %v11715, %v11728
    %11730 = vdwg.mxu0
    %11731 = vmatpush.bf16.msra.mxu0 %v10208
    %11732 = vmatpush.bf16.msra.mxu0 %v10200
    %11733 = vmatpush.bf16.msra.mxu0 %v10192
    %11734 = vmatpush.bf16.msra.mxu0 %v10184
    %11735 = vmatpush.bf16.msra.mxu0 %v10176
    %11736 = vmatpush.bf16.msra.mxu0 %v10168
    %11737 = vmatpush.bf16.msra.mxu0 %v10160
    %11738 = vmatpush.bf16.msra.mxu0 %v10152
    %11739 = vmatmul.bf16.gmra.mxu0 %v8073
    %v11740 = vpop.f32.mrf.mxu0
    %v11741 = vadd.f32 %v8600, %v11740
    %v11742 = vpop.f32.mrf.mxu0
    %v11743 = vadd.f32 %v8600, %v11742
    %11744 = vdwg.mxu0
    %11745 = vmatpush.bf16.msra.mxu0 %v10272
    %11746 = vmatpush.bf16.msra.mxu0 %v10264
    %11747 = vmatpush.bf16.msra.mxu0 %v10256
    %11748 = vmatpush.bf16.msra.mxu0 %v10248
    %11749 = vmatpush.bf16.msra.mxu0 %v10240
    %11750 = vmatpush.bf16.msra.mxu0 %v10232
    %11751 = vmatpush.bf16.msra.mxu0 %v10224
    %11752 = vmatpush.bf16.msra.mxu0 %v10216
    %11753 = vmatmul.bf16.gmra.mxu0 %v8074
    %v11754 = vpop.f32.mrf.mxu0
    %v11755 = vadd.f32 %v11741, %v11754
    %v11756 = vpop.f32.mrf.mxu0
    %v11757 = vadd.f32 %v11743, %v11756
    %11758 = vdwg.mxu0
    %11759 = vmatpush.bf16.msra.mxu0 %v10336
    %11760 = vmatpush.bf16.msra.mxu0 %v10328
    %11761 = vmatpush.bf16.msra.mxu0 %v10320
    %11762 = vmatpush.bf16.msra.mxu0 %v10312
    %11763 = vmatpush.bf16.msra.mxu0 %v10304
    %11764 = vmatpush.bf16.msra.mxu0 %v10296
    %11765 = vmatpush.bf16.msra.mxu0 %v10288
    %11766 = vmatpush.bf16.msra.mxu0 %v10280
    %11767 = vmatmul.bf16.gmra.mxu0 %v8075
    %v11768 = vpop.f32.mrf.mxu0
    %v11769 = vadd.f32 %v11755, %v11768
    %v11770 = vpop.f32.mrf.mxu0
    %v11771 = vadd.f32 %v11757, %v11770
    %11772 = vdwg.mxu0
    %11773 = vmatpush.bf16.msra.mxu0 %v10400
    %11774 = vmatpush.bf16.msra.mxu0 %v10392
    %11775 = vmatpush.bf16.msra.mxu0 %v10384
    %11776 = vmatpush.bf16.msra.mxu0 %v10376
    %11777 = vmatpush.bf16.msra.mxu0 %v10368
    %11778 = vmatpush.bf16.msra.mxu0 %v10360
    %11779 = vmatpush.bf16.msra.mxu0 %v10352
    %11780 = vmatpush.bf16.msra.mxu0 %v10344
    %11781 = vmatmul.bf16.gmra.mxu0 %v8076
    %v11782 = vpop.f32.mrf.mxu0
    %v11783 = vadd.f32 %v11769, %v11782
    %v11784 = vpop.f32.mrf.mxu0
    %v11785 = vadd.f32 %v11771, %v11784
    %11786 = vdwg.mxu0
    %11787 = vmatpush.bf16.msra.mxu0 %v10464
    %11788 = vmatpush.bf16.msra.mxu0 %v10456
    %11789 = vmatpush.bf16.msra.mxu0 %v10448
    %11790 = vmatpush.bf16.msra.mxu0 %v10440
    %11791 = vmatpush.bf16.msra.mxu0 %v10432
    %11792 = vmatpush.bf16.msra.mxu0 %v10424
    %11793 = vmatpush.bf16.msra.mxu0 %v10416
    %11794 = vmatpush.bf16.msra.mxu0 %v10408
    %11795 = vmatmul.bf16.gmra.mxu0 %v8077
    %v11796 = vpop.f32.mrf.mxu0
    %v11797 = vadd.f32 %v11783, %v11796
    %v11798 = vpop.f32.mrf.mxu0
    %v11799 = vadd.f32 %v11785, %v11798
    %11800 = vdwg.mxu0
    %11801 = vmatpush.bf16.msra.mxu0 %v10528
    %11802 = vmatpush.bf16.msra.mxu0 %v10520
    %11803 = vmatpush.bf16.msra.mxu0 %v10512
    %11804 = vmatpush.bf16.msra.mxu0 %v10504
    %11805 = vmatpush.bf16.msra.mxu0 %v10496
    %11806 = vmatpush.bf16.msra.mxu0 %v10488
    %11807 = vmatpush.bf16.msra.mxu0 %v10480
    %11808 = vmatpush.bf16.msra.mxu0 %v10472
    %11809 = vmatmul.bf16.gmra.mxu0 %v8078
    %v11810 = vpop.f32.mrf.mxu0
    %v11811 = vadd.f32 %v11797, %v11810
    %v11812 = vpop.f32.mrf.mxu0
    %v11813 = vadd.f32 %v11799, %v11812
    %11814 = vdwg.mxu0
    %11815 = vmatpush.bf16.msra.mxu0 %v10592
    %11816 = vmatpush.bf16.msra.mxu0 %v10584
    %11817 = vmatpush.bf16.msra.mxu0 %v10576
    %11818 = vmatpush.bf16.msra.mxu0 %v10568
    %11819 = vmatpush.bf16.msra.mxu0 %v10560
    %11820 = vmatpush.bf16.msra.mxu0 %v10552
    %11821 = vmatpush.bf16.msra.mxu0 %v10544
    %11822 = vmatpush.bf16.msra.mxu0 %v10536
    %11823 = vmatmul.bf16.gmra.mxu0 %v8079
    %v11824 = vpop.f32.mrf.mxu0
    %v11825 = vadd.f32 %v11811, %v11824
    %v11826 = vpop.f32.mrf.mxu0
    %v11827 = vadd.f32 %v11813, %v11826
    %11828 = vdwg.mxu0
    %11829 = vmatpush.bf16.msra.mxu0 %v10656
    %11830 = vmatpush.bf16.msra.mxu0 %v10648
    %11831 = vmatpush.bf16.msra.mxu0 %v10640
    %11832 = vmatpush.bf16.msra.mxu0 %v10632
    %11833 = vmatpush.bf16.msra.mxu0 %v10624
    %11834 = vmatpush.bf16.msra.mxu0 %v10616
    %11835 = vmatpush.bf16.msra.mxu0 %v10608
    %11836 = vmatpush.bf16.msra.mxu0 %v10600
    %11837 = vmatmul.bf16.gmra.mxu0 %v8080
    %v11838 = vpop.f32.mrf.mxu0
    %v11839 = vadd.f32 %v11825, %v11838
    %v11840 = vpop.f32.mrf.mxu0
    %v11841 = vadd.f32 %v11827, %v11840
    %11842 = vdwg.mxu0
    %11843 = vmatpush.bf16.msra.mxu0 %v10209
    %11844 = vmatpush.bf16.msra.mxu0 %v10201
    %11845 = vmatpush.bf16.msra.mxu0 %v10193
    %11846 = vmatpush.bf16.msra.mxu0 %v10185
    %11847 = vmatpush.bf16.msra.mxu0 %v10177
    %11848 = vmatpush.bf16.msra.mxu0 %v10169
    %11849 = vmatpush.bf16.msra.mxu0 %v10161
    %11850 = vmatpush.bf16.msra.mxu0 %v10153
    %11851 = vmatmul.bf16.gmra.mxu0 %v8073
    %v11852 = vpop.f32.mrf.mxu0
    %v11853 = vadd.f32 %v8601, %v11852
    %v11854 = vpop.f32.mrf.mxu0
    %v11855 = vadd.f32 %v8601, %v11854
    %11856 = vdwg.mxu0
    %11857 = vmatpush.bf16.msra.mxu0 %v10273
    %11858 = vmatpush.bf16.msra.mxu0 %v10265
    %11859 = vmatpush.bf16.msra.mxu0 %v10257
    %11860 = vmatpush.bf16.msra.mxu0 %v10249
    %11861 = vmatpush.bf16.msra.mxu0 %v10241
    %11862 = vmatpush.bf16.msra.mxu0 %v10233
    %11863 = vmatpush.bf16.msra.mxu0 %v10225
    %11864 = vmatpush.bf16.msra.mxu0 %v10217
    %11865 = vmatmul.bf16.gmra.mxu0 %v8074
    %v11866 = vpop.f32.mrf.mxu0
    %v11867 = vadd.f32 %v11853, %v11866
    %v11868 = vpop.f32.mrf.mxu0
    %v11869 = vadd.f32 %v11855, %v11868
    %11870 = vdwg.mxu0
    %11871 = vmatpush.bf16.msra.mxu0 %v10337
    %11872 = vmatpush.bf16.msra.mxu0 %v10329
    %11873 = vmatpush.bf16.msra.mxu0 %v10321
    %11874 = vmatpush.bf16.msra.mxu0 %v10313
    %11875 = vmatpush.bf16.msra.mxu0 %v10305
    %11876 = vmatpush.bf16.msra.mxu0 %v10297
    %11877 = vmatpush.bf16.msra.mxu0 %v10289
    %11878 = vmatpush.bf16.msra.mxu0 %v10281
    %11879 = vmatmul.bf16.gmra.mxu0 %v8075
    %v11880 = vpop.f32.mrf.mxu0
    %v11881 = vadd.f32 %v11867, %v11880
    %v11882 = vpop.f32.mrf.mxu0
    %v11883 = vadd.f32 %v11869, %v11882
    %11884 = vdwg.mxu0
    %11885 = vmatpush.bf16.msra.mxu0 %v10401
    %11886 = vmatpush.bf16.msra.mxu0 %v10393
    %11887 = vmatpush.bf16.msra.mxu0 %v10385
    %11888 = vmatpush.bf16.msra.mxu0 %v10377
    %11889 = vmatpush.bf16.msra.mxu0 %v10369
    %11890 = vmatpush.bf16.msra.mxu0 %v10361
    %11891 = vmatpush.bf16.msra.mxu0 %v10353
    %11892 = vmatpush.bf16.msra.mxu0 %v10345
    %11893 = vmatmul.bf16.gmra.mxu0 %v8076
    %v11894 = vpop.f32.mrf.mxu0
    %v11895 = vadd.f32 %v11881, %v11894
    %v11896 = vpop.f32.mrf.mxu0
    %v11897 = vadd.f32 %v11883, %v11896
    %11898 = vdwg.mxu0
    %11899 = vmatpush.bf16.msra.mxu0 %v10465
    %11900 = vmatpush.bf16.msra.mxu0 %v10457
    %11901 = vmatpush.bf16.msra.mxu0 %v10449
    %11902 = vmatpush.bf16.msra.mxu0 %v10441
    %11903 = vmatpush.bf16.msra.mxu0 %v10433
    %11904 = vmatpush.bf16.msra.mxu0 %v10425
    %11905 = vmatpush.bf16.msra.mxu0 %v10417
    %11906 = vmatpush.bf16.msra.mxu0 %v10409
    %11907 = vmatmul.bf16.gmra.mxu0 %v8077
    %v11908 = vpop.f32.mrf.mxu0
    %v11909 = vadd.f32 %v11895, %v11908
    %v11910 = vpop.f32.mrf.mxu0
    %v11911 = vadd.f32 %v11897, %v11910
    %11912 = vdwg.mxu0
    %11913 = vmatpush.bf16.msra.mxu0 %v10529
    %11914 = vmatpush.bf16.msra.mxu0 %v10521
    %11915 = vmatpush.bf16.msra.mxu0 %v10513
    %11916 = vmatpush.bf16.msra.mxu0 %v10505
    %11917 = vmatpush.bf16.msra.mxu0 %v10497
    %11918 = vmatpush.bf16.msra.mxu0 %v10489
    %11919 = vmatpush.bf16.msra.mxu0 %v10481
    %11920 = vmatpush.bf16.msra.mxu0 %v10473
    %11921 = vmatmul.bf16.gmra.mxu0 %v8078
    %v11922 = vpop.f32.mrf.mxu0
    %v11923 = vadd.f32 %v11909, %v11922
    %v11924 = vpop.f32.mrf.mxu0
    %v11925 = vadd.f32 %v11911, %v11924
    %11926 = vdwg.mxu0
    %11927 = vmatpush.bf16.msra.mxu0 %v10593
    %11928 = vmatpush.bf16.msra.mxu0 %v10585
    %11929 = vmatpush.bf16.msra.mxu0 %v10577
    %11930 = vmatpush.bf16.msra.mxu0 %v10569
    %11931 = vmatpush.bf16.msra.mxu0 %v10561
    %11932 = vmatpush.bf16.msra.mxu0 %v10553
    %11933 = vmatpush.bf16.msra.mxu0 %v10545
    %11934 = vmatpush.bf16.msra.mxu0 %v10537
    %11935 = vmatmul.bf16.gmra.mxu0 %v8079
    %v11936 = vpop.f32.mrf.mxu0
    %v11937 = vadd.f32 %v11923, %v11936
    %v11938 = vpop.f32.mrf.mxu0
    %v11939 = vadd.f32 %v11925, %v11938
    %11940 = vdwg.mxu0
    %11941 = vmatpush.bf16.msra.mxu0 %v10657
    %11942 = vmatpush.bf16.msra.mxu0 %v10649
    %11943 = vmatpush.bf16.msra.mxu0 %v10641
    %11944 = vmatpush.bf16.msra.mxu0 %v10633
    %11945 = vmatpush.bf16.msra.mxu0 %v10625
    %11946 = vmatpush.bf16.msra.mxu0 %v10617
    %11947 = vmatpush.bf16.msra.mxu0 %v10609
    %11948 = vmatpush.bf16.msra.mxu0 %v10601
    %11949 = vmatmul.bf16.gmra.mxu0 %v8080
    %v11950 = vpop.f32.mrf.mxu0
    %v11951 = vadd.f32 %v11937, %v11950
    %v11952 = vpop.f32.mrf.mxu0
    %v11953 = vadd.f32 %v11939, %v11952
    %11954 = vdwg.mxu0
    %11955 = vmatpush.bf16.msra.mxu0 %v10210
    %11956 = vmatpush.bf16.msra.mxu0 %v10202
    %11957 = vmatpush.bf16.msra.mxu0 %v10194
    %11958 = vmatpush.bf16.msra.mxu0 %v10186
    %11959 = vmatpush.bf16.msra.mxu0 %v10178
    %11960 = vmatpush.bf16.msra.mxu0 %v10170
    %11961 = vmatpush.bf16.msra.mxu0 %v10162
    %11962 = vmatpush.bf16.msra.mxu0 %v10154
    %11963 = vmatmul.bf16.gmra.mxu0 %v8073
    %v11964 = vpop.f32.mrf.mxu0
    %v11965 = vadd.f32 %v8602, %v11964
    %v11966 = vpop.f32.mrf.mxu0
    %v11967 = vadd.f32 %v8602, %v11966
    %11968 = vdwg.mxu0
    %11969 = vmatpush.bf16.msra.mxu0 %v10274
    %11970 = vmatpush.bf16.msra.mxu0 %v10266
    %11971 = vmatpush.bf16.msra.mxu0 %v10258
    %11972 = vmatpush.bf16.msra.mxu0 %v10250
    %11973 = vmatpush.bf16.msra.mxu0 %v10242
    %11974 = vmatpush.bf16.msra.mxu0 %v10234
    %11975 = vmatpush.bf16.msra.mxu0 %v10226
    %11976 = vmatpush.bf16.msra.mxu0 %v10218
    %11977 = vmatmul.bf16.gmra.mxu0 %v8074
    %v11978 = vpop.f32.mrf.mxu0
    %v11979 = vadd.f32 %v11965, %v11978
    %v11980 = vpop.f32.mrf.mxu0
    %v11981 = vadd.f32 %v11967, %v11980
    %11982 = vdwg.mxu0
    %11983 = vmatpush.bf16.msra.mxu0 %v10338
    %11984 = vmatpush.bf16.msra.mxu0 %v10330
    %11985 = vmatpush.bf16.msra.mxu0 %v10322
    %11986 = vmatpush.bf16.msra.mxu0 %v10314
    %11987 = vmatpush.bf16.msra.mxu0 %v10306
    %11988 = vmatpush.bf16.msra.mxu0 %v10298
    %11989 = vmatpush.bf16.msra.mxu0 %v10290
    %11990 = vmatpush.bf16.msra.mxu0 %v10282
    %11991 = vmatmul.bf16.gmra.mxu0 %v8075
    %v11992 = vpop.f32.mrf.mxu0
    %v11993 = vadd.f32 %v11979, %v11992
    %v11994 = vpop.f32.mrf.mxu0
    %v11995 = vadd.f32 %v11981, %v11994
    %11996 = vdwg.mxu0
    %11997 = vmatpush.bf16.msra.mxu0 %v10402
    %11998 = vmatpush.bf16.msra.mxu0 %v10394
    %11999 = vmatpush.bf16.msra.mxu0 %v10386
    %12000 = vmatpush.bf16.msra.mxu0 %v10378
    %12001 = vmatpush.bf16.msra.mxu0 %v10370
    %12002 = vmatpush.bf16.msra.mxu0 %v10362
    %12003 = vmatpush.bf16.msra.mxu0 %v10354
    %12004 = vmatpush.bf16.msra.mxu0 %v10346
    %12005 = vmatmul.bf16.gmra.mxu0 %v8076
    %v12006 = vpop.f32.mrf.mxu0
    %v12007 = vadd.f32 %v11993, %v12006
    %v12008 = vpop.f32.mrf.mxu0
    %v12009 = vadd.f32 %v11995, %v12008
    %12010 = vdwg.mxu0
    %12011 = vmatpush.bf16.msra.mxu0 %v10466
    %12012 = vmatpush.bf16.msra.mxu0 %v10458
    %12013 = vmatpush.bf16.msra.mxu0 %v10450
    %12014 = vmatpush.bf16.msra.mxu0 %v10442
    %12015 = vmatpush.bf16.msra.mxu0 %v10434
    %12016 = vmatpush.bf16.msra.mxu0 %v10426
    %12017 = vmatpush.bf16.msra.mxu0 %v10418
    %12018 = vmatpush.bf16.msra.mxu0 %v10410
    %12019 = vmatmul.bf16.gmra.mxu0 %v8077
    %v12020 = vpop.f32.mrf.mxu0
    %v12021 = vadd.f32 %v12007, %v12020
    %v12022 = vpop.f32.mrf.mxu0
    %v12023 = vadd.f32 %v12009, %v12022
    %12024 = vdwg.mxu0
    %12025 = vmatpush.bf16.msra.mxu0 %v10530
    %12026 = vmatpush.bf16.msra.mxu0 %v10522
    %12027 = vmatpush.bf16.msra.mxu0 %v10514
    %12028 = vmatpush.bf16.msra.mxu0 %v10506
    %12029 = vmatpush.bf16.msra.mxu0 %v10498
    %12030 = vmatpush.bf16.msra.mxu0 %v10490
    %12031 = vmatpush.bf16.msra.mxu0 %v10482
    %12032 = vmatpush.bf16.msra.mxu0 %v10474
    %12033 = vmatmul.bf16.gmra.mxu0 %v8078
    %v12034 = vpop.f32.mrf.mxu0
    %v12035 = vadd.f32 %v12021, %v12034
    %v12036 = vpop.f32.mrf.mxu0
    %v12037 = vadd.f32 %v12023, %v12036
    %12038 = vdwg.mxu0
    %12039 = vmatpush.bf16.msra.mxu0 %v10594
    %12040 = vmatpush.bf16.msra.mxu0 %v10586
    %12041 = vmatpush.bf16.msra.mxu0 %v10578
    %12042 = vmatpush.bf16.msra.mxu0 %v10570
    %12043 = vmatpush.bf16.msra.mxu0 %v10562
    %12044 = vmatpush.bf16.msra.mxu0 %v10554
    %12045 = vmatpush.bf16.msra.mxu0 %v10546
    %12046 = vmatpush.bf16.msra.mxu0 %v10538
    %12047 = vmatmul.bf16.gmra.mxu0 %v8079
    %v12048 = vpop.f32.mrf.mxu0
    %v12049 = vadd.f32 %v12035, %v12048
    %v12050 = vpop.f32.mrf.mxu0
    %v12051 = vadd.f32 %v12037, %v12050
    %12052 = vdwg.mxu0
    %12053 = vmatpush.bf16.msra.mxu0 %v10658
    %12054 = vmatpush.bf16.msra.mxu0 %v10650
    %12055 = vmatpush.bf16.msra.mxu0 %v10642
    %12056 = vmatpush.bf16.msra.mxu0 %v10634
    %12057 = vmatpush.bf16.msra.mxu0 %v10626
    %12058 = vmatpush.bf16.msra.mxu0 %v10618
    %12059 = vmatpush.bf16.msra.mxu0 %v10610
    %12060 = vmatpush.bf16.msra.mxu0 %v10602
    %12061 = vmatmul.bf16.gmra.mxu0 %v8080
    %v12062 = vpop.f32.mrf.mxu0
    %v12063 = vadd.f32 %v12049, %v12062
    %v12064 = vpop.f32.mrf.mxu0
    %v12065 = vadd.f32 %v12051, %v12064
    %12066 = vdwg.mxu0
    %v12067 = vmul.f32 %v11279, 0.5
    %v12068 = vmul.f32 %v11391, 0.5
    %v12069 = vmul.f32 %v11503, 0.5
    %v12070 = vmul.f32 %v11615, 0.5
    %v12071 = vmul.f32 %v11727, 0.5
    %v12072 = vmul.f32 %v11839, 0.5
    %v12073 = vmul.f32 %v11951, 0.5
    %v12074 = vmul.f32 %v12063, 0.5
    %v12075 = vmul.f32 %v11281, 0.5
    %v12076 = vmul.f32 %v11393, 0.5
    %v12077 = vmul.f32 %v11505, 0.5
    %v12078 = vmul.f32 %v11617, 0.5
    %v12079 = vmul.f32 %v11729, 0.5
    %v12080 = vmul.f32 %v11841, 0.5
    %v12081 = vmul.f32 %v11953, 0.5
    %v12082 = vmul.f32 %v12065, 0.5
    %v12083 = vtanh.pop %v12067
    %v12084 = vtanh.pop %v12068
    %v12085 = vtanh.pop %v12069
    %v12086 = vtanh.pop %v12070
    %v12087 = vtanh.pop %v12071
    %v12088 = vtanh.pop %v12072
    %v12089 = vtanh.pop %v12073
    %v12090 = vtanh.pop %v12074
    %v12091 = vtanh.pop %v12075
    %v12092 = vtanh.pop %v12076
    %v12093 = vtanh.pop %v12077
    %v12094 = vtanh.pop %v12078
    %v12095 = vtanh.pop %v12079
    %v12096 = vtanh.pop %v12080
    %v12097 = vtanh.pop %v12081
    %v12098 = vtanh.pop %v12082
    %v12099 = vmul.f32 %v12083, 0.5
    %v12100 = vmul.f32 %v12084, 0.5
    %v12101 = vmul.f32 %v12085, 0.5
    %v12102 = vmul.f32 %v12086, 0.5
    %v12103 = vmul.f32 %v12087, 0.5
    %v12104 = vmul.f32 %v12088, 0.5
    %v12105 = vmul.f32 %v12089, 0.5
    %v12106 = vmul.f32 %v12090, 0.5
    %v12107 = vmul.f32 %v12091, 0.5
    %v12108 = vmul.f32 %v12092, 0.5
    %v12109 = vmul.f32 %v12093, 0.5
    %v12110 = vmul.f32 %v12094, 0.5
    %v12111 = vmul.f32 %v12095, 0.5
    %v12112 = vmul.f32 %v12096, 0.5
    %v12113 = vmul.f32 %v12097, 0.5
    %v12114 = vmul.f32 %v12098, 0.5
    %v12115 = vadd.f32 %v12099, 0.5
    %v12116 = vadd.f32 %v12100, 0.5
    %v12117 = vadd.f32 %v12101, 0.5
    %v12118 = vadd.f32 %v12102, 0.5
    %v12119 = vadd.f32 %v12103, 0.5
    %v12120 = vadd.f32 %v12104, 0.5
    %v12121 = vadd.f32 %v12105, 0.5
    %v12122 = vadd.f32 %v12106, 0.5
    %v12123 = vadd.f32 %v12107, 0.5
    %v12124 = vadd.f32 %v12108, 0.5
    %v12125 = vadd.f32 %v12109, 0.5
    %v12126 = vadd.f32 %v12110, 0.5
    %v12127 = vadd.f32 %v12111, 0.5
    %v12128 = vadd.f32 %v12112, 0.5
    %v12129 = vadd.f32 %v12113, 0.5
    %v12130 = vadd.f32 %v12114, 0.5
    %v12131 = vmul.f32 %v11279, %v12115
    %v12132 = vmul.f32 %v11391, %v12116
    %v12133 = vmul.f32 %v11503, %v12117
    %v12134 = vmul.f32 %v11615, %v12118
    %v12135 = vmul.f32 %v11727, %v12119
    %v12136 = vmul.f32 %v11839, %v12120
    %v12137 = vmul.f32 %v11951, %v12121
    %v12138 = vmul.f32 %v12063, %v12122
    %v12139 = vmul.f32 %v11281, %v12123
    %v12140 = vmul.f32 %v11393, %v12124
    %v12141 = vmul.f32 %v11505, %v12125
    %v12142 = vmul.f32 %v11617, %v12126
    %v12143 = vmul.f32 %v11729, %v12127
    %v12144 = vmul.f32 %v11841, %v12128
    %v12145 = vmul.f32 %v11953, %v12129
    %v12146 = vmul.f32 %v12065, %v12130
    %v12147 = vpack.c.bf16 %v12139, %v12131
    %v12148 = vpack.c.bf16 %v12140, %v12132
    %v12149 = vpack.c.bf16 %v12141, %v12133
    %v12150 = vpack.c.bf16 %v12142, %v12134
    %v12151 = vpack.c.bf16 %v12143, %v12135
    %v12152 = vpack.c.bf16 %v12144, %v12136
    %v12153 = vpack.c.bf16 %v12145, %v12137
    %v12154 = vpack.c.bf16 %v12146, %v12138
    %v12155 = vld [vmem:[#allocation11] sm:$0xf]
    %v12156 = vld [vmem:[#allocation11 + $0x4] sm:$0xf]
    %v12157 = vld [vmem:[#allocation11 + $0x8] sm:$0xf]
    %v12158 = vld [vmem:[#allocation11 + $0xc] sm:$0xf]
    %v12159 = vld [vmem:[#allocation11 + $0x10] sm:$0xf]
    %v12160 = vld [vmem:[#allocation11 + $0x14] sm:$0xf]
    %v12161 = vld [vmem:[#allocation11 + $0x18] sm:$0xf]
    %v12162 = vld [vmem:[#allocation11 + $0x1c] sm:$0xf]
    %v12163 = vld [vmem:[#allocation11 + $0x20] sm:$0xf]
    %v12164 = vld [vmem:[#allocation11 + $0x24] sm:$0xf]
    %v12165 = vld [vmem:[#allocation11 + $0x28] sm:$0xf]
    %v12166 = vld [vmem:[#allocation11 + $0x2c] sm:$0xf]
    %v12167 = vld [vmem:[#allocation11 + $0x30] sm:$0xf]
    %v12168 = vld [vmem:[#allocation11 + $0x34] sm:$0xf]
    %v12169 = vld [vmem:[#allocation11 + $0x38] sm:$0xf]
    %v12170 = vld [vmem:[#allocation11 + $0x3c] sm:$0xf]
    %v12171 = vld [vmem:[#allocation11 + $0x40] sm:$0xf]
    %v12172 = vld [vmem:[#allocation11 + $0x44] sm:$0xf]
    %v12173 = vld [vmem:[#allocation11 + $0x48] sm:$0xf]
    %v12174 = vld [vmem:[#allocation11 + $0x4c] sm:$0xf]
    %v12175 = vld [vmem:[#allocation11 + $0x50] sm:$0xf]
    %v12176 = vld [vmem:[#allocation11 + $0x54] sm:$0xf]
    %v12177 = vld [vmem:[#allocation11 + $0x58] sm:$0xf]
    %v12178 = vld [vmem:[#allocation11 + $0x5c] sm:$0xf]
    %v12179 = vld [vmem:[#allocation11 + $0x60] sm:$0xf]
    %v12180 = vld [vmem:[#allocation11 + $0x64] sm:$0xf]
    %v12181 = vld [vmem:[#allocation11 + $0x68] sm:$0xf]
    %v12182 = vld [vmem:[#allocation11 + $0x6c] sm:$0xf]
    %v12183 = vld [vmem:[#allocation11 + $0x70] sm:$0xf]
    %v12184 = vld [vmem:[#allocation11 + $0x74] sm:$0xf]
    %v12185 = vld [vmem:[#allocation11 + $0x78] sm:$0xf]
    %v12186 = vld [vmem:[#allocation11 + $0x7c] sm:$0xf]
    %v12187 = vld [vmem:[#allocation11 + $0x80] sm:$0xf]
    %v12188 = vld [vmem:[#allocation11 + $0x84] sm:$0xf]
    %v12189 = vld [vmem:[#allocation11 + $0x88] sm:$0xf]
    %v12190 = vld [vmem:[#allocation11 + $0x8c] sm:$0xf]
    %v12191 = vld [vmem:[#allocation11 + $0x90] sm:$0xf]
    %v12192 = vld [vmem:[#allocation11 + $0x94] sm:$0xf]
    %v12193 = vld [vmem:[#allocation11 + $0x98] sm:$0xf]
    %v12194 = vld [vmem:[#allocation11 + $0x9c] sm:$0xf]
    %v12195 = vld [vmem:[#allocation11 + $0xa0] sm:$0xf]
    %v12196 = vld [vmem:[#allocation11 + $0xa4] sm:$0xf]
    %v12197 = vld [vmem:[#allocation11 + $0xa8] sm:$0xf]
    %v12198 = vld [vmem:[#allocation11 + $0xac] sm:$0xf]
    %v12199 = vld [vmem:[#allocation11 + $0xb0] sm:$0xf]
    %v12200 = vld [vmem:[#allocation11 + $0xb4] sm:$0xf]
    %v12201 = vld [vmem:[#allocation11 + $0xb8] sm:$0xf]
    %v12202 = vld [vmem:[#allocation11 + $0xbc] sm:$0xf]
    %v12203 = vld [vmem:[#allocation11 + $0xc0] sm:$0xf]
    %v12204 = vld [vmem:[#allocation11 + $0xc4] sm:$0xf]
    %v12205 = vld [vmem:[#allocation11 + $0xc8] sm:$0xf]
    %v12206 = vld [vmem:[#allocation11 + $0xcc] sm:$0xf]
    %v12207 = vld [vmem:[#allocation11 + $0xd0] sm:$0xf]
    %v12208 = vld [vmem:[#allocation11 + $0xd4] sm:$0xf]
    %v12209 = vld [vmem:[#allocation11 + $0xd8] sm:$0xf]
    %v12210 = vld [vmem:[#allocation11 + $0xdc] sm:$0xf]
    %v12211 = vld [vmem:[#allocation11 + $0xe0] sm:$0xf]
    %v12212 = vld [vmem:[#allocation11 + $0xe4] sm:$0xf]
    %v12213 = vld [vmem:[#allocation11 + $0xe8] sm:$0xf]
    %v12214 = vld [vmem:[#allocation11 + $0xec] sm:$0xf]
    %v12215 = vld [vmem:[#allocation11 + $0xf0] sm:$0xf]
    %v12216 = vld [vmem:[#allocation11 + $0xf4] sm:$0xf]
    %v12217 = vld [vmem:[#allocation11 + $0xf8] sm:$0xf]
    %v12218 = vld [vmem:[#allocation11 + $0xfc] sm:$0xf]
    %v12219 = vld [vmem:[#allocation11 + $0x100] sm:$0xf]
    %v12220 = vld [vmem:[#allocation11 + $0x104] sm:$0xf]
    %v12221 = vld [vmem:[#allocation11 + $0x108] sm:$0xf]
    %v12222 = vld [vmem:[#allocation11 + $0x10c] sm:$0xf]
    %v12223 = vld [vmem:[#allocation11 + $0x110] sm:$0xf]
    %v12224 = vld [vmem:[#allocation11 + $0x114] sm:$0xf]
    %v12225 = vld [vmem:[#allocation11 + $0x118] sm:$0xf]
    %v12226 = vld [vmem:[#allocation11 + $0x11c] sm:$0xf]
    %v12227 = vld [vmem:[#allocation11 + $0x120] sm:$0xf]
    %v12228 = vld [vmem:[#allocation11 + $0x124] sm:$0xf]
    %v12229 = vld [vmem:[#allocation11 + $0x128] sm:$0xf]
    %v12230 = vld [vmem:[#allocation11 + $0x12c] sm:$0xf]
    %v12231 = vld [vmem:[#allocation11 + $0x130] sm:$0xf]
    %v12232 = vld [vmem:[#allocation11 + $0x134] sm:$0xf]
    %v12233 = vld [vmem:[#allocation11 + $0x138] sm:$0xf]
    %v12234 = vld [vmem:[#allocation11 + $0x13c] sm:$0xf]
    %v12235 = vld [vmem:[#allocation11 + $0x140] sm:$0xf]
    %v12236 = vld [vmem:[#allocation11 + $0x144] sm:$0xf]
    %v12237 = vld [vmem:[#allocation11 + $0x148] sm:$0xf]
    %v12238 = vld [vmem:[#allocation11 + $0x14c] sm:$0xf]
    %v12239 = vld [vmem:[#allocation11 + $0x150] sm:$0xf]
    %v12240 = vld [vmem:[#allocation11 + $0x154] sm:$0xf]
    %v12241 = vld [vmem:[#allocation11 + $0x158] sm:$0xf]
    %v12242 = vld [vmem:[#allocation11 + $0x15c] sm:$0xf]
    %v12243 = vld [vmem:[#allocation11 + $0x160] sm:$0xf]
    %v12244 = vld [vmem:[#allocation11 + $0x164] sm:$0xf]
    %v12245 = vld [vmem:[#allocation11 + $0x168] sm:$0xf]
    %v12246 = vld [vmem:[#allocation11 + $0x16c] sm:$0xf]
    %v12247 = vld [vmem:[#allocation11 + $0x170] sm:$0xf]
    %v12248 = vld [vmem:[#allocation11 + $0x174] sm:$0xf]
    %v12249 = vld [vmem:[#allocation11 + $0x178] sm:$0xf]
    %v12250 = vld [vmem:[#allocation11 + $0x17c] sm:$0xf]
    %v12251 = vld [vmem:[#allocation11 + $0x180] sm:$0xf]
    %v12252 = vld [vmem:[#allocation11 + $0x184] sm:$0xf]
    %v12253 = vld [vmem:[#allocation11 + $0x188] sm:$0xf]
    %v12254 = vld [vmem:[#allocation11 + $0x18c] sm:$0xf]
    %v12255 = vld [vmem:[#allocation11 + $0x190] sm:$0xf]
    %v12256 = vld [vmem:[#allocation11 + $0x194] sm:$0xf]
    %v12257 = vld [vmem:[#allocation11 + $0x198] sm:$0xf]
    %v12258 = vld [vmem:[#allocation11 + $0x19c] sm:$0xf]
    %v12259 = vld [vmem:[#allocation11 + $0x1a0] sm:$0xf]
    %v12260 = vld [vmem:[#allocation11 + $0x1a4] sm:$0xf]
    %v12261 = vld [vmem:[#allocation11 + $0x1a8] sm:$0xf]
    %v12262 = vld [vmem:[#allocation11 + $0x1ac] sm:$0xf]
    %v12263 = vld [vmem:[#allocation11 + $0x1b0] sm:$0xf]
    %v12264 = vld [vmem:[#allocation11 + $0x1b4] sm:$0xf]
    %v12265 = vld [vmem:[#allocation11 + $0x1b8] sm:$0xf]
    %v12266 = vld [vmem:[#allocation11 + $0x1bc] sm:$0xf]
    %v12267 = vld [vmem:[#allocation11 + $0x1c0] sm:$0xf]
    %v12268 = vld [vmem:[#allocation11 + $0x1c4] sm:$0xf]
    %v12269 = vld [vmem:[#allocation11 + $0x1c8] sm:$0xf]
    %v12270 = vld [vmem:[#allocation11 + $0x1cc] sm:$0xf]
    %v12271 = vld [vmem:[#allocation11 + $0x1d0] sm:$0xf]
    %v12272 = vld [vmem:[#allocation11 + $0x1d4] sm:$0xf]
    %v12273 = vld [vmem:[#allocation11 + $0x1d8] sm:$0xf]
    %v12274 = vld [vmem:[#allocation11 + $0x1dc] sm:$0xf]
    %v12275 = vld [vmem:[#allocation11 + $0x1e0] sm:$0xf]
    %v12276 = vld [vmem:[#allocation11 + $0x1e4] sm:$0xf]
    %v12277 = vld [vmem:[#allocation11 + $0x1e8] sm:$0xf]
    %v12278 = vld [vmem:[#allocation11 + $0x1ec] sm:$0xf]
    %v12279 = vld [vmem:[#allocation11 + $0x1f0] sm:$0xf]
    %v12280 = vld [vmem:[#allocation11 + $0x1f4] sm:$0xf]
    %v12281 = vld [vmem:[#allocation11 + $0x1f8] sm:$0xf]
    %v12282 = vld [vmem:[#allocation11 + $0x1fc] sm:$0xf]
    %v12283 = vld [vmem:[#allocation13] sm:$0x1]
    %v12285 = vperm.slane %v12283, 0
    %v12415 = vunpack.c.l.b16 %v12155
    %v12416 = vunpack.c.l.b16 %v12156
    %v12417 = vunpack.c.l.b16 %v12157
    %v12418 = vunpack.c.l.b16 %v12158
    %v12419 = vunpack.c.l.b16 %v12159
    %v12420 = vunpack.c.l.b16 %v12160
    %v12421 = vunpack.c.l.b16 %v12161
    %v12422 = vunpack.c.l.b16 %v12162
    %v12423 = vunpack.c.l.b16 %v12163
    %v12424 = vunpack.c.l.b16 %v12164
    %v12425 = vunpack.c.l.b16 %v12165
    %v12426 = vunpack.c.l.b16 %v12166
    %v12427 = vunpack.c.l.b16 %v12167
    %v12428 = vunpack.c.l.b16 %v12168
    %v12429 = vunpack.c.l.b16 %v12169
    %v12430 = vunpack.c.l.b16 %v12170
    %v12431 = vunpack.c.l.b16 %v12171
    %v12432 = vunpack.c.l.b16 %v12172
    %v12433 = vunpack.c.l.b16 %v12173
    %v12434 = vunpack.c.l.b16 %v12174
    %v12435 = vunpack.c.l.b16 %v12175
    %v12436 = vunpack.c.l.b16 %v12176
    %v12437 = vunpack.c.l.b16 %v12177
    %v12438 = vunpack.c.l.b16 %v12178
    %v12439 = vunpack.c.l.b16 %v12179
    %v12440 = vunpack.c.l.b16 %v12180
    %v12441 = vunpack.c.l.b16 %v12181
    %v12442 = vunpack.c.l.b16 %v12182
    %v12443 = vunpack.c.l.b16 %v12183
    %v12444 = vunpack.c.l.b16 %v12184
    %v12445 = vunpack.c.l.b16 %v12185
    %v12446 = vunpack.c.l.b16 %v12186
    %v12447 = vunpack.c.l.b16 %v12187
    %v12448 = vunpack.c.l.b16 %v12188
    %v12449 = vunpack.c.l.b16 %v12189
    %v12450 = vunpack.c.l.b16 %v12190
    %v12451 = vunpack.c.l.b16 %v12191
    %v12452 = vunpack.c.l.b16 %v12192
    %v12453 = vunpack.c.l.b16 %v12193
    %v12454 = vunpack.c.l.b16 %v12194
    %v12455 = vunpack.c.l.b16 %v12195
    %v12456 = vunpack.c.l.b16 %v12196
    %v12457 = vunpack.c.l.b16 %v12197
    %v12458 = vunpack.c.l.b16 %v12198
    %v12459 = vunpack.c.l.b16 %v12199
    %v12460 = vunpack.c.l.b16 %v12200
    %v12461 = vunpack.c.l.b16 %v12201
    %v12462 = vunpack.c.l.b16 %v12202
    %v12463 = vunpack.c.l.b16 %v12203
    %v12464 = vunpack.c.l.b16 %v12204
    %v12465 = vunpack.c.l.b16 %v12205
    %v12466 = vunpack.c.l.b16 %v12206
    %v12467 = vunpack.c.l.b16 %v12207
    %v12468 = vunpack.c.l.b16 %v12208
    %v12469 = vunpack.c.l.b16 %v12209
    %v12470 = vunpack.c.l.b16 %v12210
    %v12471 = vunpack.c.l.b16 %v12211
    %v12472 = vunpack.c.l.b16 %v12212
    %v12473 = vunpack.c.l.b16 %v12213
    %v12474 = vunpack.c.l.b16 %v12214
    %v12475 = vunpack.c.l.b16 %v12215
    %v12476 = vunpack.c.l.b16 %v12216
    %v12477 = vunpack.c.l.b16 %v12217
    %v12478 = vunpack.c.l.b16 %v12218
    %v12479 = vunpack.c.l.b16 %v12219
    %v12480 = vunpack.c.l.b16 %v12220
    %v12481 = vunpack.c.l.b16 %v12221
    %v12482 = vunpack.c.l.b16 %v12222
    %v12483 = vunpack.c.l.b16 %v12223
    %v12484 = vunpack.c.l.b16 %v12224
    %v12485 = vunpack.c.l.b16 %v12225
    %v12486 = vunpack.c.l.b16 %v12226
    %v12487 = vunpack.c.l.b16 %v12227
    %v12488 = vunpack.c.l.b16 %v12228
    %v12489 = vunpack.c.l.b16 %v12229
    %v12490 = vunpack.c.l.b16 %v12230
    %v12491 = vunpack.c.l.b16 %v12231
    %v12492 = vunpack.c.l.b16 %v12232
    %v12493 = vunpack.c.l.b16 %v12233
    %v12494 = vunpack.c.l.b16 %v12234
    %v12495 = vunpack.c.l.b16 %v12235
    %v12496 = vunpack.c.l.b16 %v12236
    %v12497 = vunpack.c.l.b16 %v12237
    %v12498 = vunpack.c.l.b16 %v12238
    %v12499 = vunpack.c.l.b16 %v12239
    %v12500 = vunpack.c.l.b16 %v12240
    %v12501 = vunpack.c.l.b16 %v12241
    %v12502 = vunpack.c.l.b16 %v12242
    %v12503 = vunpack.c.l.b16 %v12243
    %v12504 = vunpack.c.l.b16 %v12244
    %v12505 = vunpack.c.l.b16 %v12245
    %v12506 = vunpack.c.l.b16 %v12246
    %v12507 = vunpack.c.l.b16 %v12247
    %v12508 = vunpack.c.l.b16 %v12248
    %v12509 = vunpack.c.l.b16 %v12249
    %v12510 = vunpack.c.l.b16 %v12250
    %v12511 = vunpack.c.l.b16 %v12251
    %v12512 = vunpack.c.l.b16 %v12252
    %v12513 = vunpack.c.l.b16 %v12253
    %v12514 = vunpack.c.l.b16 %v12254
    %v12515 = vunpack.c.l.b16 %v12255
    %v12516 = vunpack.c.l.b16 %v12256
    %v12517 = vunpack.c.l.b16 %v12257
    %v12518 = vunpack.c.l.b16 %v12258
    %v12519 = vunpack.c.l.b16 %v12259
    %v12520 = vunpack.c.l.b16 %v12260
    %v12521 = vunpack.c.l.b16 %v12261
    %v12522 = vunpack.c.l.b16 %v12262
    %v12523 = vunpack.c.l.b16 %v12263
    %v12524 = vunpack.c.l.b16 %v12264
    %v12525 = vunpack.c.l.b16 %v12265
    %v12526 = vunpack.c.l.b16 %v12266
    %v12527 = vunpack.c.l.b16 %v12267
    %v12528 = vunpack.c.l.b16 %v12268
    %v12529 = vunpack.c.l.b16 %v12269
    %v12530 = vunpack.c.l.b16 %v12270
    %v12531 = vunpack.c.l.b16 %v12271
    %v12532 = vunpack.c.l.b16 %v12272
    %v12533 = vunpack.c.l.b16 %v12273
    %v12534 = vunpack.c.l.b16 %v12274
    %v12535 = vunpack.c.l.b16 %v12275
    %v12536 = vunpack.c.l.b16 %v12276
    %v12537 = vunpack.c.l.b16 %v12277
    %v12538 = vunpack.c.l.b16 %v12278
    %v12539 = vunpack.c.l.b16 %v12279
    %v12540 = vunpack.c.l.b16 %v12280
    %v12541 = vunpack.c.l.b16 %v12281
    %v12542 = vunpack.c.l.b16 %v12282
    %v12543 = vpack.c.b16 %v12416, %v12415
    %v12544 = vpack.c.b16 %v12418, %v12417
    %v12545 = vpack.c.b16 %v12420, %v12419
    %v12546 = vpack.c.b16 %v12422, %v12421
    %v12547 = vpack.c.b16 %v12424, %v12423
    %v12548 = vpack.c.b16 %v12426, %v12425
    %v12549 = vpack.c.b16 %v12428, %v12427
    %v12550 = vpack.c.b16 %v12430, %v12429
    %v12551 = vpack.c.b16 %v12432, %v12431
    %v12552 = vpack.c.b16 %v12434, %v12433
    %v12553 = vpack.c.b16 %v12436, %v12435
    %v12554 = vpack.c.b16 %v12438, %v12437
    %v12555 = vpack.c.b16 %v12440, %v12439
    %v12556 = vpack.c.b16 %v12442, %v12441
    %v12557 = vpack.c.b16 %v12444, %v12443
    %v12558 = vpack.c.b16 %v12446, %v12445
    %v12559 = vpack.c.b16 %v12448, %v12447
    %v12560 = vpack.c.b16 %v12450, %v12449
    %v12561 = vpack.c.b16 %v12452, %v12451
    %v12562 = vpack.c.b16 %v12454, %v12453
    %v12563 = vpack.c.b16 %v12456, %v12455
    %v12564 = vpack.c.b16 %v12458, %v12457
    %v12565 = vpack.c.b16 %v12460, %v12459
    %v12566 = vpack.c.b16 %v12462, %v12461
    %v12567 = vpack.c.b16 %v12464, %v12463
    %v12568 = vpack.c.b16 %v12466, %v12465
    %v12569 = vpack.c.b16 %v12468, %v12467
    %v12570 = vpack.c.b16 %v12470, %v12469
    %v12571 = vpack.c.b16 %v12472, %v12471
    %v12572 = vpack.c.b16 %v12474, %v12473
    %v12573 = vpack.c.b16 %v12476, %v12475
    %v12574 = vpack.c.b16 %v12478, %v12477
    %v12575 = vpack.c.b16 %v12480, %v12479
    %v12576 = vpack.c.b16 %v12482, %v12481
    %v12577 = vpack.c.b16 %v12484, %v12483
    %v12578 = vpack.c.b16 %v12486, %v12485
    %v12579 = vpack.c.b16 %v12488, %v12487
    %v12580 = vpack.c.b16 %v12490, %v12489
    %v12581 = vpack.c.b16 %v12492, %v12491
    %v12582 = vpack.c.b16 %v12494, %v12493
    %v12583 = vpack.c.b16 %v12496, %v12495
    %v12584 = vpack.c.b16 %v12498, %v12497
    %v12585 = vpack.c.b16 %v12500, %v12499
    %v12586 = vpack.c.b16 %v12502, %v12501
    %v12587 = vpack.c.b16 %v12504, %v12503
    %v12588 = vpack.c.b16 %v12506, %v12505
    %v12589 = vpack.c.b16 %v12508, %v12507
    %v12590 = vpack.c.b16 %v12510, %v12509
    %v12591 = vpack.c.b16 %v12512, %v12511
    %v12592 = vpack.c.b16 %v12514, %v12513
    %v12593 = vpack.c.b16 %v12516, %v12515
    %v12594 = vpack.c.b16 %v12518, %v12517
    %v12595 = vpack.c.b16 %v12520, %v12519
    %v12596 = vpack.c.b16 %v12522, %v12521
    %v12597 = vpack.c.b16 %v12524, %v12523
    %v12598 = vpack.c.b16 %v12526, %v12525
    %v12599 = vpack.c.b16 %v12528, %v12527
    %v12600 = vpack.c.b16 %v12530, %v12529
    %v12601 = vpack.c.b16 %v12532, %v12531
    %v12602 = vpack.c.b16 %v12534, %v12533
    %v12603 = vpack.c.b16 %v12536, %v12535
    %v12604 = vpack.c.b16 %v12538, %v12537
    %v12605 = vpack.c.b16 %v12540, %v12539
    %v12606 = vpack.c.b16 %v12542, %v12541
    %12671 = vmatpush.bf16.msra.mxu0 %v12550
    %12672 = vmatpush.bf16.msra.mxu0 %v12549
    %12673 = vmatpush.bf16.msra.mxu0 %v12548
    %12674 = vmatpush.bf16.msra.mxu0 %v12547
    %12675 = vmatpush.bf16.msra.mxu0 %v12546
    %12676 = vmatpush.bf16.msra.mxu0 %v12545
    %12677 = vmatpush.bf16.msra.mxu0 %v12544
    %12678 = vmatpush.bf16.msra.mxu0 %v12543
    %12679 = vmatmul.bf16.gmra.mxu0 %v12147
    %v12680 = vpop.f32.mrf.mxu0
    %v12681 = vadd.f32 %v12285, %v12680
    %v12682 = vpop.f32.mrf.mxu0
    %v12683 = vadd.f32 %v12285, %v12682
    %12684 = vdwg.mxu0
    %12685 = vmatpush.bf16.msra.mxu0 %v12558
    %12686 = vmatpush.bf16.msra.mxu0 %v12557
    %12687 = vmatpush.bf16.msra.mxu0 %v12556
    %12688 = vmatpush.bf16.msra.mxu0 %v12555
    %12689 = vmatpush.bf16.msra.mxu0 %v12554
    %12690 = vmatpush.bf16.msra.mxu0 %v12553
    %12691 = vmatpush.bf16.msra.mxu0 %v12552
    %12692 = vmatpush.bf16.msra.mxu0 %v12551
    %12693 = vmatmul.bf16.gmra.mxu0 %v12148
    %v12694 = vpop.f32.mrf.mxu0
    %v12695 = vadd.f32 %v12681, %v12694
    %v12696 = vpop.f32.mrf.mxu0
    %v12697 = vadd.f32 %v12683, %v12696
    %12698 = vdwg.mxu0
    %12699 = vmatpush.bf16.msra.mxu0 %v12566
    %12700 = vmatpush.bf16.msra.mxu0 %v12565
    %12701 = vmatpush.bf16.msra.mxu0 %v12564
    %12702 = vmatpush.bf16.msra.mxu0 %v12563
    %12703 = vmatpush.bf16.msra.mxu0 %v12562
    %12704 = vmatpush.bf16.msra.mxu0 %v12561
    %12705 = vmatpush.bf16.msra.mxu0 %v12560
    %12706 = vmatpush.bf16.msra.mxu0 %v12559
    %12707 = vmatmul.bf16.gmra.mxu0 %v12149
    %v12708 = vpop.f32.mrf.mxu0
    %v12709 = vadd.f32 %v12695, %v12708
    %v12710 = vpop.f32.mrf.mxu0
    %v12711 = vadd.f32 %v12697, %v12710
    %12712 = vdwg.mxu0
    %12713 = vmatpush.bf16.msra.mxu0 %v12574
    %12714 = vmatpush.bf16.msra.mxu0 %v12573
    %12715 = vmatpush.bf16.msra.mxu0 %v12572
    %12716 = vmatpush.bf16.msra.mxu0 %v12571
    %12717 = vmatpush.bf16.msra.mxu0 %v12570
    %12718 = vmatpush.bf16.msra.mxu0 %v12569
    %12719 = vmatpush.bf16.msra.mxu0 %v12568
    %12720 = vmatpush.bf16.msra.mxu0 %v12567
    %12721 = vmatmul.bf16.gmra.mxu0 %v12150
    %v12722 = vpop.f32.mrf.mxu0
    %v12723 = vadd.f32 %v12709, %v12722
    %v12724 = vpop.f32.mrf.mxu0
    %v12725 = vadd.f32 %v12711, %v12724
    %12726 = vdwg.mxu0
    %12727 = vmatpush.bf16.msra.mxu0 %v12582
    %12728 = vmatpush.bf16.msra.mxu0 %v12581
    %12729 = vmatpush.bf16.msra.mxu0 %v12580
    %12730 = vmatpush.bf16.msra.mxu0 %v12579
    %12731 = vmatpush.bf16.msra.mxu0 %v12578
    %12732 = vmatpush.bf16.msra.mxu0 %v12577
    %12733 = vmatpush.bf16.msra.mxu0 %v12576
    %12734 = vmatpush.bf16.msra.mxu0 %v12575
    %12735 = vmatmul.bf16.gmra.mxu0 %v12151
    %v12736 = vpop.f32.mrf.mxu0
    %v12737 = vadd.f32 %v12723, %v12736
    %v12738 = vpop.f32.mrf.mxu0
    %v12739 = vadd.f32 %v12725, %v12738
    %12740 = vdwg.mxu0
    %12741 = vmatpush.bf16.msra.mxu0 %v12590
    %12742 = vmatpush.bf16.msra.mxu0 %v12589
    %12743 = vmatpush.bf16.msra.mxu0 %v12588
    %12744 = vmatpush.bf16.msra.mxu0 %v12587
    %12745 = vmatpush.bf16.msra.mxu0 %v12586
    %12746 = vmatpush.bf16.msra.mxu0 %v12585
    %12747 = vmatpush.bf16.msra.mxu0 %v12584
    %12748 = vmatpush.bf16.msra.mxu0 %v12583
    %12749 = vmatmul.bf16.gmra.mxu0 %v12152
    %v12750 = vpop.f32.mrf.mxu0
    %v12751 = vadd.f32 %v12737, %v12750
    %v12752 = vpop.f32.mrf.mxu0
    %v12753 = vadd.f32 %v12739, %v12752
    %12754 = vdwg.mxu0
    %12755 = vmatpush.bf16.msra.mxu0 %v12598
    %12756 = vmatpush.bf16.msra.mxu0 %v12597
    %12757 = vmatpush.bf16.msra.mxu0 %v12596
    %12758 = vmatpush.bf16.msra.mxu0 %v12595
    %12759 = vmatpush.bf16.msra.mxu0 %v12594
    %12760 = vmatpush.bf16.msra.mxu0 %v12593
    %12761 = vmatpush.bf16.msra.mxu0 %v12592
    %12762 = vmatpush.bf16.msra.mxu0 %v12591
    %12763 = vmatmul.bf16.gmra.mxu0 %v12153
    %v12764 = vpop.f32.mrf.mxu0
    %v12765 = vadd.f32 %v12751, %v12764
    %v12766 = vpop.f32.mrf.mxu0
    %v12767 = vadd.f32 %v12753, %v12766
    %12768 = vdwg.mxu0
    %12769 = vmatpush.bf16.msra.mxu0 %v12606
    %12770 = vmatpush.bf16.msra.mxu0 %v12605
    %12771 = vmatpush.bf16.msra.mxu0 %v12604
    %12772 = vmatpush.bf16.msra.mxu0 %v12603
    %12773 = vmatpush.bf16.msra.mxu0 %v12602
    %12774 = vmatpush.bf16.msra.mxu0 %v12601
    %12775 = vmatpush.bf16.msra.mxu0 %v12600
    %12776 = vmatpush.bf16.msra.mxu0 %v12599
    %12777 = vmatmul.bf16.gmra.mxu0 %v12154
    %v12778 = vpop.f32.mrf.mxu0
    %v12779 = vadd.f32 %v12765, %v12778
    %v12780 = vpop.f32.mrf.mxu0
    %v12781 = vadd.f32 %v12767, %v12780
    %12782 = vdwg.mxu0
    %v12783 = vmul.f32 %v12779, 0.5
    %v12784 = vmul.f32 %v12781, 0.5
    %v12785 = vtanh.pop %v12783
    %v12786 = vtanh.pop %v12784
    %v12787 = vmul.f32 %v12785, 0.5
    %v12788 = vmul.f32 %v12786, 0.5
    %v12789 = vadd.f32 %v12787, 0.5
    %v12790 = vadd.f32 %v12788, 0.5
    %v12791 = vmul.f32 %v12779, %v12789
    %v12792 = vmul.f32 %v12781, %v12790
    %v12793 = vmax.f32 %v12791, %v12792
    %v12794 = vrot.slane %v12793, 4
    %v12795 = vmax.f32 %v12793, %v12794
    %v12796 = vrot.slane %v12795, 2
    %v12797 = vmax.f32 %v12795, %v12796
    %v12798 = vrot.slane %v12797, 1
    %v12799 = vmax.f32 %v12797, %v12798
    %v12800 = vsub.f32 %v12791, %v12799
    %v12801 = vsub.f32 %v12792, %v12799
    %v12802 = vmul.f32 %v12800, 1.442695
    %v12803 = vpow.pop %v12802
    %v12804 = vmul.f32 %v12801, 1.442695
    %v12805 = vpow.pop %v12804
    %v12806 = vadd.f32 %v12803, %v12805
    %v12807 = vrot.slane %v12806, 4
    %v12808 = vadd.f32 %v12806, %v12807
    %v12809 = vrot.slane %v12808, 2
    %v12810 = vadd.f32 %v12808, %v12809
    %v12811 = vrot.slane %v12810, 1
    %v12812 = vadd.f32 %v12810, %v12811
    %v12813 = vrcp.pop %v12812
    %v12814 = vmul.f32 %v12812, %v12813
    %v12815 = vsub.f32 1.0, %v12814
    %v12816 = vmul.f32 %v12813, %v12815
    %v12817 = vadd.f32 %v12813, %v12816
    %vm12818 = vweird.f32 %v12812
    %vm12819 = vweird.f32 %v12813
    %vm12820 = vmor %vm12818, %vm12819
    %v12821 = vsel %vm12820, %v12813, %v12817
    %v12822 = vand.u32 2147483647, %v12812
    %vm12823 = vcmp.eq.f32.partialorder %v12822, 8.507059e+37
    %v12824 = vand.u32 %v12812, 2147483648
    %v12825 = vor.u32 1.1754944e-38, %v12824
    %v12826 = vsel %vm12823, %v12825, %v12821
    %v12827 = vmul.f32 %v12803, %v12826
    %v12828 = vmul.f32 %v12805, %v12826
    %12829 = vst [vmem:[#allocation14] sm:$0xff] %v12827
    %12830 = vst [vmem:[#allocation14 + $0x8] sm:$0xff] %v12828
    // Predicated region
    $region58: #{tpu_custom_call.1} parent=1 // pred_check
      _
    $region59: #{tpu_custom_call.1} parent=1 // pred_check_branch
      %12832 = sbr.rel (0) target = $region61
    $region60: #{tpu_custom_call.1} parent=1 // pred_region
      %12834 = vsyncadd [#allocation4], 0
      %s12835 = sshll.u32 [#allocation14], 4
      %s12836 = int_to_ptr.vmem [resolvable:$true] %s12835
      %s12837 = sshll.u32 %s7, 4
      %s12838 = int_to_ptr.hbm [resolvable:$true] %s12837
      %12843 = dma.vmem_to_hbm [thread:$0]  %s12836, 256, %s12838, [#allocation4], 128, 128, 8
    $region61: #{tpu_custom_call.1} parent=1 // pred_fallthru
      _
    // Predicated region
    $region62: #{tpu_custom_call.1} parent=1 // pred_check
      _
    $region63: #{tpu_custom_call.1} parent=1 // pred_check_branch
      %12845 = sbr.rel (0) target = $region65
    $region64: #{tpu_custom_call.1} parent=1 // pred_region
      %12847 = dma.done [#allocation4], 256
    $region65: #{tpu_custom_call.1} parent=1 // pred_fallthru
      _
    %12848 = vsyncpa [#allocation3], 1
    %12849 = vsyncpa [#allocation6], 1
    %12850 = vsyncpa [#allocation9], 1
    %12851 = vsyncpa [#allocation12], 1
    %12852 = vsyncpa [#allocation4], 1

</llo_original>
